<compile_context>
chip_gen: v6e
topology: v6e:2x2x1
jax: 0.10.0
libtpu: 0.0.40
codegen_flags: <defaults>
</compile_context>

<pallas_src>
import jax
import jax.numpy as jnp
from jax.experimental import pallas as pl
from jax.experimental.pallas import tpu as pltpu

EPS = 1e-5
LANES = 128


# ----------------------------------------------------------------------------
# In-kernel helpers (trace-time Python, shared by the fused block kernels)
# ----------------------------------------------------------------------------
def _zero_halo(pad_ref):
    """Zero only the 1-wide halo border of a (Hp, Wp, C) VMEM scratch.

    Done every grid step (4 thin stores) instead of zeroing the whole buffer:
    the interior is fully overwritten each step, and gating on program_id == 0
    would be unsafe when the 'parallel' batch axis is sharded across megacore
    TensorCores (a core may never execute step 0).
    """
    Hp, Wp, C = pad_ref.shape
    z_row = jnp.zeros((1, Wp, C), pad_ref.dtype)
    z_col = jnp.zeros((Hp, 1, C), pad_ref.dtype)
    pad_ref[0:1, :, :] = z_row
    pad_ref[Hp - 1:Hp, :, :] = z_row
    pad_ref[:, 0:1, :] = z_col
    pad_ref[:, Wp - 1:Wp, :] = z_col


def _conv3x3_s1(pad_ref, w_ref, H, W, bias=None):
    """3x3 stride-1 conv over a zero-halo (H+2, W+2, Cin) f32 scratch.

    Three W-shifted slabs are read once each (one sublane realignment per dx,
    instead of nine per-tap misaligned copies); the 9 taps are contiguous
    leading-axis slices.  MXU operands are bf16 (weights pre-cast in the
    wrapper, patches cast here), accumulation is f32.
    """
    cin = pad_ref.shape[-1]
    acc = bias                                    # (1, Cout) f32 or None
    for dx in range(3):
        slab = pad_ref[:, dx:dx + W, :]           # (H+2, W, Cin) f32
        for dy in range(3):
            patch = slab[dy:dy + H].reshape(H * W, cin).astype(jnp.bfloat16)
            part = jnp.dot(patch, w_ref[3 * dy + dx],
                           preferred_element_type=jnp.float32)
            acc = part if acc is None else acc + part
    return acc                                    # (H*W, Cout) f32


# ----------------------------------------------------------------------------
# Fused residual-block kernels (stride 1)
# ----------------------------------------------------------------------------
def _fused_block_body(x_ref, scale1_ref, shift1_ref, w1_ref,
                      scale2_ref, shift2_ref, w2_ref, b2_ref,
                      pw_ref, pb_ref, o_ref, pad1_ref, pad2_ref):
    H, W, cin = x_ref.shape[1], x_ref.shape[2], x_ref.shape[3]
    cout = o_ref.shape[3]

    _zero_halo(pad1_ref)
    _zero_halo(pad2_ref)

    # BN1 (folded scale/shift) + ReLU into the conv1 halo scratch (f32).
    pad1_ref[1:H + 1, 1:W + 1, :] = jnp.maximum(
        x_ref[0] * scale1_ref[...] + shift1_ref[...], 0.0)
    # conv1 (its bias is folded into shift2 in the wrapper).
    h1 = _conv3x3_s1(pad1_ref, w1_ref, H, W)                  # (H*W, cout) f32

    # Dropout2d(p=0.5) between conv1 and BN2 is identity in eval mode.
    # BN2 (folded, incl. conv1 bias) + ReLU into the conv2 halo scratch.
    pad2_ref[1:H + 1, 1:W + 1, :] = jnp.maximum(
        h1 * scale2_ref[...] + shift2_ref[...], 0.0).reshape(H, W, cout)
    h2 = _conv3x3_s1(pad2_ref, w2_ref, H, W, bias=b2_ref[...])

    # Residual: identity, or fused 1x1 projection of the raw block input.
    if pw_ref is None:
        res = x_ref[0].reshape(H * W, cout)
    else:
        res = jnp.dot(x_ref[0].reshape(H * W, cin).astype(jnp.bfloat16),
                      pw_ref[...], preferred_element_type=jnp.float32)
        res = res + pb_ref[...]
    o_ref[0] = (h2 + res).reshape(H, W, cout).astype(o_ref.dtype)


def _res_block_kernel(x_ref, s1, sh1, w1, s2, sh2, w2, b2,
                      o_ref, pad1_ref, pad2_ref):
    _fused_block_body(x_ref, s1, sh1, w1, s2, sh2, w2, b2,
                      None, None, o_ref, pad1_ref, pad2_ref)


def _res_block_proj_kernel(x_ref, s1, sh1, w1, s2, sh2, w2, b2, pw, pb,
                           o_ref, pad1_ref, pad2_ref):
    _fused_block_body(x_ref, s1, sh1, w1, s2, sh2, w2, b2,
                      pw, pb, o_ref, pad1_ref, pad2_ref)


# ----------------------------------------------------------------------------
# Fused block-0 kernel with stride-2 conv1 + 1x1 projection (phase decomposed)
# ----------------------------------------------------------------------------
def _res_block0_s2_kernel(xee_ref, xeo_ref, xoe_ref, xoo_ref,
                          scale1_ref, shift1_ref, w1_ref,
                          scale2_ref, shift2_ref, w2_ref, b2_ref,
                          pw_ref, pb_ref,
                          o_ref,
                          pee_ref, peo_ref, poe_ref, poo_ref, pad2_ref):
    """Stride-2 3x3 conv done exactly via 4 input phases (even/odd rows x cols):
    every tap of the strided conv is a contiguous slice of one phase buffer,
    so no strided gathers are needed inside the kernel."""
    Ho, Wo, cin = xee_ref.shape[1], xee_ref.shape[2], xee_ref.shape[3]
    cout = o_ref.shape[3]
    phase_refs = (pee_ref, peo_ref, poe_ref, poo_ref)
    x_refs = (xee_ref, xeo_ref, xoe_ref, xoo_ref)

    # BN1 (folded) + ReLU per phase (pointwise per channel => phase split exact).
    s1 = scale1_ref[...]
    sh1 = shift1_ref[...]
    for pref, xr in zip(phase_refs, x_refs):
        # Only a low-side halo is needed: stride-2 + pad-1 never reads past the
        # high edge.  Zeroed every step (megacore-safe, 2 thin stores).
        pref[0:1, :, :] = jnp.zeros((1, Wo + 1, cin), jnp.float32)
        pref[:, 0:1, :] = jnp.zeros((Ho + 1, 1, cin), jnp.float32)
        pref[1:Ho + 1, 1:Wo + 1, :] = jnp.maximum(xr[0] * s1 + sh1, 0.0)

    # Tap t = 3*ky + kx of the stride-2 conv -> (phase, row-offset oy, col-offset ox)
    # Phase order: 0=EE, 1=EO, 2=OE, 3=OO.  Taps sharing (phase, ox) reuse one slab.
    slab_taps = (
        (3, 0, ((0, 0), (1, 6))),   # OO, ox=0 : taps (0,0) and (2,0)
        (3, 1, ((0, 2), (1, 8))),   # OO, ox=1 : taps (0,2) and (2,2)
        (2, 1, ((0, 1), (1, 7))),   # OE, ox=1 : taps (0,1) and (2,1)
        (1, 0, ((1, 3),)),          # EO, ox=0 : tap  (1,0)
        (1, 1, ((1, 5),)),          # EO, ox=1 : tap  (1,2)
        (0, 1, ((1, 4),)),          # EE, ox=1 : tap  (1,1)
    )
    acc = None                                       # conv1 bias folded into shift2
    for p, ox, taps in slab_taps:
        slab = phase_refs[p][:, ox:ox + Wo, :]       # (Ho+1, Wo, cin) f32
        for oy, t in taps:
            patch = slab[oy:oy + Ho].reshape(Ho * Wo, cin).astype(jnp.bfloat16)
            part = jnp.dot(patch, w1_ref[t], preferred_element_type=jnp.float32)
            acc = part if acc is None else acc + part
    h1 = acc                                         # (Ho*Wo, cout) f32

    # Dropout2d identity (eval).  BN2 (folded, incl. conv1 bias) + ReLU.
    _zero_halo(pad2_ref)
    pad2_ref[1:Ho + 1, 1:Wo + 1, :] = jnp.maximum(
        h1 * scale2_ref[...] + shift2_ref[...], 0.0).reshape(Ho, Wo, cout)
    h2 = _conv3x3_s1(pad2_ref, w2_ref, Ho, Wo, bias=b2_ref[...])

    # Projection shortcut on the raw strided input (= EE phase), fused here.
    res = jnp.dot(xee_ref[0].reshape(Ho * Wo, cin).astype(jnp.bfloat16),
                  pw_ref[...], preferred_element_type=jnp.float32)
    res = res + pb_ref[...]
    o_ref[0] = (h2 + res).reshape(Ho, Wo, cout).astype(o_ref.dtype)


# ----------------------------------------------------------------------------
# pallas_call wrappers
# ----------------------------------------------------------------------------
def _compiler_params():
    # Batch axis "parallel" -> double-buffered DMA + megacore sharding on v7x.
    # Explicit VMEM budget, comfortably under v7x's 64 MiB physical VMEM
    # (actual per-step footprint is ~2-3 MiB).
    return pltpu.CompilerParams(
        dimension_semantics=("parallel",),
        vmem_limit_bytes=32 * 1024 * 1024,
    )


def _vspec(c):
    return pl.BlockSpec((1, c), lambda n: (0, 0))


def res_block(x, scale1, shift1, w1, scale2, shift2, w2, b2, pw=None, pb=None):
    """Fused stride-1 residual block: (N, H, W, Cin_pad) -> (N, H, W, Cout_pad)."""
    N, H, W, cin = x.shape
    cout = w1.shape[-1]
    has_proj = pw is not None
    kernel = _res_block_proj_kernel if has_proj else _res_block_kernel

    in_specs = [
        pl.BlockSpec((1, H, W, cin), lambda n: (n, 0, 0, 0)),
        _vspec(cin), _vspec(cin),
        pl.BlockSpec((9, cin, cout), lambda n: (0, 0, 0)),
        _vspec(cout), _vspec(cout),
        pl.BlockSpec((9, cout, cout), lambda n: (0, 0, 0)),
        _vspec(cout),
    ]
    args = [x, scale1, shift1, w1, scale2, shift2, w2, b2]
    if has_proj:
        in_specs += [pl.BlockSpec((cin, cout), lambda n: (0, 0)), _vspec(cout)]
        args += [pw, pb]

    return pl.pallas_call(
        kernel,
        out_shape=jax.ShapeDtypeStruct((N, H, W, cout), jnp.float32),
        grid_spec=pltpu.PrefetchScalarGridSpec(
            num_scalar_prefetch=0,
            grid=(N,),
            in_specs=in_specs,
            out_specs=pl.BlockSpec((1, H, W, cout), lambda n: (n, 0, 0, 0)),
            scratch_shapes=[pltpu.VMEM((H + 2, W + 2, cin), jnp.float32),
                            pltpu.VMEM((H + 2, W + 2, cout), jnp.float32)],
        ),
        compiler_params=_compiler_params(),
    )(*args)


def res_block0_s2(x, scale1, shift1, w1, scale2, shift2, w2, b2, pw, pb):
    """Fused block-0 with stride-2 conv1 and 1x1 projection (stride 2)."""
    N, H, W, cin = x.shape
    cout = w1.shape[-1]
    Ho, Wo = H // 2, W // 2

    # Phase-decompose the input in XLA once (the only strided gather of the
    # whole stack); it replaces the old stride-1 conv + subsample (4x MXU work,
    # extra HBM pass) and feeds the strided projection for free (EE phase).
    xee = x[:, 0::2, 0::2, :]
    xeo = x[:, 0::2, 1::2, :]
    xoe = x[:, 1::2, 0::2, :]
    xoo = x[:, 1::2, 1::2, :]

    phase_spec = pl.BlockSpec((1, Ho, Wo, cin), lambda n: (n, 0, 0, 0))
    in_specs = [
        phase_spec, phase_spec, phase_spec, phase_spec,
        _vspec(cin), _vspec(cin),
        pl.BlockSpec((9, cin, cout), lambda n: (0, 0, 0)),
        _vspec(cout), _vspec(cout),
        pl.BlockSpec((9, cout, cout), lambda n: (0, 0, 0)),
        _vspec(cout),
        pl.BlockSpec((cin, cout), lambda n: (0, 0)),
        _vspec(cout),
    ]

    return pl.pallas_call(
        _res_block0_s2_kernel,
        out_shape=jax.ShapeDtypeStruct((N, Ho, Wo, cout), jnp.float32),
        grid_spec=pltpu.PrefetchScalarGridSpec(
            num_scalar_prefetch=0,
            grid=(N,),
            in_specs=in_specs,
            out_specs=pl.BlockSpec((1, Ho, Wo, cout), lambda n: (n, 0, 0, 0)),
            scratch_shapes=[pltpu.VMEM((Ho + 1, Wo + 1, cin), jnp.float32),
                            pltpu.VMEM((Ho + 1, Wo + 1, cin), jnp.float32),
                            pltpu.VMEM((Ho + 1, Wo + 1, cin), jnp.float32),
                            pltpu.VMEM((Ho + 1, Wo + 1, cin), jnp.float32),
                            pltpu.VMEM((Ho + 2, Wo + 2, cout), jnp.float32)],
        ),
        compiler_params=_compiler_params(),
    )(xee, xeo, xoe, xoo, scale1, shift1, w1, scale2, shift2, w2, b2, pw, pb)


# ----------------------------------------------------------------------------
# Parameter preparation (wrapper-side folding / lane padding / bf16 weights)
# ----------------------------------------------------------------------------
def _round_up(c, m=LANES):
    return ((c + m - 1) // m) * m


def _fold_bn(gamma, beta, mean, var, cp, extra_bias=None):
    """Fold eval-mode BN (and optionally the preceding conv's bias) into
    per-channel scale/shift, zero-padded to cp lanes (padded lanes stay 0)."""
    scale = gamma * jax.lax.rsqrt(var + EPS)
    shift = beta - mean * scale
    if extra_bias is not None:                 # relu((y+b)*s+t) == relu(y*s + (t+s*b))
        shift = shift + scale * extra_bias
    c = gamma.shape[0]
    scale = jnp.pad(scale, (0, cp - c)).reshape(1, cp).astype(jnp.float32)
    shift = jnp.pad(shift, (0, cp - c)).reshape(1, cp).astype(jnp.float32)
    return scale, shift


def _prep_conv3x3(w, cpi, cpo):
    """Torch (Cout, Cin, 3, 3) -> tap-major (9, cpi, cpo) bf16, zero-padded lanes."""
    co, ci = w.shape[0], w.shape[1]
    w9 = jnp.transpose(w, (2, 3, 1, 0)).reshape(9, ci, co)
    w9 = jnp.pad(w9, ((0, 0), (0, cpi - ci), (0, cpo - co)))
    return w9.astype(jnp.bfloat16)


def _prep_conv1x1(w, cpi, cpo):
    co, ci = w.shape[0], w.shape[1]
    w2 = jnp.transpose(w.reshape(co, ci), (1, 0))
    w2 = jnp.pad(w2, ((0, cpi - ci), (0, cpo - co)))
    return w2.astype(jnp.bfloat16)


def _prep_bias(b, cpo):
    co = b.shape[0]
    return jnp.pad(b, (0, cpo - co)).reshape(1, cpo).astype(jnp.float32)


# ----------------------------------------------------------------------------
# stack_layer forward (eval mode)
# ----------------------------------------------------------------------------
def stack_layer_forward(x_nchw, params, strides):
    """Eval-mode forward of stack_layer (standard_block path).

    x_nchw : (N, Cin, H, W)
    params : {'proj_w': (Cout, Cin, 1, 1), 'proj_b': (Cout,),
              'blocks': [ {bn1:(g,b,mean,var), conv1_w, conv1_b,
                           bn2:(g,b,mean,var), conv2_w, conv2_b}, ... ]}
    BatchNorm uses running statistics, Dropout2d(p=0.5) is identity (eval mode).
    """
    N, Cin, H, W = x_nchw.shape
    Cout = params["proj_w"].shape[0]
    cpi = _round_up(Cin)
    cpo = _round_up(Cout)
    s = strides
    assert H % 2 == 0 and W % 2 == 0, "even spatial dims required"

    # Boundary glue: NCHW -> channels-last, pad channel lanes to 128 ONCE.
    x = jnp.transpose(x_nchw, (0, 2, 3, 1)).astype(jnp.float32)
    x = jnp.pad(x, ((0, 0), (0, 0), (0, 0), (0, cpi - Cin)))

    blk0 = params["blocks"][0]
    scale1, shift1 = _fold_bn(*blk0["bn1"], cpi)
    w1 = _prep_conv3x3(blk0["conv1_w"], cpi, cpo)
    # conv1's bias is folded into BN2's shift (exact in eval mode).
    scale2, shift2 = _fold_bn(*blk0["bn2"], cpo, extra_bias=blk0["conv1_b"])
    w2 = _prep_conv3x3(blk0["conv2_w"], cpo, cpo)
    b2 = _prep_bias(blk0["conv2_b"], cpo)
    pw = _prep_conv1x1(params["proj_w"], cpi, cpo)
    pb = _prep_bias(params["proj_b"], cpo)

    proj_stride = 1 if Cin == Cout else s          # stack_layer's rule
    if s == 1:
        out = res_block(x, scale1, shift1, w1, scale2, shift2, w2, b2, pw, pb)
    elif s == 2 and proj_stride == 2:
        out = res_block0_s2(x, scale1, shift1, w1, scale2, shift2, w2, b2, pw, pb)
    else:
        # TODO(synk): strides > 2 (or stride-2 with Cin==Cout) not implemented.
        raise NotImplementedError("stack_layer kernel supports strides in {1, 2}")

    # Blocks 1..resnet_size-1: identity shortcut, stride 1, fully fused.
    for blk in params["blocks"][1:]:
        sc1, sh1 = _fold_bn(*blk["bn1"], cpo)
        cw1 = _prep_conv3x3(blk["conv1_w"], cpo, cpo)
        sc2, sh2 = _fold_bn(*blk["bn2"], cpo, extra_bias=blk["conv1_b"])
        cw2 = _prep_conv3x3(blk["conv2_w"], cpo, cpo)
        cb2 = _prep_bias(blk["conv2_b"], cpo)
        out = res_block(out, sc1, sh1, cw1, sc2, sh2, cw2, cb2)

    # Boundary glue back to the module's NCHW interface; drop lane padding.
    return jnp.transpose(out[..., :Cout], (0, 3, 1, 2))


# ----------------------------------------------------------------------------
# Pure-JAX reference (eval-mode PyTorch semantics)
# ----------------------------------------------------------------------------
def _bn_relu_ref(x, bn):
    gamma, beta, mean, var = bn
    inv = jax.lax.rsqrt(var + EPS)
    y = (x - mean[None, :, None, None]) * inv[None, :, None, None]
    y = y * gamma[None, :, None, None] + beta[None, :, None, None]
    return jnp.maximum(y, 0.0)


def _conv_ref(x, w, b, stride, pad):
    y = jax.lax.conv_general_dilated(
        x, w, window_strides=(stride, stride),
        padding=((pad, pad), (pad, pad)),
        dimension_numbers=("NCHW", "OIHW", "NCHW"))
    return y + b[None, :, None, None]


def stack_layer_reference(x, params, strides):
    c_in, c_out = x.shape[1], params["proj_w"].shape[0]
    proj_stride = 1 if c_in == c_out else strides
    blk0 = params["blocks"][0]
    shortcut = _conv_ref(x, params["proj_w"], params["proj_b"], proj_stride, 0)
    h = _bn_relu_ref(x, blk0["bn1"])
    h = _conv_ref(h, blk0["conv1_w"], blk0["conv1_b"], strides, 1)
    h = _bn_relu_ref(h, blk0["bn2"])
    h = _conv_ref(h, blk0["conv2_w"], blk0["conv2_b"], 1, 1)
    out = h + shortcut
    for blk in params["blocks"][1:]:
        h = _bn_relu_ref(out, blk["bn1"])
        h = _conv_ref(h, blk["conv1_w"], blk["conv1_b"], 1, 1)
        h = _bn_relu_ref(h, blk["bn2"])
        h = _conv_ref(h, blk["conv2_w"], blk["conv2_b"], 1, 1)
        out = h + out
    return out


# ----------------------------------------------------------------------------
if __name__ == "__main__":
    # stack_layer(filters=32, block_fn=standard_block, strides=2,
    #             resnet_size=2, first_num_filters=16)
    # -> filters_in = 16, filters_out = 32, downsampling stack.
    N, C_in, H, W = 2, 16, 16, 16
    filters_out = 32
    strides = 2
    resnet_size = 2

    key = jax.random.PRNGKey(0)
    keys = iter(jax.random.split(key, 64))

    def nrm(shape, s=0.1):
        return s * jax.random.normal(next(keys), shape, dtype=jnp.float32)

    def bn_params(c):
        return (1.0 + nrm((c,)),               # gamma
                nrm((c,)),                     # beta
                nrm((c,)),                     # running_mean
                jnp.abs(1.0 + nrm((c,))))      # running_var

    blocks = []
    for i in range(resnet_size):
        cin_blk = C_in if i == 0 else filters_out
        blocks.append(dict(
            bn1=bn_params(cin_blk),
            conv1_w=nrm((filters_out, cin_blk, 3, 3)),
            conv1_b=nrm((filters_out,)),
            bn2=bn_params(filters_out),
            conv2_w=nrm((filters_out, filters_out, 3, 3)),
            conv2_b=nrm((filters_out,)),
        ))
    params = dict(
        proj_w=nrm((filters_out, C_in, 1, 1)),
        proj_b=nrm((filters_out,)),
        blocks=blocks,
    )

    x = jax.random.normal(next(keys), (N, C_in, H, W), dtype=jnp.float32)

    fwd = jax.jit(stack_layer_forward, static_argnums=(2,))
    out = jax.block_until_ready(fwd(x, params, strides))

    ref = stack_layer_reference(x, params, strides)
    assert out.shape == (N, filters_out, H // strides, W // strides), out.shape
    max_err = float(jnp.max(jnp.abs(out - ref)))
    assert jnp.allclose(out, ref, atol=3e-2, rtol=3e-2), f"mismatch: {max_err}"

    print("KERNEL_OK")
</pallas_src>

<mosaic_0001>
module attributes {stable_mosaic.version = 11 : i64} {
  func.func @_res_block_kernel(%arg0: i32, %arg1: memref<1x8x8x128xf32, #tpu.memory_space<vmem>>, %arg2: memref<1x128xf32, #tpu.memory_space<vmem>>, %arg3: memref<1x128xf32, #tpu.memory_space<vmem>>, %arg4: memref<9x128x128xbf16, #tpu.memory_space<vmem>>, %arg5: memref<1x128xf32, #tpu.memory_space<vmem>>, %arg6: memref<1x128xf32, #tpu.memory_space<vmem>>, %arg7: memref<9x128x128xbf16, #tpu.memory_space<vmem>>, %arg8: memref<1x128xf32, #tpu.memory_space<vmem>>, %arg9: memref<1x8x8x128xf32, #tpu.memory_space<vmem>>, %arg10: memref<10x10x128xf32, #tpu.memory_space<vmem>>, %arg11: memref<10x10x128xf32, #tpu.memory_space<vmem>>) attributes {dimension_semantics = [#tpu.dimension_semantics<parallel>], iteration_bounds = array<i64: 2>, scalar_prefetch = 0 : i64, scratch_operands = 2 : i64, tpu.core_type = #tpu.core_type<tc>, window_params = [{transform_indices = @transform_0, window_bounds = array<i64: 1, 8, 8, 128>}, {pipeline_mode = #tpu.pipeline_mode<synchronous>, transform_indices = @transform_1, window_bounds = array<i64: 1, 128>}, {pipeline_mode = #tpu.pipeline_mode<synchronous>, transform_indices = @transform_2, window_bounds = array<i64: 1, 128>}, {pipeline_mode = #tpu.pipeline_mode<synchronous>, transform_indices = @transform_3, window_bounds = array<i64: 9, 128, 128>}, {pipeline_mode = #tpu.pipeline_mode<synchronous>, transform_indices = @transform_4, window_bounds = array<i64: 1, 128>}, {pipeline_mode = #tpu.pipeline_mode<synchronous>, transform_indices = @transform_5, window_bounds = array<i64: 1, 128>}, {pipeline_mode = #tpu.pipeline_mode<synchronous>, transform_indices = @transform_6, window_bounds = array<i64: 9, 128, 128>}, {pipeline_mode = #tpu.pipeline_mode<synchronous>, transform_indices = @transform_7, window_bounds = array<i64: 1, 128>}, {transform_indices = @transform_8, window_bounds = array<i64: 1, 8, 8, 128>}]} {
    %cst = arith.constant 0.000000e+00 : f32
    %0 = vector.broadcast %cst : f32 to vector<1x10x128xf32>
    %cst_0 = arith.constant 0.000000e+00 : f32
    %1 = vector.broadcast %cst_0 : f32 to vector<10x1x128xf32>
    %c0 = arith.constant 0 : index
    %c0_1 = arith.constant 0 : index
    %c0_2 = arith.constant 0 : index
    %2 = vector.load %arg10[%c0, %c0_1, %c0_2] : memref<10x10x128xf32, #tpu.memory_space<vmem>>, vector<1x10x128xf32>
    tpu.vector_store %arg10[%c0, %c0_1, %c0_2], %0 {strides = array<i32>} : memref<10x10x128xf32, #tpu.memory_space<vmem>>, vector<1x10x128xf32>,
    %c9 = arith.constant 9 : index
    %c0_3 = arith.constant 0 : index
    %c0_4 = arith.constant 0 : index
    %3 = vector.load %arg10[%c9, %c0_3, %c0_4] : memref<10x10x128xf32, #tpu.memory_space<vmem>>, vector<1x10x128xf32>
    tpu.vector_store %arg10[%c9, %c0_3, %c0_4], %0 {strides = array<i32>} : memref<10x10x128xf32, #tpu.memory_space<vmem>>, vector<1x10x128xf32>,
    %c0_5 = arith.constant 0 : index
    %c0_6 = arith.constant 0 : index
    %c0_7 = arith.constant 0 : index
    %4 = vector.load %arg10[%c0_5, %c0_6, %c0_7] : memref<10x10x128xf32, #tpu.memory_space<vmem>>, vector<10x1x128xf32>
    tpu.vector_store %arg10[%c0_5, %c0_6, %c0_7], %1 {strides = array<i32>} : memref<10x10x128xf32, #tpu.memory_space<vmem>>, vector<10x1x128xf32>,
    %c0_8 = arith.constant 0 : index
    %c9_9 = arith.constant 9 : index
    %c0_10 = arith.constant 0 : index
    %5 = vector.load %arg10[%c0_8, %c9_9, %c0_10] : memref<10x10x128xf32, #tpu.memory_space<vmem>>, vector<10x1x128xf32>
    tpu.vector_store %arg10[%c0_8, %c9_9, %c0_10], %1 {strides = array<i32>} : memref<10x10x128xf32, #tpu.memory_space<vmem>>, vector<10x1x128xf32>,
    %cst_11 = arith.constant 0.000000e+00 : f32
    %6 = vector.broadcast %cst_11 : f32 to vector<1x10x128xf32>
    %cst_12 = arith.constant 0.000000e+00 : f32
    %7 = vector.broadcast %cst_12 : f32 to vector<10x1x128xf32>
    %c0_13 = arith.constant 0 : index
    %c0_14 = arith.constant 0 : index
    %c0_15 = arith.constant 0 : index
    %8 = vector.load %arg11[%c0_13, %c0_14, %c0_15] : memref<10x10x128xf32, #tpu.memory_space<vmem>>, vector<1x10x128xf32>
    tpu.vector_store %arg11[%c0_13, %c0_14, %c0_15], %6 {strides = array<i32>} : memref<10x10x128xf32, #tpu.memory_space<vmem>>, vector<1x10x128xf32>,
    %c9_16 = arith.constant 9 : index
    %c0_17 = arith.constant 0 : index
    %c0_18 = arith.constant 0 : index
    %9 = vector.load %arg11[%c9_16, %c0_17, %c0_18] : memref<10x10x128xf32, #tpu.memory_space<vmem>>, vector<1x10x128xf32>
    tpu.vector_store %arg11[%c9_16, %c0_17, %c0_18], %6 {strides = array<i32>} : memref<10x10x128xf32, #tpu.memory_space<vmem>>, vector<1x10x128xf32>,
    %c0_19 = arith.constant 0 : index
    %c0_20 = arith.constant 0 : index
    %c0_21 = arith.constant 0 : index
    %10 = vector.load %arg11[%c0_19, %c0_20, %c0_21] : memref<10x10x128xf32, #tpu.memory_space<vmem>>, vector<10x1x128xf32>
    tpu.vector_store %arg11[%c0_19, %c0_20, %c0_21], %7 {strides = array<i32>} : memref<10x10x128xf32, #tpu.memory_space<vmem>>, vector<10x1x128xf32>,
    %c0_22 = arith.constant 0 : index
    %c9_23 = arith.constant 9 : index
    %c0_24 = arith.constant 0 : index
    %11 = vector.load %arg11[%c0_22, %c9_23, %c0_24] : memref<10x10x128xf32, #tpu.memory_space<vmem>>, vector<10x1x128xf32>
    tpu.vector_store %arg11[%c0_22, %c9_23, %c0_24], %7 {strides = array<i32>} : memref<10x10x128xf32, #tpu.memory_space<vmem>>, vector<10x1x128xf32>,
    %c0_25 = arith.constant 0 : index
    %c0_26 = arith.constant 0 : index
    %c0_27 = arith.constant 0 : index
    %c0_28 = arith.constant 0 : index
    %12 = vector.load %arg1[%c0_25, %c0_26, %c0_27, %c0_28] : memref<1x8x8x128xf32, #tpu.memory_space<vmem>>, vector<1x8x8x128xf32>
    %13 = vector.shape_cast %12 : vector<1x8x8x128xf32> to vector<8x8x128xf32>
    %c0_29 = arith.constant 0 : index
    %c0_30 = arith.constant 0 : index
    %14 = vector.load %arg2[%c0_29, %c0_30] : memref<1x128xf32, #tpu.memory_space<vmem>>, vector<1x128xf32>
    %15 = vector.shape_cast %14 : vector<1x128xf32> to vector<1x1x128xf32>
    %16 = vector.broadcast %15 : vector<1x1x128xf32> to vector<8x8x128xf32>
    %17 = arith.mulf %13, %16 : vector<8x8x128xf32>
    %c0_31 = arith.constant 0 : index
    %c0_32 = arith.constant 0 : index
    %18 = vector.load %arg3[%c0_31, %c0_32] : memref<1x128xf32, #tpu.memory_space<vmem>>, vector<1x128xf32>
    %19 = vector.shape_cast %18 : vector<1x128xf32> to vector<1x1x128xf32>
    %20 = vector.broadcast %19 : vector<1x1x128xf32> to vector<8x8x128xf32>
    %21 = arith.addf %17, %20 : vector<8x8x128xf32>
    %cst_33 = arith.constant 0.000000e+00 : f32
    %22 = vector.broadcast %cst_33 : f32 to vector<8x8x128xf32>
    %23 = arith.maximumf %21, %22 : vector<8x8x128xf32>
    %c1 = arith.constant 1 : index
    %c1_34 = arith.constant 1 : index
    %c0_35 = arith.constant 0 : index
    %24 = vector.load %arg10[%c1, %c1_34, %c0_35] : memref<10x10x128xf32, #tpu.memory_space<vmem>>, vector<8x8x128xf32>
    tpu.vector_store %arg10[%c1, %c1_34, %c0_35], %23 {strides = array<i32>} : memref<10x10x128xf32, #tpu.memory_space<vmem>>, vector<8x8x128xf32>,
    %c0_36 = arith.constant 0 : index
    %c0_37 = arith.constant 0 : index
    %c0_38 = arith.constant 0 : index
    %25 = vector.load %arg10[%c0_36, %c0_37, %c0_38] : memref<10x10x128xf32, #tpu.memory_space<vmem>>, vector<10x8x128xf32>
    %26 = vector.extract_strided_slice %25 {offsets = [0, 0, 0], sizes = [8, 8, 128], strides = [1, 1, 1]} : vector<10x8x128xf32> to vector<8x8x128xf32>
    %27 = vector.shape_cast %26 : vector<8x8x128xf32> to vector<64x128xf32>
    %28 = arith.truncf %27 : vector<64x128xf32> to vector<64x128xbf16>
    %c0_39 = arith.constant 0 : index
    %c0_40 = arith.constant 0 : index
    %c0_41 = arith.constant 0 : index
    %29 = vector.load %arg4[%c0_39, %c0_40, %c0_41] : memref<9x128x128xbf16, #tpu.memory_space<vmem>>, vector<1x128x128xbf16>
    %30 = vector.shape_cast %29 : vector<1x128x128xbf16> to vector<128x128xbf16>
    %cst_42 = arith.constant dense<0.000000e+00> : vector<64x128xf32>
    %31 = tpu.matmul %28, %30, %cst_42 {dimension_numbers = #tpu.dot_dimension_numbers<[1], [0], [0], [1], [0, 0, 1, 1], [], []>} : vector<64x128xbf16>, vector<128x128xbf16>, vector<64x128xf32> -> vector<64x128xf32>
    %32 = vector.extract_strided_slice %25 {offsets = [1, 0, 0], sizes = [8, 8, 128], strides = [1, 1, 1]} : vector<10x8x128xf32> to vector<8x8x128xf32>
    %33 = vector.shape_cast %32 : vector<8x8x128xf32> to vector<64x128xf32>
    %34 = arith.truncf %33 : vector<64x128xf32> to vector<64x128xbf16>
    %c3 = arith.constant 3 : index
    %c0_43 = arith.constant 0 : index
    %c0_44 = arith.constant 0 : index
    %35 = vector.load %arg4[%c3, %c0_43, %c0_44] : memref<9x128x128xbf16, #tpu.memory_space<vmem>>, vector<1x128x128xbf16>
    %36 = vector.shape_cast %35 : vector<1x128x128xbf16> to vector<128x128xbf16>
    %cst_45 = arith.constant dense<0.000000e+00> : vector<64x128xf32>
    %37 = tpu.matmul %34, %36, %cst_45 {dimension_numbers = #tpu.dot_dimension_numbers<[1], [0], [0], [1], [0, 0, 1, 1], [], []>} : vector<64x128xbf16>, vector<128x128xbf16>, vector<64x128xf32> -> vector<64x128xf32>
    %38 = arith.addf %31, %37 : vector<64x128xf32>
    %39 = vector.extract_strided_slice %25 {offsets = [2, 0, 0], sizes = [8, 8, 128], strides = [1, 1, 1]} : vector<10x8x128xf32> to vector<8x8x128xf32>
    %40 = vector.shape_cast %39 : vector<8x8x128xf32> to vector<64x128xf32>
    %41 = arith.truncf %40 : vector<64x128xf32> to vector<64x128xbf16>
    %c6 = arith.constant 6 : index
    %c0_46 = arith.constant 0 : index
    %c0_47 = arith.constant 0 : index
    %42 = vector.load %arg4[%c6, %c0_46, %c0_47] : memref<9x128x128xbf16, #tpu.memory_space<vmem>>, vector<1x128x128xbf16>
    %43 = vector.shape_cast %42 : vector<1x128x128xbf16> to vector<128x128xbf16>
    %cst_48 = arith.constant dense<0.000000e+00> : vector<64x128xf32>
    %44 = tpu.matmul %41, %43, %cst_48 {dimension_numbers = #tpu.dot_dimension_numbers<[1], [0], [0], [1], [0, 0, 1, 1], [], []>} : vector<64x128xbf16>, vector<128x128xbf16>, vector<64x128xf32> -> vector<64x128xf32>
    %45 = arith.addf %38, %44 : vector<64x128xf32>
    %c0_49 = arith.constant 0 : index
    %c1_50 = arith.constant 1 : index
    %c0_51 = arith.constant 0 : index
    %46 = vector.load %arg10[%c0_49, %c1_50, %c0_51] : memref<10x10x128xf32, #tpu.memory_space<vmem>>, vector<10x8x128xf32>
    %47 = vector.extract_strided_slice %46 {offsets = [0, 0, 0], sizes = [8, 8, 128], strides = [1, 1, 1]} : vector<10x8x128xf32> to vector<8x8x128xf32>
    %48 = vector.shape_cast %47 : vector<8x8x128xf32> to vector<64x128xf32>
    %49 = arith.truncf %48 : vector<64x128xf32> to vector<64x128xbf16>
    %c1_52 = arith.constant 1 : index
    %c0_53 = arith.constant 0 : index
    %c0_54 = arith.constant 0 : index
    %50 = vector.load %arg4[%c1_52, %c0_53, %c0_54] : memref<9x128x128xbf16, #tpu.memory_space<vmem>>, vector<1x128x128xbf16>
    %51 = vector.shape_cast %50 : vector<1x128x128xbf16> to vector<128x128xbf16>
    %cst_55 = arith.constant dense<0.000000e+00> : vector<64x128xf32>
    %52 = tpu.matmul %49, %51, %cst_55 {dimension_numbers = #tpu.dot_dimension_numbers<[1], [0], [0], [1], [0, 0, 1, 1], [], []>} : vector<64x128xbf16>, vector<128x128xbf16>, vector<64x128xf32> -> vector<64x128xf32>
    %53 = arith.addf %45, %52 : vector<64x128xf32>
    %54 = vector.extract_strided_slice %46 {offsets = [1, 0, 0], sizes = [8, 8, 128], strides = [1, 1, 1]} : vector<10x8x128xf32> to vector<8x8x128xf32>
    %55 = vector.shape_cast %54 : vector<8x8x128xf32> to vector<64x128xf32>
    %56 = arith.truncf %55 : vector<64x128xf32> to vector<64x128xbf16>
    %c4 = arith.constant 4 : index
    %c0_56 = arith.constant 0 : index
    %c0_57 = arith.constant 0 : index
    %57 = vector.load %arg4[%c4, %c0_56, %c0_57] : memref<9x128x128xbf16, #tpu.memory_space<vmem>>, vector<1x128x128xbf16>
    %58 = vector.shape_cast %57 : vector<1x128x128xbf16> to vector<128x128xbf16>
    %cst_58 = arith.constant dense<0.000000e+00> : vector<64x128xf32>
    %59 = tpu.matmul %56, %58, %cst_58 {dimension_numbers = #tpu.dot_dimension_numbers<[1], [0], [0], [1], [0, 0, 1, 1], [], []>} : vector<64x128xbf16>, vector<128x128xbf16>, vector<64x128xf32> -> vector<64x128xf32>
    %60 = arith.addf %53, %59 : vector<64x128xf32>
    %61 = vector.extract_strided_slice %46 {offsets = [2, 0, 0], sizes = [8, 8, 128], strides = [1, 1, 1]} : vector<10x8x128xf32> to vector<8x8x128xf32>
    %62 = vector.shape_cast %61 : vector<8x8x128xf32> to vector<64x128xf32>
    %63 = arith.truncf %62 : vector<64x128xf32> to vector<64x128xbf16>
    %c7 = arith.constant 7 : index
    %c0_59 = arith.constant 0 : index
    %c0_60 = arith.constant 0 : index
    %64 = vector.load %arg4[%c7, %c0_59, %c0_60] : memref<9x128x128xbf16, #tpu.memory_space<vmem>>, vector<1x128x128xbf16>
    %65 = vector.shape_cast %64 : vector<1x128x128xbf16> to vector<128x128xbf16>
    %cst_61 = arith.constant dense<0.000000e+00> : vector<64x128xf32>
    %66 = tpu.matmul %63, %65, %cst_61 {dimension_numbers = #tpu.dot_dimension_numbers<[1], [0], [0], [1], [0, 0, 1, 1], [], []>} : vector<64x128xbf16>, vector<128x128xbf16>, vector<64x128xf32> -> vector<64x128xf32>
    %67 = arith.addf %60, %66 : vector<64x128xf32>
    %c0_62 = arith.constant 0 : index
    %c2 = arith.constant 2 : index
    %c0_63 = arith.constant 0 : index
    %68 = vector.load %arg10[%c0_62, %c2, %c0_63] : memref<10x10x128xf32, #tpu.memory_space<vmem>>, vector<10x8x128xf32>
    %69 = vector.extract_strided_slice %68 {offsets = [0, 0, 0], sizes = [8, 8, 128], strides = [1, 1, 1]} : vector<10x8x128xf32> to vector<8x8x128xf32>
    %70 = vector.shape_cast %69 : vector<8x8x128xf32> to vector<64x128xf32>
    %71 = arith.truncf %70 : vector<64x128xf32> to vector<64x128xbf16>
    %c2_64 = arith.constant 2 : index
    %c0_65 = arith.constant 0 : index
    %c0_66 = arith.constant 0 : index
    %72 = vector.load %arg4[%c2_64, %c0_65, %c0_66] : memref<9x128x128xbf16, #tpu.memory_space<vmem>>, vector<1x128x128xbf16>
    %73 = vector.shape_cast %72 : vector<1x128x128xbf16> to vector<128x128xbf16>
    %cst_67 = arith.constant dense<0.000000e+00> : vector<64x128xf32>
    %74 = tpu.matmul %71, %73, %cst_67 {dimension_numbers = #tpu.dot_dimension_numbers<[1], [0], [0], [1], [0, 0, 1, 1], [], []>} : vector<64x128xbf16>, vector<128x128xbf16>, vector<64x128xf32> -> vector<64x128xf32>
    %75 = arith.addf %67, %74 : vector<64x128xf32>
    %76 = vector.extract_strided_slice %68 {offsets = [1, 0, 0], sizes = [8, 8, 128], strides = [1, 1, 1]} : vector<10x8x128xf32> to vector<8x8x128xf32>
    %77 = vector.shape_cast %76 : vector<8x8x128xf32> to vector<64x128xf32>
    %78 = arith.truncf %77 : vector<64x128xf32> to vector<64x128xbf16>
    %c5 = arith.constant 5 : index
    %c0_68 = arith.constant 0 : index
    %c0_69 = arith.constant 0 : index
    %79 = vector.load %arg4[%c5, %c0_68, %c0_69] : memref<9x128x128xbf16, #tpu.memory_space<vmem>>, vector<1x128x128xbf16>
    %80 = vector.shape_cast %79 : vector<1x128x128xbf16> to vector<128x128xbf16>
    %cst_70 = arith.constant dense<0.000000e+00> : vector<64x128xf32>
    %81 = tpu.matmul %78, %80, %cst_70 {dimension_numbers = #tpu.dot_dimension_numbers<[1], [0], [0], [1], [0, 0, 1, 1], [], []>} : vector<64x128xbf16>, vector<128x128xbf16>, vector<64x128xf32> -> vector<64x128xf32>
    %82 = arith.addf %75, %81 : vector<64x128xf32>
    %83 = vector.extract_strided_slice %68 {offsets = [2, 0, 0], sizes = [8, 8, 128], strides = [1, 1, 1]} : vector<10x8x128xf32> to vector<8x8x128xf32>
    %84 = vector.shape_cast %83 : vector<8x8x128xf32> to vector<64x128xf32>
    %85 = arith.truncf %84 : vector<64x128xf32> to vector<64x128xbf16>
    %c8 = arith.constant 8 : index
    %c0_71 = arith.constant 0 : index
    %c0_72 = arith.constant 0 : index
    %86 = vector.load %arg4[%c8, %c0_71, %c0_72] : memref<9x128x128xbf16, #tpu.memory_space<vmem>>, vector<1x128x128xbf16>
    %87 = vector.shape_cast %86 : vector<1x128x128xbf16> to vector<128x128xbf16>
    %cst_73 = arith.constant dense<0.000000e+00> : vector<64x128xf32>
    %88 = tpu.matmul %85, %87, %cst_73 {dimension_numbers = #tpu.dot_dimension_numbers<[1], [0], [0], [1], [0, 0, 1, 1], [], []>} : vector<64x128xbf16>, vector<128x128xbf16>, vector<64x128xf32> -> vector<64x128xf32>
    %89 = arith.addf %82, %88 : vector<64x128xf32>
    %c0_74 = arith.constant 0 : index
    %c0_75 = arith.constant 0 : index
    %90 = vector.load %arg5[%c0_74, %c0_75] : memref<1x128xf32, #tpu.memory_space<vmem>>, vector<1x128xf32>
    %91 = vector.broadcast %90 : vector<1x128xf32> to vector<64x128xf32>
    %92 = arith.mulf %89, %91 : vector<64x128xf32>
    %c0_76 = arith.constant 0 : index
    %c0_77 = arith.constant 0 : index
    %93 = vector.load %arg6[%c0_76, %c0_77] : memref<1x128xf32, #tpu.memory_space<vmem>>, vector<1x128xf32>
    %94 = vector.broadcast %93 : vector<1x128xf32> to vector<64x128xf32>
    %95 = arith.addf %92, %94 : vector<64x128xf32>
    %cst_78 = arith.constant 0.000000e+00 : f32
    %96 = vector.broadcast %cst_78 : f32 to vector<64x128xf32>
    %97 = arith.maximumf %95, %96 : vector<64x128xf32>
    %98 = vector.shape_cast %97 : vector<64x128xf32> to vector<8x8x128xf32>
    %c1_79 = arith.constant 1 : index
    %c1_80 = arith.constant 1 : index
    %c0_81 = arith.constant 0 : index
    %99 = vector.load %arg11[%c1_79, %c1_80, %c0_81] : memref<10x10x128xf32, #tpu.memory_space<vmem>>, vector<8x8x128xf32>
    tpu.vector_store %arg11[%c1_79, %c1_80, %c0_81], %98 {strides = array<i32>} : memref<10x10x128xf32, #tpu.memory_space<vmem>>, vector<8x8x128xf32>,
    %c0_82 = arith.constant 0 : index
    %c0_83 = arith.constant 0 : index
    %100 = vector.load %arg8[%c0_82, %c0_83] : memref<1x128xf32, #tpu.memory_space<vmem>>, vector<1x128xf32>
    %c0_84 = arith.constant 0 : index
    %c0_85 = arith.constant 0 : index
    %c0_86 = arith.constant 0 : index
    %101 = vector.load %arg11[%c0_84, %c0_85, %c0_86] : memref<10x10x128xf32, #tpu.memory_space<vmem>>, vector<10x8x128xf32>
    %102 = vector.extract_strided_slice %101 {offsets = [0, 0, 0], sizes = [8, 8, 128], strides = [1, 1, 1]} : vector<10x8x128xf32> to vector<8x8x128xf32>
    %103 = vector.shape_cast %102 : vector<8x8x128xf32> to vector<64x128xf32>
    %104 = arith.truncf %103 : vector<64x128xf32> to vector<64x128xbf16>
    %c0_87 = arith.constant 0 : index
    %c0_88 = arith.constant 0 : index
    %c0_89 = arith.constant 0 : index
    %105 = vector.load %arg7[%c0_87, %c0_88, %c0_89] : memref<9x128x128xbf16, #tpu.memory_space<vmem>>, vector<1x128x128xbf16>
    %106 = vector.shape_cast %105 : vector<1x128x128xbf16> to vector<128x128xbf16>
    %cst_90 = arith.constant dense<0.000000e+00> : vector<64x128xf32>
    %107 = tpu.matmul %104, %106, %cst_90 {dimension_numbers = #tpu.dot_dimension_numbers<[1], [0], [0], [1], [0, 0, 1, 1], [], []>} : vector<64x128xbf16>, vector<128x128xbf16>, vector<64x128xf32> -> vector<64x128xf32>
    %108 = vector.broadcast %100 : vector<1x128xf32> to vector<64x128xf32>
    %109 = arith.addf %108, %107 : vector<64x128xf32>
    %110 = vector.extract_strided_slice %101 {offsets = [1, 0, 0], sizes = [8, 8, 128], strides = [1, 1, 1]} : vector<10x8x128xf32> to vector<8x8x128xf32>
    %111 = vector.shape_cast %110 : vector<8x8x128xf32> to vector<64x128xf32>
    %112 = arith.truncf %111 : vector<64x128xf32> to vector<64x128xbf16>
    %c3_91 = arith.constant 3 : index
    %c0_92 = arith.constant 0 : index
    %c0_93 = arith.constant 0 : index
    %113 = vector.load %arg7[%c3_91, %c0_92, %c0_93] : memref<9x128x128xbf16, #tpu.memory_space<vmem>>, vector<1x128x128xbf16>
    %114 = vector.shape_cast %113 : vector<1x128x128xbf16> to vector<128x128xbf16>
    %cst_94 = arith.constant dense<0.000000e+00> : vector<64x128xf32>
    %115 = tpu.matmul %112, %114, %cst_94 {dimension_numbers = #tpu.dot_dimension_numbers<[1], [0], [0], [1], [0, 0, 1, 1], [], []>} : vector<64x128xbf16>, vector<128x128xbf16>, vector<64x128xf32> -> vector<64x128xf32>
    %116 = arith.addf %109, %115 : vector<64x128xf32>
    %117 = vector.extract_strided_slice %101 {offsets = [2, 0, 0], sizes = [8, 8, 128], strides = [1, 1, 1]} : vector<10x8x128xf32> to vector<8x8x128xf32>
    %118 = vector.shape_cast %117 : vector<8x8x128xf32> to vector<64x128xf32>
    %119 = arith.truncf %118 : vector<64x128xf32> to vector<64x128xbf16>
    %c6_95 = arith.constant 6 : index
    %c0_96 = arith.constant 0 : index
    %c0_97 = arith.constant 0 : index
    %120 = vector.load %arg7[%c6_95, %c0_96, %c0_97] : memref<9x128x128xbf16, #tpu.memory_space<vmem>>, vector<1x128x128xbf16>
    %121 = vector.shape_cast %120 : vector<1x128x128xbf16> to vector<128x128xbf16>
    %cst_98 = arith.constant dense<0.000000e+00> : vector<64x128xf32>
    %122 = tpu.matmul %119, %121, %cst_98 {dimension_numbers = #tpu.dot_dimension_numbers<[1], [0], [0], [1], [0, 0, 1, 1], [], []>} : vector<64x128xbf16>, vector<128x128xbf16>, vector<64x128xf32> -> vector<64x128xf32>
    %123 = arith.addf %116, %122 : vector<64x128xf32>
    %c0_99 = arith.constant 0 : index
    %c1_100 = arith.constant 1 : index
    %c0_101 = arith.constant 0 : index
    %124 = vector.load %arg11[%c0_99, %c1_100, %c0_101] : memref<10x10x128xf32, #tpu.memory_space<vmem>>, vector<10x8x128xf32>
    %125 = vector.extract_strided_slice %124 {offsets = [0, 0, 0], sizes = [8, 8, 128], strides = [1, 1, 1]} : vector<10x8x128xf32> to vector<8x8x128xf32>
    %126 = vector.shape_cast %125 : vector<8x8x128xf32> to vector<64x128xf32>
    %127 = arith.truncf %126 : vector<64x128xf32> to vector<64x128xbf16>
    %c1_102 = arith.constant 1 : index
    %c0_103 = arith.constant 0 : index
    %c0_104 = arith.constant 0 : index
    %128 = vector.load %arg7[%c1_102, %c0_103, %c0_104] : memref<9x128x128xbf16, #tpu.memory_space<vmem>>, vector<1x128x128xbf16>
    %129 = vector.shape_cast %128 : vector<1x128x128xbf16> to vector<128x128xbf16>
    %cst_105 = arith.constant dense<0.000000e+00> : vector<64x128xf32>
    %130 = tpu.matmul %127, %129, %cst_105 {dimension_numbers = #tpu.dot_dimension_numbers<[1], [0], [0], [1], [0, 0, 1, 1], [], []>} : vector<64x128xbf16>, vector<128x128xbf16>, vector<64x128xf32> -> vector<64x128xf32>
    %131 = arith.addf %123, %130 : vector<64x128xf32>
    %132 = vector.extract_strided_slice %124 {offsets = [1, 0, 0], sizes = [8, 8, 128], strides = [1, 1, 1]} : vector<10x8x128xf32> to vector<8x8x128xf32>
    %133 = vector.shape_cast %132 : vector<8x8x128xf32> to vector<64x128xf32>
    %134 = arith.truncf %133 : vector<64x128xf32> to vector<64x128xbf16>
    %c4_106 = arith.constant 4 : index
    %c0_107 = arith.constant 0 : index
    %c0_108 = arith.constant 0 : index
    %135 = vector.load %arg7[%c4_106, %c0_107, %c0_108] : memref<9x128x128xbf16, #tpu.memory_space<vmem>>, vector<1x128x128xbf16>
    %136 = vector.shape_cast %135 : vector<1x128x128xbf16> to vector<128x128xbf16>
    %cst_109 = arith.constant dense<0.000000e+00> : vector<64x128xf32>
    %137 = tpu.matmul %134, %136, %cst_109 {dimension_numbers = #tpu.dot_dimension_numbers<[1], [0], [0], [1], [0, 0, 1, 1], [], []>} : vector<64x128xbf16>, vector<128x128xbf16>, vector<64x128xf32> -> vector<64x128xf32>
    %138 = arith.addf %131, %137 : vector<64x128xf32>
    %139 = vector.extract_strided_slice %124 {offsets = [2, 0, 0], sizes = [8, 8, 128], strides = [1, 1, 1]} : vector<10x8x128xf32> to vector<8x8x128xf32>
    %140 = vector.shape_cast %139 : vector<8x8x128xf32> to vector<64x128xf32>
    %141 = arith.truncf %140 : vector<64x128xf32> to vector<64x128xbf16>
    %c7_110 = arith.constant 7 : index
    %c0_111 = arith.constant 0 : index
    %c0_112 = arith.constant 0 : index
    %142 = vector.load %arg7[%c7_110, %c0_111, %c0_112] : memref<9x128x128xbf16, #tpu.memory_space<vmem>>, vector<1x128x128xbf16>
    %143 = vector.shape_cast %142 : vector<1x128x128xbf16> to vector<128x128xbf16>
    %cst_113 = arith.constant dense<0.000000e+00> : vector<64x128xf32>
    %144 = tpu.matmul %141, %143, %cst_113 {dimension_numbers = #tpu.dot_dimension_numbers<[1], [0], [0], [1], [0, 0, 1, 1], [], []>} : vector<64x128xbf16>, vector<128x128xbf16>, vector<64x128xf32> -> vector<64x128xf32>
    %145 = arith.addf %138, %144 : vector<64x128xf32>
    %c0_114 = arith.constant 0 : index
    %c2_115 = arith.constant 2 : index
    %c0_116 = arith.constant 0 : index
    %146 = vector.load %arg11[%c0_114, %c2_115, %c0_116] : memref<10x10x128xf32, #tpu.memory_space<vmem>>, vector<10x8x128xf32>
    %147 = vector.extract_strided_slice %146 {offsets = [0, 0, 0], sizes = [8, 8, 128], strides = [1, 1, 1]} : vector<10x8x128xf32> to vector<8x8x128xf32>
    %148 = vector.shape_cast %147 : vector<8x8x128xf32> to vector<64x128xf32>
    %149 = arith.truncf %148 : vector<64x128xf32> to vector<64x128xbf16>
    %c2_117 = arith.constant 2 : index
    %c0_118 = arith.constant 0 : index
    %c0_119 = arith.constant 0 : index
    %150 = vector.load %arg7[%c2_117, %c0_118, %c0_119] : memref<9x128x128xbf16, #tpu.memory_space<vmem>>, vector<1x128x128xbf16>
    %151 = vector.shape_cast %150 : vector<1x128x128xbf16> to vector<128x128xbf16>
    %cst_120 = arith.constant dense<0.000000e+00> : vector<64x128xf32>
    %152 = tpu.matmul %149, %151, %cst_120 {dimension_numbers = #tpu.dot_dimension_numbers<[1], [0], [0], [1], [0, 0, 1, 1], [], []>} : vector<64x128xbf16>, vector<128x128xbf16>, vector<64x128xf32> -> vector<64x128xf32>
    %153 = arith.addf %145, %152 : vector<64x128xf32>
    %154 = vector.extract_strided_slice %146 {offsets = [1, 0, 0], sizes = [8, 8, 128], strides = [1, 1, 1]} : vector<10x8x128xf32> to vector<8x8x128xf32>
    %155 = vector.shape_cast %154 : vector<8x8x128xf32> to vector<64x128xf32>
    %156 = arith.truncf %155 : vector<64x128xf32> to vector<64x128xbf16>
    %c5_121 = arith.constant 5 : index
    %c0_122 = arith.constant 0 : index
    %c0_123 = arith.constant 0 : index
    %157 = vector.load %arg7[%c5_121, %c0_122, %c0_123] : memref<9x128x128xbf16, #tpu.memory_space<vmem>>, vector<1x128x128xbf16>
    %158 = vector.shape_cast %157 : vector<1x128x128xbf16> to vector<128x128xbf16>
    %cst_124 = arith.constant dense<0.000000e+00> : vector<64x128xf32>
    %159 = tpu.matmul %156, %158, %cst_124 {dimension_numbers = #tpu.dot_dimension_numbers<[1], [0], [0], [1], [0, 0, 1, 1], [], []>} : vector<64x128xbf16>, vector<128x128xbf16>, vector<64x128xf32> -> vector<64x128xf32>
    %160 = arith.addf %153, %159 : vector<64x128xf32>
    %161 = vector.extract_strided_slice %146 {offsets = [2, 0, 0], sizes = [8, 8, 128], strides = [1, 1, 1]} : vector<10x8x128xf32> to vector<8x8x128xf32>
    %162 = vector.shape_cast %161 : vector<8x8x128xf32> to vector<64x128xf32>
    %163 = arith.truncf %162 : vector<64x128xf32> to vector<64x128xbf16>
    %c8_125 = arith.constant 8 : index
    %c0_126 = arith.constant 0 : index
    %c0_127 = arith.constant 0 : index
    %164 = vector.load %arg7[%c8_125, %c0_126, %c0_127] : memref<9x128x128xbf16, #tpu.memory_space<vmem>>, vector<1x128x128xbf16>
    %165 = vector.shape_cast %164 : vector<1x128x128xbf16> to vector<128x128xbf16>
    %cst_128 = arith.constant dense<0.000000e+00> : vector<64x128xf32>
    %166 = tpu.matmul %163, %165, %cst_128 {dimension_numbers = #tpu.dot_dimension_numbers<[1], [0], [0], [1], [0, 0, 1, 1], [], []>} : vector<64x128xbf16>, vector<128x128xbf16>, vector<64x128xf32> -> vector<64x128xf32>
    %167 = arith.addf %160, %166 : vector<64x128xf32>
    %c0_129 = arith.constant 0 : index
    %c0_130 = arith.constant 0 : index
    %c0_131 = arith.constant 0 : index
    %c0_132 = arith.constant 0 : index
    %168 = vector.load %arg1[%c0_129, %c0_130, %c0_131, %c0_132] : memref<1x8x8x128xf32, #tpu.memory_space<vmem>>, vector<1x8x8x128xf32>
    %169 = vector.shape_cast %168 : vector<1x8x8x128xf32> to vector<8x8x128xf32>
    %170 = vector.shape_cast %169 : vector<8x8x128xf32> to vector<64x128xf32>
    %171 = arith.addf %167, %170 : vector<64x128xf32>
    %172 = vector.shape_cast %171 : vector<64x128xf32> to vector<8x8x128xf32>
    %c0_133 = arith.constant 0 : index
    %c0_134 = arith.constant 0 : index
    %c0_135 = arith.constant 0 : index
    %c0_136 = arith.constant 0 : index
    %173 = vector.load %arg9[%c0_133, %c0_134, %c0_135, %c0_136] : memref<1x8x8x128xf32, #tpu.memory_space<vmem>>, vector<1x8x8x128xf32>
    %174 = vector.shape_cast %173 : vector<1x8x8x128xf32> to vector<8x8x128xf32>
    %175 = vector.shape_cast %172 : vector<8x8x128xf32> to vector<1x8x8x128xf32>
    tpu.vector_store %arg9[%c0_133, %c0_134, %c0_135, %c0_136], %175 {strides = array<i32>} : memref<1x8x8x128xf32, #tpu.memory_space<vmem>>, vector<1x8x8x128xf32>,
    return
  }
  func.func @transform_0(%arg0: i32) -> (i32, i32, i32, i32) {
    %c0_i32 = arith.constant 0 : i32
    %c0_i32_0 = arith.constant 0 : i32
    %c0_i32_1 = arith.constant 0 : i32
    %c0_i32_2 = arith.constant 0 : i32
    return %arg0, %c0_i32, %c0_i32_0, %c0_i32_1 : i32, i32, i32, i32
  }
  func.func @transform_1(%arg0: i32) -> (i32, i32) {
    %c0_i32 = arith.constant 0 : i32
    %c0_i32_0 = arith.constant 0 : i32
    %c0_i32_1 = arith.constant 0 : i32
    return %c0_i32, %c0_i32_0 : i32, i32
  }
  func.func @transform_2(%arg0: i32) -> (i32, i32) {
    %c0_i32 = arith.constant 0 : i32
    %c0_i32_0 = arith.constant 0 : i32
    %c0_i32_1 = arith.constant 0 : i32
    return %c0_i32, %c0_i32_0 : i32, i32
  }
  func.func @transform_3(%arg0: i32) -> (i32, i32, i32) {
    %c0_i32 = arith.constant 0 : i32
    %c0_i32_0 = arith.constant 0 : i32
    %c0_i32_1 = arith.constant 0 : i32
    %c0_i32_2 = arith.constant 0 : i32
    return %c0_i32, %c0_i32_0, %c0_i32_1 : i32, i32, i32
  }
  func.func @transform_4(%arg0: i32) -> (i32, i32) {
    %c0_i32 = arith.constant 0 : i32
    %c0_i32_0 = arith.constant 0 : i32
    %c0_i32_1 = arith.constant 0 : i32
    return %c0_i32, %c0_i32_0 : i32, i32
  }
  func.func @transform_5(%arg0: i32) -> (i32, i32) {
    %c0_i32 = arith.constant 0 : i32
    %c0_i32_0 = arith.constant 0 : i32
    %c0_i32_1 = arith.constant 0 : i32
    return %c0_i32, %c0_i32_0 : i32, i32
  }
  func.func @transform_6(%arg0: i32) -> (i32, i32, i32) {
    %c0_i32 = arith.constant 0 : i32
    %c0_i32_0 = arith.constant 0 : i32
    %c0_i32_1 = arith.constant 0 : i32
    %c0_i32_2 = arith.constant 0 : i32
    return %c0_i32, %c0_i32_0, %c0_i32_1 : i32, i32, i32
  }
  func.func @transform_7(%arg0: i32) -> (i32, i32) {
    %c0_i32 = arith.constant 0 : i32
    %c0_i32_0 = arith.constant 0 : i32
    %c0_i32_1 = arith.constant 0 : i32
    return %c0_i32, %c0_i32_0 : i32, i32
  }
  func.func @transform_8(%arg0: i32) -> (i32, i32, i32, i32) {
    %c0_i32 = arith.constant 0 : i32
    %c0_i32_0 = arith.constant 0 : i32
    %c0_i32_1 = arith.constant 0 : i32
    %c0_i32_2 = arith.constant 0 : i32
    return %arg0, %c0_i32, %c0_i32_0, %c0_i32_1 : i32, i32, i32, i32
  }
}

module attributes {stable_mosaic.version = 11 : i64} {
  func.func @_res_block0_s2_kernel(%arg0: i32, %arg1: memref<1x8x8x128xf32, #tpu.memory_space<vmem>>, %arg2: memref<1x8x8x128xf32, #tpu.memory_space<vmem>>, %arg3: memref<1x8x8x128xf32, #tpu.memory_space<vmem>>, %arg4: memref<1x8x8x128xf32, #tpu.memory_space<vmem>>, %arg5: memref<1x128xf32, #tpu.memory_space<vmem>>, %arg6: memref<1x128xf32, #tpu.memory_space<vmem>>, %arg7: memref<9x128x128xbf16, #tpu.memory_space<vmem>>, %arg8: memref<1x128xf32, #tpu.memory_space<vmem>>, %arg9: memref<1x128xf32, #tpu.memory_space<vmem>>, %arg10: memref<9x128x128xbf16, #tpu.memory_space<vmem>>, %arg11: memref<1x128xf32, #tpu.memory_space<vmem>>, %arg12: memref<128x128xbf16, #tpu.memory_space<vmem>>, %arg13: memref<1x128xf32, #tpu.memory_space<vmem>>, %arg14: memref<1x8x8x128xf32, #tpu.memory_space<vmem>>, %arg15: memref<9x9x128xf32, #tpu.memory_space<vmem>>, %arg16: memref<9x9x128xf32, #tpu.memory_space<vmem>>, %arg17: memref<9x9x128xf32, #tpu.memory_space<vmem>>, %arg18: memref<9x9x128xf32, #tpu.memory_space<vmem>>, %arg19: memref<10x10x128xf32, #tpu.memory_space<vmem>>) attributes {dimension_semantics = [#tpu.dimension_semantics<parallel>], iteration_bounds = array<i64: 2>, scalar_prefetch = 0 : i64, scratch_operands = 5 : i64, tpu.core_type = #tpu.core_type<tc>, window_params = [{transform_indices = @transform_0, window_bounds = array<i64: 1, 8, 8, 128>}, {transform_indices = @transform_1, window_bounds = array<i64: 1, 8, 8, 128>}, {transform_indices = @transform_2, window_bounds = array<i64: 1, 8, 8, 128>}, {transform_indices = @transform_3, window_bounds = array<i64: 1, 8, 8, 128>}, {pipeline_mode = #tpu.pipeline_mode<synchronous>, transform_indices = @transform_4, window_bounds = array<i64: 1, 128>}, {pipeline_mode = #tpu.pipeline_mode<synchronous>, transform_indices = @transform_5, window_bounds = array<i64: 1, 128>}, {pipeline_mode = #tpu.pipeline_mode<synchronous>, transform_indices = @transform_6, window_bounds = array<i64: 9, 128, 128>}, {pipeline_mode = #tpu.pipeline_mode<synchronous>, transform_indices = @transform_7, window_bounds = array<i64: 1, 128>}, {pipeline_mode = #tpu.pipeline_mode<synchronous>, transform_indices = @transform_8, window_bounds = array<i64: 1, 128>}, {pipeline_mode = #tpu.pipeline_mode<synchronous>, transform_indices = @transform_9, window_bounds = array<i64: 9, 128, 128>}, {pipeline_mode = #tpu.pipeline_mode<synchronous>, transform_indices = @transform_10, window_bounds = array<i64: 1, 128>}, {pipeline_mode = #tpu.pipeline_mode<synchronous>, transform_indices = @transform_11, window_bounds = array<i64: 128, 128>}, {pipeline_mode = #tpu.pipeline_mode<synchronous>, transform_indices = @transform_12, window_bounds = array<i64: 1, 128>}, {transform_indices = @transform_13, window_bounds = array<i64: 1, 8, 8, 128>}]} {
    %c0 = arith.constant 0 : index
    %c0_0 = arith.constant 0 : index
    %0 = vector.load %arg5[%c0, %c0_0] : memref<1x128xf32, #tpu.memory_space<vmem>>, vector<1x128xf32>
    %c0_1 = arith.constant 0 : index
    %c0_2 = arith.constant 0 : index
    %1 = vector.load %arg6[%c0_1, %c0_2] : memref<1x128xf32, #tpu.memory_space<vmem>>, vector<1x128xf32>
    %cst = arith.constant 0.000000e+00 : f32
    %2 = vector.broadcast %cst : f32 to vector<1x9x128xf32>
    %c0_3 = arith.constant 0 : index
    %c0_4 = arith.constant 0 : index
    %c0_5 = arith.constant 0 : index
    %3 = vector.load %arg15[%c0_3, %c0_4, %c0_5] : memref<9x9x128xf32, #tpu.memory_space<vmem>>, vector<1x9x128xf32>
    tpu.vector_store %arg15[%c0_3, %c0_4, %c0_5], %2 {strides = array<i32>} : memref<9x9x128xf32, #tpu.memory_space<vmem>>, vector<1x9x128xf32>,
    %cst_6 = arith.constant 0.000000e+00 : f32
    %4 = vector.broadcast %cst_6 : f32 to vector<9x1x128xf32>
    %c0_7 = arith.constant 0 : index
    %c0_8 = arith.constant 0 : index
    %c0_9 = arith.constant 0 : index
    %5 = vector.load %arg15[%c0_7, %c0_8, %c0_9] : memref<9x9x128xf32, #tpu.memory_space<vmem>>, vector<9x1x128xf32>
    tpu.vector_store %arg15[%c0_7, %c0_8, %c0_9], %4 {strides = array<i32>} : memref<9x9x128xf32, #tpu.memory_space<vmem>>, vector<9x1x128xf32>,
    %c0_10 = arith.constant 0 : index
    %c0_11 = arith.constant 0 : index
    %c0_12 = arith.constant 0 : index
    %c0_13 = arith.constant 0 : index
    %6 = vector.load %arg1[%c0_10, %c0_11, %c0_12, %c0_13] : memref<1x8x8x128xf32, #tpu.memory_space<vmem>>, vector<1x8x8x128xf32>
    %7 = vector.shape_cast %6 : vector<1x8x8x128xf32> to vector<8x8x128xf32>
    %8 = vector.shape_cast %0 : vector<1x128xf32> to vector<1x1x128xf32>
    %9 = vector.broadcast %8 : vector<1x1x128xf32> to vector<8x8x128xf32>
    %10 = arith.mulf %7, %9 : vector<8x8x128xf32>
    %11 = vector.shape_cast %1 : vector<1x128xf32> to vector<1x1x128xf32>
    %12 = vector.broadcast %11 : vector<1x1x128xf32> to vector<8x8x128xf32>
    %13 = arith.addf %10, %12 : vector<8x8x128xf32>
    %cst_14 = arith.constant 0.000000e+00 : f32
    %14 = vector.broadcast %cst_14 : f32 to vector<8x8x128xf32>
    %15 = arith.maximumf %13, %14 : vector<8x8x128xf32>
    %c1 = arith.constant 1 : index
    %c1_15 = arith.constant 1 : index
    %c0_16 = arith.constant 0 : index
    %16 = vector.load %arg15[%c1, %c1_15, %c0_16] : memref<9x9x128xf32, #tpu.memory_space<vmem>>, vector<8x8x128xf32>
    tpu.vector_store %arg15[%c1, %c1_15, %c0_16], %15 {strides = array<i32>} : memref<9x9x128xf32, #tpu.memory_space<vmem>>, vector<8x8x128xf32>,
    %cst_17 = arith.constant 0.000000e+00 : f32
    %17 = vector.broadcast %cst_17 : f32 to vector<1x9x128xf32>
    %c0_18 = arith.constant 0 : index
    %c0_19 = arith.constant 0 : index
    %c0_20 = arith.constant 0 : index
    %18 = vector.load %arg16[%c0_18, %c0_19, %c0_20] : memref<9x9x128xf32, #tpu.memory_space<vmem>>, vector<1x9x128xf32>
    tpu.vector_store %arg16[%c0_18, %c0_19, %c0_20], %17 {strides = array<i32>} : memref<9x9x128xf32, #tpu.memory_space<vmem>>, vector<1x9x128xf32>,
    %cst_21 = arith.constant 0.000000e+00 : f32
    %19 = vector.broadcast %cst_21 : f32 to vector<9x1x128xf32>
    %c0_22 = arith.constant 0 : index
    %c0_23 = arith.constant 0 : index
    %c0_24 = arith.constant 0 : index
    %20 = vector.load %arg16[%c0_22, %c0_23, %c0_24] : memref<9x9x128xf32, #tpu.memory_space<vmem>>, vector<9x1x128xf32>
    tpu.vector_store %arg16[%c0_22, %c0_23, %c0_24], %19 {strides = array<i32>} : memref<9x9x128xf32, #tpu.memory_space<vmem>>, vector<9x1x128xf32>,
    %c0_25 = arith.constant 0 : index
    %c0_26 = arith.constant 0 : index
    %c0_27 = arith.constant 0 : index
    %c0_28 = arith.constant 0 : index
    %21 = vector.load %arg2[%c0_25, %c0_26, %c0_27, %c0_28] : memref<1x8x8x128xf32, #tpu.memory_space<vmem>>, vector<1x8x8x128xf32>
    %22 = vector.shape_cast %21 : vector<1x8x8x128xf32> to vector<8x8x128xf32>
    %23 = vector.shape_cast %0 : vector<1x128xf32> to vector<1x1x128xf32>
    %24 = vector.broadcast %23 : vector<1x1x128xf32> to vector<8x8x128xf32>
    %25 = arith.mulf %22, %24 : vector<8x8x128xf32>
    %26 = vector.shape_cast %1 : vector<1x128xf32> to vector<1x1x128xf32>
    %27 = vector.broadcast %26 : vector<1x1x128xf32> to vector<8x8x128xf32>
    %28 = arith.addf %25, %27 : vector<8x8x128xf32>
    %cst_29 = arith.constant 0.000000e+00 : f32
    %29 = vector.broadcast %cst_29 : f32 to vector<8x8x128xf32>
    %30 = arith.maximumf %28, %29 : vector<8x8x128xf32>
    %c1_30 = arith.constant 1 : index
    %c1_31 = arith.constant 1 : index
    %c0_32 = arith.constant 0 : index
    %31 = vector.load %arg16[%c1_30, %c1_31, %c0_32] : memref<9x9x128xf32, #tpu.memory_space<vmem>>, vector<8x8x128xf32>
    tpu.vector_store %arg16[%c1_30, %c1_31, %c0_32], %30 {strides = array<i32>} : memref<9x9x128xf32, #tpu.memory_space<vmem>>, vector<8x8x128xf32>,
    %cst_33 = arith.constant 0.000000e+00 : f32
    %32 = vector.broadcast %cst_33 : f32 to vector<1x9x128xf32>
    %c0_34 = arith.constant 0 : index
    %c0_35 = arith.constant 0 : index
    %c0_36 = arith.constant 0 : index
    %33 = vector.load %arg17[%c0_34, %c0_35, %c0_36] : memref<9x9x128xf32, #tpu.memory_space<vmem>>, vector<1x9x128xf32>
    tpu.vector_store %arg17[%c0_34, %c0_35, %c0_36], %32 {strides = array<i32>} : memref<9x9x128xf32, #tpu.memory_space<vmem>>, vector<1x9x128xf32>,
    %cst_37 = arith.constant 0.000000e+00 : f32
    %34 = vector.broadcast %cst_37 : f32 to vector<9x1x128xf32>
    %c0_38 = arith.constant 0 : index
    %c0_39 = arith.constant 0 : index
    %c0_40 = arith.constant 0 : index
    %35 = vector.load %arg17[%c0_38, %c0_39, %c0_40] : memref<9x9x128xf32, #tpu.memory_space<vmem>>, vector<9x1x128xf32>
    tpu.vector_store %arg17[%c0_38, %c0_39, %c0_40], %34 {strides = array<i32>} : memref<9x9x128xf32, #tpu.memory_space<vmem>>, vector<9x1x128xf32>,
    %c0_41 = arith.constant 0 : index
    %c0_42 = arith.constant 0 : index
    %c0_43 = arith.constant 0 : index
    %c0_44 = arith.constant 0 : index
    %36 = vector.load %arg3[%c0_41, %c0_42, %c0_43, %c0_44] : memref<1x8x8x128xf32, #tpu.memory_space<vmem>>, vector<1x8x8x128xf32>
    %37 = vector.shape_cast %36 : vector<1x8x8x128xf32> to vector<8x8x128xf32>
    %38 = vector.shape_cast %0 : vector<1x128xf32> to vector<1x1x128xf32>
    %39 = vector.broadcast %38 : vector<1x1x128xf32> to vector<8x8x128xf32>
    %40 = arith.mulf %37, %39 : vector<8x8x128xf32>
    %41 = vector.shape_cast %1 : vector<1x128xf32> to vector<1x1x128xf32>
    %42 = vector.broadcast %41 : vector<1x1x128xf32> to vector<8x8x128xf32>
    %43 = arith.addf %40, %42 : vector<8x8x128xf32>
    %cst_45 = arith.constant 0.000000e+00 : f32
    %44 = vector.broadcast %cst_45 : f32 to vector<8x8x128xf32>
    %45 = arith.maximumf %43, %44 : vector<8x8x128xf32>
    %c1_46 = arith.constant 1 : index
    %c1_47 = arith.constant 1 : index
    %c0_48 = arith.constant 0 : index
    %46 = vector.load %arg17[%c1_46, %c1_47, %c0_48] : memref<9x9x128xf32, #tpu.memory_space<vmem>>, vector<8x8x128xf32>
    tpu.vector_store %arg17[%c1_46, %c1_47, %c0_48], %45 {strides = array<i32>} : memref<9x9x128xf32, #tpu.memory_space<vmem>>, vector<8x8x128xf32>,
    %cst_49 = arith.constant 0.000000e+00 : f32
    %47 = vector.broadcast %cst_49 : f32 to vector<1x9x128xf32>
    %c0_50 = arith.constant 0 : index
    %c0_51 = arith.constant 0 : index
    %c0_52 = arith.constant 0 : index
    %48 = vector.load %arg18[%c0_50, %c0_51, %c0_52] : memref<9x9x128xf32, #tpu.memory_space<vmem>>, vector<1x9x128xf32>
    tpu.vector_store %arg18[%c0_50, %c0_51, %c0_52], %47 {strides = array<i32>} : memref<9x9x128xf32, #tpu.memory_space<vmem>>, vector<1x9x128xf32>,
    %cst_53 = arith.constant 0.000000e+00 : f32
    %49 = vector.broadcast %cst_53 : f32 to vector<9x1x128xf32>
    %c0_54 = arith.constant 0 : index
    %c0_55 = arith.constant 0 : index
    %c0_56 = arith.constant 0 : index
    %50 = vector.load %arg18[%c0_54, %c0_55, %c0_56] : memref<9x9x128xf32, #tpu.memory_space<vmem>>, vector<9x1x128xf32>
    tpu.vector_store %arg18[%c0_54, %c0_55, %c0_56], %49 {strides = array<i32>} : memref<9x9x128xf32, #tpu.memory_space<vmem>>, vector<9x1x128xf32>,
    %c0_57 = arith.constant 0 : index
    %c0_58 = arith.constant 0 : index
    %c0_59 = arith.constant 0 : index
    %c0_60 = arith.constant 0 : index
    %51 = vector.load %arg4[%c0_57, %c0_58, %c0_59, %c0_60] : memref<1x8x8x128xf32, #tpu.memory_space<vmem>>, vector<1x8x8x128xf32>
    %52 = vector.shape_cast %51 : vector<1x8x8x128xf32> to vector<8x8x128xf32>
    %53 = vector.shape_cast %0 : vector<1x128xf32> to vector<1x1x128xf32>
    %54 = vector.broadcast %53 : vector<1x1x128xf32> to vector<8x8x128xf32>
    %55 = arith.mulf %52, %54 : vector<8x8x128xf32>
    %56 = vector.shape_cast %1 : vector<1x128xf32> to vector<1x1x128xf32>
    %57 = vector.broadcast %56 : vector<1x1x128xf32> to vector<8x8x128xf32>
    %58 = arith.addf %55, %57 : vector<8x8x128xf32>
    %cst_61 = arith.constant 0.000000e+00 : f32
    %59 = vector.broadcast %cst_61 : f32 to vector<8x8x128xf32>
    %60 = arith.maximumf %58, %59 : vector<8x8x128xf32>
    %c1_62 = arith.constant 1 : index
    %c1_63 = arith.constant 1 : index
    %c0_64 = arith.constant 0 : index
    %61 = vector.load %arg18[%c1_62, %c1_63, %c0_64] : memref<9x9x128xf32, #tpu.memory_space<vmem>>, vector<8x8x128xf32>
    tpu.vector_store %arg18[%c1_62, %c1_63, %c0_64], %60 {strides = array<i32>} : memref<9x9x128xf32, #tpu.memory_space<vmem>>, vector<8x8x128xf32>,
    %c0_65 = arith.constant 0 : index
    %c0_66 = arith.constant 0 : index
    %c0_67 = arith.constant 0 : index
    %62 = vector.load %arg18[%c0_65, %c0_66, %c0_67] : memref<9x9x128xf32, #tpu.memory_space<vmem>>, vector<9x8x128xf32>
    %63 = vector.extract_strided_slice %62 {offsets = [0, 0, 0], sizes = [8, 8, 128], strides = [1, 1, 1]} : vector<9x8x128xf32> to vector<8x8x128xf32>
    %64 = vector.shape_cast %63 : vector<8x8x128xf32> to vector<64x128xf32>
    %65 = arith.truncf %64 : vector<64x128xf32> to vector<64x128xbf16>
    %c0_68 = arith.constant 0 : index
    %c0_69 = arith.constant 0 : index
    %c0_70 = arith.constant 0 : index
    %66 = vector.load %arg7[%c0_68, %c0_69, %c0_70] : memref<9x128x128xbf16, #tpu.memory_space<vmem>>, vector<1x128x128xbf16>
    %67 = vector.shape_cast %66 : vector<1x128x128xbf16> to vector<128x128xbf16>
    %cst_71 = arith.constant dense<0.000000e+00> : vector<64x128xf32>
    %68 = tpu.matmul %65, %67, %cst_71 {dimension_numbers = #tpu.dot_dimension_numbers<[1], [0], [0], [1], [0, 0, 1, 1], [], []>} : vector<64x128xbf16>, vector<128x128xbf16>, vector<64x128xf32> -> vector<64x128xf32>
    %69 = vector.extract_strided_slice %62 {offsets = [1, 0, 0], sizes = [8, 8, 128], strides = [1, 1, 1]} : vector<9x8x128xf32> to vector<8x8x128xf32>
    %70 = vector.shape_cast %69 : vector<8x8x128xf32> to vector<64x128xf32>
    %71 = arith.truncf %70 : vector<64x128xf32> to vector<64x128xbf16>
    %c6 = arith.constant 6 : index
    %c0_72 = arith.constant 0 : index
    %c0_73 = arith.constant 0 : index
    %72 = vector.load %arg7[%c6, %c0_72, %c0_73] : memref<9x128x128xbf16, #tpu.memory_space<vmem>>, vector<1x128x128xbf16>
    %73 = vector.shape_cast %72 : vector<1x128x128xbf16> to vector<128x128xbf16>
    %cst_74 = arith.constant dense<0.000000e+00> : vector<64x128xf32>
    %74 = tpu.matmul %71, %73, %cst_74 {dimension_numbers = #tpu.dot_dimension_numbers<[1], [0], [0], [1], [0, 0, 1, 1], [], []>} : vector<64x128xbf16>, vector<128x128xbf16>, vector<64x128xf32> -> vector<64x128xf32>
    %75 = arith.addf %68, %74 : vector<64x128xf32>
    %c0_75 = arith.constant 0 : index
    %c1_76 = arith.constant 1 : index
    %c0_77 = arith.constant 0 : index
    %76 = vector.load %arg18[%c0_75, %c1_76, %c0_77] : memref<9x9x128xf32, #tpu.memory_space<vmem>>, vector<9x8x128xf32>
    %77 = vector.extract_strided_slice %76 {offsets = [0, 0, 0], sizes = [8, 8, 128], strides = [1, 1, 1]} : vector<9x8x128xf32> to vector<8x8x128xf32>
    %78 = vector.shape_cast %77 : vector<8x8x128xf32> to vector<64x128xf32>
    %79 = arith.truncf %78 : vector<64x128xf32> to vector<64x128xbf16>
    %c2 = arith.constant 2 : index
    %c0_78 = arith.constant 0 : index
    %c0_79 = arith.constant 0 : index
    %80 = vector.load %arg7[%c2, %c0_78, %c0_79] : memref<9x128x128xbf16, #tpu.memory_space<vmem>>, vector<1x128x128xbf16>
    %81 = vector.shape_cast %80 : vector<1x128x128xbf16> to vector<128x128xbf16>
    %cst_80 = arith.constant dense<0.000000e+00> : vector<64x128xf32>
    %82 = tpu.matmul %79, %81, %cst_80 {dimension_numbers = #tpu.dot_dimension_numbers<[1], [0], [0], [1], [0, 0, 1, 1], [], []>} : vector<64x128xbf16>, vector<128x128xbf16>, vector<64x128xf32> -> vector<64x128xf32>
    %83 = arith.addf %75, %82 : vector<64x128xf32>
    %84 = vector.extract_strided_slice %76 {offsets = [1, 0, 0], sizes = [8, 8, 128], strides = [1, 1, 1]} : vector<9x8x128xf32> to vector<8x8x128xf32>
    %85 = vector.shape_cast %84 : vector<8x8x128xf32> to vector<64x128xf32>
    %86 = arith.truncf %85 : vector<64x128xf32> to vector<64x128xbf16>
    %c8 = arith.constant 8 : index
    %c0_81 = arith.constant 0 : index
    %c0_82 = arith.constant 0 : index
    %87 = vector.load %arg7[%c8, %c0_81, %c0_82] : memref<9x128x128xbf16, #tpu.memory_space<vmem>>, vector<1x128x128xbf16>
    %88 = vector.shape_cast %87 : vector<1x128x128xbf16> to vector<128x128xbf16>
    %cst_83 = arith.constant dense<0.000000e+00> : vector<64x128xf32>
    %89 = tpu.matmul %86, %88, %cst_83 {dimension_numbers = #tpu.dot_dimension_numbers<[1], [0], [0], [1], [0, 0, 1, 1], [], []>} : vector<64x128xbf16>, vector<128x128xbf16>, vector<64x128xf32> -> vector<64x128xf32>
    %90 = arith.addf %83, %89 : vector<64x128xf32>
    %c0_84 = arith.constant 0 : index
    %c1_85 = arith.constant 1 : index
    %c0_86 = arith.constant 0 : index
    %91 = vector.load %arg17[%c0_84, %c1_85, %c0_86] : memref<9x9x128xf32, #tpu.memory_space<vmem>>, vector<9x8x128xf32>
    %92 = vector.extract_strided_slice %91 {offsets = [0, 0, 0], sizes = [8, 8, 128], strides = [1, 1, 1]} : vector<9x8x128xf32> to vector<8x8x128xf32>
    %93 = vector.shape_cast %92 : vector<8x8x128xf32> to vector<64x128xf32>
    %94 = arith.truncf %93 : vector<64x128xf32> to vector<64x128xbf16>
    %c1_87 = arith.constant 1 : index
    %c0_88 = arith.constant 0 : index
    %c0_89 = arith.constant 0 : index
    %95 = vector.load %arg7[%c1_87, %c0_88, %c0_89] : memref<9x128x128xbf16, #tpu.memory_space<vmem>>, vector<1x128x128xbf16>
    %96 = vector.shape_cast %95 : vector<1x128x128xbf16> to vector<128x128xbf16>
    %cst_90 = arith.constant dense<0.000000e+00> : vector<64x128xf32>
    %97 = tpu.matmul %94, %96, %cst_90 {dimension_numbers = #tpu.dot_dimension_numbers<[1], [0], [0], [1], [0, 0, 1, 1], [], []>} : vector<64x128xbf16>, vector<128x128xbf16>, vector<64x128xf32> -> vector<64x128xf32>
    %98 = arith.addf %90, %97 : vector<64x128xf32>
    %99 = vector.extract_strided_slice %91 {offsets = [1, 0, 0], sizes = [8, 8, 128], strides = [1, 1, 1]} : vector<9x8x128xf32> to vector<8x8x128xf32>
    %100 = vector.shape_cast %99 : vector<8x8x128xf32> to vector<64x128xf32>
    %101 = arith.truncf %100 : vector<64x128xf32> to vector<64x128xbf16>
    %c7 = arith.constant 7 : index
    %c0_91 = arith.constant 0 : index
    %c0_92 = arith.constant 0 : index
    %102 = vector.load %arg7[%c7, %c0_91, %c0_92] : memref<9x128x128xbf16, #tpu.memory_space<vmem>>, vector<1x128x128xbf16>
    %103 = vector.shape_cast %102 : vector<1x128x128xbf16> to vector<128x128xbf16>
    %cst_93 = arith.constant dense<0.000000e+00> : vector<64x128xf32>
    %104 = tpu.matmul %101, %103, %cst_93 {dimension_numbers = #tpu.dot_dimension_numbers<[1], [0], [0], [1], [0, 0, 1, 1], [], []>} : vector<64x128xbf16>, vector<128x128xbf16>, vector<64x128xf32> -> vector<64x128xf32>
    %105 = arith.addf %98, %104 : vector<64x128xf32>
    %c0_94 = arith.constant 0 : index
    %c0_95 = arith.constant 0 : index
    %c0_96 = arith.constant 0 : index
    %106 = vector.load %arg16[%c0_94, %c0_95, %c0_96] : memref<9x9x128xf32, #tpu.memory_space<vmem>>, vector<9x8x128xf32>
    %107 = vector.extract_strided_slice %106 {offsets = [1, 0, 0], sizes = [8, 8, 128], strides = [1, 1, 1]} : vector<9x8x128xf32> to vector<8x8x128xf32>
    %108 = vector.shape_cast %107 : vector<8x8x128xf32> to vector<64x128xf32>
    %109 = arith.truncf %108 : vector<64x128xf32> to vector<64x128xbf16>
    %c3 = arith.constant 3 : index
    %c0_97 = arith.constant 0 : index
    %c0_98 = arith.constant 0 : index
    %110 = vector.load %arg7[%c3, %c0_97, %c0_98] : memref<9x128x128xbf16, #tpu.memory_space<vmem>>, vector<1x128x128xbf16>
    %111 = vector.shape_cast %110 : vector<1x128x128xbf16> to vector<128x128xbf16>
    %cst_99 = arith.constant dense<0.000000e+00> : vector<64x128xf32>
    %112 = tpu.matmul %109, %111, %cst_99 {dimension_numbers = #tpu.dot_dimension_numbers<[1], [0], [0], [1], [0, 0, 1, 1], [], []>} : vector<64x128xbf16>, vector<128x128xbf16>, vector<64x128xf32> -> vector<64x128xf32>
    %113 = arith.addf %105, %112 : vector<64x128xf32>
    %c0_100 = arith.constant 0 : index
    %c1_101 = arith.constant 1 : index
    %c0_102 = arith.constant 0 : index
    %114 = vector.load %arg16[%c0_100, %c1_101, %c0_102] : memref<9x9x128xf32, #tpu.memory_space<vmem>>, vector<9x8x128xf32>
    %115 = vector.extract_strided_slice %114 {offsets = [1, 0, 0], sizes = [8, 8, 128], strides = [1, 1, 1]} : vector<9x8x128xf32> to vector<8x8x128xf32>
    %116 = vector.shape_cast %115 : vector<8x8x128xf32> to vector<64x128xf32>
    %117 = arith.truncf %116 : vector<64x128xf32> to vector<64x128xbf16>
    %c5 = arith.constant 5 : index
    %c0_103 = arith.constant 0 : index
    %c0_104 = arith.constant 0 : index
    %118 = vector.load %arg7[%c5, %c0_103, %c0_104] : memref<9x128x128xbf16, #tpu.memory_space<vmem>>, vector<1x128x128xbf16>
    %119 = vector.shape_cast %118 : vector<1x128x128xbf16> to vector<128x128xbf16>
    %cst_105 = arith.constant dense<0.000000e+00> : vector<64x128xf32>
    %120 = tpu.matmul %117, %119, %cst_105 {dimension_numbers = #tpu.dot_dimension_numbers<[1], [0], [0], [1], [0, 0, 1, 1], [], []>} : vector<64x128xbf16>, vector<128x128xbf16>, vector<64x128xf32> -> vector<64x128xf32>
    %121 = arith.addf %113, %120 : vector<64x128xf32>
    %c0_106 = arith.constant 0 : index
    %c1_107 = arith.constant 1 : index
    %c0_108 = arith.constant 0 : index
    %122 = vector.load %arg15[%c0_106, %c1_107, %c0_108] : memref<9x9x128xf32, #tpu.memory_space<vmem>>, vector<9x8x128xf32>
    %123 = vector.extract_strided_slice %122 {offsets = [1, 0, 0], sizes = [8, 8, 128], strides = [1, 1, 1]} : vector<9x8x128xf32> to vector<8x8x128xf32>
    %124 = vector.shape_cast %123 : vector<8x8x128xf32> to vector<64x128xf32>
    %125 = arith.truncf %124 : vector<64x128xf32> to vector<64x128xbf16>
    %c4 = arith.constant 4 : index
    %c0_109 = arith.constant 0 : index
    %c0_110 = arith.constant 0 : index
    %126 = vector.load %arg7[%c4, %c0_109, %c0_110] : memref<9x128x128xbf16, #tpu.memory_space<vmem>>, vector<1x128x128xbf16>
    %127 = vector.shape_cast %126 : vector<1x128x128xbf16> to vector<128x128xbf16>
    %cst_111 = arith.constant dense<0.000000e+00> : vector<64x128xf32>
    %128 = tpu.matmul %125, %127, %cst_111 {dimension_numbers = #tpu.dot_dimension_numbers<[1], [0], [0], [1], [0, 0, 1, 1], [], []>} : vector<64x128xbf16>, vector<128x128xbf16>, vector<64x128xf32> -> vector<64x128xf32>
    %129 = arith.addf %121, %128 : vector<64x128xf32>
    %cst_112 = arith.constant 0.000000e+00 : f32
    %130 = vector.broadcast %cst_112 : f32 to vector<1x10x128xf32>
    %cst_113 = arith.constant 0.000000e+00 : f32
    %131 = vector.broadcast %cst_113 : f32 to vector<10x1x128xf32>
    %c0_114 = arith.constant 0 : index
    %c0_115 = arith.constant 0 : index
    %c0_116 = arith.constant 0 : index
    %132 = vector.load %arg19[%c0_114, %c0_115, %c0_116] : memref<10x10x128xf32, #tpu.memory_space<vmem>>, vector<1x10x128xf32>
    tpu.vector_store %arg19[%c0_114, %c0_115, %c0_116], %130 {strides = array<i32>} : memref<10x10x128xf32, #tpu.memory_space<vmem>>, vector<1x10x128xf32>,
    %c9 = arith.constant 9 : index
    %c0_117 = arith.constant 0 : index
    %c0_118 = arith.constant 0 : index
    %133 = vector.load %arg19[%c9, %c0_117, %c0_118] : memref<10x10x128xf32, #tpu.memory_space<vmem>>, vector<1x10x128xf32>
    tpu.vector_store %arg19[%c9, %c0_117, %c0_118], %130 {strides = array<i32>} : memref<10x10x128xf32, #tpu.memory_space<vmem>>, vector<1x10x128xf32>,
    %c0_119 = arith.constant 0 : index
    %c0_120 = arith.constant 0 : index
    %c0_121 = arith.constant 0 : index
    %134 = vector.load %arg19[%c0_119, %c0_120, %c0_121] : memref<10x10x128xf32, #tpu.memory_space<vmem>>, vector<10x1x128xf32>
    tpu.vector_store %arg19[%c0_119, %c0_120, %c0_121], %131 {strides = array<i32>} : memref<10x10x128xf32, #tpu.memory_space<vmem>>, vector<10x1x128xf32>,
    %c0_122 = arith.constant 0 : index
    %c9_123 = arith.constant 9 : index
    %c0_124 = arith.constant 0 : index
    %135 = vector.load %arg19[%c0_122, %c9_123, %c0_124] : memref<10x10x128xf32, #tpu.memory_space<vmem>>, vector<10x1x128xf32>
    tpu.vector_store %arg19[%c0_122, %c9_123, %c0_124], %131 {strides = array<i32>} : memref<10x10x128xf32, #tpu.memory_space<vmem>>, vector<10x1x128xf32>,
    %c0_125 = arith.constant 0 : index
    %c0_126 = arith.constant 0 : index
    %136 = vector.load %arg8[%c0_125, %c0_126] : memref<1x128xf32, #tpu.memory_space<vmem>>, vector<1x128xf32>
    %137 = vector.broadcast %136 : vector<1x128xf32> to vector<64x128xf32>
    %138 = arith.mulf %129, %137 : vector<64x128xf32>
    %c0_127 = arith.constant 0 : index
    %c0_128 = arith.constant 0 : index
    %139 = vector.load %arg9[%c0_127, %c0_128] : memref<1x128xf32, #tpu.memory_space<vmem>>, vector<1x128xf32>
    %140 = vector.broadcast %139 : vector<1x128xf32> to vector<64x128xf32>
    %141 = arith.addf %138, %140 : vector<64x128xf32>
    %cst_129 = arith.constant 0.000000e+00 : f32
    %142 = vector.broadcast %cst_129 : f32 to vector<64x128xf32>
    %143 = arith.maximumf %141, %142 : vector<64x128xf32>
    %144 = vector.shape_cast %143 : vector<64x128xf32> to vector<8x8x128xf32>
    %c1_130 = arith.constant 1 : index
    %c1_131 = arith.constant 1 : index
    %c0_132 = arith.constant 0 : index
    %145 = vector.load %arg19[%c1_130, %c1_131, %c0_132] : memref<10x10x128xf32, #tpu.memory_space<vmem>>, vector<8x8x128xf32>
    tpu.vector_store %arg19[%c1_130, %c1_131, %c0_132], %144 {strides = array<i32>} : memref<10x10x128xf32, #tpu.memory_space<vmem>>, vector<8x8x128xf32>,
    %c0_133 = arith.constant 0 : index
    %c0_134 = arith.constant 0 : index
    %146 = vector.load %arg11[%c0_133, %c0_134] : memref<1x128xf32, #tpu.memory_space<vmem>>, vector<1x128xf32>
    %c0_135 = arith.constant 0 : index
    %c0_136 = arith.constant 0 : index
    %c0_137 = arith.constant 0 : index
    %147 = vector.load %arg19[%c0_135, %c0_136, %c0_137] : memref<10x10x128xf32, #tpu.memory_space<vmem>>, vector<10x8x128xf32>
    %148 = vector.extract_strided_slice %147 {offsets = [0, 0, 0], sizes = [8, 8, 128], strides = [1, 1, 1]} : vector<10x8x128xf32> to vector<8x8x128xf32>
    %149 = vector.shape_cast %148 : vector<8x8x128xf32> to vector<64x128xf32>
    %150 = arith.truncf %149 : vector<64x128xf32> to vector<64x128xbf16>
    %c0_138 = arith.constant 0 : index
    %c0_139 = arith.constant 0 : index
    %c0_140 = arith.constant 0 : index
    %151 = vector.load %arg10[%c0_138, %c0_139, %c0_140] : memref<9x128x128xbf16, #tpu.memory_space<vmem>>, vector<1x128x128xbf16>
    %152 = vector.shape_cast %151 : vector<1x128x128xbf16> to vector<128x128xbf16>
    %cst_141 = arith.constant dense<0.000000e+00> : vector<64x128xf32>
    %153 = tpu.matmul %150, %152, %cst_141 {dimension_numbers = #tpu.dot_dimension_numbers<[1], [0], [0], [1], [0, 0, 1, 1], [], []>} : vector<64x128xbf16>, vector<128x128xbf16>, vector<64x128xf32> -> vector<64x128xf32>
    %154 = vector.broadcast %146 : vector<1x128xf32> to vector<64x128xf32>
    %155 = arith.addf %154, %153 : vector<64x128xf32>
    %156 = vector.extract_strided_slice %147 {offsets = [1, 0, 0], sizes = [8, 8, 128], strides = [1, 1, 1]} : vector<10x8x128xf32> to vector<8x8x128xf32>
    %157 = vector.shape_cast %156 : vector<8x8x128xf32> to vector<64x128xf32>
    %158 = arith.truncf %157 : vector<64x128xf32> to vector<64x128xbf16>
    %c3_142 = arith.constant 3 : index
    %c0_143 = arith.constant 0 : index
    %c0_144 = arith.constant 0 : index
    %159 = vector.load %arg10[%c3_142, %c0_143, %c0_144] : memref<9x128x128xbf16, #tpu.memory_space<vmem>>, vector<1x128x128xbf16>
    %160 = vector.shape_cast %159 : vector<1x128x128xbf16> to vector<128x128xbf16>
    %cst_145 = arith.constant dense<0.000000e+00> : vector<64x128xf32>
    %161 = tpu.matmul %158, %160, %cst_145 {dimension_numbers = #tpu.dot_dimension_numbers<[1], [0], [0], [1], [0, 0, 1, 1], [], []>} : vector<64x128xbf16>, vector<128x128xbf16>, vector<64x128xf32> -> vector<64x128xf32>
    %162 = arith.addf %155, %161 : vector<64x128xf32>
    %163 = vector.extract_strided_slice %147 {offsets = [2, 0, 0], sizes = [8, 8, 128], strides = [1, 1, 1]} : vector<10x8x128xf32> to vector<8x8x128xf32>
    %164 = vector.shape_cast %163 : vector<8x8x128xf32> to vector<64x128xf32>
    %165 = arith.truncf %164 : vector<64x128xf32> to vector<64x128xbf16>
    %c6_146 = arith.constant 6 : index
    %c0_147 = arith.constant 0 : index
    %c0_148 = arith.constant 0 : index
    %166 = vector.load %arg10[%c6_146, %c0_147, %c0_148] : memref<9x128x128xbf16, #tpu.memory_space<vmem>>, vector<1x128x128xbf16>
    %167 = vector.shape_cast %166 : vector<1x128x128xbf16> to vector<128x128xbf16>
    %cst_149 = arith.constant dense<0.000000e+00> : vector<64x128xf32>
    %168 = tpu.matmul %165, %167, %cst_149 {dimension_numbers = #tpu.dot_dimension_numbers<[1], [0], [0], [1], [0, 0, 1, 1], [], []>} : vector<64x128xbf16>, vector<128x128xbf16>, vector<64x128xf32> -> vector<64x128xf32>
    %169 = arith.addf %162, %168 : vector<64x128xf32>
    %c0_150 = arith.constant 0 : index
    %c1_151 = arith.constant 1 : index
    %c0_152 = arith.constant 0 : index
    %170 = vector.load %arg19[%c0_150, %c1_151, %c0_152] : memref<10x10x128xf32, #tpu.memory_space<vmem>>, vector<10x8x128xf32>
    %171 = vector.extract_strided_slice %170 {offsets = [0, 0, 0], sizes = [8, 8, 128], strides = [1, 1, 1]} : vector<10x8x128xf32> to vector<8x8x128xf32>
    %172 = vector.shape_cast %171 : vector<8x8x128xf32> to vector<64x128xf32>
    %173 = arith.truncf %172 : vector<64x128xf32> to vector<64x128xbf16>
    %c1_153 = arith.constant 1 : index
    %c0_154 = arith.constant 0 : index
    %c0_155 = arith.constant 0 : index
    %174 = vector.load %arg10[%c1_153, %c0_154, %c0_155] : memref<9x128x128xbf16, #tpu.memory_space<vmem>>, vector<1x128x128xbf16>
    %175 = vector.shape_cast %174 : vector<1x128x128xbf16> to vector<128x128xbf16>
    %cst_156 = arith.constant dense<0.000000e+00> : vector<64x128xf32>
    %176 = tpu.matmul %173, %175, %cst_156 {dimension_numbers = #tpu.dot_dimension_numbers<[1], [0], [0], [1], [0, 0, 1, 1], [], []>} : vector<64x128xbf16>, vector<128x128xbf16>, vector<64x128xf32> -> vector<64x128xf32>
    %177 = arith.addf %169, %176 : vector<64x128xf32>
    %178 = vector.extract_strided_slice %170 {offsets = [1, 0, 0], sizes = [8, 8, 128], strides = [1, 1, 1]} : vector<10x8x128xf32> to vector<8x8x128xf32>
    %179 = vector.shape_cast %178 : vector<8x8x128xf32> to vector<64x128xf32>
    %180 = arith.truncf %179 : vector<64x128xf32> to vector<64x128xbf16>
    %c4_157 = arith.constant 4 : index
    %c0_158 = arith.constant 0 : index
    %c0_159 = arith.constant 0 : index
    %181 = vector.load %arg10[%c4_157, %c0_158, %c0_159] : memref<9x128x128xbf16, #tpu.memory_space<vmem>>, vector<1x128x128xbf16>
    %182 = vector.shape_cast %181 : vector<1x128x128xbf16> to vector<128x128xbf16>
    %cst_160 = arith.constant dense<0.000000e+00> : vector<64x128xf32>
    %183 = tpu.matmul %180, %182, %cst_160 {dimension_numbers = #tpu.dot_dimension_numbers<[1], [0], [0], [1], [0, 0, 1, 1], [], []>} : vector<64x128xbf16>, vector<128x128xbf16>, vector<64x128xf32> -> vector<64x128xf32>
    %184 = arith.addf %177, %183 : vector<64x128xf32>
    %185 = vector.extract_strided_slice %170 {offsets = [2, 0, 0], sizes = [8, 8, 128], strides = [1, 1, 1]} : vector<10x8x128xf32> to vector<8x8x128xf32>
    %186 = vector.shape_cast %185 : vector<8x8x128xf32> to vector<64x128xf32>
    %187 = arith.truncf %186 : vector<64x128xf32> to vector<64x128xbf16>
    %c7_161 = arith.constant 7 : index
    %c0_162 = arith.constant 0 : index
    %c0_163 = arith.constant 0 : index
    %188 = vector.load %arg10[%c7_161, %c0_162, %c0_163] : memref<9x128x128xbf16, #tpu.memory_space<vmem>>, vector<1x128x128xbf16>
    %189 = vector.shape_cast %188 : vector<1x128x128xbf16> to vector<128x128xbf16>
    %cst_164 = arith.constant dense<0.000000e+00> : vector<64x128xf32>
    %190 = tpu.matmul %187, %189, %cst_164 {dimension_numbers = #tpu.dot_dimension_numbers<[1], [0], [0], [1], [0, 0, 1, 1], [], []>} : vector<64x128xbf16>, vector<128x128xbf16>, vector<64x128xf32> -> vector<64x128xf32>
    %191 = arith.addf %184, %190 : vector<64x128xf32>
    %c0_165 = arith.constant 0 : index
    %c2_166 = arith.constant 2 : index
    %c0_167 = arith.constant 0 : index
    %192 = vector.load %arg19[%c0_165, %c2_166, %c0_167] : memref<10x10x128xf32, #tpu.memory_space<vmem>>, vector<10x8x128xf32>
    %193 = vector.extract_strided_slice %192 {offsets = [0, 0, 0], sizes = [8, 8, 128], strides = [1, 1, 1]} : vector<10x8x128xf32> to vector<8x8x128xf32>
    %194 = vector.shape_cast %193 : vector<8x8x128xf32> to vector<64x128xf32>
    %195 = arith.truncf %194 : vector<64x128xf32> to vector<64x128xbf16>
    %c2_168 = arith.constant 2 : index
    %c0_169 = arith.constant 0 : index
    %c0_170 = arith.constant 0 : index
    %196 = vector.load %arg10[%c2_168, %c0_169, %c0_170] : memref<9x128x128xbf16, #tpu.memory_space<vmem>>, vector<1x128x128xbf16>
    %197 = vector.shape_cast %196 : vector<1x128x128xbf16> to vector<128x128xbf16>
    %cst_171 = arith.constant dense<0.000000e+00> : vector<64x128xf32>
    %198 = tpu.matmul %195, %197, %cst_171 {dimension_numbers = #tpu.dot_dimension_numbers<[1], [0], [0], [1], [0, 0, 1, 1], [], []>} : vector<64x128xbf16>, vector<128x128xbf16>, vector<64x128xf32> -> vector<64x128xf32>
    %199 = arith.addf %191, %198 : vector<64x128xf32>
    %200 = vector.extract_strided_slice %192 {offsets = [1, 0, 0], sizes = [8, 8, 128], strides = [1, 1, 1]} : vector<10x8x128xf32> to vector<8x8x128xf32>
    %201 = vector.shape_cast %200 : vector<8x8x128xf32> to vector<64x128xf32>
    %202 = arith.truncf %201 : vector<64x128xf32> to vector<64x128xbf16>
    %c5_172 = arith.constant 5 : index
    %c0_173 = arith.constant 0 : index
    %c0_174 = arith.constant 0 : index
    %203 = vector.load %arg10[%c5_172, %c0_173, %c0_174] : memref<9x128x128xbf16, #tpu.memory_space<vmem>>, vector<1x128x128xbf16>
    %204 = vector.shape_cast %203 : vector<1x128x128xbf16> to vector<128x128xbf16>
    %cst_175 = arith.constant dense<0.000000e+00> : vector<64x128xf32>
    %205 = tpu.matmul %202, %204, %cst_175 {dimension_numbers = #tpu.dot_dimension_numbers<[1], [0], [0], [1], [0, 0, 1, 1], [], []>} : vector<64x128xbf16>, vector<128x128xbf16>, vector<64x128xf32> -> vector<64x128xf32>
    %206 = arith.addf %199, %205 : vector<64x128xf32>
    %207 = vector.extract_strided_slice %192 {offsets = [2, 0, 0], sizes = [8, 8, 128], strides = [1, 1, 1]} : vector<10x8x128xf32> to vector<8x8x128xf32>
    %208 = vector.shape_cast %207 : vector<8x8x128xf32> to vector<64x128xf32>
    %209 = arith.truncf %208 : vector<64x128xf32> to vector<64x128xbf16>
    %c8_176 = arith.constant 8 : index
    %c0_177 = arith.constant 0 : index
    %c0_178 = arith.constant 0 : index
    %210 = vector.load %arg10[%c8_176, %c0_177, %c0_178] : memref<9x128x128xbf16, #tpu.memory_space<vmem>>, vector<1x128x128xbf16>
    %211 = vector.shape_cast %210 : vector<1x128x128xbf16> to vector<128x128xbf16>
    %cst_179 = arith.constant dense<0.000000e+00> : vector<64x128xf32>
    %212 = tpu.matmul %209, %211, %cst_179 {dimension_numbers = #tpu.dot_dimension_numbers<[1], [0], [0], [1], [0, 0, 1, 1], [], []>} : vector<64x128xbf16>, vector<128x128xbf16>, vector<64x128xf32> -> vector<64x128xf32>
    %213 = arith.addf %206, %212 : vector<64x128xf32>
    %c0_180 = arith.constant 0 : index
    %c0_181 = arith.constant 0 : index
    %c0_182 = arith.constant 0 : index
    %c0_183 = arith.constant 0 : index
    %214 = vector.load %arg1[%c0_180, %c0_181, %c0_182, %c0_183] : memref<1x8x8x128xf32, #tpu.memory_space<vmem>>, vector<1x8x8x128xf32>
    %215 = vector.shape_cast %214 : vector<1x8x8x128xf32> to vector<8x8x128xf32>
    %216 = vector.shape_cast %215 : vector<8x8x128xf32> to vector<64x128xf32>
    %217 = arith.truncf %216 : vector<64x128xf32> to vector<64x128xbf16>
    %c0_184 = arith.constant 0 : index
    %c0_185 = arith.constant 0 : index
    %218 = vector.load %arg12[%c0_184, %c0_185] : memref<128x128xbf16, #tpu.memory_space<vmem>>, vector<128x128xbf16>
    %cst_186 = arith.constant dense<0.000000e+00> : vector<64x128xf32>
    %219 = tpu.matmul %217, %218, %cst_186 {dimension_numbers = #tpu.dot_dimension_numbers<[1], [0], [0], [1], [0, 0, 1, 1], [], []>} : vector<64x128xbf16>, vector<128x128xbf16>, vector<64x128xf32> -> vector<64x128xf32>
    %c0_187 = arith.constant 0 : index
    %c0_188 = arith.constant 0 : index
    %220 = vector.load %arg13[%c0_187, %c0_188] : memref<1x128xf32, #tpu.memory_space<vmem>>, vector<1x128xf32>
    %221 = vector.broadcast %220 : vector<1x128xf32> to vector<64x128xf32>
    %222 = arith.addf %219, %221 : vector<64x128xf32>
    %223 = arith.addf %213, %222 : vector<64x128xf32>
    %224 = vector.shape_cast %223 : vector<64x128xf32> to vector<8x8x128xf32>
    %c0_189 = arith.constant 0 : index
    %c0_190 = arith.constant 0 : index
    %c0_191 = arith.constant 0 : index
    %c0_192 = arith.constant 0 : index
    %225 = vector.load %arg14[%c0_189, %c0_190, %c0_191, %c0_192] : memref<1x8x8x128xf32, #tpu.memory_space<vmem>>, vector<1x8x8x128xf32>
    %226 = vector.shape_cast %225 : vector<1x8x8x128xf32> to vector<8x8x128xf32>
    %227 = vector.shape_cast %224 : vector<8x8x128xf32> to vector<1x8x8x128xf32>
    tpu.vector_store %arg14[%c0_189, %c0_190, %c0_191, %c0_192], %227 {strides = array<i32>} : memref<1x8x8x128xf32, #tpu.memory_space<vmem>>, vector<1x8x8x128xf32>,
    return
  }
  func.func @transform_0(%arg0: i32) -> (i32, i32, i32, i32) {
    %c0_i32 = arith.constant 0 : i32
    %c0_i32_0 = arith.constant 0 : i32
    %c0_i32_1 = arith.constant 0 : i32
    %c0_i32_2 = arith.constant 0 : i32
    return %arg0, %c0_i32, %c0_i32_0, %c0_i32_1 : i32, i32, i32, i32
  }
  func.func @transform_1(%arg0: i32) -> (i32, i32, i32, i32) {
    %c0_i32 = arith.constant 0 : i32
    %c0_i32_0 = arith.constant 0 : i32
    %c0_i32_1 = arith.constant 0 : i32
    %c0_i32_2 = arith.constant 0 : i32
    return %arg0, %c0_i32, %c0_i32_0, %c0_i32_1 : i32, i32, i32, i32
  }
  func.func @transform_2(%arg0: i32) -> (i32, i32, i32, i32) {
    %c0_i32 = arith.constant 0 : i32
    %c0_i32_0 = arith.constant 0 : i32
    %c0_i32_1 = arith.constant 0 : i32
    %c0_i32_2 = arith.constant 0 : i32
    return %arg0, %c0_i32, %c0_i32_0, %c0_i32_1 : i32, i32, i32, i32
  }
  func.func @transform_3(%arg0: i32) -> (i32, i32, i32, i32) {
    %c0_i32 = arith.constant 0 : i32
    %c0_i32_0 = arith.constant 0 : i32
    %c0_i32_1 = arith.constant 0 : i32
    %c0_i32_2 = arith.constant 0 : i32
    return %arg0, %c0_i32, %c0_i32_0, %c0_i32_1 : i32, i32, i32, i32
  }
  func.func @transform_4(%arg0: i32) -> (i32, i32) {
    %c0_i32 = arith.constant 0 : i32
    %c0_i32_0 = arith.constant 0 : i32
    %c0_i32_1 = arith.constant 0 : i32
    return %c0_i32, %c0_i32_0 : i32, i32
  }
  func.func @transform_5(%arg0: i32) -> (i32, i32) {
    %c0_i32 = arith.constant 0 : i32
    %c0_i32_0 = arith.constant 0 : i32
    %c0_i32_1 = arith.constant 0 : i32
    return %c0_i32, %c0_i32_0 : i32, i32
  }
  func.func @transform_6(%arg0: i32) -> (i32, i32, i32) {
    %c0_i32 = arith.constant 0 : i32
    %c0_i32_0 = arith.constant 0 : i32
    %c0_i32_1 = arith.constant 0 : i32
    %c0_i32_2 = arith.constant 0 : i32
    return %c0_i32, %c0_i32_0, %c0_i32_1 : i32, i32, i32
  }
  func.func @transform_7(%arg0: i32) -> (i32, i32) {
    %c0_i32 = arith.constant 0 : i32
    %c0_i32_0 = arith.constant 0 : i32
    %c0_i32_1 = arith.constant 0 : i32
    return %c0_i32, %c0_i32_0 : i32, i32
  }
  func.func @transform_8(%arg0: i32) -> (i32, i32) {
    %c0_i32 = arith.constant 0 : i32
    %c0_i32_0 = arith.constant 0 : i32
    %c0_i32_1 = arith.constant 0 : i32
    return %c0_i32, %c0_i32_0 : i32, i32
  }
  func.func @transform_9(%arg0: i32) -> (i32, i32, i32) {
    %c0_i32 = arith.constant 0 : i32
    %c0_i32_0 = arith.constant 0 : i32
    %c0_i32_1 = arith.constant 0 : i32
    %c0_i32_2 = arith.constant 0 : i32
    return %c0_i32, %c0_i32_0, %c0_i32_1 : i32, i32, i32
  }
  func.func @transform_10(%arg0: i32) -> (i32, i32) {
    %c0_i32 = arith.constant 0 : i32
    %c0_i32_0 = arith.constant 0 : i32
    %c0_i32_1 = arith.constant 0 : i32
    return %c0_i32, %c0_i32_0 : i32, i32
  }
  func.func @transform_11(%arg0: i32) -> (i32, i32) {
    %c0_i32 = arith.constant 0 : i32
    %c0_i32_0 = arith.constant 0 : i32
    %c0_i32_1 = arith.constant 0 : i32
    return %c0_i32, %c0_i32_0 : i32, i32
  }
  func.func @transform_12(%arg0: i32) -> (i32, i32) {
    %c0_i32 = arith.constant 0 : i32
    %c0_i32_0 = arith.constant 0 : i32
    %c0_i32_1 = arith.constant 0 : i32
    return %c0_i32, %c0_i32_0 : i32, i32
  }
  func.func @transform_13(%arg0: i32) -> (i32, i32, i32, i32) {
    %c0_i32 = arith.constant 0 : i32
    %c0_i32_0 = arith.constant 0 : i32
    %c0_i32_1 = arith.constant 0 : i32
    %c0_i32_2 = arith.constant 0 : i32
    return %arg0, %c0_i32, %c0_i32_0, %c0_i32_1 : i32, i32, i32, i32
  }
}

</mosaic_0001>

<llo_original>
// kernel: stack_layer_forward.3
$region0: #{stack_layer_forward.3}
  #allocation0 [shape = 'u32[]', space=smem, size = 0x4, offset = 0x4, fixed_abs, tag = 'smem constant byte address 0x4 - core index']
  #allocation1 [shape = 'u32[144,128]{1,0:T(1,128)}', space=vmem, size = 0x12000, scoped, tag = 'internal scratch']
  #allocation2 [shape = 'f32[10,10,128]{2,1,0:T(8,128)}', space=vmem, size = 0x14000, scoped, tag = 'scratch operand']
  #allocation3 [shape = 'f32[10,10,128]{2,1,0:T(8,128)}', space=vmem, size = 0x14000, scoped, tag = 'scratch operand']
  %s0 = inlined_call_operand.vmem [shape: f32[2,8,8,128], index: 0, kind: input, shape index: {}]
  %s1 = inlined_call_operand.vmem [shape: f32[1,128], index: 1, kind: input, shape index: {}]
  %s2 = inlined_call_operand.vmem [shape: f32[1,128], index: 2, kind: input, shape index: {}]
  %s3 = inlined_call_operand.vmem [shape: bf16[9,128,128], index: 3, kind: input, shape index: {}]
  %s4 = inlined_call_operand.vmem [shape: f32[1,128], index: 4, kind: input, shape index: {}]
  %s5 = inlined_call_operand.vmem [shape: f32[1,128], index: 5, kind: input, shape index: {}]
  %s6 = inlined_call_operand.vmem [shape: bf16[9,128,128], index: 6, kind: input, shape index: {}]
  %s7 = inlined_call_operand.vmem [shape: f32[1,128], index: 7, kind: input, shape index: {}]
  %s8 = inlined_call_operand.vmem [shape: f32[2,8,8,128], index: 8, kind: output, shape index: {}]
  %s9 = sld [smem:[#allocation0]]
  $region65: #{stack_layer_forward.3} parent=0
    _
  %s11 = ssub.s32 1, %s9
  %s12 = scalar_select 0, %s11, %s9
  loop: start=0, step=1, limit=4
  $region2: #{stack_layer_forward.3} parent=0 // loop_pre_header
    _
  $region3: #{stack_layer_forward.3} parent=0 // loop_header
    %s14 = sphi 0, %s18
    %p15 = scmp.ge.s32.totalorder %s14, 4
    %s24 = sphi 0, %s26
    %s27 = sphi 0, %s24
    %s28 = sphi 0, %s27
    %s44 = sphi 0, %s28
    %s48 = sphi 0, %s48
    %s50 = sphi 0, %s48
    %s51 = sphi 0, %s50
    %s65 = sphi 0, %s51
    %s69 = sphi 0, %s69
    %s71 = sphi 0, %s69
    %s72 = sphi 0, %s71
    %s86 = sphi 0, %s72
    %s90 = sphi 0, %s90
    %s92 = sphi 0, %s90
    %s93 = sphi 0, %s92
    %s107 = sphi 0, %s93
    %s111 = sphi 0, %s111
    %s113 = sphi 0, %s111
    %s114 = sphi 0, %s113
    %s128 = sphi 0, %s114
    %s132 = sphi 0, %s132
    %s134 = sphi 0, %s132
    %s135 = sphi 0, %s134
    %s149 = sphi 0, %s135
    %s153 = sphi 0, %s153
    %s155 = sphi 0, %s153
    %s156 = sphi 0, %s155
    %s170 = sphi 0, %s156
    %s174 = sphi 0, %s174
    %s176 = sphi 0, %s174
    %s177 = sphi 0, %s176
    %s191 = sphi 0, %s177
    %s197 = sphi 0, %s199
    %s200 = sphi 0, %s197
    %s201 = sphi 0, %s200
    %s217 = sphi 0, %s201
  $region4: #{stack_layer_forward.3} parent=0 // loop_header_branch
    %17 = sbr.rel (%p15) target = $region8
  $region5: #{stack_layer_forward.3} parent=0 // loop_body
    %s19 = ssub.s32 %s14, 1
    %s20 = ssub.s32 %s14, 2
    %s21 = sadd.s32 %s14, 1
    %s22 = ssub.s32 %s14, %s21
    %p23 = scmp.eq.s32.totalorder %s22, 0
    %s25 = sadd.s32 %s24, 1
    %s26 = scalar_select %p23, %s24, %s25
    %p29 = pneg %p23
    %p30 = scmp.eq.s32.totalorder %s14, 1
    %p31 = por %p29, %p30
    %p32 = scmp.ne.s32.totalorder %s24, %s27
    %p33 = scmp.eq.s32.totalorder %s14, 0
    %p34 = por %p32, %p33
    %p35 = scmp.ne.s32.totalorder %s24, %s27
    %p36 = scmp.eq.s32.totalorder %s19, 1
    %p37 = por %p35, %p36
    %p38 = scmp.ne.s32.totalorder %s27, %s28
    %p39 = scmp.eq.s32.totalorder %s19, 0
    %p40 = por %p38, %p39
    %p41 = scmp.ne.s32.totalorder %s27, %s28
    %p42 = scmp.eq.s32.totalorder %s20, 1
    %p43 = por %p41, %p42
    %p45 = scmp.ne.s32.totalorder %s28, %s44
    %p46 = scmp.eq.s32.totalorder %s20, 0
    %p47 = por %p45, %p46
    %s49 = sadd.s32 %s48, 1
    %p52 = scmp.eq.s32.totalorder %s14, 1
    %p53 = scmp.ne.s32.totalorder %s48, %s50
    %p54 = scmp.eq.s32.totalorder %s14, 0
    %p55 = por %p53, %p54
    %p56 = scmp.ne.s32.totalorder %s48, %s50
    %p57 = scmp.eq.s32.totalorder %s19, 1
    %p58 = por %p56, %p57
    %p59 = scmp.ne.s32.totalorder %s50, %s51
    %p60 = scmp.eq.s32.totalorder %s19, 0
    %p61 = por %p59, %p60
    %p62 = scmp.ne.s32.totalorder %s50, %s51
    %p63 = scmp.eq.s32.totalorder %s20, 1
    %p64 = por %p62, %p63
    %p66 = scmp.ne.s32.totalorder %s51, %s65
    %p67 = scmp.eq.s32.totalorder %s20, 0
    %p68 = por %p66, %p67
    %s70 = sadd.s32 %s69, 1
    %p73 = scmp.eq.s32.totalorder %s14, 1
    %p74 = scmp.ne.s32.totalorder %s69, %s71
    %p75 = scmp.eq.s32.totalorder %s14, 0
    %p76 = por %p74, %p75
    %p77 = scmp.ne.s32.totalorder %s69, %s71
    %p78 = scmp.eq.s32.totalorder %s19, 1
    %p79 = por %p77, %p78
    %p80 = scmp.ne.s32.totalorder %s71, %s72
    %p81 = scmp.eq.s32.totalorder %s19, 0
    %p82 = por %p80, %p81
    %p83 = scmp.ne.s32.totalorder %s71, %s72
    %p84 = scmp.eq.s32.totalorder %s20, 1
    %p85 = por %p83, %p84
    %p87 = scmp.ne.s32.totalorder %s72, %s86
    %p88 = scmp.eq.s32.totalorder %s20, 0
    %p89 = por %p87, %p88
    %s91 = sadd.s32 %s90, 1
    %p94 = scmp.eq.s32.totalorder %s14, 1
    %p95 = scmp.ne.s32.totalorder %s90, %s92
    %p96 = scmp.eq.s32.totalorder %s14, 0
    %p97 = por %p95, %p96
    %p98 = scmp.ne.s32.totalorder %s90, %s92
    %p99 = scmp.eq.s32.totalorder %s19, 1
    %p100 = por %p98, %p99
    %p101 = scmp.ne.s32.totalorder %s92, %s93
    %p102 = scmp.eq.s32.totalorder %s19, 0
    %p103 = por %p101, %p102
    %p104 = scmp.ne.s32.totalorder %s92, %s93
    %p105 = scmp.eq.s32.totalorder %s20, 1
    %p106 = por %p104, %p105
    %p108 = scmp.ne.s32.totalorder %s93, %s107
    %p109 = scmp.eq.s32.totalorder %s20, 0
    %p110 = por %p108, %p109
    %s112 = sadd.s32 %s111, 1
    %p115 = scmp.eq.s32.totalorder %s14, 1
    %p116 = scmp.ne.s32.totalorder %s111, %s113
    %p117 = scmp.eq.s32.totalorder %s14, 0
    %p118 = por %p116, %p117
    %p119 = scmp.ne.s32.totalorder %s111, %s113
    %p120 = scmp.eq.s32.totalorder %s19, 1
    %p121 = por %p119, %p120
    %p122 = scmp.ne.s32.totalorder %s113, %s114
    %p123 = scmp.eq.s32.totalorder %s19, 0
    %p124 = por %p122, %p123
    %p125 = scmp.ne.s32.totalorder %s113, %s114
    %p126 = scmp.eq.s32.totalorder %s20, 1
    %p127 = por %p125, %p126
    %p129 = scmp.ne.s32.totalorder %s114, %s128
    %p130 = scmp.eq.s32.totalorder %s20, 0
    %p131 = por %p129, %p130
    %s133 = sadd.s32 %s132, 1
    %p136 = scmp.eq.s32.totalorder %s14, 1
    %p137 = scmp.ne.s32.totalorder %s132, %s134
    %p138 = scmp.eq.s32.totalorder %s14, 0
    %p139 = por %p137, %p138
    %p140 = scmp.ne.s32.totalorder %s132, %s134
    %p141 = scmp.eq.s32.totalorder %s19, 1
    %p142 = por %p140, %p141
    %p143 = scmp.ne.s32.totalorder %s134, %s135
    %p144 = scmp.eq.s32.totalorder %s19, 0
    %p145 = por %p143, %p144
    %p146 = scmp.ne.s32.totalorder %s134, %s135
    %p147 = scmp.eq.s32.totalorder %s20, 1
    %p148 = por %p146, %p147
    %p150 = scmp.ne.s32.totalorder %s135, %s149
    %p151 = scmp.eq.s32.totalorder %s20, 0
    %p152 = por %p150, %p151
    %s154 = sadd.s32 %s153, 1
    %p157 = scmp.eq.s32.totalorder %s14, 1
    %p158 = scmp.ne.s32.totalorder %s153, %s155
    %p159 = scmp.eq.s32.totalorder %s14, 0
    %p160 = por %p158, %p159
    %p161 = scmp.ne.s32.totalorder %s153, %s155
    %p162 = scmp.eq.s32.totalorder %s19, 1
    %p163 = por %p161, %p162
    %p164 = scmp.ne.s32.totalorder %s155, %s156
    %p165 = scmp.eq.s32.totalorder %s19, 0
    %p166 = por %p164, %p165
    %p167 = scmp.ne.s32.totalorder %s155, %s156
    %p168 = scmp.eq.s32.totalorder %s20, 1
    %p169 = por %p167, %p168
    %p171 = scmp.ne.s32.totalorder %s156, %s170
    %p172 = scmp.eq.s32.totalorder %s20, 0
    %p173 = por %p171, %p172
    %s175 = sadd.s32 %s174, 1
    %p178 = scmp.eq.s32.totalorder %s14, 1
    %p179 = scmp.ne.s32.totalorder %s174, %s176
    %p180 = scmp.eq.s32.totalorder %s14, 0
    %p181 = por %p179, %p180
    %p182 = scmp.ne.s32.totalorder %s174, %s176
    %p183 = scmp.eq.s32.totalorder %s19, 1
    %p184 = por %p182, %p183
    %p185 = scmp.ne.s32.totalorder %s176, %s177
    %p186 = scmp.eq.s32.totalorder %s19, 0
    %p187 = por %p185, %p186
    %p188 = scmp.ne.s32.totalorder %s176, %s177
    %p189 = scmp.eq.s32.totalorder %s20, 1
    %p190 = por %p188, %p189
    %p192 = scmp.ne.s32.totalorder %s177, %s191
    %p193 = scmp.eq.s32.totalorder %s20, 0
    %p194 = por %p192, %p193
    %s195 = ssub.s32 %s14, %s21
    %p196 = scmp.eq.s32.totalorder %s195, 0
    %s198 = sadd.s32 %s197, 1
    %s199 = scalar_select %p196, %s197, %s198
    %p202 = pneg %p196
    %p203 = scmp.eq.s32.totalorder %s14, 1
    %p204 = por %p202, %p203
    %p205 = scmp.ne.s32.totalorder %s197, %s200
    %p206 = scmp.eq.s32.totalorder %s14, 0
    %p207 = por %p205, %p206
    %p208 = scmp.ne.s32.totalorder %s197, %s200
    %p209 = scmp.eq.s32.totalorder %s19, 1
    %p210 = por %p208, %p209
    %p211 = scmp.ne.s32.totalorder %s200, %s201
    %p212 = scmp.eq.s32.totalorder %s19, 0
    %p213 = por %p211, %p212
    %p214 = scmp.ne.s32.totalorder %s200, %s201
    %p215 = scmp.eq.s32.totalorder %s20, 1
    %p216 = por %p214, %p215
    %p218 = scmp.ne.s32.totalorder %s201, %s217
    %p219 = scmp.eq.s32.totalorder %s20, 0
    %p220 = por %p218, %p219
    %p221 = scmp.le.s32.totalorder 1, %s14
    %p222 = scmp.lt.s32.totalorder %s14, 3
    %p223 = pnand %p221, %p222
    %p224 = pneg %p223
    // Predicated region
    $region9: #{stack_layer_forward.3} parent=5 // pred_check
      _
    $region10: #{stack_layer_forward.3} parent=5 // pred_check_branch
      %226 = sbr.rel (%p223) target = $region12
    $region11: #{stack_layer_forward.3} parent=5 // pred_region
      %s227 = ssub.s32 %s14, 1
      // Predicated region
      $region13: #{stack_layer_forward.3} parent=11 // pred_check
        %p228 = pneg %p61
      $region14: #{stack_layer_forward.3} parent=11 // pred_check_branch
        %230 = sbr.rel (%p228) target = $region16
      $region15: #{stack_layer_forward.3} parent=11 // pred_region
        _
      $region16: #{stack_layer_forward.3} parent=11 // pred_fallthru
        _
      // Predicated region
      $region17: #{stack_layer_forward.3} parent=11 // pred_check
        %p231 = pneg %p82
      $region18: #{stack_layer_forward.3} parent=11 // pred_check_branch
        %233 = sbr.rel (%p231) target = $region20
      $region19: #{stack_layer_forward.3} parent=11 // pred_region
        _
      $region20: #{stack_layer_forward.3} parent=11 // pred_fallthru
        _
      // Predicated region
      $region21: #{stack_layer_forward.3} parent=11 // pred_check
        %p234 = pneg %p103
      $region22: #{stack_layer_forward.3} parent=11 // pred_check_branch
        %236 = sbr.rel (%p234) target = $region24
      $region23: #{stack_layer_forward.3} parent=11 // pred_region
        _
      $region24: #{stack_layer_forward.3} parent=11 // pred_fallthru
        _
      // Predicated region
      $region25: #{stack_layer_forward.3} parent=11 // pred_check
        %p237 = pneg %p124
      $region26: #{stack_layer_forward.3} parent=11 // pred_check_branch
        %239 = sbr.rel (%p237) target = $region28
      $region27: #{stack_layer_forward.3} parent=11 // pred_region
        _
      $region28: #{stack_layer_forward.3} parent=11 // pred_fallthru
        _
      // Predicated region
      $region29: #{stack_layer_forward.3} parent=11 // pred_check
        %p240 = pneg %p145
      $region30: #{stack_layer_forward.3} parent=11 // pred_check_branch
        %242 = sbr.rel (%p240) target = $region32
      $region31: #{stack_layer_forward.3} parent=11 // pred_region
        _
      $region32: #{stack_layer_forward.3} parent=11 // pred_fallthru
        _
      // Predicated region
      $region33: #{stack_layer_forward.3} parent=11 // pred_check
        %p243 = pneg %p166
      $region34: #{stack_layer_forward.3} parent=11 // pred_check_branch
        %245 = sbr.rel (%p243) target = $region36
      $region35: #{stack_layer_forward.3} parent=11 // pred_region
        _
      $region36: #{stack_layer_forward.3} parent=11 // pred_fallthru
        _
      // Predicated region
      $region37: #{stack_layer_forward.3} parent=11 // pred_check
        %p246 = pneg %p187
      $region38: #{stack_layer_forward.3} parent=11 // pred_check_branch
        %248 = sbr.rel (%p246) target = $region40
      $region39: #{stack_layer_forward.3} parent=11 // pred_region
        _
      $region40: #{stack_layer_forward.3} parent=11 // pred_fallthru
        _
    $region12: #{stack_layer_forward.3} parent=5 // pred_fallthru
      _
    %p249 = scmp.lt.s32.totalorder %s14, 2
    // Predicated region
    $region41: #{stack_layer_forward.3} parent=5 // pred_check
      %p250 = pneg %p249
    $region42: #{stack_layer_forward.3} parent=5 // pred_check_branch
      %252 = sbr.rel (%p250) target = $region44
    $region43: #{stack_layer_forward.3} parent=5 // pred_region
      // Predicated region
      $region45: #{stack_layer_forward.3} parent=43 // pred_check
        %p253 = pneg %p34
      $region46: #{stack_layer_forward.3} parent=43 // pred_check_branch
        %255 = sbr.rel (%p253) target = $region48
      $region47: #{stack_layer_forward.3} parent=43 // pred_region
        %p256 = scmp.lt.s32.totalorder %s14, 1
        %s257 = scalar_select %p256, %s14, 1
        %s258 = smul.addr %s257, 8
        %s259 = smul.addr %s258, 8
        %s260 = scalar_lea.vmem %s0, %s259
      $region48: #{stack_layer_forward.3} parent=43 // pred_fallthru
        _
    $region44: #{stack_layer_forward.3} parent=5 // pred_fallthru
      _
    %p261 = scmp.le.s32.totalorder 1, %s14
    %p262 = scmp.lt.s32.totalorder %s14, 3
    %p263 = pnand %p261, %p262
    %p264 = pneg %p263
    // Predicated region
    $region49: #{stack_layer_forward.3} parent=5 // pred_check
      _
    $region50: #{stack_layer_forward.3} parent=5 // pred_check_branch
      %266 = sbr.rel (%p263) target = $region52
    $region51: #{stack_layer_forward.3} parent=5 // pred_region
      %s267 = ssub.s32 %s14, 1
      %p268 = scmp.lt.s32.totalorder %s19, 1
      %s269 = scalar_select %p268, %s19, 1
      %s270 = smul.addr %s269, 8
      %s271 = smul.addr %s270, 8
      %s272 = scalar_lea.vmem %s0, %s271
      %p273 = pneg %p40
      %p274 = pneg %p37
      %p275 = pneg %p61
      %p276 = pneg %p58
      %p277 = pneg %p82
      %p278 = pneg %p79
      %p279 = pneg %p103
      %p280 = pneg %p100
      %p281 = pneg %p124
      %p282 = pneg %p121
      %p283 = pneg %p145
      %p284 = pneg %p142
      %p285 = pneg %p166
      %p286 = pneg %p163
      %p287 = pneg %p187
      %p288 = pneg %p184
      %p289 = pneg %p213
      %p290 = pneg %p210
      %p291 = scmp.lt.s32.totalorder %s19, 1
      %s292 = scalar_select %p291, %s19, 1
      %s293 = smul.addr %s292, 8
      %s294 = smul.addr %s293, 8
      %s295 = scalar_lea.vmem %s8, %s294
      %p296 = scmp.lt.s32.totalorder %s19, 1
      %s297 = scalar_select %p296, %s19, 1
      %s298 = smul.addr %s297, 8
      %s299 = smul.addr %s298, 8
      %s300 = scalar_lea.vmem %s0, %s299
      %p301 = scmp.lt.s32.totalorder %s19, 1
      %s302 = scalar_select %p301, %s19, 1
      %s303 = smul.addr %s302, 8
      %s304 = smul.addr %s303, 8
      %s305 = scalar_lea.vmem %s8, %s304
      %307 = vst [vmem:[#allocation2] sm:$0xff] 0.0
      %308 = vst [vmem:[#allocation2 + $0x8] sm:$0x3] 0.0
      %s309 = scalar_lea.vmem [#allocation2], 144
      %310 = vst [vmem:[%s309] sm:$0xff] 0.0
      %311 = vst [vmem:[%s309 + $0x8] sm:$0x3] 0.0
      %312 = vst [vmem:[#allocation2] sm:$0x1] 0.0
      %313 = vst [vmem:[#allocation2 + $0x10] sm:$0x1] 0.0
      %314 = vst [vmem:[#allocation2 + $0x20] sm:$0x1] 0.0
      %315 = vst [vmem:[#allocation2 + $0x30] sm:$0x1] 0.0
      %316 = vst [vmem:[#allocation2 + $0x40] sm:$0x1] 0.0
      %317 = vst [vmem:[#allocation2 + $0x50] sm:$0x1] 0.0
      %318 = vst [vmem:[#allocation2 + $0x60] sm:$0x1] 0.0
      %319 = vst [vmem:[#allocation2 + $0x70] sm:$0x1] 0.0
      %320 = vst [vmem:[#allocation2 + $0x80] sm:$0x1] 0.0
      %321 = vst [vmem:[#allocation2 + $0x90] sm:$0x1] 0.0
      %322 = vst [vmem:[#allocation2 + $0x9] sm:$0x1] 0.0
      %323 = vst [vmem:[#allocation2 + $0x19] sm:$0x1] 0.0
      %324 = vst [vmem:[#allocation2 + $0x29] sm:$0x1] 0.0
      %325 = vst [vmem:[#allocation2 + $0x39] sm:$0x1] 0.0
      %326 = vst [vmem:[#allocation2 + $0x49] sm:$0x1] 0.0
      %327 = vst [vmem:[#allocation2 + $0x59] sm:$0x1] 0.0
      %328 = vst [vmem:[#allocation2 + $0x69] sm:$0x1] 0.0
      %329 = vst [vmem:[#allocation2 + $0x79] sm:$0x1] 0.0
      %330 = vst [vmem:[#allocation2 + $0x89] sm:$0x1] 0.0
      %331 = vst [vmem:[#allocation2 + $0x99] sm:$0x1] 0.0
      %332 = vst [vmem:[#allocation3] sm:$0xff] 0.0
      %333 = vst [vmem:[#allocation3 + $0x8] sm:$0x3] 0.0
      %s334 = scalar_lea.vmem [#allocation3], 144
      %335 = vst [vmem:[%s334] sm:$0xff] 0.0
      %336 = vst [vmem:[%s334 + $0x8] sm:$0x3] 0.0
      %337 = vst [vmem:[#allocation3] sm:$0x1] 0.0
      %338 = vst [vmem:[#allocation3 + $0x10] sm:$0x1] 0.0
      %339 = vst [vmem:[#allocation3 + $0x20] sm:$0x1] 0.0
      %340 = vst [vmem:[#allocation3 + $0x30] sm:$0x1] 0.0
      %341 = vst [vmem:[#allocation3 + $0x40] sm:$0x1] 0.0
      %342 = vst [vmem:[#allocation3 + $0x50] sm:$0x1] 0.0
      %343 = vst [vmem:[#allocation3 + $0x60] sm:$0x1] 0.0
      %344 = vst [vmem:[#allocation3 + $0x70] sm:$0x1] 0.0
      %345 = vst [vmem:[#allocation3 + $0x80] sm:$0x1] 0.0
      %346 = vst [vmem:[#allocation3 + $0x90] sm:$0x1] 0.0
      %347 = vst [vmem:[#allocation3 + $0x9] sm:$0x1] 0.0
      %348 = vst [vmem:[#allocation3 + $0x19] sm:$0x1] 0.0
      %349 = vst [vmem:[#allocation3 + $0x29] sm:$0x1] 0.0
      %350 = vst [vmem:[#allocation3 + $0x39] sm:$0x1] 0.0
      %351 = vst [vmem:[#allocation3 + $0x49] sm:$0x1] 0.0
      %352 = vst [vmem:[#allocation3 + $0x59] sm:$0x1] 0.0
      %353 = vst [vmem:[#allocation3 + $0x69] sm:$0x1] 0.0
      %354 = vst [vmem:[#allocation3 + $0x79] sm:$0x1] 0.0
      %355 = vst [vmem:[#allocation3 + $0x89] sm:$0x1] 0.0
      %356 = vst [vmem:[#allocation3 + $0x99] sm:$0x1] 0.0
      %v357 = vld [vmem:[%s300] sm:$0xff]
      %v358 = vld [vmem:[%s300 + $0x8] sm:$0xff]
      %v359 = vld [vmem:[%s300 + $0x10] sm:$0xff]
      %v360 = vld [vmem:[%s300 + $0x18] sm:$0xff]
      %v361 = vld [vmem:[%s300 + $0x20] sm:$0xff]
      %v362 = vld [vmem:[%s300 + $0x28] sm:$0xff]
      %v363 = vld [vmem:[%s300 + $0x30] sm:$0xff]
      %v364 = vld [vmem:[%s300 + $0x38] sm:$0xff]
      %v365 = vld [vmem:[%s1] sm:$0x1]
      %v367 = vlaneseq
      %v368 = vshrl.u32 %v367, 7
      %v369 = vsub.s32 0, %v368
      %v370 = vrot.slane %v365, %v369
      %v372 = vmul.f32 %v357, %v370
      %v373 = vmul.f32 %v358, %v370
      %v374 = vmul.f32 %v359, %v370
      %v375 = vmul.f32 %v360, %v370
      %v376 = vmul.f32 %v361, %v370
      %v377 = vmul.f32 %v362, %v370
      %v378 = vmul.f32 %v363, %v370
      %v379 = vmul.f32 %v364, %v370
      %v380 = vld [vmem:[%s2] sm:$0x1]
      %v382 = vlaneseq
      %v383 = vshrl.u32 %v382, 7
      %v384 = vsub.s32 0, %v383
      %v385 = vrot.slane %v380, %v384
      %v387 = vadd.f32 %v372, %v385
      %v388 = vadd.f32 %v373, %v385
      %v389 = vadd.f32 %v374, %v385
      %v390 = vadd.f32 %v375, %v385
      %v391 = vadd.f32 %v376, %v385
      %v392 = vadd.f32 %v377, %v385
      %v393 = vadd.f32 %v378, %v385
      %v394 = vadd.f32 %v379, %v385
      %v395 = vmax.f32 %v387, 0.0
      %v396 = vmax.f32 %v388, 0.0
      %v397 = vmax.f32 %v389, 0.0
      %v398 = vmax.f32 %v390, 0.0
      %v399 = vmax.f32 %v391, 0.0
      %v400 = vmax.f32 %v392, 0.0
      %v401 = vmax.f32 %v393, 0.0
      %v402 = vmax.f32 %v394, 0.0
      %s403 = scalar_lea.vmem [#allocation2], 16
      %404 = vst [vmem:[%s403 + $0x1] sm:$0xff] %v395
      %405 = vst [vmem:[%s403 + $0x11] sm:$0xff] %v396
      %406 = vst [vmem:[%s403 + $0x21] sm:$0xff] %v397
      %407 = vst [vmem:[%s403 + $0x31] sm:$0xff] %v398
      %408 = vst [vmem:[%s403 + $0x41] sm:$0xff] %v399
      %409 = vst [vmem:[%s403 + $0x51] sm:$0xff] %v400
      %410 = vst [vmem:[%s403 + $0x61] sm:$0xff] %v401
      %411 = vst [vmem:[%s403 + $0x71] sm:$0xff] %v402
      %v412 = vld [vmem:[#allocation2] sm:$0xff]
      %v413 = vld [vmem:[#allocation2 + $0x10] sm:$0xff]
      %v414 = vld [vmem:[#allocation2 + $0x20] sm:$0xff]
      %v415 = vld [vmem:[#allocation2 + $0x30] sm:$0xff]
      %v416 = vld [vmem:[#allocation2 + $0x40] sm:$0xff]
      %v417 = vld [vmem:[#allocation2 + $0x50] sm:$0xff]
      %v418 = vld [vmem:[#allocation2 + $0x60] sm:$0xff]
      %v419 = vld [vmem:[#allocation2 + $0x70] sm:$0xff]
      %v420 = vld [vmem:[#allocation2 + $0x80] sm:$0xff]
      %v421 = vld [vmem:[#allocation2 + $0x90] sm:$0xff]
      %v422 = vpack.c.bf16 %v413, %v412
      %v423 = vpack.c.bf16 %v415, %v414
      %v424 = vpack.c.bf16 %v417, %v416
      %v425 = vpack.c.bf16 %v419, %v418
      %v426 = vld [vmem:[%s3] sm:$0xf]
      %v427 = vld [vmem:[%s3 + $0x4] sm:$0xf]
      %v428 = vld [vmem:[%s3 + $0x8] sm:$0xf]
      %v429 = vld [vmem:[%s3 + $0xc] sm:$0xf]
      %v430 = vld [vmem:[%s3 + $0x10] sm:$0xf]
      %v431 = vld [vmem:[%s3 + $0x14] sm:$0xf]
      %v432 = vld [vmem:[%s3 + $0x18] sm:$0xf]
      %v433 = vld [vmem:[%s3 + $0x1c] sm:$0xf]
      %v434 = vld [vmem:[%s3 + $0x20] sm:$0xf]
      %v435 = vld [vmem:[%s3 + $0x24] sm:$0xf]
      %v436 = vld [vmem:[%s3 + $0x28] sm:$0xf]
      %v437 = vld [vmem:[%s3 + $0x2c] sm:$0xf]
      %v438 = vld [vmem:[%s3 + $0x30] sm:$0xf]
      %v439 = vld [vmem:[%s3 + $0x34] sm:$0xf]
      %v440 = vld [vmem:[%s3 + $0x38] sm:$0xf]
      %v441 = vld [vmem:[%s3 + $0x3c] sm:$0xf]
      %v442 = vpack.c.bf16 %v414, %v413
      %v443 = vpack.c.bf16 %v416, %v415
      %v444 = vpack.c.bf16 %v418, %v417
      %v445 = vpack.c.bf16 %v420, %v419
      %s446 = scalar_lea.vmem %s3, 192
      %v447 = vld [vmem:[%s446] sm:$0xf]
      %v448 = vld [vmem:[%s446 + $0x4] sm:$0xf]
      %v449 = vld [vmem:[%s446 + $0x8] sm:$0xf]
      %v450 = vld [vmem:[%s446 + $0xc] sm:$0xf]
      %v451 = vld [vmem:[%s446 + $0x10] sm:$0xf]
      %v452 = vld [vmem:[%s446 + $0x14] sm:$0xf]
      %v453 = vld [vmem:[%s446 + $0x18] sm:$0xf]
      %v454 = vld [vmem:[%s446 + $0x1c] sm:$0xf]
      %v455 = vld [vmem:[%s446 + $0x20] sm:$0xf]
      %v456 = vld [vmem:[%s446 + $0x24] sm:$0xf]
      %v457 = vld [vmem:[%s446 + $0x28] sm:$0xf]
      %v458 = vld [vmem:[%s446 + $0x2c] sm:$0xf]
      %v459 = vld [vmem:[%s446 + $0x30] sm:$0xf]
      %v460 = vld [vmem:[%s446 + $0x34] sm:$0xf]
      %v461 = vld [vmem:[%s446 + $0x38] sm:$0xf]
      %v462 = vld [vmem:[%s446 + $0x3c] sm:$0xf]
      %v479 = vunpack.c.l.b16 %v447
      %v480 = vunpack.c.l.b16 %v448
      %v481 = vunpack.c.l.b16 %v449
      %v482 = vunpack.c.l.b16 %v450
      %v483 = vunpack.c.l.b16 %v451
      %v484 = vunpack.c.l.b16 %v452
      %v485 = vunpack.c.l.b16 %v453
      %v486 = vunpack.c.l.b16 %v454
      %v487 = vunpack.c.l.b16 %v455
      %v488 = vunpack.c.l.b16 %v456
      %v489 = vunpack.c.l.b16 %v457
      %v490 = vunpack.c.l.b16 %v458
      %v491 = vunpack.c.l.b16 %v459
      %v492 = vunpack.c.l.b16 %v460
      %v493 = vunpack.c.l.b16 %v461
      %v494 = vunpack.c.l.b16 %v462
      %v495 = vpack.c.b16 %v480, %v479
      %v496 = vpack.c.b16 %v482, %v481
      %v497 = vpack.c.b16 %v484, %v483
      %v498 = vpack.c.b16 %v486, %v485
      %v499 = vpack.c.b16 %v488, %v487
      %v500 = vpack.c.b16 %v490, %v489
      %v501 = vpack.c.b16 %v492, %v491
      %v502 = vpack.c.b16 %v494, %v493
      %511 = vmatprep.subr.bf16.mxu0 0
      %512 = vmatpush1.bf16.msra.mxu0 %v502
      %513 = vmatprep.subr.bf16.mxu0 0
      %514 = vmatpush1.bf16.msra.mxu0 %v501
      %515 = vmatprep.subr.bf16.mxu0 0
      %516 = vmatpush1.bf16.msra.mxu0 %v500
      %517 = vmatprep.subr.bf16.mxu0 0
      %518 = vmatpush1.bf16.msra.mxu0 %v499
      %519 = vmatprep.subr.bf16.mxu0 0
      %520 = vmatpush1.bf16.msra.mxu0 %v498
      %521 = vmatprep.subr.bf16.mxu0 0
      %522 = vmatpush1.bf16.msra.mxu0 %v497
      %523 = vmatprep.subr.bf16.mxu0 0
      %524 = vmatpush1.bf16.msra.mxu0 %v496
      %525 = vmatprep.subr.bf16.mxu0 0
      %526 = vmatpush1.bf16.msra.mxu0 %v495
      %527 = vmatprep.subr.bf16.mxu0 0
      %528 = vmatpush2.bf16.msra.mxu0 0
      %529 = vmatprep.subr.bf16.mxu0 0
      %530 = vmatpush2.bf16.msra.mxu0 0
      %531 = vmatprep.subr.bf16.mxu0 0
      %532 = vmatpush2.bf16.msra.mxu0 0
      %533 = vmatprep.subr.bf16.mxu0 0
      %534 = vmatpush2.bf16.msra.mxu0 0
      %535 = vmatprep.subr.bf16.mxu0 0
      %536 = vmatpush2.bf16.msra.mxu0 0
      %537 = vmatprep.subr.bf16.mxu0 0
      %538 = vmatpush2.bf16.msra.mxu0 0
      %539 = vmatprep.subr.bf16.mxu0 0
      %540 = vmatpush2.bf16.msra.mxu0 0
      %541 = vmatprep.subr.bf16.mxu0 0
      %542 = vmatpush2.bf16.msra.mxu0 0
      %543 = vmatprep.mubr.bf16.mxu0 0
      %544 = vmatmul.mubr.bf16.gmra.mxu0 %v442
      %v545 = vpop.f32.mrf.mxu0
      %v546 = vadd.f32 0.0, %v545
      %v547 = vpop.f32.mrf.mxu0
      %v548 = vpop.f32.mrf.mxu0
      %v549 = vadd.f32 0.0, %v548
      %v550 = vpop.f32.mrf.mxu0
      %551 = vmatprep.mubr.bf16.mxu0 0
      %552 = vmatmul.mubr.bf16.gmra.mxu0 %v443
      %v553 = vpop.f32.mrf.mxu0
      %v554 = vadd.f32 0.0, %v553
      %v555 = vpop.f32.mrf.mxu0
      %v556 = vpop.f32.mrf.mxu0
      %v557 = vadd.f32 0.0, %v556
      %v558 = vpop.f32.mrf.mxu0
      %559 = vmatprep.mubr.bf16.mxu0 0
      %560 = vmatmul.mubr.bf16.gmra.mxu0 %v444
      %v561 = vpop.f32.mrf.mxu0
      %v562 = vadd.f32 0.0, %v561
      %v563 = vpop.f32.mrf.mxu0
      %v564 = vpop.f32.mrf.mxu0
      %v565 = vadd.f32 0.0, %v564
      %v566 = vpop.f32.mrf.mxu0
      %567 = vmatprep.mubr.bf16.mxu0 0
      %568 = vmatmul.mubr.bf16.gmra.mxu0 %v445
      %v569 = vpop.f32.mrf.mxu0
      %v570 = vadd.f32 0.0, %v569
      %v571 = vpop.f32.mrf.mxu0
      %v572 = vpop.f32.mrf.mxu0
      %v573 = vadd.f32 0.0, %v572
      %v574 = vpop.f32.mrf.mxu0
      %575 = vdwg.mxu0
      %v592 = vunpack.c.l.b16 %v426
      %v593 = vunpack.c.l.b16 %v427
      %v594 = vunpack.c.l.b16 %v428
      %v595 = vunpack.c.l.b16 %v429
      %v596 = vunpack.c.l.b16 %v430
      %v597 = vunpack.c.l.b16 %v431
      %v598 = vunpack.c.l.b16 %v432
      %v599 = vunpack.c.l.b16 %v433
      %v600 = vunpack.c.l.b16 %v434
      %v601 = vunpack.c.l.b16 %v435
      %v602 = vunpack.c.l.b16 %v436
      %v603 = vunpack.c.l.b16 %v437
      %v604 = vunpack.c.l.b16 %v438
      %v605 = vunpack.c.l.b16 %v439
      %v606 = vunpack.c.l.b16 %v440
      %v607 = vunpack.c.l.b16 %v441
      %v608 = vpack.c.b16 %v593, %v592
      %v609 = vpack.c.b16 %v595, %v594
      %v610 = vpack.c.b16 %v597, %v596
      %v611 = vpack.c.b16 %v599, %v598
      %v612 = vpack.c.b16 %v601, %v600
      %v613 = vpack.c.b16 %v603, %v602
      %v614 = vpack.c.b16 %v605, %v604
      %v615 = vpack.c.b16 %v607, %v606
      %624 = vmatprep.subr.bf16.mxu0 0
      %625 = vmatpush1.bf16.msra.mxu0 %v615
      %626 = vmatprep.subr.bf16.mxu0 0
      %627 = vmatpush1.bf16.msra.mxu0 %v614
      %628 = vmatprep.subr.bf16.mxu0 0
      %629 = vmatpush1.bf16.msra.mxu0 %v613
      %630 = vmatprep.subr.bf16.mxu0 0
      %631 = vmatpush1.bf16.msra.mxu0 %v612
      %632 = vmatprep.subr.bf16.mxu0 0
      %633 = vmatpush1.bf16.msra.mxu0 %v611
      %634 = vmatprep.subr.bf16.mxu0 0
      %635 = vmatpush1.bf16.msra.mxu0 %v610
      %636 = vmatprep.subr.bf16.mxu0 0
      %637 = vmatpush1.bf16.msra.mxu0 %v609
      %638 = vmatprep.subr.bf16.mxu0 0
      %639 = vmatpush1.bf16.msra.mxu0 %v608
      %640 = vmatprep.subr.bf16.mxu0 0
      %641 = vmatpush2.bf16.msra.mxu0 0
      %642 = vmatprep.subr.bf16.mxu0 0
      %643 = vmatpush2.bf16.msra.mxu0 0
      %644 = vmatprep.subr.bf16.mxu0 0
      %645 = vmatpush2.bf16.msra.mxu0 0
      %646 = vmatprep.subr.bf16.mxu0 0
      %647 = vmatpush2.bf16.msra.mxu0 0
      %648 = vmatprep.subr.bf16.mxu0 0
      %649 = vmatpush2.bf16.msra.mxu0 0
      %650 = vmatprep.subr.bf16.mxu0 0
      %651 = vmatpush2.bf16.msra.mxu0 0
      %652 = vmatprep.subr.bf16.mxu0 0
      %653 = vmatpush2.bf16.msra.mxu0 0
      %654 = vmatprep.subr.bf16.mxu0 0
      %655 = vmatpush2.bf16.msra.mxu0 0
      %656 = vmatprep.mubr.bf16.mxu0 0
      %657 = vmatmul.mubr.bf16.gmra.mxu0 %v422
      %v658 = vpop.f32.mrf.mxu0
      %v659 = vadd.f32 %v546, %v658
      %v660 = vpop.f32.mrf.mxu0
      %v661 = vpop.f32.mrf.mxu0
      %v662 = vadd.f32 %v549, %v661
      %v663 = vpop.f32.mrf.mxu0
      %664 = vmatprep.mubr.bf16.mxu0 0
      %665 = vmatmul.mubr.bf16.gmra.mxu0 %v423
      %v666 = vpop.f32.mrf.mxu0
      %v667 = vadd.f32 %v554, %v666
      %v668 = vpop.f32.mrf.mxu0
      %v669 = vpop.f32.mrf.mxu0
      %v670 = vadd.f32 %v557, %v669
      %v671 = vpop.f32.mrf.mxu0
      %672 = vmatprep.mubr.bf16.mxu0 0
      %673 = vmatmul.mubr.bf16.gmra.mxu0 %v424
      %v674 = vpop.f32.mrf.mxu0
      %v675 = vadd.f32 %v562, %v674
      %v676 = vpop.f32.mrf.mxu0
      %v677 = vpop.f32.mrf.mxu0
      %v678 = vadd.f32 %v565, %v677
      %v679 = vpop.f32.mrf.mxu0
      %680 = vmatprep.mubr.bf16.mxu0 0
      %681 = vmatmul.mubr.bf16.gmra.mxu0 %v425
      %v682 = vpop.f32.mrf.mxu0
      %v683 = vadd.f32 %v570, %v682
      %v684 = vpop.f32.mrf.mxu0
      %v685 = vpop.f32.mrf.mxu0
      %v686 = vadd.f32 %v573, %v685
      %v687 = vpop.f32.mrf.mxu0
      %688 = vdwg.mxu0
      %v689 = vpack.c.bf16 %v421, %v420
      %s690 = scalar_lea.vmem %s3, 384
      %v691 = vld [vmem:[%s690] sm:$0xf]
      %v692 = vld [vmem:[%s690 + $0x4] sm:$0xf]
      %v693 = vld [vmem:[%s690 + $0x8] sm:$0xf]
      %v694 = vld [vmem:[%s690 + $0xc] sm:$0xf]
      %v695 = vld [vmem:[%s690 + $0x10] sm:$0xf]
      %v696 = vld [vmem:[%s690 + $0x14] sm:$0xf]
      %v697 = vld [vmem:[%s690 + $0x18] sm:$0xf]
      %v698 = vld [vmem:[%s690 + $0x1c] sm:$0xf]
      %v699 = vld [vmem:[%s690 + $0x20] sm:$0xf]
      %v700 = vld [vmem:[%s690 + $0x24] sm:$0xf]
      %v701 = vld [vmem:[%s690 + $0x28] sm:$0xf]
      %v702 = vld [vmem:[%s690 + $0x2c] sm:$0xf]
      %v703 = vld [vmem:[%s690 + $0x30] sm:$0xf]
      %v704 = vld [vmem:[%s690 + $0x34] sm:$0xf]
      %v705 = vld [vmem:[%s690 + $0x38] sm:$0xf]
      %v706 = vld [vmem:[%s690 + $0x3c] sm:$0xf]
      %v723 = vunpack.c.l.b16 %v691
      %v724 = vunpack.c.l.b16 %v692
      %v725 = vunpack.c.l.b16 %v693
      %v726 = vunpack.c.l.b16 %v694
      %v727 = vunpack.c.l.b16 %v695
      %v728 = vunpack.c.l.b16 %v696
      %v729 = vunpack.c.l.b16 %v697
      %v730 = vunpack.c.l.b16 %v698
      %v731 = vunpack.c.l.b16 %v699
      %v732 = vunpack.c.l.b16 %v700
      %v733 = vunpack.c.l.b16 %v701
      %v734 = vunpack.c.l.b16 %v702
      %v735 = vunpack.c.l.b16 %v703
      %v736 = vunpack.c.l.b16 %v704
      %v737 = vunpack.c.l.b16 %v705
      %v738 = vunpack.c.l.b16 %v706
      %v739 = vpack.c.b16 %v724, %v723
      %v740 = vpack.c.b16 %v726, %v725
      %v741 = vpack.c.b16 %v728, %v727
      %v742 = vpack.c.b16 %v730, %v729
      %v743 = vpack.c.b16 %v732, %v731
      %v744 = vpack.c.b16 %v734, %v733
      %v745 = vpack.c.b16 %v736, %v735
      %v746 = vpack.c.b16 %v738, %v737
      %755 = vmatprep.subr.bf16.mxu0 0
      %756 = vmatpush1.bf16.msra.mxu0 %v746
      %757 = vmatprep.subr.bf16.mxu0 0
      %758 = vmatpush1.bf16.msra.mxu0 %v745
      %759 = vmatprep.subr.bf16.mxu0 0
      %760 = vmatpush1.bf16.msra.mxu0 %v744
      %761 = vmatprep.subr.bf16.mxu0 0
      %762 = vmatpush1.bf16.msra.mxu0 %v743
      %763 = vmatprep.subr.bf16.mxu0 0
      %764 = vmatpush1.bf16.msra.mxu0 %v742
      %765 = vmatprep.subr.bf16.mxu0 0
      %766 = vmatpush1.bf16.msra.mxu0 %v741
      %767 = vmatprep.subr.bf16.mxu0 0
      %768 = vmatpush1.bf16.msra.mxu0 %v740
      %769 = vmatprep.subr.bf16.mxu0 0
      %770 = vmatpush1.bf16.msra.mxu0 %v739
      %771 = vmatprep.subr.bf16.mxu0 0
      %772 = vmatpush2.bf16.msra.mxu0 0
      %773 = vmatprep.subr.bf16.mxu0 0
      %774 = vmatpush2.bf16.msra.mxu0 0
      %775 = vmatprep.subr.bf16.mxu0 0
      %776 = vmatpush2.bf16.msra.mxu0 0
      %777 = vmatprep.subr.bf16.mxu0 0
      %778 = vmatpush2.bf16.msra.mxu0 0
      %779 = vmatprep.subr.bf16.mxu0 0
      %780 = vmatpush2.bf16.msra.mxu0 0
      %781 = vmatprep.subr.bf16.mxu0 0
      %782 = vmatpush2.bf16.msra.mxu0 0
      %783 = vmatprep.subr.bf16.mxu0 0
      %784 = vmatpush2.bf16.msra.mxu0 0
      %785 = vmatprep.subr.bf16.mxu0 0
      %786 = vmatpush2.bf16.msra.mxu0 0
      %787 = vmatprep.mubr.bf16.mxu0 0
      %788 = vmatmul.mubr.bf16.gmra.mxu0 %v423
      %v789 = vpop.f32.mrf.mxu0
      %v790 = vadd.f32 0.0, %v789
      %v791 = vpop.f32.mrf.mxu0
      %v792 = vpop.f32.mrf.mxu0
      %v793 = vadd.f32 0.0, %v792
      %v794 = vpop.f32.mrf.mxu0
      %795 = vmatprep.mubr.bf16.mxu0 0
      %796 = vmatmul.mubr.bf16.gmra.mxu0 %v424
      %v797 = vpop.f32.mrf.mxu0
      %v798 = vadd.f32 0.0, %v797
      %v799 = vpop.f32.mrf.mxu0
      %v800 = vpop.f32.mrf.mxu0
      %v801 = vadd.f32 0.0, %v800
      %v802 = vpop.f32.mrf.mxu0
      %803 = vmatprep.mubr.bf16.mxu0 0
      %804 = vmatmul.mubr.bf16.gmra.mxu0 %v425
      %v805 = vpop.f32.mrf.mxu0
      %v806 = vadd.f32 0.0, %v805
      %v807 = vpop.f32.mrf.mxu0
      %v808 = vpop.f32.mrf.mxu0
      %v809 = vadd.f32 0.0, %v808
      %v810 = vpop.f32.mrf.mxu0
      %811 = vmatprep.mubr.bf16.mxu0 0
      %812 = vmatmul.mubr.bf16.gmra.mxu0 %v689
      %v813 = vpop.f32.mrf.mxu0
      %v814 = vadd.f32 0.0, %v813
      %v815 = vpop.f32.mrf.mxu0
      %v816 = vpop.f32.mrf.mxu0
      %v817 = vadd.f32 0.0, %v816
      %v818 = vpop.f32.mrf.mxu0
      %819 = vdwg.mxu0
      %v820 = vadd.f32 %v659, %v790
      %v821 = vadd.f32 %v662, %v793
      %v822 = vadd.f32 %v667, %v798
      %v823 = vadd.f32 %v670, %v801
      %v824 = vadd.f32 %v675, %v806
      %v825 = vadd.f32 %v678, %v809
      %v826 = vadd.f32 %v683, %v814
      %v827 = vadd.f32 %v686, %v817
      %v828 = vld [vmem:[#allocation2 + $0x1] sm:$0xff]
      %v829 = vld [vmem:[#allocation2 + $0x11] sm:$0xff]
      %v830 = vld [vmem:[#allocation2 + $0x21] sm:$0xff]
      %v831 = vld [vmem:[#allocation2 + $0x31] sm:$0xff]
      %v832 = vld [vmem:[#allocation2 + $0x41] sm:$0xff]
      %v833 = vld [vmem:[#allocation2 + $0x51] sm:$0xff]
      %v834 = vld [vmem:[#allocation2 + $0x61] sm:$0xff]
      %v835 = vld [vmem:[#allocation2 + $0x71] sm:$0xff]
      %v836 = vld [vmem:[#allocation2 + $0x81] sm:$0xff]
      %v837 = vld [vmem:[#allocation2 + $0x91] sm:$0xff]
      %v838 = vpack.c.bf16 %v829, %v828
      %v839 = vpack.c.bf16 %v831, %v830
      %v840 = vpack.c.bf16 %v833, %v832
      %v841 = vpack.c.bf16 %v835, %v834
      %s842 = scalar_lea.vmem %s3, 64
      %v843 = vld [vmem:[%s842] sm:$0xf]
      %v844 = vld [vmem:[%s842 + $0x4] sm:$0xf]
      %v845 = vld [vmem:[%s842 + $0x8] sm:$0xf]
      %v846 = vld [vmem:[%s842 + $0xc] sm:$0xf]
      %v847 = vld [vmem:[%s842 + $0x10] sm:$0xf]
      %v848 = vld [vmem:[%s842 + $0x14] sm:$0xf]
      %v849 = vld [vmem:[%s842 + $0x18] sm:$0xf]
      %v850 = vld [vmem:[%s842 + $0x1c] sm:$0xf]
      %v851 = vld [vmem:[%s842 + $0x20] sm:$0xf]
      %v852 = vld [vmem:[%s842 + $0x24] sm:$0xf]
      %v853 = vld [vmem:[%s842 + $0x28] sm:$0xf]
      %v854 = vld [vmem:[%s842 + $0x2c] sm:$0xf]
      %v855 = vld [vmem:[%s842 + $0x30] sm:$0xf]
      %v856 = vld [vmem:[%s842 + $0x34] sm:$0xf]
      %v857 = vld [vmem:[%s842 + $0x38] sm:$0xf]
      %v858 = vld [vmem:[%s842 + $0x3c] sm:$0xf]
      %v875 = vunpack.c.l.b16 %v843
      %v876 = vunpack.c.l.b16 %v844
      %v877 = vunpack.c.l.b16 %v845
      %v878 = vunpack.c.l.b16 %v846
      %v879 = vunpack.c.l.b16 %v847
      %v880 = vunpack.c.l.b16 %v848
      %v881 = vunpack.c.l.b16 %v849
      %v882 = vunpack.c.l.b16 %v850
      %v883 = vunpack.c.l.b16 %v851
      %v884 = vunpack.c.l.b16 %v852
      %v885 = vunpack.c.l.b16 %v853
      %v886 = vunpack.c.l.b16 %v854
      %v887 = vunpack.c.l.b16 %v855
      %v888 = vunpack.c.l.b16 %v856
      %v889 = vunpack.c.l.b16 %v857
      %v890 = vunpack.c.l.b16 %v858
      %v891 = vpack.c.b16 %v876, %v875
      %v892 = vpack.c.b16 %v878, %v877
      %v893 = vpack.c.b16 %v880, %v879
      %v894 = vpack.c.b16 %v882, %v881
      %v895 = vpack.c.b16 %v884, %v883
      %v896 = vpack.c.b16 %v886, %v885
      %v897 = vpack.c.b16 %v888, %v887
      %v898 = vpack.c.b16 %v890, %v889
      %907 = vmatprep.subr.bf16.mxu0 0
      %908 = vmatpush1.bf16.msra.mxu0 %v898
      %909 = vmatprep.subr.bf16.mxu0 0
      %910 = vmatpush1.bf16.msra.mxu0 %v897
      %911 = vmatprep.subr.bf16.mxu0 0
      %912 = vmatpush1.bf16.msra.mxu0 %v896
      %913 = vmatprep.subr.bf16.mxu0 0
      %914 = vmatpush1.bf16.msra.mxu0 %v895
      %915 = vmatprep.subr.bf16.mxu0 0
      %916 = vmatpush1.bf16.msra.mxu0 %v894
      %917 = vmatprep.subr.bf16.mxu0 0
      %918 = vmatpush1.bf16.msra.mxu0 %v893
      %919 = vmatprep.subr.bf16.mxu0 0
      %920 = vmatpush1.bf16.msra.mxu0 %v892
      %921 = vmatprep.subr.bf16.mxu0 0
      %922 = vmatpush1.bf16.msra.mxu0 %v891
      %923 = vmatprep.subr.bf16.mxu0 0
      %924 = vmatpush2.bf16.msra.mxu0 0
      %925 = vmatprep.subr.bf16.mxu0 0
      %926 = vmatpush2.bf16.msra.mxu0 0
      %927 = vmatprep.subr.bf16.mxu0 0
      %928 = vmatpush2.bf16.msra.mxu0 0
      %929 = vmatprep.subr.bf16.mxu0 0
      %930 = vmatpush2.bf16.msra.mxu0 0
      %931 = vmatprep.subr.bf16.mxu0 0
      %932 = vmatpush2.bf16.msra.mxu0 0
      %933 = vmatprep.subr.bf16.mxu0 0
      %934 = vmatpush2.bf16.msra.mxu0 0
      %935 = vmatprep.subr.bf16.mxu0 0
      %936 = vmatpush2.bf16.msra.mxu0 0
      %937 = vmatprep.subr.bf16.mxu0 0
      %938 = vmatpush2.bf16.msra.mxu0 0
      %939 = vmatprep.mubr.bf16.mxu0 0
      %940 = vmatmul.mubr.bf16.gmra.mxu0 %v838
      %v941 = vpop.f32.mrf.mxu0
      %v942 = vadd.f32 0.0, %v941
      %v943 = vpop.f32.mrf.mxu0
      %v944 = vpop.f32.mrf.mxu0
      %v945 = vadd.f32 0.0, %v944
      %v946 = vpop.f32.mrf.mxu0
      %947 = vmatprep.mubr.bf16.mxu0 0
      %948 = vmatmul.mubr.bf16.gmra.mxu0 %v839
      %v949 = vpop.f32.mrf.mxu0
      %v950 = vadd.f32 0.0, %v949
      %v951 = vpop.f32.mrf.mxu0
      %v952 = vpop.f32.mrf.mxu0
      %v953 = vadd.f32 0.0, %v952
      %v954 = vpop.f32.mrf.mxu0
      %955 = vmatprep.mubr.bf16.mxu0 0
      %956 = vmatmul.mubr.bf16.gmra.mxu0 %v840
      %v957 = vpop.f32.mrf.mxu0
      %v958 = vadd.f32 0.0, %v957
      %v959 = vpop.f32.mrf.mxu0
      %v960 = vpop.f32.mrf.mxu0
      %v961 = vadd.f32 0.0, %v960
      %v962 = vpop.f32.mrf.mxu0
      %963 = vmatprep.mubr.bf16.mxu0 0
      %964 = vmatmul.mubr.bf16.gmra.mxu0 %v841
      %v965 = vpop.f32.mrf.mxu0
      %v966 = vadd.f32 0.0, %v965
      %v967 = vpop.f32.mrf.mxu0
      %v968 = vpop.f32.mrf.mxu0
      %v969 = vadd.f32 0.0, %v968
      %v970 = vpop.f32.mrf.mxu0
      %971 = vdwg.mxu0
      %v972 = vadd.f32 %v820, %v942
      %v973 = vadd.f32 %v821, %v945
      %v974 = vadd.f32 %v822, %v950
      %v975 = vadd.f32 %v823, %v953
      %v976 = vadd.f32 %v824, %v958
      %v977 = vadd.f32 %v825, %v961
      %v978 = vadd.f32 %v826, %v966
      %v979 = vadd.f32 %v827, %v969
      %v980 = vpack.c.bf16 %v830, %v829
      %v981 = vpack.c.bf16 %v832, %v831
      %v982 = vpack.c.bf16 %v834, %v833
      %v983 = vpack.c.bf16 %v836, %v835
      %s984 = scalar_lea.vmem %s3, 256
      %v985 = vld [vmem:[%s984] sm:$0xf]
      %v986 = vld [vmem:[%s984 + $0x4] sm:$0xf]
      %v987 = vld [vmem:[%s984 + $0x8] sm:$0xf]
      %v988 = vld [vmem:[%s984 + $0xc] sm:$0xf]
      %v989 = vld [vmem:[%s984 + $0x10] sm:$0xf]
      %v990 = vld [vmem:[%s984 + $0x14] sm:$0xf]
      %v991 = vld [vmem:[%s984 + $0x18] sm:$0xf]
      %v992 = vld [vmem:[%s984 + $0x1c] sm:$0xf]
      %v993 = vld [vmem:[%s984 + $0x20] sm:$0xf]
      %v994 = vld [vmem:[%s984 + $0x24] sm:$0xf]
      %v995 = vld [vmem:[%s984 + $0x28] sm:$0xf]
      %v996 = vld [vmem:[%s984 + $0x2c] sm:$0xf]
      %v997 = vld [vmem:[%s984 + $0x30] sm:$0xf]
      %v998 = vld [vmem:[%s984 + $0x34] sm:$0xf]
      %v999 = vld [vmem:[%s984 + $0x38] sm:$0xf]
      %v1000 = vld [vmem:[%s984 + $0x3c] sm:$0xf]
      %v1017 = vunpack.c.l.b16 %v985
      %v1018 = vunpack.c.l.b16 %v986
      %v1019 = vunpack.c.l.b16 %v987
      %v1020 = vunpack.c.l.b16 %v988
      %v1021 = vunpack.c.l.b16 %v989
      %v1022 = vunpack.c.l.b16 %v990
      %v1023 = vunpack.c.l.b16 %v991
      %v1024 = vunpack.c.l.b16 %v992
      %v1025 = vunpack.c.l.b16 %v993
      %v1026 = vunpack.c.l.b16 %v994
      %v1027 = vunpack.c.l.b16 %v995
      %v1028 = vunpack.c.l.b16 %v996
      %v1029 = vunpack.c.l.b16 %v997
      %v1030 = vunpack.c.l.b16 %v998
      %v1031 = vunpack.c.l.b16 %v999
      %v1032 = vunpack.c.l.b16 %v1000
      %v1033 = vpack.c.b16 %v1018, %v1017
      %v1034 = vpack.c.b16 %v1020, %v1019
      %v1035 = vpack.c.b16 %v1022, %v1021
      %v1036 = vpack.c.b16 %v1024, %v1023
      %v1037 = vpack.c.b16 %v1026, %v1025
      %v1038 = vpack.c.b16 %v1028, %v1027
      %v1039 = vpack.c.b16 %v1030, %v1029
      %v1040 = vpack.c.b16 %v1032, %v1031
      %1049 = vmatprep.subr.bf16.mxu0 0
      %1050 = vmatpush1.bf16.msra.mxu0 %v1040
      %1051 = vmatprep.subr.bf16.mxu0 0
      %1052 = vmatpush1.bf16.msra.mxu0 %v1039
      %1053 = vmatprep.subr.bf16.mxu0 0
      %1054 = vmatpush1.bf16.msra.mxu0 %v1038
      %1055 = vmatprep.subr.bf16.mxu0 0
      %1056 = vmatpush1.bf16.msra.mxu0 %v1037
      %1057 = vmatprep.subr.bf16.mxu0 0
      %1058 = vmatpush1.bf16.msra.mxu0 %v1036
      %1059 = vmatprep.subr.bf16.mxu0 0
      %1060 = vmatpush1.bf16.msra.mxu0 %v1035
      %1061 = vmatprep.subr.bf16.mxu0 0
      %1062 = vmatpush1.bf16.msra.mxu0 %v1034
      %1063 = vmatprep.subr.bf16.mxu0 0
      %1064 = vmatpush1.bf16.msra.mxu0 %v1033
      %1065 = vmatprep.subr.bf16.mxu0 0
      %1066 = vmatpush2.bf16.msra.mxu0 0
      %1067 = vmatprep.subr.bf16.mxu0 0
      %1068 = vmatpush2.bf16.msra.mxu0 0
      %1069 = vmatprep.subr.bf16.mxu0 0
      %1070 = vmatpush2.bf16.msra.mxu0 0
      %1071 = vmatprep.subr.bf16.mxu0 0
      %1072 = vmatpush2.bf16.msra.mxu0 0
      %1073 = vmatprep.subr.bf16.mxu0 0
      %1074 = vmatpush2.bf16.msra.mxu0 0
      %1075 = vmatprep.subr.bf16.mxu0 0
      %1076 = vmatpush2.bf16.msra.mxu0 0
      %1077 = vmatprep.subr.bf16.mxu0 0
      %1078 = vmatpush2.bf16.msra.mxu0 0
      %1079 = vmatprep.subr.bf16.mxu0 0
      %1080 = vmatpush2.bf16.msra.mxu0 0
      %1081 = vmatprep.mubr.bf16.mxu0 0
      %1082 = vmatmul.mubr.bf16.gmra.mxu0 %v980
      %v1083 = vpop.f32.mrf.mxu0
      %v1084 = vadd.f32 0.0, %v1083
      %v1085 = vpop.f32.mrf.mxu0
      %v1086 = vpop.f32.mrf.mxu0
      %v1087 = vadd.f32 0.0, %v1086
      %v1088 = vpop.f32.mrf.mxu0
      %1089 = vmatprep.mubr.bf16.mxu0 0
      %1090 = vmatmul.mubr.bf16.gmra.mxu0 %v981
      %v1091 = vpop.f32.mrf.mxu0
      %v1092 = vadd.f32 0.0, %v1091
      %v1093 = vpop.f32.mrf.mxu0
      %v1094 = vpop.f32.mrf.mxu0
      %v1095 = vadd.f32 0.0, %v1094
      %v1096 = vpop.f32.mrf.mxu0
      %1097 = vmatprep.mubr.bf16.mxu0 0
      %1098 = vmatmul.mubr.bf16.gmra.mxu0 %v982
      %v1099 = vpop.f32.mrf.mxu0
      %v1100 = vadd.f32 0.0, %v1099
      %v1101 = vpop.f32.mrf.mxu0
      %v1102 = vpop.f32.mrf.mxu0
      %v1103 = vadd.f32 0.0, %v1102
      %v1104 = vpop.f32.mrf.mxu0
      %1105 = vmatprep.mubr.bf16.mxu0 0
      %1106 = vmatmul.mubr.bf16.gmra.mxu0 %v983
      %v1107 = vpop.f32.mrf.mxu0
      %v1108 = vadd.f32 0.0, %v1107
      %v1109 = vpop.f32.mrf.mxu0
      %v1110 = vpop.f32.mrf.mxu0
      %v1111 = vadd.f32 0.0, %v1110
      %v1112 = vpop.f32.mrf.mxu0
      %1113 = vdwg.mxu0
      %v1114 = vadd.f32 %v972, %v1084
      %v1115 = vadd.f32 %v973, %v1087
      %v1116 = vadd.f32 %v974, %v1092
      %v1117 = vadd.f32 %v975, %v1095
      %v1118 = vadd.f32 %v976, %v1100
      %v1119 = vadd.f32 %v977, %v1103
      %v1120 = vadd.f32 %v978, %v1108
      %v1121 = vadd.f32 %v979, %v1111
      %v1122 = vpack.c.bf16 %v837, %v836
      %s1123 = scalar_lea.vmem %s3, 448
      %v1124 = vld [vmem:[%s1123] sm:$0xf]
      %v1125 = vld [vmem:[%s1123 + $0x4] sm:$0xf]
      %v1126 = vld [vmem:[%s1123 + $0x8] sm:$0xf]
      %v1127 = vld [vmem:[%s1123 + $0xc] sm:$0xf]
      %v1128 = vld [vmem:[%s1123 + $0x10] sm:$0xf]
      %v1129 = vld [vmem:[%s1123 + $0x14] sm:$0xf]
      %v1130 = vld [vmem:[%s1123 + $0x18] sm:$0xf]
      %v1131 = vld [vmem:[%s1123 + $0x1c] sm:$0xf]
      %v1132 = vld [vmem:[%s1123 + $0x20] sm:$0xf]
      %v1133 = vld [vmem:[%s1123 + $0x24] sm:$0xf]
      %v1134 = vld [vmem:[%s1123 + $0x28] sm:$0xf]
      %v1135 = vld [vmem:[%s1123 + $0x2c] sm:$0xf]
      %v1136 = vld [vmem:[%s1123 + $0x30] sm:$0xf]
      %v1137 = vld [vmem:[%s1123 + $0x34] sm:$0xf]
      %v1138 = vld [vmem:[%s1123 + $0x38] sm:$0xf]
      %v1139 = vld [vmem:[%s1123 + $0x3c] sm:$0xf]
      %v1156 = vunpack.c.l.b16 %v1124
      %v1157 = vunpack.c.l.b16 %v1125
      %v1158 = vunpack.c.l.b16 %v1126
      %v1159 = vunpack.c.l.b16 %v1127
      %v1160 = vunpack.c.l.b16 %v1128
      %v1161 = vunpack.c.l.b16 %v1129
      %v1162 = vunpack.c.l.b16 %v1130
      %v1163 = vunpack.c.l.b16 %v1131
      %v1164 = vunpack.c.l.b16 %v1132
      %v1165 = vunpack.c.l.b16 %v1133
      %v1166 = vunpack.c.l.b16 %v1134
      %v1167 = vunpack.c.l.b16 %v1135
      %v1168 = vunpack.c.l.b16 %v1136
      %v1169 = vunpack.c.l.b16 %v1137
      %v1170 = vunpack.c.l.b16 %v1138
      %v1171 = vunpack.c.l.b16 %v1139
      %v1172 = vpack.c.b16 %v1157, %v1156
      %v1173 = vpack.c.b16 %v1159, %v1158
      %v1174 = vpack.c.b16 %v1161, %v1160
      %v1175 = vpack.c.b16 %v1163, %v1162
      %v1176 = vpack.c.b16 %v1165, %v1164
      %v1177 = vpack.c.b16 %v1167, %v1166
      %v1178 = vpack.c.b16 %v1169, %v1168
      %v1179 = vpack.c.b16 %v1171, %v1170
      %1188 = vmatprep.subr.bf16.mxu0 0
      %1189 = vmatpush1.bf16.msra.mxu0 %v1179
      %1190 = vmatprep.subr.bf16.mxu0 0
      %1191 = vmatpush1.bf16.msra.mxu0 %v1178
      %1192 = vmatprep.subr.bf16.mxu0 0
      %1193 = vmatpush1.bf16.msra.mxu0 %v1177
      %1194 = vmatprep.subr.bf16.mxu0 0
      %1195 = vmatpush1.bf16.msra.mxu0 %v1176
      %1196 = vmatprep.subr.bf16.mxu0 0
      %1197 = vmatpush1.bf16.msra.mxu0 %v1175
      %1198 = vmatprep.subr.bf16.mxu0 0
      %1199 = vmatpush1.bf16.msra.mxu0 %v1174
      %1200 = vmatprep.subr.bf16.mxu0 0
      %1201 = vmatpush1.bf16.msra.mxu0 %v1173
      %1202 = vmatprep.subr.bf16.mxu0 0
      %1203 = vmatpush1.bf16.msra.mxu0 %v1172
      %1204 = vmatprep.subr.bf16.mxu0 0
      %1205 = vmatpush2.bf16.msra.mxu0 0
      %1206 = vmatprep.subr.bf16.mxu0 0
      %1207 = vmatpush2.bf16.msra.mxu0 0
      %1208 = vmatprep.subr.bf16.mxu0 0
      %1209 = vmatpush2.bf16.msra.mxu0 0
      %1210 = vmatprep.subr.bf16.mxu0 0
      %1211 = vmatpush2.bf16.msra.mxu0 0
      %1212 = vmatprep.subr.bf16.mxu0 0
      %1213 = vmatpush2.bf16.msra.mxu0 0
      %1214 = vmatprep.subr.bf16.mxu0 0
      %1215 = vmatpush2.bf16.msra.mxu0 0
      %1216 = vmatprep.subr.bf16.mxu0 0
      %1217 = vmatpush2.bf16.msra.mxu0 0
      %1218 = vmatprep.subr.bf16.mxu0 0
      %1219 = vmatpush2.bf16.msra.mxu0 0
      %1220 = vmatprep.mubr.bf16.mxu0 0
      %1221 = vmatmul.mubr.bf16.gmra.mxu0 %v839
      %v1222 = vpop.f32.mrf.mxu0
      %v1223 = vadd.f32 0.0, %v1222
      %v1224 = vpop.f32.mrf.mxu0
      %v1225 = vpop.f32.mrf.mxu0
      %v1226 = vadd.f32 0.0, %v1225
      %v1227 = vpop.f32.mrf.mxu0
      %1228 = vmatprep.mubr.bf16.mxu0 0
      %1229 = vmatmul.mubr.bf16.gmra.mxu0 %v840
      %v1230 = vpop.f32.mrf.mxu0
      %v1231 = vadd.f32 0.0, %v1230
      %v1232 = vpop.f32.mrf.mxu0
      %v1233 = vpop.f32.mrf.mxu0
      %v1234 = vadd.f32 0.0, %v1233
      %v1235 = vpop.f32.mrf.mxu0
      %1236 = vmatprep.mubr.bf16.mxu0 0
      %1237 = vmatmul.mubr.bf16.gmra.mxu0 %v841
      %v1238 = vpop.f32.mrf.mxu0
      %v1239 = vadd.f32 0.0, %v1238
      %v1240 = vpop.f32.mrf.mxu0
      %v1241 = vpop.f32.mrf.mxu0
      %v1242 = vadd.f32 0.0, %v1241
      %v1243 = vpop.f32.mrf.mxu0
      %1244 = vmatprep.mubr.bf16.mxu0 0
      %1245 = vmatmul.mubr.bf16.gmra.mxu0 %v1122
      %v1246 = vpop.f32.mrf.mxu0
      %v1247 = vadd.f32 0.0, %v1246
      %v1248 = vpop.f32.mrf.mxu0
      %v1249 = vpop.f32.mrf.mxu0
      %v1250 = vadd.f32 0.0, %v1249
      %v1251 = vpop.f32.mrf.mxu0
      %1252 = vdwg.mxu0
      %v1253 = vadd.f32 %v1114, %v1223
      %v1254 = vadd.f32 %v1115, %v1226
      %v1255 = vadd.f32 %v1116, %v1231
      %v1256 = vadd.f32 %v1117, %v1234
      %v1257 = vadd.f32 %v1118, %v1239
      %v1258 = vadd.f32 %v1119, %v1242
      %v1259 = vadd.f32 %v1120, %v1247
      %v1260 = vadd.f32 %v1121, %v1250
      %v1261 = vld [vmem:[#allocation2 + $0x2] sm:$0xff]
      %v1262 = vld [vmem:[#allocation2 + $0x12] sm:$0xff]
      %v1263 = vld [vmem:[#allocation2 + $0x22] sm:$0xff]
      %v1264 = vld [vmem:[#allocation2 + $0x32] sm:$0xff]
      %v1265 = vld [vmem:[#allocation2 + $0x42] sm:$0xff]
      %v1266 = vld [vmem:[#allocation2 + $0x52] sm:$0xff]
      %v1267 = vld [vmem:[#allocation2 + $0x62] sm:$0xff]
      %v1268 = vld [vmem:[#allocation2 + $0x72] sm:$0xff]
      %v1269 = vld [vmem:[#allocation2 + $0x82] sm:$0xff]
      %v1270 = vld [vmem:[#allocation2 + $0x92] sm:$0xff]
      %v1271 = vpack.c.bf16 %v1262, %v1261
      %v1272 = vpack.c.bf16 %v1264, %v1263
      %v1273 = vpack.c.bf16 %v1266, %v1265
      %v1274 = vpack.c.bf16 %v1268, %v1267
      %s1275 = scalar_lea.vmem %s3, 128
      %v1276 = vld [vmem:[%s1275] sm:$0xf]
      %v1277 = vld [vmem:[%s1275 + $0x4] sm:$0xf]
      %v1278 = vld [vmem:[%s1275 + $0x8] sm:$0xf]
      %v1279 = vld [vmem:[%s1275 + $0xc] sm:$0xf]
      %v1280 = vld [vmem:[%s1275 + $0x10] sm:$0xf]
      %v1281 = vld [vmem:[%s1275 + $0x14] sm:$0xf]
      %v1282 = vld [vmem:[%s1275 + $0x18] sm:$0xf]
      %v1283 = vld [vmem:[%s1275 + $0x1c] sm:$0xf]
      %v1284 = vld [vmem:[%s1275 + $0x20] sm:$0xf]
      %v1285 = vld [vmem:[%s1275 + $0x24] sm:$0xf]
      %v1286 = vld [vmem:[%s1275 + $0x28] sm:$0xf]
      %v1287 = vld [vmem:[%s1275 + $0x2c] sm:$0xf]
      %v1288 = vld [vmem:[%s1275 + $0x30] sm:$0xf]
      %v1289 = vld [vmem:[%s1275 + $0x34] sm:$0xf]
      %v1290 = vld [vmem:[%s1275 + $0x38] sm:$0xf]
      %v1291 = vld [vmem:[%s1275 + $0x3c] sm:$0xf]
      %v1308 = vunpack.c.l.b16 %v1276
      %v1309 = vunpack.c.l.b16 %v1277
      %v1310 = vunpack.c.l.b16 %v1278
      %v1311 = vunpack.c.l.b16 %v1279
      %v1312 = vunpack.c.l.b16 %v1280
      %v1313 = vunpack.c.l.b16 %v1281
      %v1314 = vunpack.c.l.b16 %v1282
      %v1315 = vunpack.c.l.b16 %v1283
      %v1316 = vunpack.c.l.b16 %v1284
      %v1317 = vunpack.c.l.b16 %v1285
      %v1318 = vunpack.c.l.b16 %v1286
      %v1319 = vunpack.c.l.b16 %v1287
      %v1320 = vunpack.c.l.b16 %v1288
      %v1321 = vunpack.c.l.b16 %v1289
      %v1322 = vunpack.c.l.b16 %v1290
      %v1323 = vunpack.c.l.b16 %v1291
      %v1324 = vpack.c.b16 %v1309, %v1308
      %v1325 = vpack.c.b16 %v1311, %v1310
      %v1326 = vpack.c.b16 %v1313, %v1312
      %v1327 = vpack.c.b16 %v1315, %v1314
      %v1328 = vpack.c.b16 %v1317, %v1316
      %v1329 = vpack.c.b16 %v1319, %v1318
      %v1330 = vpack.c.b16 %v1321, %v1320
      %v1331 = vpack.c.b16 %v1323, %v1322
      %1340 = vmatprep.subr.bf16.mxu0 0
      %1341 = vmatpush1.bf16.msra.mxu0 %v1331
      %1342 = vmatprep.subr.bf16.mxu0 0
      %1343 = vmatpush1.bf16.msra.mxu0 %v1330
      %1344 = vmatprep.subr.bf16.mxu0 0
      %1345 = vmatpush1.bf16.msra.mxu0 %v1329
      %1346 = vmatprep.subr.bf16.mxu0 0
      %1347 = vmatpush1.bf16.msra.mxu0 %v1328
      %1348 = vmatprep.subr.bf16.mxu0 0
      %1349 = vmatpush1.bf16.msra.mxu0 %v1327
      %1350 = vmatprep.subr.bf16.mxu0 0
      %1351 = vmatpush1.bf16.msra.mxu0 %v1326
      %1352 = vmatprep.subr.bf16.mxu0 0
      %1353 = vmatpush1.bf16.msra.mxu0 %v1325
      %1354 = vmatprep.subr.bf16.mxu0 0
      %1355 = vmatpush1.bf16.msra.mxu0 %v1324
      %1356 = vmatprep.subr.bf16.mxu0 0
      %1357 = vmatpush2.bf16.msra.mxu0 0
      %1358 = vmatprep.subr.bf16.mxu0 0
      %1359 = vmatpush2.bf16.msra.mxu0 0
      %1360 = vmatprep.subr.bf16.mxu0 0
      %1361 = vmatpush2.bf16.msra.mxu0 0
      %1362 = vmatprep.subr.bf16.mxu0 0
      %1363 = vmatpush2.bf16.msra.mxu0 0
      %1364 = vmatprep.subr.bf16.mxu0 0
      %1365 = vmatpush2.bf16.msra.mxu0 0
      %1366 = vmatprep.subr.bf16.mxu0 0
      %1367 = vmatpush2.bf16.msra.mxu0 0
      %1368 = vmatprep.subr.bf16.mxu0 0
      %1369 = vmatpush2.bf16.msra.mxu0 0
      %1370 = vmatprep.subr.bf16.mxu0 0
      %1371 = vmatpush2.bf16.msra.mxu0 0
      %1372 = vmatprep.mubr.bf16.mxu0 0
      %1373 = vmatmul.mubr.bf16.gmra.mxu0 %v1271
      %v1374 = vpop.f32.mrf.mxu0
      %v1375 = vadd.f32 0.0, %v1374
      %v1376 = vpop.f32.mrf.mxu0
      %v1377 = vpop.f32.mrf.mxu0
      %v1378 = vadd.f32 0.0, %v1377
      %v1379 = vpop.f32.mrf.mxu0
      %1380 = vmatprep.mubr.bf16.mxu0 0
      %1381 = vmatmul.mubr.bf16.gmra.mxu0 %v1272
      %v1382 = vpop.f32.mrf.mxu0
      %v1383 = vadd.f32 0.0, %v1382
      %v1384 = vpop.f32.mrf.mxu0
      %v1385 = vpop.f32.mrf.mxu0
      %v1386 = vadd.f32 0.0, %v1385
      %v1387 = vpop.f32.mrf.mxu0
      %1388 = vmatprep.mubr.bf16.mxu0 0
      %1389 = vmatmul.mubr.bf16.gmra.mxu0 %v1273
      %v1390 = vpop.f32.mrf.mxu0
      %v1391 = vadd.f32 0.0, %v1390
      %v1392 = vpop.f32.mrf.mxu0
      %v1393 = vpop.f32.mrf.mxu0
      %v1394 = vadd.f32 0.0, %v1393
      %v1395 = vpop.f32.mrf.mxu0
      %1396 = vmatprep.mubr.bf16.mxu0 0
      %1397 = vmatmul.mubr.bf16.gmra.mxu0 %v1274
      %v1398 = vpop.f32.mrf.mxu0
      %v1399 = vadd.f32 0.0, %v1398
      %v1400 = vpop.f32.mrf.mxu0
      %v1401 = vpop.f32.mrf.mxu0
      %v1402 = vadd.f32 0.0, %v1401
      %v1403 = vpop.f32.mrf.mxu0
      %1404 = vdwg.mxu0
      %v1405 = vadd.f32 %v1253, %v1375
      %v1406 = vadd.f32 %v1254, %v1378
      %v1407 = vadd.f32 %v1255, %v1383
      %v1408 = vadd.f32 %v1256, %v1386
      %v1409 = vadd.f32 %v1257, %v1391
      %v1410 = vadd.f32 %v1258, %v1394
      %v1411 = vadd.f32 %v1259, %v1399
      %v1412 = vadd.f32 %v1260, %v1402
      %v1413 = vpack.c.bf16 %v1263, %v1262
      %v1414 = vpack.c.bf16 %v1265, %v1264
      %v1415 = vpack.c.bf16 %v1267, %v1266
      %v1416 = vpack.c.bf16 %v1269, %v1268
      %s1417 = scalar_lea.vmem %s3, 320
      %v1418 = vld [vmem:[%s1417] sm:$0xf]
      %v1419 = vld [vmem:[%s1417 + $0x4] sm:$0xf]
      %v1420 = vld [vmem:[%s1417 + $0x8] sm:$0xf]
      %v1421 = vld [vmem:[%s1417 + $0xc] sm:$0xf]
      %v1422 = vld [vmem:[%s1417 + $0x10] sm:$0xf]
      %v1423 = vld [vmem:[%s1417 + $0x14] sm:$0xf]
      %v1424 = vld [vmem:[%s1417 + $0x18] sm:$0xf]
      %v1425 = vld [vmem:[%s1417 + $0x1c] sm:$0xf]
      %v1426 = vld [vmem:[%s1417 + $0x20] sm:$0xf]
      %v1427 = vld [vmem:[%s1417 + $0x24] sm:$0xf]
      %v1428 = vld [vmem:[%s1417 + $0x28] sm:$0xf]
      %v1429 = vld [vmem:[%s1417 + $0x2c] sm:$0xf]
      %v1430 = vld [vmem:[%s1417 + $0x30] sm:$0xf]
      %v1431 = vld [vmem:[%s1417 + $0x34] sm:$0xf]
      %v1432 = vld [vmem:[%s1417 + $0x38] sm:$0xf]
      %v1433 = vld [vmem:[%s1417 + $0x3c] sm:$0xf]
      %v1450 = vunpack.c.l.b16 %v1418
      %v1451 = vunpack.c.l.b16 %v1419
      %v1452 = vunpack.c.l.b16 %v1420
      %v1453 = vunpack.c.l.b16 %v1421
      %v1454 = vunpack.c.l.b16 %v1422
      %v1455 = vunpack.c.l.b16 %v1423
      %v1456 = vunpack.c.l.b16 %v1424
      %v1457 = vunpack.c.l.b16 %v1425
      %v1458 = vunpack.c.l.b16 %v1426
      %v1459 = vunpack.c.l.b16 %v1427
      %v1460 = vunpack.c.l.b16 %v1428
      %v1461 = vunpack.c.l.b16 %v1429
      %v1462 = vunpack.c.l.b16 %v1430
      %v1463 = vunpack.c.l.b16 %v1431
      %v1464 = vunpack.c.l.b16 %v1432
      %v1465 = vunpack.c.l.b16 %v1433
      %v1466 = vpack.c.b16 %v1451, %v1450
      %v1467 = vpack.c.b16 %v1453, %v1452
      %v1468 = vpack.c.b16 %v1455, %v1454
      %v1469 = vpack.c.b16 %v1457, %v1456
      %v1470 = vpack.c.b16 %v1459, %v1458
      %v1471 = vpack.c.b16 %v1461, %v1460
      %v1472 = vpack.c.b16 %v1463, %v1462
      %v1473 = vpack.c.b16 %v1465, %v1464
      %1482 = vmatprep.subr.bf16.mxu0 0
      %1483 = vmatpush1.bf16.msra.mxu0 %v1473
      %1484 = vmatprep.subr.bf16.mxu0 0
      %1485 = vmatpush1.bf16.msra.mxu0 %v1472
      %1486 = vmatprep.subr.bf16.mxu0 0
      %1487 = vmatpush1.bf16.msra.mxu0 %v1471
      %1488 = vmatprep.subr.bf16.mxu0 0
      %1489 = vmatpush1.bf16.msra.mxu0 %v1470
      %1490 = vmatprep.subr.bf16.mxu0 0
      %1491 = vmatpush1.bf16.msra.mxu0 %v1469
      %1492 = vmatprep.subr.bf16.mxu0 0
      %1493 = vmatpush1.bf16.msra.mxu0 %v1468
      %1494 = vmatprep.subr.bf16.mxu0 0
      %1495 = vmatpush1.bf16.msra.mxu0 %v1467
      %1496 = vmatprep.subr.bf16.mxu0 0
      %1497 = vmatpush1.bf16.msra.mxu0 %v1466
      %1498 = vmatprep.subr.bf16.mxu0 0
      %1499 = vmatpush2.bf16.msra.mxu0 0
      %1500 = vmatprep.subr.bf16.mxu0 0
      %1501 = vmatpush2.bf16.msra.mxu0 0
      %1502 = vmatprep.subr.bf16.mxu0 0
      %1503 = vmatpush2.bf16.msra.mxu0 0
      %1504 = vmatprep.subr.bf16.mxu0 0
      %1505 = vmatpush2.bf16.msra.mxu0 0
      %1506 = vmatprep.subr.bf16.mxu0 0
      %1507 = vmatpush2.bf16.msra.mxu0 0
      %1508 = vmatprep.subr.bf16.mxu0 0
      %1509 = vmatpush2.bf16.msra.mxu0 0
      %1510 = vmatprep.subr.bf16.mxu0 0
      %1511 = vmatpush2.bf16.msra.mxu0 0
      %1512 = vmatprep.subr.bf16.mxu0 0
      %1513 = vmatpush2.bf16.msra.mxu0 0
      %1514 = vmatprep.mubr.bf16.mxu0 0
      %1515 = vmatmul.mubr.bf16.gmra.mxu0 %v1413
      %v1516 = vpop.f32.mrf.mxu0
      %v1517 = vadd.f32 0.0, %v1516
      %v1518 = vpop.f32.mrf.mxu0
      %v1519 = vpop.f32.mrf.mxu0
      %v1520 = vadd.f32 0.0, %v1519
      %v1521 = vpop.f32.mrf.mxu0
      %1522 = vmatprep.mubr.bf16.mxu0 0
      %1523 = vmatmul.mubr.bf16.gmra.mxu0 %v1414
      %v1524 = vpop.f32.mrf.mxu0
      %v1525 = vadd.f32 0.0, %v1524
      %v1526 = vpop.f32.mrf.mxu0
      %v1527 = vpop.f32.mrf.mxu0
      %v1528 = vadd.f32 0.0, %v1527
      %v1529 = vpop.f32.mrf.mxu0
      %1530 = vmatprep.mubr.bf16.mxu0 0
      %1531 = vmatmul.mubr.bf16.gmra.mxu0 %v1415
      %v1532 = vpop.f32.mrf.mxu0
      %v1533 = vadd.f32 0.0, %v1532
      %v1534 = vpop.f32.mrf.mxu0
      %v1535 = vpop.f32.mrf.mxu0
      %v1536 = vadd.f32 0.0, %v1535
      %v1537 = vpop.f32.mrf.mxu0
      %1538 = vmatprep.mubr.bf16.mxu0 0
      %1539 = vmatmul.mubr.bf16.gmra.mxu0 %v1416
      %v1540 = vpop.f32.mrf.mxu0
      %v1541 = vadd.f32 0.0, %v1540
      %v1542 = vpop.f32.mrf.mxu0
      %v1543 = vpop.f32.mrf.mxu0
      %v1544 = vadd.f32 0.0, %v1543
      %v1545 = vpop.f32.mrf.mxu0
      %1546 = vdwg.mxu0
      %v1547 = vadd.f32 %v1405, %v1517
      %v1548 = vadd.f32 %v1406, %v1520
      %v1549 = vadd.f32 %v1407, %v1525
      %v1550 = vadd.f32 %v1408, %v1528
      %v1551 = vadd.f32 %v1409, %v1533
      %v1552 = vadd.f32 %v1410, %v1536
      %v1553 = vadd.f32 %v1411, %v1541
      %v1554 = vadd.f32 %v1412, %v1544
      %v1555 = vpack.c.bf16 %v1270, %v1269
      %s1556 = scalar_lea.vmem %s3, 512
      %v1557 = vld [vmem:[%s1556] sm:$0xf]
      %v1558 = vld [vmem:[%s1556 + $0x4] sm:$0xf]
      %v1559 = vld [vmem:[%s1556 + $0x8] sm:$0xf]
      %v1560 = vld [vmem:[%s1556 + $0xc] sm:$0xf]
      %v1561 = vld [vmem:[%s1556 + $0x10] sm:$0xf]
      %v1562 = vld [vmem:[%s1556 + $0x14] sm:$0xf]
      %v1563 = vld [vmem:[%s1556 + $0x18] sm:$0xf]
      %v1564 = vld [vmem:[%s1556 + $0x1c] sm:$0xf]
      %v1565 = vld [vmem:[%s1556 + $0x20] sm:$0xf]
      %v1566 = vld [vmem:[%s1556 + $0x24] sm:$0xf]
      %v1567 = vld [vmem:[%s1556 + $0x28] sm:$0xf]
      %v1568 = vld [vmem:[%s1556 + $0x2c] sm:$0xf]
      %v1569 = vld [vmem:[%s1556 + $0x30] sm:$0xf]
      %v1570 = vld [vmem:[%s1556 + $0x34] sm:$0xf]
      %v1571 = vld [vmem:[%s1556 + $0x38] sm:$0xf]
      %v1572 = vld [vmem:[%s1556 + $0x3c] sm:$0xf]
      %v1589 = vunpack.c.l.b16 %v1557
      %v1590 = vunpack.c.l.b16 %v1558
      %v1591 = vunpack.c.l.b16 %v1559
      %v1592 = vunpack.c.l.b16 %v1560
      %v1593 = vunpack.c.l.b16 %v1561
      %v1594 = vunpack.c.l.b16 %v1562
      %v1595 = vunpack.c.l.b16 %v1563
      %v1596 = vunpack.c.l.b16 %v1564
      %v1597 = vunpack.c.l.b16 %v1565
      %v1598 = vunpack.c.l.b16 %v1566
      %v1599 = vunpack.c.l.b16 %v1567
      %v1600 = vunpack.c.l.b16 %v1568
      %v1601 = vunpack.c.l.b16 %v1569
      %v1602 = vunpack.c.l.b16 %v1570
      %v1603 = vunpack.c.l.b16 %v1571
      %v1604 = vunpack.c.l.b16 %v1572
      %v1605 = vpack.c.b16 %v1590, %v1589
      %v1606 = vpack.c.b16 %v1592, %v1591
      %v1607 = vpack.c.b16 %v1594, %v1593
      %v1608 = vpack.c.b16 %v1596, %v1595
      %v1609 = vpack.c.b16 %v1598, %v1597
      %v1610 = vpack.c.b16 %v1600, %v1599
      %v1611 = vpack.c.b16 %v1602, %v1601
      %v1612 = vpack.c.b16 %v1604, %v1603
      %1621 = vmatprep.subr.bf16.mxu0 0
      %1622 = vmatpush1.bf16.msra.mxu0 %v1612
      %1623 = vmatprep.subr.bf16.mxu0 0
      %1624 = vmatpush1.bf16.msra.mxu0 %v1611
      %1625 = vmatprep.subr.bf16.mxu0 0
      %1626 = vmatpush1.bf16.msra.mxu0 %v1610
      %1627 = vmatprep.subr.bf16.mxu0 0
      %1628 = vmatpush1.bf16.msra.mxu0 %v1609
      %1629 = vmatprep.subr.bf16.mxu0 0
      %1630 = vmatpush1.bf16.msra.mxu0 %v1608
      %1631 = vmatprep.subr.bf16.mxu0 0
      %1632 = vmatpush1.bf16.msra.mxu0 %v1607
      %1633 = vmatprep.subr.bf16.mxu0 0
      %1634 = vmatpush1.bf16.msra.mxu0 %v1606
      %1635 = vmatprep.subr.bf16.mxu0 0
      %1636 = vmatpush1.bf16.msra.mxu0 %v1605
      %1637 = vmatprep.subr.bf16.mxu0 0
      %1638 = vmatpush2.bf16.msra.mxu0 0
      %1639 = vmatprep.subr.bf16.mxu0 0
      %1640 = vmatpush2.bf16.msra.mxu0 0
      %1641 = vmatprep.subr.bf16.mxu0 0
      %1642 = vmatpush2.bf16.msra.mxu0 0
      %1643 = vmatprep.subr.bf16.mxu0 0
      %1644 = vmatpush2.bf16.msra.mxu0 0
      %1645 = vmatprep.subr.bf16.mxu0 0
      %1646 = vmatpush2.bf16.msra.mxu0 0
      %1647 = vmatprep.subr.bf16.mxu0 0
      %1648 = vmatpush2.bf16.msra.mxu0 0
      %1649 = vmatprep.subr.bf16.mxu0 0
      %1650 = vmatpush2.bf16.msra.mxu0 0
      %1651 = vmatprep.subr.bf16.mxu0 0
      %1652 = vmatpush2.bf16.msra.mxu0 0
      %1653 = vmatprep.mubr.bf16.mxu0 0
      %1654 = vmatmul.mubr.bf16.gmra.mxu0 %v1272
      %v1655 = vpop.f32.mrf.mxu0
      %v1656 = vadd.f32 0.0, %v1655
      %v1657 = vpop.f32.mrf.mxu0
      %v1658 = vpop.f32.mrf.mxu0
      %v1659 = vadd.f32 0.0, %v1658
      %v1660 = vpop.f32.mrf.mxu0
      %1661 = vmatprep.mubr.bf16.mxu0 0
      %1662 = vmatmul.mubr.bf16.gmra.mxu0 %v1273
      %v1663 = vpop.f32.mrf.mxu0
      %v1664 = vadd.f32 0.0, %v1663
      %v1665 = vpop.f32.mrf.mxu0
      %v1666 = vpop.f32.mrf.mxu0
      %v1667 = vadd.f32 0.0, %v1666
      %v1668 = vpop.f32.mrf.mxu0
      %1669 = vmatprep.mubr.bf16.mxu0 0
      %1670 = vmatmul.mubr.bf16.gmra.mxu0 %v1274
      %v1671 = vpop.f32.mrf.mxu0
      %v1672 = vadd.f32 0.0, %v1671
      %v1673 = vpop.f32.mrf.mxu0
      %v1674 = vpop.f32.mrf.mxu0
      %v1675 = vadd.f32 0.0, %v1674
      %v1676 = vpop.f32.mrf.mxu0
      %1677 = vmatprep.mubr.bf16.mxu0 0
      %1678 = vmatmul.mubr.bf16.gmra.mxu0 %v1555
      %v1679 = vpop.f32.mrf.mxu0
      %v1680 = vadd.f32 0.0, %v1679
      %v1681 = vpop.f32.mrf.mxu0
      %v1682 = vpop.f32.mrf.mxu0
      %v1683 = vadd.f32 0.0, %v1682
      %v1684 = vpop.f32.mrf.mxu0
      %1685 = vdwg.mxu0
      %v1686 = vadd.f32 %v1547, %v1656
      %v1687 = vadd.f32 %v1548, %v1659
      %v1688 = vadd.f32 %v1549, %v1664
      %v1689 = vadd.f32 %v1550, %v1667
      %v1690 = vadd.f32 %v1551, %v1672
      %v1691 = vadd.f32 %v1552, %v1675
      %v1692 = vadd.f32 %v1553, %v1680
      %v1693 = vadd.f32 %v1554, %v1683
      %v1694 = vld [vmem:[%s4] sm:$0x1]
      %v1696 = vlaneseq
      %v1697 = vshrl.u32 %v1696, 7
      %v1698 = vsub.s32 0, %v1697
      %v1699 = vrot.slane %v1694, %v1698
      %v1701 = vmul.f32 %v1686, %v1699
      %v1702 = vmul.f32 %v1687, %v1699
      %v1703 = vmul.f32 %v1688, %v1699
      %v1704 = vmul.f32 %v1689, %v1699
      %v1705 = vmul.f32 %v1690, %v1699
      %v1706 = vmul.f32 %v1691, %v1699
      %v1707 = vmul.f32 %v1692, %v1699
      %v1708 = vmul.f32 %v1693, %v1699
      %v1709 = vld [vmem:[%s5] sm:$0x1]
      %v1711 = vlaneseq
      %v1712 = vshrl.u32 %v1711, 7
      %v1713 = vsub.s32 0, %v1712
      %v1714 = vrot.slane %v1709, %v1713
      %v1716 = vadd.f32 %v1701, %v1714
      %v1717 = vadd.f32 %v1702, %v1714
      %v1718 = vadd.f32 %v1703, %v1714
      %v1719 = vadd.f32 %v1704, %v1714
      %v1720 = vadd.f32 %v1705, %v1714
      %v1721 = vadd.f32 %v1706, %v1714
      %v1722 = vadd.f32 %v1707, %v1714
      %v1723 = vadd.f32 %v1708, %v1714
      %v1724 = vmax.f32 %v1716, 0.0
      %v1725 = vmax.f32 %v1717, 0.0
      %v1726 = vmax.f32 %v1718, 0.0
      %v1727 = vmax.f32 %v1719, 0.0
      %v1728 = vmax.f32 %v1720, 0.0
      %v1729 = vmax.f32 %v1721, 0.0
      %v1730 = vmax.f32 %v1722, 0.0
      %v1731 = vmax.f32 %v1723, 0.0
      %s1732 = scalar_lea.vmem [#allocation3], 16
      %1733 = vst [vmem:[%s1732 + $0x1] sm:$0xff] %v1724
      %1734 = vst [vmem:[%s1732 + $0x11] sm:$0xff] %v1725
      %1735 = vst [vmem:[%s1732 + $0x21] sm:$0xff] %v1726
      %1736 = vst [vmem:[%s1732 + $0x31] sm:$0xff] %v1727
      %1737 = vst [vmem:[%s1732 + $0x41] sm:$0xff] %v1728
      %1738 = vst [vmem:[%s1732 + $0x51] sm:$0xff] %v1729
      %1739 = vst [vmem:[%s1732 + $0x61] sm:$0xff] %v1730
      %1740 = vst [vmem:[%s1732 + $0x71] sm:$0xff] %v1731
      %v1741 = vld [vmem:[%s7] sm:$0x1]
      %v1742 = vld [vmem:[#allocation3] sm:$0xff]
      %v1743 = vld [vmem:[#allocation3 + $0x10] sm:$0xff]
      %v1744 = vld [vmem:[#allocation3 + $0x20] sm:$0xff]
      %v1745 = vld [vmem:[#allocation3 + $0x30] sm:$0xff]
      %v1746 = vld [vmem:[#allocation3 + $0x40] sm:$0xff]
      %v1747 = vld [vmem:[#allocation3 + $0x50] sm:$0xff]
      %v1748 = vld [vmem:[#allocation3 + $0x60] sm:$0xff]
      %v1749 = vld [vmem:[#allocation3 + $0x70] sm:$0xff]
      %v1750 = vld [vmem:[#allocation3 + $0x80] sm:$0xff]
      %v1751 = vld [vmem:[#allocation3 + $0x90] sm:$0xff]
      %v1752 = vpack.c.bf16 %v1743, %v1742
      %v1753 = vpack.c.bf16 %v1745, %v1744
      %v1754 = vpack.c.bf16 %v1747, %v1746
      %v1755 = vpack.c.bf16 %v1749, %v1748
      %v1756 = vld [vmem:[%s6] sm:$0xf]
      %v1757 = vld [vmem:[%s6 + $0x4] sm:$0xf]
      %v1758 = vld [vmem:[%s6 + $0x8] sm:$0xf]
      %v1759 = vld [vmem:[%s6 + $0xc] sm:$0xf]
      %v1760 = vld [vmem:[%s6 + $0x10] sm:$0xf]
      %v1761 = vld [vmem:[%s6 + $0x14] sm:$0xf]
      %v1762 = vld [vmem:[%s6 + $0x18] sm:$0xf]
      %v1763 = vld [vmem:[%s6 + $0x1c] sm:$0xf]
      %v1764 = vld [vmem:[%s6 + $0x20] sm:$0xf]
      %v1765 = vld [vmem:[%s6 + $0x24] sm:$0xf]
      %v1766 = vld [vmem:[%s6 + $0x28] sm:$0xf]
      %v1767 = vld [vmem:[%s6 + $0x2c] sm:$0xf]
      %v1768 = vld [vmem:[%s6 + $0x30] sm:$0xf]
      %v1769 = vld [vmem:[%s6 + $0x34] sm:$0xf]
      %v1770 = vld [vmem:[%s6 + $0x38] sm:$0xf]
      %v1771 = vld [vmem:[%s6 + $0x3c] sm:$0xf]
      %v1788 = vunpack.c.l.b16 %v1756
      %v1789 = vunpack.c.l.b16 %v1757
      %v1790 = vunpack.c.l.b16 %v1758
      %v1791 = vunpack.c.l.b16 %v1759
      %v1792 = vunpack.c.l.b16 %v1760
      %v1793 = vunpack.c.l.b16 %v1761
      %v1794 = vunpack.c.l.b16 %v1762
      %v1795 = vunpack.c.l.b16 %v1763
      %v1796 = vunpack.c.l.b16 %v1764
      %v1797 = vunpack.c.l.b16 %v1765
      %v1798 = vunpack.c.l.b16 %v1766
      %v1799 = vunpack.c.l.b16 %v1767
      %v1800 = vunpack.c.l.b16 %v1768
      %v1801 = vunpack.c.l.b16 %v1769
      %v1802 = vunpack.c.l.b16 %v1770
      %v1803 = vunpack.c.l.b16 %v1771
      %v1804 = vpack.c.b16 %v1789, %v1788
      %v1805 = vpack.c.b16 %v1791, %v1790
      %v1806 = vpack.c.b16 %v1793, %v1792
      %v1807 = vpack.c.b16 %v1795, %v1794
      %v1808 = vpack.c.b16 %v1797, %v1796
      %v1809 = vpack.c.b16 %v1799, %v1798
      %v1810 = vpack.c.b16 %v1801, %v1800
      %v1811 = vpack.c.b16 %v1803, %v1802
      %1820 = vmatprep.subr.bf16.mxu0 0
      %1821 = vmatpush1.bf16.msra.mxu0 %v1811
      %1822 = vmatprep.subr.bf16.mxu0 0
      %1823 = vmatpush1.bf16.msra.mxu0 %v1810
      %1824 = vmatprep.subr.bf16.mxu0 0
      %1825 = vmatpush1.bf16.msra.mxu0 %v1809
      %1826 = vmatprep.subr.bf16.mxu0 0
      %1827 = vmatpush1.bf16.msra.mxu0 %v1808
      %1828 = vmatprep.subr.bf16.mxu0 0
      %1829 = vmatpush1.bf16.msra.mxu0 %v1807
      %1830 = vmatprep.subr.bf16.mxu0 0
      %1831 = vmatpush1.bf16.msra.mxu0 %v1806
      %1832 = vmatprep.subr.bf16.mxu0 0
      %1833 = vmatpush1.bf16.msra.mxu0 %v1805
      %1834 = vmatprep.subr.bf16.mxu0 0
      %1835 = vmatpush1.bf16.msra.mxu0 %v1804
      %1836 = vmatprep.subr.bf16.mxu0 0
      %1837 = vmatpush2.bf16.msra.mxu0 0
      %1838 = vmatprep.subr.bf16.mxu0 0
      %1839 = vmatpush2.bf16.msra.mxu0 0
      %1840 = vmatprep.subr.bf16.mxu0 0
      %1841 = vmatpush2.bf16.msra.mxu0 0
      %1842 = vmatprep.subr.bf16.mxu0 0
      %1843 = vmatpush2.bf16.msra.mxu0 0
      %1844 = vmatprep.subr.bf16.mxu0 0
      %1845 = vmatpush2.bf16.msra.mxu0 0
      %1846 = vmatprep.subr.bf16.mxu0 0
      %1847 = vmatpush2.bf16.msra.mxu0 0
      %1848 = vmatprep.subr.bf16.mxu0 0
      %1849 = vmatpush2.bf16.msra.mxu0 0
      %1850 = vmatprep.subr.bf16.mxu0 0
      %1851 = vmatpush2.bf16.msra.mxu0 0
      %1852 = vmatprep.mubr.bf16.mxu0 0
      %1853 = vmatmul.mubr.bf16.gmra.mxu0 %v1752
      %v1854 = vpop.f32.mrf.mxu0
      %v1855 = vadd.f32 0.0, %v1854
      %v1856 = vpop.f32.mrf.mxu0
      %v1857 = vpop.f32.mrf.mxu0
      %v1858 = vadd.f32 0.0, %v1857
      %v1859 = vpop.f32.mrf.mxu0
      %1860 = vmatprep.mubr.bf16.mxu0 0
      %1861 = vmatmul.mubr.bf16.gmra.mxu0 %v1753
      %v1862 = vpop.f32.mrf.mxu0
      %v1863 = vadd.f32 0.0, %v1862
      %v1864 = vpop.f32.mrf.mxu0
      %v1865 = vpop.f32.mrf.mxu0
      %v1866 = vadd.f32 0.0, %v1865
      %v1867 = vpop.f32.mrf.mxu0
      %1868 = vmatprep.mubr.bf16.mxu0 0
      %1869 = vmatmul.mubr.bf16.gmra.mxu0 %v1754
      %v1870 = vpop.f32.mrf.mxu0
      %v1871 = vadd.f32 0.0, %v1870
      %v1872 = vpop.f32.mrf.mxu0
      %v1873 = vpop.f32.mrf.mxu0
      %v1874 = vadd.f32 0.0, %v1873
      %v1875 = vpop.f32.mrf.mxu0
      %1876 = vmatprep.mubr.bf16.mxu0 0
      %1877 = vmatmul.mubr.bf16.gmra.mxu0 %v1755
      %v1878 = vpop.f32.mrf.mxu0
      %v1879 = vadd.f32 0.0, %v1878
      %v1880 = vpop.f32.mrf.mxu0
      %v1881 = vpop.f32.mrf.mxu0
      %v1882 = vadd.f32 0.0, %v1881
      %v1883 = vpop.f32.mrf.mxu0
      %1884 = vdwg.mxu0
      %v1886 = vlaneseq
      %v1887 = vshrl.u32 %v1886, 7
      %v1888 = vsub.s32 0, %v1887
      %v1889 = vrot.slane %v1741, %v1888
      %v1891 = vadd.f32 %v1889, %v1855
      %v1892 = vadd.f32 %v1889, %v1858
      %v1893 = vadd.f32 %v1889, %v1863
      %v1894 = vadd.f32 %v1889, %v1866
      %v1895 = vadd.f32 %v1889, %v1871
      %v1896 = vadd.f32 %v1889, %v1874
      %v1897 = vadd.f32 %v1889, %v1879
      %v1898 = vadd.f32 %v1889, %v1882
      %v1899 = vpack.c.bf16 %v1744, %v1743
      %v1900 = vpack.c.bf16 %v1746, %v1745
      %v1901 = vpack.c.bf16 %v1748, %v1747
      %v1902 = vpack.c.bf16 %v1750, %v1749
      %s1903 = scalar_lea.vmem %s6, 192
      %v1904 = vld [vmem:[%s1903] sm:$0xf]
      %v1905 = vld [vmem:[%s1903 + $0x4] sm:$0xf]
      %v1906 = vld [vmem:[%s1903 + $0x8] sm:$0xf]
      %v1907 = vld [vmem:[%s1903 + $0xc] sm:$0xf]
      %v1908 = vld [vmem:[%s1903 + $0x10] sm:$0xf]
      %v1909 = vld [vmem:[%s1903 + $0x14] sm:$0xf]
      %v1910 = vld [vmem:[%s1903 + $0x18] sm:$0xf]
      %v1911 = vld [vmem:[%s1903 + $0x1c] sm:$0xf]
      %v1912 = vld [vmem:[%s1903 + $0x20] sm:$0xf]
      %v1913 = vld [vmem:[%s1903 + $0x24] sm:$0xf]
      %v1914 = vld [vmem:[%s1903 + $0x28] sm:$0xf]
      %v1915 = vld [vmem:[%s1903 + $0x2c] sm:$0xf]
      %v1916 = vld [vmem:[%s1903 + $0x30] sm:$0xf]
      %v1917 = vld [vmem:[%s1903 + $0x34] sm:$0xf]
      %v1918 = vld [vmem:[%s1903 + $0x38] sm:$0xf]
      %v1919 = vld [vmem:[%s1903 + $0x3c] sm:$0xf]
      %v1936 = vunpack.c.l.b16 %v1904
      %v1937 = vunpack.c.l.b16 %v1905
      %v1938 = vunpack.c.l.b16 %v1906
      %v1939 = vunpack.c.l.b16 %v1907
      %v1940 = vunpack.c.l.b16 %v1908
      %v1941 = vunpack.c.l.b16 %v1909
      %v1942 = vunpack.c.l.b16 %v1910
      %v1943 = vunpack.c.l.b16 %v1911
      %v1944 = vunpack.c.l.b16 %v1912
      %v1945 = vunpack.c.l.b16 %v1913
      %v1946 = vunpack.c.l.b16 %v1914
      %v1947 = vunpack.c.l.b16 %v1915
      %v1948 = vunpack.c.l.b16 %v1916
      %v1949 = vunpack.c.l.b16 %v1917
      %v1950 = vunpack.c.l.b16 %v1918
      %v1951 = vunpack.c.l.b16 %v1919
      %v1952 = vpack.c.b16 %v1937, %v1936
      %v1953 = vpack.c.b16 %v1939, %v1938
      %v1954 = vpack.c.b16 %v1941, %v1940
      %v1955 = vpack.c.b16 %v1943, %v1942
      %v1956 = vpack.c.b16 %v1945, %v1944
      %v1957 = vpack.c.b16 %v1947, %v1946
      %v1958 = vpack.c.b16 %v1949, %v1948
      %v1959 = vpack.c.b16 %v1951, %v1950
      %1968 = vmatprep.subr.bf16.mxu0 0
      %1969 = vmatpush1.bf16.msra.mxu0 %v1959
      %1970 = vmatprep.subr.bf16.mxu0 0
      %1971 = vmatpush1.bf16.msra.mxu0 %v1958
      %1972 = vmatprep.subr.bf16.mxu0 0
      %1973 = vmatpush1.bf16.msra.mxu0 %v1957
      %1974 = vmatprep.subr.bf16.mxu0 0
      %1975 = vmatpush1.bf16.msra.mxu0 %v1956
      %1976 = vmatprep.subr.bf16.mxu0 0
      %1977 = vmatpush1.bf16.msra.mxu0 %v1955
      %1978 = vmatprep.subr.bf16.mxu0 0
      %1979 = vmatpush1.bf16.msra.mxu0 %v1954
      %1980 = vmatprep.subr.bf16.mxu0 0
      %1981 = vmatpush1.bf16.msra.mxu0 %v1953
      %1982 = vmatprep.subr.bf16.mxu0 0
      %1983 = vmatpush1.bf16.msra.mxu0 %v1952
      %1984 = vmatprep.subr.bf16.mxu0 0
      %1985 = vmatpush2.bf16.msra.mxu0 0
      %1986 = vmatprep.subr.bf16.mxu0 0
      %1987 = vmatpush2.bf16.msra.mxu0 0
      %1988 = vmatprep.subr.bf16.mxu0 0
      %1989 = vmatpush2.bf16.msra.mxu0 0
      %1990 = vmatprep.subr.bf16.mxu0 0
      %1991 = vmatpush2.bf16.msra.mxu0 0
      %1992 = vmatprep.subr.bf16.mxu0 0
      %1993 = vmatpush2.bf16.msra.mxu0 0
      %1994 = vmatprep.subr.bf16.mxu0 0
      %1995 = vmatpush2.bf16.msra.mxu0 0
      %1996 = vmatprep.subr.bf16.mxu0 0
      %1997 = vmatpush2.bf16.msra.mxu0 0
      %1998 = vmatprep.subr.bf16.mxu0 0
      %1999 = vmatpush2.bf16.msra.mxu0 0
      %2000 = vmatprep.mubr.bf16.mxu0 0
      %2001 = vmatmul.mubr.bf16.gmra.mxu0 %v1899
      %v2002 = vpop.f32.mrf.mxu0
      %v2003 = vadd.f32 0.0, %v2002
      %v2004 = vpop.f32.mrf.mxu0
      %v2005 = vpop.f32.mrf.mxu0
      %v2006 = vadd.f32 0.0, %v2005
      %v2007 = vpop.f32.mrf.mxu0
      %2008 = vmatprep.mubr.bf16.mxu0 0
      %2009 = vmatmul.mubr.bf16.gmra.mxu0 %v1900
      %v2010 = vpop.f32.mrf.mxu0
      %v2011 = vadd.f32 0.0, %v2010
      %v2012 = vpop.f32.mrf.mxu0
      %v2013 = vpop.f32.mrf.mxu0
      %v2014 = vadd.f32 0.0, %v2013
      %v2015 = vpop.f32.mrf.mxu0
      %2016 = vmatprep.mubr.bf16.mxu0 0
      %2017 = vmatmul.mubr.bf16.gmra.mxu0 %v1901
      %v2018 = vpop.f32.mrf.mxu0
      %v2019 = vadd.f32 0.0, %v2018
      %v2020 = vpop.f32.mrf.mxu0
      %v2021 = vpop.f32.mrf.mxu0
      %v2022 = vadd.f32 0.0, %v2021
      %v2023 = vpop.f32.mrf.mxu0
      %2024 = vmatprep.mubr.bf16.mxu0 0
      %2025 = vmatmul.mubr.bf16.gmra.mxu0 %v1902
      %v2026 = vpop.f32.mrf.mxu0
      %v2027 = vadd.f32 0.0, %v2026
      %v2028 = vpop.f32.mrf.mxu0
      %v2029 = vpop.f32.mrf.mxu0
      %v2030 = vadd.f32 0.0, %v2029
      %v2031 = vpop.f32.mrf.mxu0
      %2032 = vdwg.mxu0
      %v2033 = vadd.f32 %v1891, %v2003
      %v2034 = vadd.f32 %v1892, %v2006
      %v2035 = vadd.f32 %v1893, %v2011
      %v2036 = vadd.f32 %v1894, %v2014
      %v2037 = vadd.f32 %v1895, %v2019
      %v2038 = vadd.f32 %v1896, %v2022
      %v2039 = vadd.f32 %v1897, %v2027
      %v2040 = vadd.f32 %v1898, %v2030
      %v2041 = vpack.c.bf16 %v1751, %v1750
      %s2042 = scalar_lea.vmem %s6, 384
      %v2043 = vld [vmem:[%s2042] sm:$0xf]
      %v2044 = vld [vmem:[%s2042 + $0x4] sm:$0xf]
      %v2045 = vld [vmem:[%s2042 + $0x8] sm:$0xf]
      %v2046 = vld [vmem:[%s2042 + $0xc] sm:$0xf]
      %v2047 = vld [vmem:[%s2042 + $0x10] sm:$0xf]
      %v2048 = vld [vmem:[%s2042 + $0x14] sm:$0xf]
      %v2049 = vld [vmem:[%s2042 + $0x18] sm:$0xf]
      %v2050 = vld [vmem:[%s2042 + $0x1c] sm:$0xf]
      %v2051 = vld [vmem:[%s2042 + $0x20] sm:$0xf]
      %v2052 = vld [vmem:[%s2042 + $0x24] sm:$0xf]
      %v2053 = vld [vmem:[%s2042 + $0x28] sm:$0xf]
      %v2054 = vld [vmem:[%s2042 + $0x2c] sm:$0xf]
      %v2055 = vld [vmem:[%s2042 + $0x30] sm:$0xf]
      %v2056 = vld [vmem:[%s2042 + $0x34] sm:$0xf]
      %v2057 = vld [vmem:[%s2042 + $0x38] sm:$0xf]
      %v2058 = vld [vmem:[%s2042 + $0x3c] sm:$0xf]
      %v2075 = vunpack.c.l.b16 %v2043
      %v2076 = vunpack.c.l.b16 %v2044
      %v2077 = vunpack.c.l.b16 %v2045
      %v2078 = vunpack.c.l.b16 %v2046
      %v2079 = vunpack.c.l.b16 %v2047
      %v2080 = vunpack.c.l.b16 %v2048
      %v2081 = vunpack.c.l.b16 %v2049
      %v2082 = vunpack.c.l.b16 %v2050
      %v2083 = vunpack.c.l.b16 %v2051
      %v2084 = vunpack.c.l.b16 %v2052
      %v2085 = vunpack.c.l.b16 %v2053
      %v2086 = vunpack.c.l.b16 %v2054
      %v2087 = vunpack.c.l.b16 %v2055
      %v2088 = vunpack.c.l.b16 %v2056
      %v2089 = vunpack.c.l.b16 %v2057
      %v2090 = vunpack.c.l.b16 %v2058
      %v2091 = vpack.c.b16 %v2076, %v2075
      %v2092 = vpack.c.b16 %v2078, %v2077
      %v2093 = vpack.c.b16 %v2080, %v2079
      %v2094 = vpack.c.b16 %v2082, %v2081
      %v2095 = vpack.c.b16 %v2084, %v2083
      %v2096 = vpack.c.b16 %v2086, %v2085
      %v2097 = vpack.c.b16 %v2088, %v2087
      %v2098 = vpack.c.b16 %v2090, %v2089
      %2107 = vmatprep.subr.bf16.mxu0 0
      %2108 = vmatpush1.bf16.msra.mxu0 %v2098
      %2109 = vmatprep.subr.bf16.mxu0 0
      %2110 = vmatpush1.bf16.msra.mxu0 %v2097
      %2111 = vmatprep.subr.bf16.mxu0 0
      %2112 = vmatpush1.bf16.msra.mxu0 %v2096
      %2113 = vmatprep.subr.bf16.mxu0 0
      %2114 = vmatpush1.bf16.msra.mxu0 %v2095
      %2115 = vmatprep.subr.bf16.mxu0 0
      %2116 = vmatpush1.bf16.msra.mxu0 %v2094
      %2117 = vmatprep.subr.bf16.mxu0 0
      %2118 = vmatpush1.bf16.msra.mxu0 %v2093
      %2119 = vmatprep.subr.bf16.mxu0 0
      %2120 = vmatpush1.bf16.msra.mxu0 %v2092
      %2121 = vmatprep.subr.bf16.mxu0 0
      %2122 = vmatpush1.bf16.msra.mxu0 %v2091
      %2123 = vmatprep.subr.bf16.mxu0 0
      %2124 = vmatpush2.bf16.msra.mxu0 0
      %2125 = vmatprep.subr.bf16.mxu0 0
      %2126 = vmatpush2.bf16.msra.mxu0 0
      %2127 = vmatprep.subr.bf16.mxu0 0
      %2128 = vmatpush2.bf16.msra.mxu0 0
      %2129 = vmatprep.subr.bf16.mxu0 0
      %2130 = vmatpush2.bf16.msra.mxu0 0
      %2131 = vmatprep.subr.bf16.mxu0 0
      %2132 = vmatpush2.bf16.msra.mxu0 0
      %2133 = vmatprep.subr.bf16.mxu0 0
      %2134 = vmatpush2.bf16.msra.mxu0 0
      %2135 = vmatprep.subr.bf16.mxu0 0
      %2136 = vmatpush2.bf16.msra.mxu0 0
      %2137 = vmatprep.subr.bf16.mxu0 0
      %2138 = vmatpush2.bf16.msra.mxu0 0
      %2139 = vmatprep.mubr.bf16.mxu0 0
      %2140 = vmatmul.mubr.bf16.gmra.mxu0 %v1753
      %v2141 = vpop.f32.mrf.mxu0
      %v2142 = vadd.f32 0.0, %v2141
      %v2143 = vpop.f32.mrf.mxu0
      %v2144 = vpop.f32.mrf.mxu0
      %v2145 = vadd.f32 0.0, %v2144
      %v2146 = vpop.f32.mrf.mxu0
      %2147 = vmatprep.mubr.bf16.mxu0 0
      %2148 = vmatmul.mubr.bf16.gmra.mxu0 %v1754
      %v2149 = vpop.f32.mrf.mxu0
      %v2150 = vadd.f32 0.0, %v2149
      %v2151 = vpop.f32.mrf.mxu0
      %v2152 = vpop.f32.mrf.mxu0
      %v2153 = vadd.f32 0.0, %v2152
      %v2154 = vpop.f32.mrf.mxu0
      %2155 = vmatprep.mubr.bf16.mxu0 0
      %2156 = vmatmul.mubr.bf16.gmra.mxu0 %v1755
      %v2157 = vpop.f32.mrf.mxu0
      %v2158 = vadd.f32 0.0, %v2157
      %v2159 = vpop.f32.mrf.mxu0
      %v2160 = vpop.f32.mrf.mxu0
      %v2161 = vadd.f32 0.0, %v2160
      %v2162 = vpop.f32.mrf.mxu0
      %2163 = vmatprep.mubr.bf16.mxu0 0
      %2164 = vmatmul.mubr.bf16.gmra.mxu0 %v2041
      %v2165 = vpop.f32.mrf.mxu0
      %v2166 = vadd.f32 0.0, %v2165
      %v2167 = vpop.f32.mrf.mxu0
      %v2168 = vpop.f32.mrf.mxu0
      %v2169 = vadd.f32 0.0, %v2168
      %v2170 = vpop.f32.mrf.mxu0
      %2171 = vdwg.mxu0
      %v2172 = vadd.f32 %v2033, %v2142
      %v2173 = vadd.f32 %v2034, %v2145
      %v2174 = vadd.f32 %v2035, %v2150
      %v2175 = vadd.f32 %v2036, %v2153
      %v2176 = vadd.f32 %v2037, %v2158
      %v2177 = vadd.f32 %v2038, %v2161
      %v2178 = vadd.f32 %v2039, %v2166
      %v2179 = vadd.f32 %v2040, %v2169
      %v2180 = vld [vmem:[#allocation3 + $0x1] sm:$0xff]
      %v2181 = vld [vmem:[#allocation3 + $0x11] sm:$0xff]
      %v2182 = vld [vmem:[#allocation3 + $0x21] sm:$0xff]
      %v2183 = vld [vmem:[#allocation3 + $0x31] sm:$0xff]
      %v2184 = vld [vmem:[#allocation3 + $0x41] sm:$0xff]
      %v2185 = vld [vmem:[#allocation3 + $0x51] sm:$0xff]
      %v2186 = vld [vmem:[#allocation3 + $0x61] sm:$0xff]
      %v2187 = vld [vmem:[#allocation3 + $0x71] sm:$0xff]
      %v2188 = vld [vmem:[#allocation3 + $0x81] sm:$0xff]
      %v2189 = vld [vmem:[#allocation3 + $0x91] sm:$0xff]
      %v2190 = vpack.c.bf16 %v2181, %v2180
      %v2191 = vpack.c.bf16 %v2183, %v2182
      %v2192 = vpack.c.bf16 %v2185, %v2184
      %v2193 = vpack.c.bf16 %v2187, %v2186
      %s2194 = scalar_lea.vmem %s6, 64
      %v2195 = vld [vmem:[%s2194] sm:$0xf]
      %v2196 = vld [vmem:[%s2194 + $0x4] sm:$0xf]
      %v2197 = vld [vmem:[%s2194 + $0x8] sm:$0xf]
      %v2198 = vld [vmem:[%s2194 + $0xc] sm:$0xf]
      %v2199 = vld [vmem:[%s2194 + $0x10] sm:$0xf]
      %v2200 = vld [vmem:[%s2194 + $0x14] sm:$0xf]
      %v2201 = vld [vmem:[%s2194 + $0x18] sm:$0xf]
      %v2202 = vld [vmem:[%s2194 + $0x1c] sm:$0xf]
      %v2203 = vld [vmem:[%s2194 + $0x20] sm:$0xf]
      %v2204 = vld [vmem:[%s2194 + $0x24] sm:$0xf]
      %v2205 = vld [vmem:[%s2194 + $0x28] sm:$0xf]
      %v2206 = vld [vmem:[%s2194 + $0x2c] sm:$0xf]
      %v2207 = vld [vmem:[%s2194 + $0x30] sm:$0xf]
      %v2208 = vld [vmem:[%s2194 + $0x34] sm:$0xf]
      %v2209 = vld [vmem:[%s2194 + $0x38] sm:$0xf]
      %v2210 = vld [vmem:[%s2194 + $0x3c] sm:$0xf]
      %v2227 = vunpack.c.l.b16 %v2195
      %v2228 = vunpack.c.l.b16 %v2196
      %v2229 = vunpack.c.l.b16 %v2197
      %v2230 = vunpack.c.l.b16 %v2198
      %v2231 = vunpack.c.l.b16 %v2199
      %v2232 = vunpack.c.l.b16 %v2200
      %v2233 = vunpack.c.l.b16 %v2201
      %v2234 = vunpack.c.l.b16 %v2202
      %v2235 = vunpack.c.l.b16 %v2203
      %v2236 = vunpack.c.l.b16 %v2204
      %v2237 = vunpack.c.l.b16 %v2205
      %v2238 = vunpack.c.l.b16 %v2206
      %v2239 = vunpack.c.l.b16 %v2207
      %v2240 = vunpack.c.l.b16 %v2208
      %v2241 = vunpack.c.l.b16 %v2209
      %v2242 = vunpack.c.l.b16 %v2210
      %v2243 = vpack.c.b16 %v2228, %v2227
      %v2244 = vpack.c.b16 %v2230, %v2229
      %v2245 = vpack.c.b16 %v2232, %v2231
      %v2246 = vpack.c.b16 %v2234, %v2233
      %v2247 = vpack.c.b16 %v2236, %v2235
      %v2248 = vpack.c.b16 %v2238, %v2237
      %v2249 = vpack.c.b16 %v2240, %v2239
      %v2250 = vpack.c.b16 %v2242, %v2241
      %2259 = vmatprep.subr.bf16.mxu0 0
      %2260 = vmatpush1.bf16.msra.mxu0 %v2250
      %2261 = vmatprep.subr.bf16.mxu0 0
      %2262 = vmatpush1.bf16.msra.mxu0 %v2249
      %2263 = vmatprep.subr.bf16.mxu0 0
      %2264 = vmatpush1.bf16.msra.mxu0 %v2248
      %2265 = vmatprep.subr.bf16.mxu0 0
      %2266 = vmatpush1.bf16.msra.mxu0 %v2247
      %2267 = vmatprep.subr.bf16.mxu0 0
      %2268 = vmatpush1.bf16.msra.mxu0 %v2246
      %2269 = vmatprep.subr.bf16.mxu0 0
      %2270 = vmatpush1.bf16.msra.mxu0 %v2245
      %2271 = vmatprep.subr.bf16.mxu0 0
      %2272 = vmatpush1.bf16.msra.mxu0 %v2244
      %2273 = vmatprep.subr.bf16.mxu0 0
      %2274 = vmatpush1.bf16.msra.mxu0 %v2243
      %2275 = vmatprep.subr.bf16.mxu0 0
      %2276 = vmatpush2.bf16.msra.mxu0 0
      %2277 = vmatprep.subr.bf16.mxu0 0
      %2278 = vmatpush2.bf16.msra.mxu0 0
      %2279 = vmatprep.subr.bf16.mxu0 0
      %2280 = vmatpush2.bf16.msra.mxu0 0
      %2281 = vmatprep.subr.bf16.mxu0 0
      %2282 = vmatpush2.bf16.msra.mxu0 0
      %2283 = vmatprep.subr.bf16.mxu0 0
      %2284 = vmatpush2.bf16.msra.mxu0 0
      %2285 = vmatprep.subr.bf16.mxu0 0
      %2286 = vmatpush2.bf16.msra.mxu0 0
      %2287 = vmatprep.subr.bf16.mxu0 0
      %2288 = vmatpush2.bf16.msra.mxu0 0
      %2289 = vmatprep.subr.bf16.mxu0 0
      %2290 = vmatpush2.bf16.msra.mxu0 0
      %2291 = vmatprep.mubr.bf16.mxu0 0
      %2292 = vmatmul.mubr.bf16.gmra.mxu0 %v2190
      %v2293 = vpop.f32.mrf.mxu0
      %v2294 = vadd.f32 0.0, %v2293
      %v2295 = vpop.f32.mrf.mxu0
      %v2296 = vpop.f32.mrf.mxu0
      %v2297 = vadd.f32 0.0, %v2296
      %v2298 = vpop.f32.mrf.mxu0
      %2299 = vmatprep.mubr.bf16.mxu0 0
      %2300 = vmatmul.mubr.bf16.gmra.mxu0 %v2191
      %v2301 = vpop.f32.mrf.mxu0
      %v2302 = vadd.f32 0.0, %v2301
      %v2303 = vpop.f32.mrf.mxu0
      %v2304 = vpop.f32.mrf.mxu0
      %v2305 = vadd.f32 0.0, %v2304
      %v2306 = vpop.f32.mrf.mxu0
      %2307 = vmatprep.mubr.bf16.mxu0 0
      %2308 = vmatmul.mubr.bf16.gmra.mxu0 %v2192
      %v2309 = vpop.f32.mrf.mxu0
      %v2310 = vadd.f32 0.0, %v2309
      %v2311 = vpop.f32.mrf.mxu0
      %v2312 = vpop.f32.mrf.mxu0
      %v2313 = vadd.f32 0.0, %v2312
      %v2314 = vpop.f32.mrf.mxu0
      %2315 = vmatprep.mubr.bf16.mxu0 0
      %2316 = vmatmul.mubr.bf16.gmra.mxu0 %v2193
      %v2317 = vpop.f32.mrf.mxu0
      %v2318 = vadd.f32 0.0, %v2317
      %v2319 = vpop.f32.mrf.mxu0
      %v2320 = vpop.f32.mrf.mxu0
      %v2321 = vadd.f32 0.0, %v2320
      %v2322 = vpop.f32.mrf.mxu0
      %2323 = vdwg.mxu0
      %v2324 = vadd.f32 %v2172, %v2294
      %v2325 = vadd.f32 %v2173, %v2297
      %v2326 = vadd.f32 %v2174, %v2302
      %v2327 = vadd.f32 %v2175, %v2305
      %v2328 = vadd.f32 %v2176, %v2310
      %v2329 = vadd.f32 %v2177, %v2313
      %v2330 = vadd.f32 %v2178, %v2318
      %v2331 = vadd.f32 %v2179, %v2321
      %v2332 = vpack.c.bf16 %v2182, %v2181
      %v2333 = vpack.c.bf16 %v2184, %v2183
      %v2334 = vpack.c.bf16 %v2186, %v2185
      %v2335 = vpack.c.bf16 %v2188, %v2187
      %s2336 = scalar_lea.vmem %s6, 256
      %v2337 = vld [vmem:[%s2336] sm:$0xf]
      %v2338 = vld [vmem:[%s2336 + $0x4] sm:$0xf]
      %v2339 = vld [vmem:[%s2336 + $0x8] sm:$0xf]
      %v2340 = vld [vmem:[%s2336 + $0xc] sm:$0xf]
      %v2341 = vld [vmem:[%s2336 + $0x10] sm:$0xf]
      %v2342 = vld [vmem:[%s2336 + $0x14] sm:$0xf]
      %v2343 = vld [vmem:[%s2336 + $0x18] sm:$0xf]
      %v2344 = vld [vmem:[%s2336 + $0x1c] sm:$0xf]
      %v2345 = vld [vmem:[%s2336 + $0x20] sm:$0xf]
      %v2346 = vld [vmem:[%s2336 + $0x24] sm:$0xf]
      %v2347 = vld [vmem:[%s2336 + $0x28] sm:$0xf]
      %v2348 = vld [vmem:[%s2336 + $0x2c] sm:$0xf]
      %v2349 = vld [vmem:[%s2336 + $0x30] sm:$0xf]
      %v2350 = vld [vmem:[%s2336 + $0x34] sm:$0xf]
      %v2351 = vld [vmem:[%s2336 + $0x38] sm:$0xf]
      %v2352 = vld [vmem:[%s2336 + $0x3c] sm:$0xf]
      %v2369 = vunpack.c.l.b16 %v2337
      %v2370 = vunpack.c.l.b16 %v2338
      %v2371 = vunpack.c.l.b16 %v2339
      %v2372 = vunpack.c.l.b16 %v2340
      %v2373 = vunpack.c.l.b16 %v2341
      %v2374 = vunpack.c.l.b16 %v2342
      %v2375 = vunpack.c.l.b16 %v2343
      %v2376 = vunpack.c.l.b16 %v2344
      %v2377 = vunpack.c.l.b16 %v2345
      %v2378 = vunpack.c.l.b16 %v2346
      %v2379 = vunpack.c.l.b16 %v2347
      %v2380 = vunpack.c.l.b16 %v2348
      %v2381 = vunpack.c.l.b16 %v2349
      %v2382 = vunpack.c.l.b16 %v2350
      %v2383 = vunpack.c.l.b16 %v2351
      %v2384 = vunpack.c.l.b16 %v2352
      %v2385 = vpack.c.b16 %v2370, %v2369
      %v2386 = vpack.c.b16 %v2372, %v2371
      %v2387 = vpack.c.b16 %v2374, %v2373
      %v2388 = vpack.c.b16 %v2376, %v2375
      %v2389 = vpack.c.b16 %v2378, %v2377
      %v2390 = vpack.c.b16 %v2380, %v2379
      %v2391 = vpack.c.b16 %v2382, %v2381
      %v2392 = vpack.c.b16 %v2384, %v2383
      %2401 = vmatprep.subr.bf16.mxu0 0
      %2402 = vmatpush1.bf16.msra.mxu0 %v2392
      %2403 = vmatprep.subr.bf16.mxu0 0
      %2404 = vmatpush1.bf16.msra.mxu0 %v2391
      %2405 = vmatprep.subr.bf16.mxu0 0
      %2406 = vmatpush1.bf16.msra.mxu0 %v2390
      %2407 = vmatprep.subr.bf16.mxu0 0
      %2408 = vmatpush1.bf16.msra.mxu0 %v2389
      %2409 = vmatprep.subr.bf16.mxu0 0
      %2410 = vmatpush1.bf16.msra.mxu0 %v2388
      %2411 = vmatprep.subr.bf16.mxu0 0
      %2412 = vmatpush1.bf16.msra.mxu0 %v2387
      %2413 = vmatprep.subr.bf16.mxu0 0
      %2414 = vmatpush1.bf16.msra.mxu0 %v2386
      %2415 = vmatprep.subr.bf16.mxu0 0
      %2416 = vmatpush1.bf16.msra.mxu0 %v2385
      %2417 = vmatprep.subr.bf16.mxu0 0
      %2418 = vmatpush2.bf16.msra.mxu0 0
      %2419 = vmatprep.subr.bf16.mxu0 0
      %2420 = vmatpush2.bf16.msra.mxu0 0
      %2421 = vmatprep.subr.bf16.mxu0 0
      %2422 = vmatpush2.bf16.msra.mxu0 0
      %2423 = vmatprep.subr.bf16.mxu0 0
      %2424 = vmatpush2.bf16.msra.mxu0 0
      %2425 = vmatprep.subr.bf16.mxu0 0
      %2426 = vmatpush2.bf16.msra.mxu0 0
      %2427 = vmatprep.subr.bf16.mxu0 0
      %2428 = vmatpush2.bf16.msra.mxu0 0
      %2429 = vmatprep.subr.bf16.mxu0 0
      %2430 = vmatpush2.bf16.msra.mxu0 0
      %2431 = vmatprep.subr.bf16.mxu0 0
      %2432 = vmatpush2.bf16.msra.mxu0 0
      %2433 = vmatprep.mubr.bf16.mxu0 0
      %2434 = vmatmul.mubr.bf16.gmra.mxu0 %v2332
      %v2435 = vpop.f32.mrf.mxu0
      %v2436 = vadd.f32 0.0, %v2435
      %v2437 = vpop.f32.mrf.mxu0
      %v2438 = vpop.f32.mrf.mxu0
      %v2439 = vadd.f32 0.0, %v2438
      %v2440 = vpop.f32.mrf.mxu0
      %2441 = vmatprep.mubr.bf16.mxu0 0
      %2442 = vmatmul.mubr.bf16.gmra.mxu0 %v2333
      %v2443 = vpop.f32.mrf.mxu0
      %v2444 = vadd.f32 0.0, %v2443
      %v2445 = vpop.f32.mrf.mxu0
      %v2446 = vpop.f32.mrf.mxu0
      %v2447 = vadd.f32 0.0, %v2446
      %v2448 = vpop.f32.mrf.mxu0
      %2449 = vmatprep.mubr.bf16.mxu0 0
      %2450 = vmatmul.mubr.bf16.gmra.mxu0 %v2334
      %v2451 = vpop.f32.mrf.mxu0
      %v2452 = vadd.f32 0.0, %v2451
      %v2453 = vpop.f32.mrf.mxu0
      %v2454 = vpop.f32.mrf.mxu0
      %v2455 = vadd.f32 0.0, %v2454
      %v2456 = vpop.f32.mrf.mxu0
      %2457 = vmatprep.mubr.bf16.mxu0 0
      %2458 = vmatmul.mubr.bf16.gmra.mxu0 %v2335
      %v2459 = vpop.f32.mrf.mxu0
      %v2460 = vadd.f32 0.0, %v2459
      %v2461 = vpop.f32.mrf.mxu0
      %v2462 = vpop.f32.mrf.mxu0
      %v2463 = vadd.f32 0.0, %v2462
      %v2464 = vpop.f32.mrf.mxu0
      %2465 = vdwg.mxu0
      %v2466 = vadd.f32 %v2324, %v2436
      %v2467 = vadd.f32 %v2325, %v2439
      %v2468 = vadd.f32 %v2326, %v2444
      %v2469 = vadd.f32 %v2327, %v2447
      %v2470 = vadd.f32 %v2328, %v2452
      %v2471 = vadd.f32 %v2329, %v2455
      %v2472 = vadd.f32 %v2330, %v2460
      %v2473 = vadd.f32 %v2331, %v2463
      %v2474 = vpack.c.bf16 %v2189, %v2188
      %s2475 = scalar_lea.vmem %s6, 448
      %v2476 = vld [vmem:[%s2475] sm:$0xf]
      %v2477 = vld [vmem:[%s2475 + $0x4] sm:$0xf]
      %v2478 = vld [vmem:[%s2475 + $0x8] sm:$0xf]
      %v2479 = vld [vmem:[%s2475 + $0xc] sm:$0xf]
      %v2480 = vld [vmem:[%s2475 + $0x10] sm:$0xf]
      %v2481 = vld [vmem:[%s2475 + $0x14] sm:$0xf]
      %v2482 = vld [vmem:[%s2475 + $0x18] sm:$0xf]
      %v2483 = vld [vmem:[%s2475 + $0x1c] sm:$0xf]
      %v2484 = vld [vmem:[%s2475 + $0x20] sm:$0xf]
      %v2485 = vld [vmem:[%s2475 + $0x24] sm:$0xf]
      %v2486 = vld [vmem:[%s2475 + $0x28] sm:$0xf]
      %v2487 = vld [vmem:[%s2475 + $0x2c] sm:$0xf]
      %v2488 = vld [vmem:[%s2475 + $0x30] sm:$0xf]
      %v2489 = vld [vmem:[%s2475 + $0x34] sm:$0xf]
      %v2490 = vld [vmem:[%s2475 + $0x38] sm:$0xf]
      %v2491 = vld [vmem:[%s2475 + $0x3c] sm:$0xf]
      %v2508 = vunpack.c.l.b16 %v2476
      %v2509 = vunpack.c.l.b16 %v2477
      %v2510 = vunpack.c.l.b16 %v2478
      %v2511 = vunpack.c.l.b16 %v2479
      %v2512 = vunpack.c.l.b16 %v2480
      %v2513 = vunpack.c.l.b16 %v2481
      %v2514 = vunpack.c.l.b16 %v2482
      %v2515 = vunpack.c.l.b16 %v2483
      %v2516 = vunpack.c.l.b16 %v2484
      %v2517 = vunpack.c.l.b16 %v2485
      %v2518 = vunpack.c.l.b16 %v2486
      %v2519 = vunpack.c.l.b16 %v2487
      %v2520 = vunpack.c.l.b16 %v2488
      %v2521 = vunpack.c.l.b16 %v2489
      %v2522 = vunpack.c.l.b16 %v2490
      %v2523 = vunpack.c.l.b16 %v2491
      %v2524 = vpack.c.b16 %v2509, %v2508
      %v2525 = vpack.c.b16 %v2511, %v2510
      %v2526 = vpack.c.b16 %v2513, %v2512
      %v2527 = vpack.c.b16 %v2515, %v2514
      %v2528 = vpack.c.b16 %v2517, %v2516
      %v2529 = vpack.c.b16 %v2519, %v2518
      %v2530 = vpack.c.b16 %v2521, %v2520
      %v2531 = vpack.c.b16 %v2523, %v2522
      %2540 = vmatprep.subr.bf16.mxu0 0
      %2541 = vmatpush1.bf16.msra.mxu0 %v2531
      %2542 = vmatprep.subr.bf16.mxu0 0
      %2543 = vmatpush1.bf16.msra.mxu0 %v2530
      %2544 = vmatprep.subr.bf16.mxu0 0
      %2545 = vmatpush1.bf16.msra.mxu0 %v2529
      %2546 = vmatprep.subr.bf16.mxu0 0
      %2547 = vmatpush1.bf16.msra.mxu0 %v2528
      %2548 = vmatprep.subr.bf16.mxu0 0
      %2549 = vmatpush1.bf16.msra.mxu0 %v2527
      %2550 = vmatprep.subr.bf16.mxu0 0
      %2551 = vmatpush1.bf16.msra.mxu0 %v2526
      %2552 = vmatprep.subr.bf16.mxu0 0
      %2553 = vmatpush1.bf16.msra.mxu0 %v2525
      %2554 = vmatprep.subr.bf16.mxu0 0
      %2555 = vmatpush1.bf16.msra.mxu0 %v2524
      %2556 = vmatprep.subr.bf16.mxu0 0
      %2557 = vmatpush2.bf16.msra.mxu0 0
      %2558 = vmatprep.subr.bf16.mxu0 0
      %2559 = vmatpush2.bf16.msra.mxu0 0
      %2560 = vmatprep.subr.bf16.mxu0 0
      %2561 = vmatpush2.bf16.msra.mxu0 0
      %2562 = vmatprep.subr.bf16.mxu0 0
      %2563 = vmatpush2.bf16.msra.mxu0 0
      %2564 = vmatprep.subr.bf16.mxu0 0
      %2565 = vmatpush2.bf16.msra.mxu0 0
      %2566 = vmatprep.subr.bf16.mxu0 0
      %2567 = vmatpush2.bf16.msra.mxu0 0
      %2568 = vmatprep.subr.bf16.mxu0 0
      %2569 = vmatpush2.bf16.msra.mxu0 0
      %2570 = vmatprep.subr.bf16.mxu0 0
      %2571 = vmatpush2.bf16.msra.mxu0 0
      %2572 = vmatprep.mubr.bf16.mxu0 0
      %2573 = vmatmul.mubr.bf16.gmra.mxu0 %v2191
      %v2574 = vpop.f32.mrf.mxu0
      %v2575 = vadd.f32 0.0, %v2574
      %v2576 = vpop.f32.mrf.mxu0
      %v2577 = vpop.f32.mrf.mxu0
      %v2578 = vadd.f32 0.0, %v2577
      %v2579 = vpop.f32.mrf.mxu0
      %2580 = vmatprep.mubr.bf16.mxu0 0
      %2581 = vmatmul.mubr.bf16.gmra.mxu0 %v2192
      %v2582 = vpop.f32.mrf.mxu0
      %v2583 = vadd.f32 0.0, %v2582
      %v2584 = vpop.f32.mrf.mxu0
      %v2585 = vpop.f32.mrf.mxu0
      %v2586 = vadd.f32 0.0, %v2585
      %v2587 = vpop.f32.mrf.mxu0
      %2588 = vmatprep.mubr.bf16.mxu0 0
      %2589 = vmatmul.mubr.bf16.gmra.mxu0 %v2193
      %v2590 = vpop.f32.mrf.mxu0
      %v2591 = vadd.f32 0.0, %v2590
      %v2592 = vpop.f32.mrf.mxu0
      %v2593 = vpop.f32.mrf.mxu0
      %v2594 = vadd.f32 0.0, %v2593
      %v2595 = vpop.f32.mrf.mxu0
      %2596 = vmatprep.mubr.bf16.mxu0 0
      %2597 = vmatmul.mubr.bf16.gmra.mxu0 %v2474
      %v2598 = vpop.f32.mrf.mxu0
      %v2599 = vadd.f32 0.0, %v2598
      %v2600 = vpop.f32.mrf.mxu0
      %v2601 = vpop.f32.mrf.mxu0
      %v2602 = vadd.f32 0.0, %v2601
      %v2603 = vpop.f32.mrf.mxu0
      %2604 = vdwg.mxu0
      %v2605 = vadd.f32 %v2466, %v2575
      %v2606 = vadd.f32 %v2467, %v2578
      %v2607 = vadd.f32 %v2468, %v2583
      %v2608 = vadd.f32 %v2469, %v2586
      %v2609 = vadd.f32 %v2470, %v2591
      %v2610 = vadd.f32 %v2471, %v2594
      %v2611 = vadd.f32 %v2472, %v2599
      %v2612 = vadd.f32 %v2473, %v2602
      %v2613 = vld [vmem:[#allocation3 + $0x2] sm:$0xff]
      %v2614 = vld [vmem:[#allocation3 + $0x12] sm:$0xff]
      %v2615 = vld [vmem:[#allocation3 + $0x22] sm:$0xff]
      %v2616 = vld [vmem:[#allocation3 + $0x32] sm:$0xff]
      %v2617 = vld [vmem:[#allocation3 + $0x42] sm:$0xff]
      %v2618 = vld [vmem:[#allocation3 + $0x52] sm:$0xff]
      %v2619 = vld [vmem:[#allocation3 + $0x62] sm:$0xff]
      %v2620 = vld [vmem:[#allocation3 + $0x72] sm:$0xff]
      %v2621 = vld [vmem:[#allocation3 + $0x82] sm:$0xff]
      %v2622 = vld [vmem:[#allocation3 + $0x92] sm:$0xff]
      %v2623 = vpack.c.bf16 %v2614, %v2613
      %v2624 = vpack.c.bf16 %v2616, %v2615
      %v2625 = vpack.c.bf16 %v2618, %v2617
      %v2626 = vpack.c.bf16 %v2620, %v2619
      %s2627 = scalar_lea.vmem %s6, 128
      %v2628 = vld [vmem:[%s2627] sm:$0xf]
      %v2629 = vld [vmem:[%s2627 + $0x4] sm:$0xf]
      %v2630 = vld [vmem:[%s2627 + $0x8] sm:$0xf]
      %v2631 = vld [vmem:[%s2627 + $0xc] sm:$0xf]
      %v2632 = vld [vmem:[%s2627 + $0x10] sm:$0xf]
      %v2633 = vld [vmem:[%s2627 + $0x14] sm:$0xf]
      %v2634 = vld [vmem:[%s2627 + $0x18] sm:$0xf]
      %v2635 = vld [vmem:[%s2627 + $0x1c] sm:$0xf]
      %v2636 = vld [vmem:[%s2627 + $0x20] sm:$0xf]
      %v2637 = vld [vmem:[%s2627 + $0x24] sm:$0xf]
      %v2638 = vld [vmem:[%s2627 + $0x28] sm:$0xf]
      %v2639 = vld [vmem:[%s2627 + $0x2c] sm:$0xf]
      %v2640 = vld [vmem:[%s2627 + $0x30] sm:$0xf]
      %v2641 = vld [vmem:[%s2627 + $0x34] sm:$0xf]
      %v2642 = vld [vmem:[%s2627 + $0x38] sm:$0xf]
      %v2643 = vld [vmem:[%s2627 + $0x3c] sm:$0xf]
      %v2660 = vunpack.c.l.b16 %v2628
      %v2661 = vunpack.c.l.b16 %v2629
      %v2662 = vunpack.c.l.b16 %v2630
      %v2663 = vunpack.c.l.b16 %v2631
      %v2664 = vunpack.c.l.b16 %v2632
      %v2665 = vunpack.c.l.b16 %v2633
      %v2666 = vunpack.c.l.b16 %v2634
      %v2667 = vunpack.c.l.b16 %v2635
      %v2668 = vunpack.c.l.b16 %v2636
      %v2669 = vunpack.c.l.b16 %v2637
      %v2670 = vunpack.c.l.b16 %v2638
      %v2671 = vunpack.c.l.b16 %v2639
      %v2672 = vunpack.c.l.b16 %v2640
      %v2673 = vunpack.c.l.b16 %v2641
      %v2674 = vunpack.c.l.b16 %v2642
      %v2675 = vunpack.c.l.b16 %v2643
      %v2676 = vpack.c.b16 %v2661, %v2660
      %v2677 = vpack.c.b16 %v2663, %v2662
      %v2678 = vpack.c.b16 %v2665, %v2664
      %v2679 = vpack.c.b16 %v2667, %v2666
      %v2680 = vpack.c.b16 %v2669, %v2668
      %v2681 = vpack.c.b16 %v2671, %v2670
      %v2682 = vpack.c.b16 %v2673, %v2672
      %v2683 = vpack.c.b16 %v2675, %v2674
      %2692 = vmatprep.subr.bf16.mxu0 0
      %2693 = vmatpush1.bf16.msra.mxu0 %v2683
      %2694 = vmatprep.subr.bf16.mxu0 0
      %2695 = vmatpush1.bf16.msra.mxu0 %v2682
      %2696 = vmatprep.subr.bf16.mxu0 0
      %2697 = vmatpush1.bf16.msra.mxu0 %v2681
      %2698 = vmatprep.subr.bf16.mxu0 0
      %2699 = vmatpush1.bf16.msra.mxu0 %v2680
      %2700 = vmatprep.subr.bf16.mxu0 0
      %2701 = vmatpush1.bf16.msra.mxu0 %v2679
      %2702 = vmatprep.subr.bf16.mxu0 0
      %2703 = vmatpush1.bf16.msra.mxu0 %v2678
      %2704 = vmatprep.subr.bf16.mxu0 0
      %2705 = vmatpush1.bf16.msra.mxu0 %v2677
      %2706 = vmatprep.subr.bf16.mxu0 0
      %2707 = vmatpush1.bf16.msra.mxu0 %v2676
      %2708 = vmatprep.subr.bf16.mxu0 0
      %2709 = vmatpush2.bf16.msra.mxu0 0
      %2710 = vmatprep.subr.bf16.mxu0 0
      %2711 = vmatpush2.bf16.msra.mxu0 0
      %2712 = vmatprep.subr.bf16.mxu0 0
      %2713 = vmatpush2.bf16.msra.mxu0 0
      %2714 = vmatprep.subr.bf16.mxu0 0
      %2715 = vmatpush2.bf16.msra.mxu0 0
      %2716 = vmatprep.subr.bf16.mxu0 0
      %2717 = vmatpush2.bf16.msra.mxu0 0
      %2718 = vmatprep.subr.bf16.mxu0 0
      %2719 = vmatpush2.bf16.msra.mxu0 0
      %2720 = vmatprep.subr.bf16.mxu0 0
      %2721 = vmatpush2.bf16.msra.mxu0 0
      %2722 = vmatprep.subr.bf16.mxu0 0
      %2723 = vmatpush2.bf16.msra.mxu0 0
      %2724 = vmatprep.mubr.bf16.mxu0 0
      %2725 = vmatmul.mubr.bf16.gmra.mxu0 %v2623
      %v2726 = vpop.f32.mrf.mxu0
      %v2727 = vadd.f32 0.0, %v2726
      %v2728 = vpop.f32.mrf.mxu0
      %v2729 = vpop.f32.mrf.mxu0
      %v2730 = vadd.f32 0.0, %v2729
      %v2731 = vpop.f32.mrf.mxu0
      %2732 = vmatprep.mubr.bf16.mxu0 0
      %2733 = vmatmul.mubr.bf16.gmra.mxu0 %v2624
      %v2734 = vpop.f32.mrf.mxu0
      %v2735 = vadd.f32 0.0, %v2734
      %v2736 = vpop.f32.mrf.mxu0
      %v2737 = vpop.f32.mrf.mxu0
      %v2738 = vadd.f32 0.0, %v2737
      %v2739 = vpop.f32.mrf.mxu0
      %2740 = vmatprep.mubr.bf16.mxu0 0
      %2741 = vmatmul.mubr.bf16.gmra.mxu0 %v2625
      %v2742 = vpop.f32.mrf.mxu0
      %v2743 = vadd.f32 0.0, %v2742
      %v2744 = vpop.f32.mrf.mxu0
      %v2745 = vpop.f32.mrf.mxu0
      %v2746 = vadd.f32 0.0, %v2745
      %v2747 = vpop.f32.mrf.mxu0
      %2748 = vmatprep.mubr.bf16.mxu0 0
      %2749 = vmatmul.mubr.bf16.gmra.mxu0 %v2626
      %v2750 = vpop.f32.mrf.mxu0
      %v2751 = vadd.f32 0.0, %v2750
      %v2752 = vpop.f32.mrf.mxu0
      %v2753 = vpop.f32.mrf.mxu0
      %v2754 = vadd.f32 0.0, %v2753
      %v2755 = vpop.f32.mrf.mxu0
      %2756 = vdwg.mxu0
      %v2757 = vadd.f32 %v2605, %v2727
      %v2758 = vadd.f32 %v2606, %v2730
      %v2759 = vadd.f32 %v2607, %v2735
      %v2760 = vadd.f32 %v2608, %v2738
      %v2761 = vadd.f32 %v2609, %v2743
      %v2762 = vadd.f32 %v2610, %v2746
      %v2763 = vadd.f32 %v2611, %v2751
      %v2764 = vadd.f32 %v2612, %v2754
      %v2765 = vpack.c.bf16 %v2615, %v2614
      %v2766 = vpack.c.bf16 %v2617, %v2616
      %v2767 = vpack.c.bf16 %v2619, %v2618
      %v2768 = vpack.c.bf16 %v2621, %v2620
      %s2769 = scalar_lea.vmem %s6, 320
      %v2770 = vld [vmem:[%s2769] sm:$0xf]
      %v2771 = vld [vmem:[%s2769 + $0x4] sm:$0xf]
      %v2772 = vld [vmem:[%s2769 + $0x8] sm:$0xf]
      %v2773 = vld [vmem:[%s2769 + $0xc] sm:$0xf]
      %v2774 = vld [vmem:[%s2769 + $0x10] sm:$0xf]
      %v2775 = vld [vmem:[%s2769 + $0x14] sm:$0xf]
      %v2776 = vld [vmem:[%s2769 + $0x18] sm:$0xf]
      %v2777 = vld [vmem:[%s2769 + $0x1c] sm:$0xf]
      %v2778 = vld [vmem:[%s2769 + $0x20] sm:$0xf]
      %v2779 = vld [vmem:[%s2769 + $0x24] sm:$0xf]
      %v2780 = vld [vmem:[%s2769 + $0x28] sm:$0xf]
      %v2781 = vld [vmem:[%s2769 + $0x2c] sm:$0xf]
      %v2782 = vld [vmem:[%s2769 + $0x30] sm:$0xf]
      %v2783 = vld [vmem:[%s2769 + $0x34] sm:$0xf]
      %v2784 = vld [vmem:[%s2769 + $0x38] sm:$0xf]
      %v2785 = vld [vmem:[%s2769 + $0x3c] sm:$0xf]
      %v2802 = vunpack.c.l.b16 %v2770
      %v2803 = vunpack.c.l.b16 %v2771
      %v2804 = vunpack.c.l.b16 %v2772
      %v2805 = vunpack.c.l.b16 %v2773
      %v2806 = vunpack.c.l.b16 %v2774
      %v2807 = vunpack.c.l.b16 %v2775
      %v2808 = vunpack.c.l.b16 %v2776
      %v2809 = vunpack.c.l.b16 %v2777
      %v2810 = vunpack.c.l.b16 %v2778
      %v2811 = vunpack.c.l.b16 %v2779
      %v2812 = vunpack.c.l.b16 %v2780
      %v2813 = vunpack.c.l.b16 %v2781
      %v2814 = vunpack.c.l.b16 %v2782
      %v2815 = vunpack.c.l.b16 %v2783
      %v2816 = vunpack.c.l.b16 %v2784
      %v2817 = vunpack.c.l.b16 %v2785
      %v2818 = vpack.c.b16 %v2803, %v2802
      %v2819 = vpack.c.b16 %v2805, %v2804
      %v2820 = vpack.c.b16 %v2807, %v2806
      %v2821 = vpack.c.b16 %v2809, %v2808
      %v2822 = vpack.c.b16 %v2811, %v2810
      %v2823 = vpack.c.b16 %v2813, %v2812
      %v2824 = vpack.c.b16 %v2815, %v2814
      %v2825 = vpack.c.b16 %v2817, %v2816
      %2834 = vmatprep.subr.bf16.mxu0 0
      %2835 = vmatpush1.bf16.msra.mxu0 %v2825
      %2836 = vmatprep.subr.bf16.mxu0 0
      %2837 = vmatpush1.bf16.msra.mxu0 %v2824
      %2838 = vmatprep.subr.bf16.mxu0 0
      %2839 = vmatpush1.bf16.msra.mxu0 %v2823
      %2840 = vmatprep.subr.bf16.mxu0 0
      %2841 = vmatpush1.bf16.msra.mxu0 %v2822
      %2842 = vmatprep.subr.bf16.mxu0 0
      %2843 = vmatpush1.bf16.msra.mxu0 %v2821
      %2844 = vmatprep.subr.bf16.mxu0 0
      %2845 = vmatpush1.bf16.msra.mxu0 %v2820
      %2846 = vmatprep.subr.bf16.mxu0 0
      %2847 = vmatpush1.bf16.msra.mxu0 %v2819
      %2848 = vmatprep.subr.bf16.mxu0 0
      %2849 = vmatpush1.bf16.msra.mxu0 %v2818
      %2850 = vmatprep.subr.bf16.mxu0 0
      %2851 = vmatpush2.bf16.msra.mxu0 0
      %2852 = vmatprep.subr.bf16.mxu0 0
      %2853 = vmatpush2.bf16.msra.mxu0 0
      %2854 = vmatprep.subr.bf16.mxu0 0
      %2855 = vmatpush2.bf16.msra.mxu0 0
      %2856 = vmatprep.subr.bf16.mxu0 0
      %2857 = vmatpush2.bf16.msra.mxu0 0
      %2858 = vmatprep.subr.bf16.mxu0 0
      %2859 = vmatpush2.bf16.msra.mxu0 0
      %2860 = vmatprep.subr.bf16.mxu0 0
      %2861 = vmatpush2.bf16.msra.mxu0 0
      %2862 = vmatprep.subr.bf16.mxu0 0
      %2863 = vmatpush2.bf16.msra.mxu0 0
      %2864 = vmatprep.subr.bf16.mxu0 0
      %2865 = vmatpush2.bf16.msra.mxu0 0
      %2866 = vmatprep.mubr.bf16.mxu0 0
      %2867 = vmatmul.mubr.bf16.gmra.mxu0 %v2765
      %v2868 = vpop.f32.mrf.mxu0
      %v2869 = vadd.f32 0.0, %v2868
      %v2870 = vpop.f32.mrf.mxu0
      %v2871 = vpop.f32.mrf.mxu0
      %v2872 = vadd.f32 0.0, %v2871
      %v2873 = vpop.f32.mrf.mxu0
      %2874 = vmatprep.mubr.bf16.mxu0 0
      %2875 = vmatmul.mubr.bf16.gmra.mxu0 %v2766
      %v2876 = vpop.f32.mrf.mxu0
      %v2877 = vadd.f32 0.0, %v2876
      %v2878 = vpop.f32.mrf.mxu0
      %v2879 = vpop.f32.mrf.mxu0
      %v2880 = vadd.f32 0.0, %v2879
      %v2881 = vpop.f32.mrf.mxu0
      %2882 = vmatprep.mubr.bf16.mxu0 0
      %2883 = vmatmul.mubr.bf16.gmra.mxu0 %v2767
      %v2884 = vpop.f32.mrf.mxu0
      %v2885 = vadd.f32 0.0, %v2884
      %v2886 = vpop.f32.mrf.mxu0
      %v2887 = vpop.f32.mrf.mxu0
      %v2888 = vadd.f32 0.0, %v2887
      %v2889 = vpop.f32.mrf.mxu0
      %2890 = vmatprep.mubr.bf16.mxu0 0
      %2891 = vmatmul.mubr.bf16.gmra.mxu0 %v2768
      %v2892 = vpop.f32.mrf.mxu0
      %v2893 = vadd.f32 0.0, %v2892
      %v2894 = vpop.f32.mrf.mxu0
      %v2895 = vpop.f32.mrf.mxu0
      %v2896 = vadd.f32 0.0, %v2895
      %v2897 = vpop.f32.mrf.mxu0
      %2898 = vdwg.mxu0
      %v2899 = vadd.f32 %v2757, %v2869
      %v2900 = vadd.f32 %v2758, %v2872
      %v2901 = vadd.f32 %v2759, %v2877
      %v2902 = vadd.f32 %v2760, %v2880
      %v2903 = vadd.f32 %v2761, %v2885
      %v2904 = vadd.f32 %v2762, %v2888
      %v2905 = vadd.f32 %v2763, %v2893
      %v2906 = vadd.f32 %v2764, %v2896
      %v2907 = vpack.c.bf16 %v2622, %v2621
      %s2908 = scalar_lea.vmem %s6, 512
      %v2909 = vld [vmem:[%s2908] sm:$0xf]
      %v2910 = vld [vmem:[%s2908 + $0x4] sm:$0xf]
      %v2911 = vld [vmem:[%s2908 + $0x8] sm:$0xf]
      %v2912 = vld [vmem:[%s2908 + $0xc] sm:$0xf]
      %v2913 = vld [vmem:[%s2908 + $0x10] sm:$0xf]
      %v2914 = vld [vmem:[%s2908 + $0x14] sm:$0xf]
      %v2915 = vld [vmem:[%s2908 + $0x18] sm:$0xf]
      %v2916 = vld [vmem:[%s2908 + $0x1c] sm:$0xf]
      %v2917 = vld [vmem:[%s2908 + $0x20] sm:$0xf]
      %v2918 = vld [vmem:[%s2908 + $0x24] sm:$0xf]
      %v2919 = vld [vmem:[%s2908 + $0x28] sm:$0xf]
      %v2920 = vld [vmem:[%s2908 + $0x2c] sm:$0xf]
      %v2921 = vld [vmem:[%s2908 + $0x30] sm:$0xf]
      %v2922 = vld [vmem:[%s2908 + $0x34] sm:$0xf]
      %v2923 = vld [vmem:[%s2908 + $0x38] sm:$0xf]
      %v2924 = vld [vmem:[%s2908 + $0x3c] sm:$0xf]
      %v2941 = vunpack.c.l.b16 %v2909
      %v2942 = vunpack.c.l.b16 %v2910
      %v2943 = vunpack.c.l.b16 %v2911
      %v2944 = vunpack.c.l.b16 %v2912
      %v2945 = vunpack.c.l.b16 %v2913
      %v2946 = vunpack.c.l.b16 %v2914
      %v2947 = vunpack.c.l.b16 %v2915
      %v2948 = vunpack.c.l.b16 %v2916
      %v2949 = vunpack.c.l.b16 %v2917
      %v2950 = vunpack.c.l.b16 %v2918
      %v2951 = vunpack.c.l.b16 %v2919
      %v2952 = vunpack.c.l.b16 %v2920
      %v2953 = vunpack.c.l.b16 %v2921
      %v2954 = vunpack.c.l.b16 %v2922
      %v2955 = vunpack.c.l.b16 %v2923
      %v2956 = vunpack.c.l.b16 %v2924
      %v2957 = vpack.c.b16 %v2942, %v2941
      %v2958 = vpack.c.b16 %v2944, %v2943
      %v2959 = vpack.c.b16 %v2946, %v2945
      %v2960 = vpack.c.b16 %v2948, %v2947
      %v2961 = vpack.c.b16 %v2950, %v2949
      %v2962 = vpack.c.b16 %v2952, %v2951
      %v2963 = vpack.c.b16 %v2954, %v2953
      %v2964 = vpack.c.b16 %v2956, %v2955
      %2973 = vmatprep.subr.bf16.mxu0 0
      %2974 = vmatpush1.bf16.msra.mxu0 %v2964
      %2975 = vmatprep.subr.bf16.mxu0 0
      %2976 = vmatpush1.bf16.msra.mxu0 %v2963
      %2977 = vmatprep.subr.bf16.mxu0 0
      %2978 = vmatpush1.bf16.msra.mxu0 %v2962
      %2979 = vmatprep.subr.bf16.mxu0 0
      %2980 = vmatpush1.bf16.msra.mxu0 %v2961
      %2981 = vmatprep.subr.bf16.mxu0 0
      %2982 = vmatpush1.bf16.msra.mxu0 %v2960
      %2983 = vmatprep.subr.bf16.mxu0 0
      %2984 = vmatpush1.bf16.msra.mxu0 %v2959
      %2985 = vmatprep.subr.bf16.mxu0 0
      %2986 = vmatpush1.bf16.msra.mxu0 %v2958
      %2987 = vmatprep.subr.bf16.mxu0 0
      %2988 = vmatpush1.bf16.msra.mxu0 %v2957
      %2989 = vmatprep.subr.bf16.mxu0 0
      %2990 = vmatpush2.bf16.msra.mxu0 0
      %2991 = vmatprep.subr.bf16.mxu0 0
      %2992 = vmatpush2.bf16.msra.mxu0 0
      %2993 = vmatprep.subr.bf16.mxu0 0
      %2994 = vmatpush2.bf16.msra.mxu0 0
      %2995 = vmatprep.subr.bf16.mxu0 0
      %2996 = vmatpush2.bf16.msra.mxu0 0
      %2997 = vmatprep.subr.bf16.mxu0 0
      %2998 = vmatpush2.bf16.msra.mxu0 0
      %2999 = vmatprep.subr.bf16.mxu0 0
      %3000 = vmatpush2.bf16.msra.mxu0 0
      %3001 = vmatprep.subr.bf16.mxu0 0
      %3002 = vmatpush2.bf16.msra.mxu0 0
      %3003 = vmatprep.subr.bf16.mxu0 0
      %3004 = vmatpush2.bf16.msra.mxu0 0
      %3005 = vmatprep.mubr.bf16.mxu0 0
      %3006 = vmatmul.mubr.bf16.gmra.mxu0 %v2624
      %v3007 = vpop.f32.mrf.mxu0
      %v3008 = vadd.f32 0.0, %v3007
      %v3009 = vpop.f32.mrf.mxu0
      %v3010 = vpop.f32.mrf.mxu0
      %v3011 = vadd.f32 0.0, %v3010
      %v3012 = vpop.f32.mrf.mxu0
      %3013 = vmatprep.mubr.bf16.mxu0 0
      %3014 = vmatmul.mubr.bf16.gmra.mxu0 %v2625
      %v3015 = vpop.f32.mrf.mxu0
      %v3016 = vadd.f32 0.0, %v3015
      %v3017 = vpop.f32.mrf.mxu0
      %v3018 = vpop.f32.mrf.mxu0
      %v3019 = vadd.f32 0.0, %v3018
      %v3020 = vpop.f32.mrf.mxu0
      %3021 = vmatprep.mubr.bf16.mxu0 0
      %3022 = vmatmul.mubr.bf16.gmra.mxu0 %v2626
      %v3023 = vpop.f32.mrf.mxu0
      %v3024 = vadd.f32 0.0, %v3023
      %v3025 = vpop.f32.mrf.mxu0
      %v3026 = vpop.f32.mrf.mxu0
      %v3027 = vadd.f32 0.0, %v3026
      %v3028 = vpop.f32.mrf.mxu0
      %3029 = vmatprep.mubr.bf16.mxu0 0
      %3030 = vmatmul.mubr.bf16.gmra.mxu0 %v2907
      %v3031 = vpop.f32.mrf.mxu0
      %v3032 = vadd.f32 0.0, %v3031
      %v3033 = vpop.f32.mrf.mxu0
      %v3034 = vpop.f32.mrf.mxu0
      %v3035 = vadd.f32 0.0, %v3034
      %v3036 = vpop.f32.mrf.mxu0
      %3037 = vdwg.mxu0
      %v3038 = vadd.f32 %v2899, %v3008
      %v3039 = vadd.f32 %v2900, %v3011
      %v3040 = vadd.f32 %v2901, %v3016
      %v3041 = vadd.f32 %v2902, %v3019
      %v3042 = vadd.f32 %v2903, %v3024
      %v3043 = vadd.f32 %v2904, %v3027
      %v3044 = vadd.f32 %v2905, %v3032
      %v3045 = vadd.f32 %v2906, %v3035
      %v3046 = vld [vmem:[%s300] sm:$0xff]
      %v3047 = vld [vmem:[%s300 + $0x8] sm:$0xff]
      %v3048 = vld [vmem:[%s300 + $0x10] sm:$0xff]
      %v3049 = vld [vmem:[%s300 + $0x18] sm:$0xff]
      %v3050 = vld [vmem:[%s300 + $0x20] sm:$0xff]
      %v3051 = vld [vmem:[%s300 + $0x28] sm:$0xff]
      %v3052 = vld [vmem:[%s300 + $0x30] sm:$0xff]
      %v3053 = vld [vmem:[%s300 + $0x38] sm:$0xff]
      %v3054 = vadd.f32 %v3038, %v3046
      %v3055 = vadd.f32 %v3039, %v3047
      %v3056 = vadd.f32 %v3040, %v3048
      %v3057 = vadd.f32 %v3041, %v3049
      %v3058 = vadd.f32 %v3042, %v3050
      %v3059 = vadd.f32 %v3043, %v3051
      %v3060 = vadd.f32 %v3044, %v3052
      %v3061 = vadd.f32 %v3045, %v3053
      %3062 = vst [vmem:[%s305] sm:$0xff] %v3054
      %3063 = vst [vmem:[%s305 + $0x8] sm:$0xff] %v3055
      %3064 = vst [vmem:[%s305 + $0x10] sm:$0xff] %v3056
      %3065 = vst [vmem:[%s305 + $0x18] sm:$0xff] %v3057
      %3066 = vst [vmem:[%s305 + $0x20] sm:$0xff] %v3058
      %3067 = vst [vmem:[%s305 + $0x28] sm:$0xff] %v3059
      %3068 = vst [vmem:[%s305 + $0x30] sm:$0xff] %v3060
      %3069 = vst [vmem:[%s305 + $0x38] sm:$0xff] %v3061
      %p3070 = scmp.lt.s32.totalorder %s19, 1
      %s3071 = scalar_select %p3070, %s19, 1
      %s3072 = smul.addr %s3071, 8
      %s3073 = smul.addr %s3072, 8
      %s3074 = scalar_lea.vmem %s8, %s3073
      // Predicated region
      $region53: #{stack_layer_forward.3} parent=51 // pred_check
        %p3075 = pneg %p210
      $region54: #{stack_layer_forward.3} parent=51 // pred_check_branch
        %3077 = sbr.rel (%p3075) target = $region56
      $region55: #{stack_layer_forward.3} parent=51 // pred_region
        _
      $region56: #{stack_layer_forward.3} parent=51 // pred_fallthru
        _
    $region52: #{stack_layer_forward.3} parent=5 // pred_fallthru
      _
    %p3078 = scmp.le.s32.totalorder 2, %s14
    // Predicated region
    $region57: #{stack_layer_forward.3} parent=5 // pred_check
      %p3079 = pneg %p3078
    $region58: #{stack_layer_forward.3} parent=5 // pred_check_branch
      %3081 = sbr.rel (%p3079) target = $region60
    $region59: #{stack_layer_forward.3} parent=5 // pred_region
      %s3082 = ssub.s32 %s14, 2
      // Predicated region
      $region61: #{stack_layer_forward.3} parent=59 // pred_check
        %p3083 = pneg %p216
      $region62: #{stack_layer_forward.3} parent=59 // pred_check_branch
        %3085 = sbr.rel (%p3083) target = $region64
      $region63: #{stack_layer_forward.3} parent=59 // pred_region
        %p3086 = scmp.lt.s32.totalorder %s20, 1
        %s3087 = scalar_select %p3086, %s20, 1
        %s3088 = smul.addr %s3087, 8
        %s3089 = smul.addr %s3088, 8
        %s3090 = scalar_lea.vmem %s8, %s3089
      $region64: #{stack_layer_forward.3} parent=59 // pred_fallthru
        _
    $region60: #{stack_layer_forward.3} parent=5 // pred_fallthru
      _
  $region6: #{stack_layer_forward.3} parent=0 // loop_footer
    %s18 = sadd.s32 1, %s14
  $region7: #{stack_layer_forward.3} parent=0 // loop_footer_branch
    %13 = sbr.rel target = $region3
  $region8: #{stack_layer_forward.3} parent=0 // loop_exit
    _

// kernel: stack_layer_forward.2
$region0: #{stack_layer_forward.2}
  #allocation0 [shape = 'u32[]', space=smem, size = 0x4, offset = 0x4, fixed_abs, tag = 'smem constant byte address 0x4 - core index']
  #allocation1 [shape = 'u32[144,128]{1,0:T(1,128)}', space=vmem, size = 0x12000, scoped, tag = 'internal scratch']
  #allocation2 [shape = 'f32[9,9,128]{2,1,0:T(8,128)}', space=vmem, size = 0x12000, scoped, tag = 'scratch operand']
  #allocation3 [shape = 'f32[9,9,128]{2,1,0:T(8,128)}', space=vmem, size = 0x12000, scoped, tag = 'scratch operand']
  #allocation4 [shape = 'f32[9,9,128]{2,1,0:T(8,128)}', space=vmem, size = 0x12000, scoped, tag = 'scratch operand']
  #allocation5 [shape = 'f32[9,9,128]{2,1,0:T(8,128)}', space=vmem, size = 0x12000, scoped, tag = 'scratch operand']
  #allocation6 [shape = 'f32[10,10,128]{2,1,0:T(8,128)}', space=vmem, size = 0x14000, scoped, tag = 'scratch operand']
  %s0 = inlined_call_operand.vmem [shape: f32[2,8,8,128], index: 0, kind: input, shape index: {}]
  %s1 = inlined_call_operand.vmem [shape: f32[2,8,8,128], index: 1, kind: input, shape index: {}]
  %s2 = inlined_call_operand.vmem [shape: f32[2,8,8,128], index: 2, kind: input, shape index: {}]
  %s3 = inlined_call_operand.vmem [shape: f32[2,8,8,128], index: 3, kind: input, shape index: {}]
  %s4 = inlined_call_operand.vmem [shape: f32[1,128], index: 4, kind: input, shape index: {}]
  %s5 = inlined_call_operand.vmem [shape: f32[1,128], index: 5, kind: input, shape index: {}]
  %s6 = inlined_call_operand.vmem [shape: bf16[9,128,128], index: 6, kind: input, shape index: {}]
  %s7 = inlined_call_operand.vmem [shape: f32[1,128], index: 7, kind: input, shape index: {}]
  %s8 = inlined_call_operand.vmem [shape: f32[1,128], index: 8, kind: input, shape index: {}]
  %s9 = inlined_call_operand.vmem [shape: bf16[9,128,128], index: 9, kind: input, shape index: {}]
  %s10 = inlined_call_operand.vmem [shape: f32[1,128], index: 10, kind: input, shape index: {}]
  %s11 = inlined_call_operand.vmem [shape: bf16[128,128], index: 11, kind: input, shape index: {}]
  %s12 = inlined_call_operand.vmem [shape: f32[1,128], index: 12, kind: input, shape index: {}]
  %s13 = inlined_call_operand.vmem [shape: f32[2,8,8,128], index: 13, kind: output, shape index: {}]
  %s14 = sld [smem:[#allocation0]]
  $region85: #{stack_layer_forward.2} parent=0
    _
  %s16 = ssub.s32 1, %s14
  %s17 = scalar_select 0, %s16, %s14
  loop: start=0, step=1, limit=4
  $region2: #{stack_layer_forward.2} parent=0 // loop_pre_header
    _
  $region3: #{stack_layer_forward.2} parent=0 // loop_header
    %s19 = sphi 0, %s23
    %p20 = scmp.ge.s32.totalorder %s19, 4
    %s29 = sphi 0, %s31
    %s32 = sphi 0, %s29
    %s33 = sphi 0, %s32
    %s49 = sphi 0, %s33
    %s55 = sphi 0, %s57
    %s58 = sphi 0, %s55
    %s59 = sphi 0, %s58
    %s75 = sphi 0, %s59
    %s81 = sphi 0, %s83
    %s84 = sphi 0, %s81
    %s85 = sphi 0, %s84
    %s101 = sphi 0, %s85
    %s107 = sphi 0, %s109
    %s110 = sphi 0, %s107
    %s111 = sphi 0, %s110
    %s127 = sphi 0, %s111
    %s131 = sphi 0, %s131
    %s133 = sphi 0, %s131
    %s134 = sphi 0, %s133
    %s148 = sphi 0, %s134
    %s152 = sphi 0, %s152
    %s154 = sphi 0, %s152
    %s155 = sphi 0, %s154
    %s169 = sphi 0, %s155
    %s173 = sphi 0, %s173
    %s175 = sphi 0, %s173
    %s176 = sphi 0, %s175
    %s190 = sphi 0, %s176
    %s194 = sphi 0, %s194
    %s196 = sphi 0, %s194
    %s197 = sphi 0, %s196
    %s211 = sphi 0, %s197
    %s215 = sphi 0, %s215
    %s217 = sphi 0, %s215
    %s218 = sphi 0, %s217
    %s232 = sphi 0, %s218
    %s236 = sphi 0, %s236
    %s238 = sphi 0, %s236
    %s239 = sphi 0, %s238
    %s253 = sphi 0, %s239
    %s257 = sphi 0, %s257
    %s259 = sphi 0, %s257
    %s260 = sphi 0, %s259
    %s274 = sphi 0, %s260
    %s278 = sphi 0, %s278
    %s280 = sphi 0, %s278
    %s281 = sphi 0, %s280
    %s295 = sphi 0, %s281
    %s299 = sphi 0, %s299
    %s301 = sphi 0, %s299
    %s302 = sphi 0, %s301
    %s316 = sphi 0, %s302
    %s322 = sphi 0, %s324
    %s325 = sphi 0, %s322
    %s326 = sphi 0, %s325
    %s342 = sphi 0, %s326
  $region4: #{stack_layer_forward.2} parent=0 // loop_header_branch
    %22 = sbr.rel (%p20) target = $region8
  $region5: #{stack_layer_forward.2} parent=0 // loop_body
    %s24 = ssub.s32 %s19, 1
    %s25 = ssub.s32 %s19, 2
    %s26 = sadd.s32 %s19, 1
    %s27 = ssub.s32 %s19, %s26
    %p28 = scmp.eq.s32.totalorder %s27, 0
    %s30 = sadd.s32 %s29, 1
    %s31 = scalar_select %p28, %s29, %s30
    %p34 = pneg %p28
    %p35 = scmp.eq.s32.totalorder %s19, 1
    %p36 = por %p34, %p35
    %p37 = scmp.ne.s32.totalorder %s29, %s32
    %p38 = scmp.eq.s32.totalorder %s19, 0
    %p39 = por %p37, %p38
    %p40 = scmp.ne.s32.totalorder %s29, %s32
    %p41 = scmp.eq.s32.totalorder %s24, 1
    %p42 = por %p40, %p41
    %p43 = scmp.ne.s32.totalorder %s32, %s33
    %p44 = scmp.eq.s32.totalorder %s24, 0
    %p45 = por %p43, %p44
    %p46 = scmp.ne.s32.totalorder %s32, %s33
    %p47 = scmp.eq.s32.totalorder %s25, 1
    %p48 = por %p46, %p47
    %p50 = scmp.ne.s32.totalorder %s33, %s49
    %p51 = scmp.eq.s32.totalorder %s25, 0
    %p52 = por %p50, %p51
    %s53 = ssub.s32 %s19, %s26
    %p54 = scmp.eq.s32.totalorder %s53, 0
    %s56 = sadd.s32 %s55, 1
    %s57 = scalar_select %p54, %s55, %s56
    %p60 = pneg %p54
    %p61 = scmp.eq.s32.totalorder %s19, 1
    %p62 = por %p60, %p61
    %p63 = scmp.ne.s32.totalorder %s55, %s58
    %p64 = scmp.eq.s32.totalorder %s19, 0
    %p65 = por %p63, %p64
    %p66 = scmp.ne.s32.totalorder %s55, %s58
    %p67 = scmp.eq.s32.totalorder %s24, 1
    %p68 = por %p66, %p67
    %p69 = scmp.ne.s32.totalorder %s58, %s59
    %p70 = scmp.eq.s32.totalorder %s24, 0
    %p71 = por %p69, %p70
    %p72 = scmp.ne.s32.totalorder %s58, %s59
    %p73 = scmp.eq.s32.totalorder %s25, 1
    %p74 = por %p72, %p73
    %p76 = scmp.ne.s32.totalorder %s59, %s75
    %p77 = scmp.eq.s32.totalorder %s25, 0
    %p78 = por %p76, %p77
    %s79 = ssub.s32 %s19, %s26
    %p80 = scmp.eq.s32.totalorder %s79, 0
    %s82 = sadd.s32 %s81, 1
    %s83 = scalar_select %p80, %s81, %s82
    %p86 = pneg %p80
    %p87 = scmp.eq.s32.totalorder %s19, 1
    %p88 = por %p86, %p87
    %p89 = scmp.ne.s32.totalorder %s81, %s84
    %p90 = scmp.eq.s32.totalorder %s19, 0
    %p91 = por %p89, %p90
    %p92 = scmp.ne.s32.totalorder %s81, %s84
    %p93 = scmp.eq.s32.totalorder %s24, 1
    %p94 = por %p92, %p93
    %p95 = scmp.ne.s32.totalorder %s84, %s85
    %p96 = scmp.eq.s32.totalorder %s24, 0
    %p97 = por %p95, %p96
    %p98 = scmp.ne.s32.totalorder %s84, %s85
    %p99 = scmp.eq.s32.totalorder %s25, 1
    %p100 = por %p98, %p99
    %p102 = scmp.ne.s32.totalorder %s85, %s101
    %p103 = scmp.eq.s32.totalorder %s25, 0
    %p104 = por %p102, %p103
    %s105 = ssub.s32 %s19, %s26
    %p106 = scmp.eq.s32.totalorder %s105, 0
    %s108 = sadd.s32 %s107, 1
    %s109 = scalar_select %p106, %s107, %s108
    %p112 = pneg %p106
    %p113 = scmp.eq.s32.totalorder %s19, 1
    %p114 = por %p112, %p113
    %p115 = scmp.ne.s32.totalorder %s107, %s110
    %p116 = scmp.eq.s32.totalorder %s19, 0
    %p117 = por %p115, %p116
    %p118 = scmp.ne.s32.totalorder %s107, %s110
    %p119 = scmp.eq.s32.totalorder %s24, 1
    %p120 = por %p118, %p119
    %p121 = scmp.ne.s32.totalorder %s110, %s111
    %p122 = scmp.eq.s32.totalorder %s24, 0
    %p123 = por %p121, %p122
    %p124 = scmp.ne.s32.totalorder %s110, %s111
    %p125 = scmp.eq.s32.totalorder %s25, 1
    %p126 = por %p124, %p125
    %p128 = scmp.ne.s32.totalorder %s111, %s127
    %p129 = scmp.eq.s32.totalorder %s25, 0
    %p130 = por %p128, %p129
    %s132 = sadd.s32 %s131, 1
    %p135 = scmp.eq.s32.totalorder %s19, 1
    %p136 = scmp.ne.s32.totalorder %s131, %s133
    %p137 = scmp.eq.s32.totalorder %s19, 0
    %p138 = por %p136, %p137
    %p139 = scmp.ne.s32.totalorder %s131, %s133
    %p140 = scmp.eq.s32.totalorder %s24, 1
    %p141 = por %p139, %p140
    %p142 = scmp.ne.s32.totalorder %s133, %s134
    %p143 = scmp.eq.s32.totalorder %s24, 0
    %p144 = por %p142, %p143
    %p145 = scmp.ne.s32.totalorder %s133, %s134
    %p146 = scmp.eq.s32.totalorder %s25, 1
    %p147 = por %p145, %p146
    %p149 = scmp.ne.s32.totalorder %s134, %s148
    %p150 = scmp.eq.s32.totalorder %s25, 0
    %p151 = por %p149, %p150
    %s153 = sadd.s32 %s152, 1
    %p156 = scmp.eq.s32.totalorder %s19, 1
    %p157 = scmp.ne.s32.totalorder %s152, %s154
    %p158 = scmp.eq.s32.totalorder %s19, 0
    %p159 = por %p157, %p158
    %p160 = scmp.ne.s32.totalorder %s152, %s154
    %p161 = scmp.eq.s32.totalorder %s24, 1
    %p162 = por %p160, %p161
    %p163 = scmp.ne.s32.totalorder %s154, %s155
    %p164 = scmp.eq.s32.totalorder %s24, 0
    %p165 = por %p163, %p164
    %p166 = scmp.ne.s32.totalorder %s154, %s155
    %p167 = scmp.eq.s32.totalorder %s25, 1
    %p168 = por %p166, %p167
    %p170 = scmp.ne.s32.totalorder %s155, %s169
    %p171 = scmp.eq.s32.totalorder %s25, 0
    %p172 = por %p170, %p171
    %s174 = sadd.s32 %s173, 1
    %p177 = scmp.eq.s32.totalorder %s19, 1
    %p178 = scmp.ne.s32.totalorder %s173, %s175
    %p179 = scmp.eq.s32.totalorder %s19, 0
    %p180 = por %p178, %p179
    %p181 = scmp.ne.s32.totalorder %s173, %s175
    %p182 = scmp.eq.s32.totalorder %s24, 1
    %p183 = por %p181, %p182
    %p184 = scmp.ne.s32.totalorder %s175, %s176
    %p185 = scmp.eq.s32.totalorder %s24, 0
    %p186 = por %p184, %p185
    %p187 = scmp.ne.s32.totalorder %s175, %s176
    %p188 = scmp.eq.s32.totalorder %s25, 1
    %p189 = por %p187, %p188
    %p191 = scmp.ne.s32.totalorder %s176, %s190
    %p192 = scmp.eq.s32.totalorder %s25, 0
    %p193 = por %p191, %p192
    %s195 = sadd.s32 %s194, 1
    %p198 = scmp.eq.s32.totalorder %s19, 1
    %p199 = scmp.ne.s32.totalorder %s194, %s196
    %p200 = scmp.eq.s32.totalorder %s19, 0
    %p201 = por %p199, %p200
    %p202 = scmp.ne.s32.totalorder %s194, %s196
    %p203 = scmp.eq.s32.totalorder %s24, 1
    %p204 = por %p202, %p203
    %p205 = scmp.ne.s32.totalorder %s196, %s197
    %p206 = scmp.eq.s32.totalorder %s24, 0
    %p207 = por %p205, %p206
    %p208 = scmp.ne.s32.totalorder %s196, %s197
    %p209 = scmp.eq.s32.totalorder %s25, 1
    %p210 = por %p208, %p209
    %p212 = scmp.ne.s32.totalorder %s197, %s211
    %p213 = scmp.eq.s32.totalorder %s25, 0
    %p214 = por %p212, %p213
    %s216 = sadd.s32 %s215, 1
    %p219 = scmp.eq.s32.totalorder %s19, 1
    %p220 = scmp.ne.s32.totalorder %s215, %s217
    %p221 = scmp.eq.s32.totalorder %s19, 0
    %p222 = por %p220, %p221
    %p223 = scmp.ne.s32.totalorder %s215, %s217
    %p224 = scmp.eq.s32.totalorder %s24, 1
    %p225 = por %p223, %p224
    %p226 = scmp.ne.s32.totalorder %s217, %s218
    %p227 = scmp.eq.s32.totalorder %s24, 0
    %p228 = por %p226, %p227
    %p229 = scmp.ne.s32.totalorder %s217, %s218
    %p230 = scmp.eq.s32.totalorder %s25, 1
    %p231 = por %p229, %p230
    %p233 = scmp.ne.s32.totalorder %s218, %s232
    %p234 = scmp.eq.s32.totalorder %s25, 0
    %p235 = por %p233, %p234
    %s237 = sadd.s32 %s236, 1
    %p240 = scmp.eq.s32.totalorder %s19, 1
    %p241 = scmp.ne.s32.totalorder %s236, %s238
    %p242 = scmp.eq.s32.totalorder %s19, 0
    %p243 = por %p241, %p242
    %p244 = scmp.ne.s32.totalorder %s236, %s238
    %p245 = scmp.eq.s32.totalorder %s24, 1
    %p246 = por %p244, %p245
    %p247 = scmp.ne.s32.totalorder %s238, %s239
    %p248 = scmp.eq.s32.totalorder %s24, 0
    %p249 = por %p247, %p248
    %p250 = scmp.ne.s32.totalorder %s238, %s239
    %p251 = scmp.eq.s32.totalorder %s25, 1
    %p252 = por %p250, %p251
    %p254 = scmp.ne.s32.totalorder %s239, %s253
    %p255 = scmp.eq.s32.totalorder %s25, 0
    %p256 = por %p254, %p255
    %s258 = sadd.s32 %s257, 1
    %p261 = scmp.eq.s32.totalorder %s19, 1
    %p262 = scmp.ne.s32.totalorder %s257, %s259
    %p263 = scmp.eq.s32.totalorder %s19, 0
    %p264 = por %p262, %p263
    %p265 = scmp.ne.s32.totalorder %s257, %s259
    %p266 = scmp.eq.s32.totalorder %s24, 1
    %p267 = por %p265, %p266
    %p268 = scmp.ne.s32.totalorder %s259, %s260
    %p269 = scmp.eq.s32.totalorder %s24, 0
    %p270 = por %p268, %p269
    %p271 = scmp.ne.s32.totalorder %s259, %s260
    %p272 = scmp.eq.s32.totalorder %s25, 1
    %p273 = por %p271, %p272
    %p275 = scmp.ne.s32.totalorder %s260, %s274
    %p276 = scmp.eq.s32.totalorder %s25, 0
    %p277 = por %p275, %p276
    %s279 = sadd.s32 %s278, 1
    %p282 = scmp.eq.s32.totalorder %s19, 1
    %p283 = scmp.ne.s32.totalorder %s278, %s280
    %p284 = scmp.eq.s32.totalorder %s19, 0
    %p285 = por %p283, %p284
    %p286 = scmp.ne.s32.totalorder %s278, %s280
    %p287 = scmp.eq.s32.totalorder %s24, 1
    %p288 = por %p286, %p287
    %p289 = scmp.ne.s32.totalorder %s280, %s281
    %p290 = scmp.eq.s32.totalorder %s24, 0
    %p291 = por %p289, %p290
    %p292 = scmp.ne.s32.totalorder %s280, %s281
    %p293 = scmp.eq.s32.totalorder %s25, 1
    %p294 = por %p292, %p293
    %p296 = scmp.ne.s32.totalorder %s281, %s295
    %p297 = scmp.eq.s32.totalorder %s25, 0
    %p298 = por %p296, %p297
    %s300 = sadd.s32 %s299, 1
    %p303 = scmp.eq.s32.totalorder %s19, 1
    %p304 = scmp.ne.s32.totalorder %s299, %s301
    %p305 = scmp.eq.s32.totalorder %s19, 0
    %p306 = por %p304, %p305
    %p307 = scmp.ne.s32.totalorder %s299, %s301
    %p308 = scmp.eq.s32.totalorder %s24, 1
    %p309 = por %p307, %p308
    %p310 = scmp.ne.s32.totalorder %s301, %s302
    %p311 = scmp.eq.s32.totalorder %s24, 0
    %p312 = por %p310, %p311
    %p313 = scmp.ne.s32.totalorder %s301, %s302
    %p314 = scmp.eq.s32.totalorder %s25, 1
    %p315 = por %p313, %p314
    %p317 = scmp.ne.s32.totalorder %s302, %s316
    %p318 = scmp.eq.s32.totalorder %s25, 0
    %p319 = por %p317, %p318
    %s320 = ssub.s32 %s19, %s26
    %p321 = scmp.eq.s32.totalorder %s320, 0
    %s323 = sadd.s32 %s322, 1
    %s324 = scalar_select %p321, %s322, %s323
    %p327 = pneg %p321
    %p328 = scmp.eq.s32.totalorder %s19, 1
    %p329 = por %p327, %p328
    %p330 = scmp.ne.s32.totalorder %s322, %s325
    %p331 = scmp.eq.s32.totalorder %s19, 0
    %p332 = por %p330, %p331
    %p333 = scmp.ne.s32.totalorder %s322, %s325
    %p334 = scmp.eq.s32.totalorder %s24, 1
    %p335 = por %p333, %p334
    %p336 = scmp.ne.s32.totalorder %s325, %s326
    %p337 = scmp.eq.s32.totalorder %s24, 0
    %p338 = por %p336, %p337
    %p339 = scmp.ne.s32.totalorder %s325, %s326
    %p340 = scmp.eq.s32.totalorder %s25, 1
    %p341 = por %p339, %p340
    %p343 = scmp.ne.s32.totalorder %s326, %s342
    %p344 = scmp.eq.s32.totalorder %s25, 0
    %p345 = por %p343, %p344
    %p346 = scmp.le.s32.totalorder 1, %s19
    %p347 = scmp.lt.s32.totalorder %s19, 3
    %p348 = pnand %p346, %p347
    %p349 = pneg %p348
    // Predicated region
    $region9: #{stack_layer_forward.2} parent=5 // pred_check
      _
    $region10: #{stack_layer_forward.2} parent=5 // pred_check_branch
      %351 = sbr.rel (%p348) target = $region12
    $region11: #{stack_layer_forward.2} parent=5 // pred_region
      %s352 = ssub.s32 %s19, 1
      // Predicated region
      $region13: #{stack_layer_forward.2} parent=11 // pred_check
        %p353 = pneg %p144
      $region14: #{stack_layer_forward.2} parent=11 // pred_check_branch
        %355 = sbr.rel (%p353) target = $region16
      $region15: #{stack_layer_forward.2} parent=11 // pred_region
        _
      $region16: #{stack_layer_forward.2} parent=11 // pred_fallthru
        _
      // Predicated region
      $region17: #{stack_layer_forward.2} parent=11 // pred_check
        %p356 = pneg %p165
      $region18: #{stack_layer_forward.2} parent=11 // pred_check_branch
        %358 = sbr.rel (%p356) target = $region20
      $region19: #{stack_layer_forward.2} parent=11 // pred_region
        _
      $region20: #{stack_layer_forward.2} parent=11 // pred_fallthru
        _
      // Predicated region
      $region21: #{stack_layer_forward.2} parent=11 // pred_check
        %p359 = pneg %p186
      $region22: #{stack_layer_forward.2} parent=11 // pred_check_branch
        %361 = sbr.rel (%p359) target = $region24
      $region23: #{stack_layer_forward.2} parent=11 // pred_region
        _
      $region24: #{stack_layer_forward.2} parent=11 // pred_fallthru
        _
      // Predicated region
      $region25: #{stack_layer_forward.2} parent=11 // pred_check
        %p362 = pneg %p207
      $region26: #{stack_layer_forward.2} parent=11 // pred_check_branch
        %364 = sbr.rel (%p362) target = $region28
      $region27: #{stack_layer_forward.2} parent=11 // pred_region
        _
      $region28: #{stack_layer_forward.2} parent=11 // pred_fallthru
        _
      // Predicated region
      $region29: #{stack_layer_forward.2} parent=11 // pred_check
        %p365 = pneg %p228
      $region30: #{stack_layer_forward.2} parent=11 // pred_check_branch
        %367 = sbr.rel (%p365) target = $region32
      $region31: #{stack_layer_forward.2} parent=11 // pred_region
        _
      $region32: #{stack_layer_forward.2} parent=11 // pred_fallthru
        _
      // Predicated region
      $region33: #{stack_layer_forward.2} parent=11 // pred_check
        %p368 = pneg %p249
      $region34: #{stack_layer_forward.2} parent=11 // pred_check_branch
        %370 = sbr.rel (%p368) target = $region36
      $region35: #{stack_layer_forward.2} parent=11 // pred_region
        _
      $region36: #{stack_layer_forward.2} parent=11 // pred_fallthru
        _
      // Predicated region
      $region37: #{stack_layer_forward.2} parent=11 // pred_check
        %p371 = pneg %p270
      $region38: #{stack_layer_forward.2} parent=11 // pred_check_branch
        %373 = sbr.rel (%p371) target = $region40
      $region39: #{stack_layer_forward.2} parent=11 // pred_region
        _
      $region40: #{stack_layer_forward.2} parent=11 // pred_fallthru
        _
      // Predicated region
      $region41: #{stack_layer_forward.2} parent=11 // pred_check
        %p374 = pneg %p291
      $region42: #{stack_layer_forward.2} parent=11 // pred_check_branch
        %376 = sbr.rel (%p374) target = $region44
      $region43: #{stack_layer_forward.2} parent=11 // pred_region
        _
      $region44: #{stack_layer_forward.2} parent=11 // pred_fallthru
        _
      // Predicated region
      $region45: #{stack_layer_forward.2} parent=11 // pred_check
        %p377 = pneg %p312
      $region46: #{stack_layer_forward.2} parent=11 // pred_check_branch
        %379 = sbr.rel (%p377) target = $region48
      $region47: #{stack_layer_forward.2} parent=11 // pred_region
        _
      $region48: #{stack_layer_forward.2} parent=11 // pred_fallthru
        _
    $region12: #{stack_layer_forward.2} parent=5 // pred_fallthru
      _
    %p380 = scmp.lt.s32.totalorder %s19, 2
    // Predicated region
    $region49: #{stack_layer_forward.2} parent=5 // pred_check
      %p381 = pneg %p380
    $region50: #{stack_layer_forward.2} parent=5 // pred_check_branch
      %383 = sbr.rel (%p381) target = $region52
    $region51: #{stack_layer_forward.2} parent=5 // pred_region
      // Predicated region
      $region53: #{stack_layer_forward.2} parent=51 // pred_check
        %p384 = pneg %p39
      $region54: #{stack_layer_forward.2} parent=51 // pred_check_branch
        %386 = sbr.rel (%p384) target = $region56
      $region55: #{stack_layer_forward.2} parent=51 // pred_region
        %p387 = scmp.lt.s32.totalorder %s19, 1
        %s388 = scalar_select %p387, %s19, 1
        %s389 = smul.addr %s388, 8
        %s390 = smul.addr %s389, 8
        %s391 = scalar_lea.vmem %s0, %s390
      $region56: #{stack_layer_forward.2} parent=51 // pred_fallthru
        _
      // Predicated region
      $region57: #{stack_layer_forward.2} parent=51 // pred_check
        %p392 = pneg %p65
      $region58: #{stack_layer_forward.2} parent=51 // pred_check_branch
        %394 = sbr.rel (%p392) target = $region60
      $region59: #{stack_layer_forward.2} parent=51 // pred_region
        %p395 = scmp.lt.s32.totalorder %s19, 1
        %s396 = scalar_select %p395, %s19, 1
        %s397 = smul.addr %s396, 8
        %s398 = smul.addr %s397, 8
        %s399 = scalar_lea.vmem %s1, %s398
      $region60: #{stack_layer_forward.2} parent=51 // pred_fallthru
        _
      // Predicated region
      $region61: #{stack_layer_forward.2} parent=51 // pred_check
        %p400 = pneg %p91
      $region62: #{stack_layer_forward.2} parent=51 // pred_check_branch
        %402 = sbr.rel (%p400) target = $region64
      $region63: #{stack_layer_forward.2} parent=51 // pred_region
        %p403 = scmp.lt.s32.totalorder %s19, 1
        %s404 = scalar_select %p403, %s19, 1
        %s405 = smul.addr %s404, 8
        %s406 = smul.addr %s405, 8
        %s407 = scalar_lea.vmem %s2, %s406
      $region64: #{stack_layer_forward.2} parent=51 // pred_fallthru
        _
      // Predicated region
      $region65: #{stack_layer_forward.2} parent=51 // pred_check
        %p408 = pneg %p117
      $region66: #{stack_layer_forward.2} parent=51 // pred_check_branch
        %410 = sbr.rel (%p408) target = $region68
      $region67: #{stack_layer_forward.2} parent=51 // pred_region
        %p411 = scmp.lt.s32.totalorder %s19, 1
        %s412 = scalar_select %p411, %s19, 1
        %s413 = smul.addr %s412, 8
        %s414 = smul.addr %s413, 8
        %s415 = scalar_lea.vmem %s3, %s414
      $region68: #{stack_layer_forward.2} parent=51 // pred_fallthru
        _
    $region52: #{stack_layer_forward.2} parent=5 // pred_fallthru
      _
    %p416 = scmp.le.s32.totalorder 1, %s19
    %p417 = scmp.lt.s32.totalorder %s19, 3
    %p418 = pnand %p416, %p417
    %p419 = pneg %p418
    // Predicated region
    $region69: #{stack_layer_forward.2} parent=5 // pred_check
      _
    $region70: #{stack_layer_forward.2} parent=5 // pred_check_branch
      %421 = sbr.rel (%p418) target = $region72
    $region71: #{stack_layer_forward.2} parent=5 // pred_region
      %s422 = ssub.s32 %s19, 1
      %p423 = scmp.lt.s32.totalorder %s24, 1
      %s424 = scalar_select %p423, %s24, 1
      %s425 = smul.addr %s424, 8
      %s426 = smul.addr %s425, 8
      %s427 = scalar_lea.vmem %s0, %s426
      %p428 = pneg %p45
      %p429 = pneg %p42
      %p430 = scmp.lt.s32.totalorder %s24, 1
      %s431 = scalar_select %p430, %s24, 1
      %s432 = smul.addr %s431, 8
      %s433 = smul.addr %s432, 8
      %s434 = scalar_lea.vmem %s1, %s433
      %p435 = pneg %p71
      %p436 = pneg %p68
      %p437 = scmp.lt.s32.totalorder %s24, 1
      %s438 = scalar_select %p437, %s24, 1
      %s439 = smul.addr %s438, 8
      %s440 = smul.addr %s439, 8
      %s441 = scalar_lea.vmem %s2, %s440
      %p442 = pneg %p97
      %p443 = pneg %p94
      %p444 = scmp.lt.s32.totalorder %s24, 1
      %s445 = scalar_select %p444, %s24, 1
      %s446 = smul.addr %s445, 8
      %s447 = smul.addr %s446, 8
      %s448 = scalar_lea.vmem %s3, %s447
      %p449 = pneg %p123
      %p450 = pneg %p120
      %p451 = pneg %p144
      %p452 = pneg %p141
      %p453 = pneg %p165
      %p454 = pneg %p162
      %p455 = pneg %p186
      %p456 = pneg %p183
      %p457 = pneg %p207
      %p458 = pneg %p204
      %p459 = pneg %p228
      %p460 = pneg %p225
      %p461 = pneg %p249
      %p462 = pneg %p246
      %p463 = pneg %p270
      %p464 = pneg %p267
      %p465 = pneg %p291
      %p466 = pneg %p288
      %p467 = pneg %p312
      %p468 = pneg %p309
      %p469 = pneg %p338
      %p470 = pneg %p335
      %p471 = scmp.lt.s32.totalorder %s24, 1
      %s472 = scalar_select %p471, %s24, 1
      %s473 = smul.addr %s472, 8
      %s474 = smul.addr %s473, 8
      %s475 = scalar_lea.vmem %s13, %s474
      %p476 = scmp.lt.s32.totalorder %s24, 1
      %s477 = scalar_select %p476, %s24, 1
      %s478 = smul.addr %s477, 8
      %s479 = smul.addr %s478, 8
      %s480 = scalar_lea.vmem %s0, %s479
      %p481 = scmp.lt.s32.totalorder %s24, 1
      %s482 = scalar_select %p481, %s24, 1
      %s483 = smul.addr %s482, 8
      %s484 = smul.addr %s483, 8
      %s485 = scalar_lea.vmem %s1, %s484
      %p486 = scmp.lt.s32.totalorder %s24, 1
      %s487 = scalar_select %p486, %s24, 1
      %s488 = smul.addr %s487, 8
      %s489 = smul.addr %s488, 8
      %s490 = scalar_lea.vmem %s2, %s489
      %p491 = scmp.lt.s32.totalorder %s24, 1
      %s492 = scalar_select %p491, %s24, 1
      %s493 = smul.addr %s492, 8
      %s494 = smul.addr %s493, 8
      %s495 = scalar_lea.vmem %s3, %s494
      %p496 = scmp.lt.s32.totalorder %s24, 1
      %s497 = scalar_select %p496, %s24, 1
      %s498 = smul.addr %s497, 8
      %s499 = smul.addr %s498, 8
      %s500 = scalar_lea.vmem %s13, %s499
      %v502 = vld [vmem:[%s4] sm:$0x1]
      %v503 = vld [vmem:[%s5] sm:$0x1]
      %504 = vst [vmem:[#allocation2] sm:$0xff] 0.0
      %505 = vst [vmem:[#allocation2 + $0x8] sm:$0x1] 0.0
      %506 = vst [vmem:[#allocation2] sm:$0x1] 0.0
      %507 = vst [vmem:[#allocation2 + $0x10] sm:$0x1] 0.0
      %508 = vst [vmem:[#allocation2 + $0x20] sm:$0x1] 0.0
      %509 = vst [vmem:[#allocation2 + $0x30] sm:$0x1] 0.0
      %510 = vst [vmem:[#allocation2 + $0x40] sm:$0x1] 0.0
      %511 = vst [vmem:[#allocation2 + $0x50] sm:$0x1] 0.0
      %512 = vst [vmem:[#allocation2 + $0x60] sm:$0x1] 0.0
      %513 = vst [vmem:[#allocation2 + $0x70] sm:$0x1] 0.0
      %514 = vst [vmem:[#allocation2 + $0x80] sm:$0x1] 0.0
      %v515 = vld [vmem:[%s480] sm:$0xff]
      %v516 = vld [vmem:[%s480 + $0x8] sm:$0xff]
      %v517 = vld [vmem:[%s480 + $0x10] sm:$0xff]
      %v518 = vld [vmem:[%s480 + $0x18] sm:$0xff]
      %v519 = vld [vmem:[%s480 + $0x20] sm:$0xff]
      %v520 = vld [vmem:[%s480 + $0x28] sm:$0xff]
      %v521 = vld [vmem:[%s480 + $0x30] sm:$0xff]
      %v522 = vld [vmem:[%s480 + $0x38] sm:$0xff]
      %v524 = vlaneseq
      %v525 = vshrl.u32 %v524, 7
      %v526 = vsub.s32 0, %v525
      %v527 = vrot.slane %v502, %v526
      %v529 = vmul.f32 %v515, %v527
      %v530 = vmul.f32 %v516, %v527
      %v531 = vmul.f32 %v517, %v527
      %v532 = vmul.f32 %v518, %v527
      %v533 = vmul.f32 %v519, %v527
      %v534 = vmul.f32 %v520, %v527
      %v535 = vmul.f32 %v521, %v527
      %v536 = vmul.f32 %v522, %v527
      %v538 = vlaneseq
      %v539 = vshrl.u32 %v538, 7
      %v540 = vsub.s32 0, %v539
      %v541 = vrot.slane %v503, %v540
      %v543 = vadd.f32 %v529, %v541
      %v544 = vadd.f32 %v530, %v541
      %v545 = vadd.f32 %v531, %v541
      %v546 = vadd.f32 %v532, %v541
      %v547 = vadd.f32 %v533, %v541
      %v548 = vadd.f32 %v534, %v541
      %v549 = vadd.f32 %v535, %v541
      %v550 = vadd.f32 %v536, %v541
      %v551 = vmax.f32 %v543, 0.0
      %v552 = vmax.f32 %v544, 0.0
      %v553 = vmax.f32 %v545, 0.0
      %v554 = vmax.f32 %v546, 0.0
      %v555 = vmax.f32 %v547, 0.0
      %v556 = vmax.f32 %v548, 0.0
      %v557 = vmax.f32 %v549, 0.0
      %v558 = vmax.f32 %v550, 0.0
      %s559 = scalar_lea.vmem [#allocation2], 16
      %560 = vst [vmem:[%s559 + $0x1] sm:$0xff] %v551
      %561 = vst [vmem:[%s559 + $0x11] sm:$0xff] %v552
      %562 = vst [vmem:[%s559 + $0x21] sm:$0xff] %v553
      %563 = vst [vmem:[%s559 + $0x31] sm:$0xff] %v554
      %564 = vst [vmem:[%s559 + $0x41] sm:$0xff] %v555
      %565 = vst [vmem:[%s559 + $0x51] sm:$0xff] %v556
      %566 = vst [vmem:[%s559 + $0x61] sm:$0xff] %v557
      %567 = vst [vmem:[%s559 + $0x71] sm:$0xff] %v558
      %568 = vst [vmem:[#allocation3] sm:$0xff] 0.0
      %569 = vst [vmem:[#allocation3 + $0x8] sm:$0x1] 0.0
      %570 = vst [vmem:[#allocation3] sm:$0x1] 0.0
      %571 = vst [vmem:[#allocation3 + $0x10] sm:$0x1] 0.0
      %572 = vst [vmem:[#allocation3 + $0x20] sm:$0x1] 0.0
      %573 = vst [vmem:[#allocation3 + $0x30] sm:$0x1] 0.0
      %574 = vst [vmem:[#allocation3 + $0x40] sm:$0x1] 0.0
      %575 = vst [vmem:[#allocation3 + $0x50] sm:$0x1] 0.0
      %576 = vst [vmem:[#allocation3 + $0x60] sm:$0x1] 0.0
      %577 = vst [vmem:[#allocation3 + $0x70] sm:$0x1] 0.0
      %578 = vst [vmem:[#allocation3 + $0x80] sm:$0x1] 0.0
      %v579 = vld [vmem:[%s485] sm:$0xff]
      %v580 = vld [vmem:[%s485 + $0x8] sm:$0xff]
      %v581 = vld [vmem:[%s485 + $0x10] sm:$0xff]
      %v582 = vld [vmem:[%s485 + $0x18] sm:$0xff]
      %v583 = vld [vmem:[%s485 + $0x20] sm:$0xff]
      %v584 = vld [vmem:[%s485 + $0x28] sm:$0xff]
      %v585 = vld [vmem:[%s485 + $0x30] sm:$0xff]
      %v586 = vld [vmem:[%s485 + $0x38] sm:$0xff]
      %v587 = vmul.f32 %v579, %v527
      %v588 = vmul.f32 %v580, %v527
      %v589 = vmul.f32 %v581, %v527
      %v590 = vmul.f32 %v582, %v527
      %v591 = vmul.f32 %v583, %v527
      %v592 = vmul.f32 %v584, %v527
      %v593 = vmul.f32 %v585, %v527
      %v594 = vmul.f32 %v586, %v527
      %v595 = vadd.f32 %v587, %v541
      %v596 = vadd.f32 %v588, %v541
      %v597 = vadd.f32 %v589, %v541
      %v598 = vadd.f32 %v590, %v541
      %v599 = vadd.f32 %v591, %v541
      %v600 = vadd.f32 %v592, %v541
      %v601 = vadd.f32 %v593, %v541
      %v602 = vadd.f32 %v594, %v541
      %v603 = vmax.f32 %v595, 0.0
      %v604 = vmax.f32 %v596, 0.0
      %v605 = vmax.f32 %v597, 0.0
      %v606 = vmax.f32 %v598, 0.0
      %v607 = vmax.f32 %v599, 0.0
      %v608 = vmax.f32 %v600, 0.0
      %v609 = vmax.f32 %v601, 0.0
      %v610 = vmax.f32 %v602, 0.0
      %s611 = scalar_lea.vmem [#allocation3], 16
      %612 = vst [vmem:[%s611 + $0x1] sm:$0xff] %v603
      %613 = vst [vmem:[%s611 + $0x11] sm:$0xff] %v604
      %614 = vst [vmem:[%s611 + $0x21] sm:$0xff] %v605
      %615 = vst [vmem:[%s611 + $0x31] sm:$0xff] %v606
      %616 = vst [vmem:[%s611 + $0x41] sm:$0xff] %v607
      %617 = vst [vmem:[%s611 + $0x51] sm:$0xff] %v608
      %618 = vst [vmem:[%s611 + $0x61] sm:$0xff] %v609
      %619 = vst [vmem:[%s611 + $0x71] sm:$0xff] %v610
      %620 = vst [vmem:[#allocation4] sm:$0xff] 0.0
      %621 = vst [vmem:[#allocation4 + $0x8] sm:$0x1] 0.0
      %622 = vst [vmem:[#allocation4] sm:$0x1] 0.0
      %623 = vst [vmem:[#allocation4 + $0x10] sm:$0x1] 0.0
      %624 = vst [vmem:[#allocation4 + $0x20] sm:$0x1] 0.0
      %625 = vst [vmem:[#allocation4 + $0x30] sm:$0x1] 0.0
      %626 = vst [vmem:[#allocation4 + $0x40] sm:$0x1] 0.0
      %627 = vst [vmem:[#allocation4 + $0x50] sm:$0x1] 0.0
      %628 = vst [vmem:[#allocation4 + $0x60] sm:$0x1] 0.0
      %629 = vst [vmem:[#allocation4 + $0x70] sm:$0x1] 0.0
      %630 = vst [vmem:[#allocation4 + $0x80] sm:$0x1] 0.0
      %v631 = vld [vmem:[%s490] sm:$0xff]
      %v632 = vld [vmem:[%s490 + $0x8] sm:$0xff]
      %v633 = vld [vmem:[%s490 + $0x10] sm:$0xff]
      %v634 = vld [vmem:[%s490 + $0x18] sm:$0xff]
      %v635 = vld [vmem:[%s490 + $0x20] sm:$0xff]
      %v636 = vld [vmem:[%s490 + $0x28] sm:$0xff]
      %v637 = vld [vmem:[%s490 + $0x30] sm:$0xff]
      %v638 = vld [vmem:[%s490 + $0x38] sm:$0xff]
      %v639 = vmul.f32 %v631, %v527
      %v640 = vmul.f32 %v632, %v527
      %v641 = vmul.f32 %v633, %v527
      %v642 = vmul.f32 %v634, %v527
      %v643 = vmul.f32 %v635, %v527
      %v644 = vmul.f32 %v636, %v527
      %v645 = vmul.f32 %v637, %v527
      %v646 = vmul.f32 %v638, %v527
      %v647 = vadd.f32 %v639, %v541
      %v648 = vadd.f32 %v640, %v541
      %v649 = vadd.f32 %v641, %v541
      %v650 = vadd.f32 %v642, %v541
      %v651 = vadd.f32 %v643, %v541
      %v652 = vadd.f32 %v644, %v541
      %v653 = vadd.f32 %v645, %v541
      %v654 = vadd.f32 %v646, %v541
      %v655 = vmax.f32 %v647, 0.0
      %v656 = vmax.f32 %v648, 0.0
      %v657 = vmax.f32 %v649, 0.0
      %v658 = vmax.f32 %v650, 0.0
      %v659 = vmax.f32 %v651, 0.0
      %v660 = vmax.f32 %v652, 0.0
      %v661 = vmax.f32 %v653, 0.0
      %v662 = vmax.f32 %v654, 0.0
      %s663 = scalar_lea.vmem [#allocation4], 16
      %664 = vst [vmem:[%s663 + $0x1] sm:$0xff] %v655
      %665 = vst [vmem:[%s663 + $0x11] sm:$0xff] %v656
      %666 = vst [vmem:[%s663 + $0x21] sm:$0xff] %v657
      %667 = vst [vmem:[%s663 + $0x31] sm:$0xff] %v658
      %668 = vst [vmem:[%s663 + $0x41] sm:$0xff] %v659
      %669 = vst [vmem:[%s663 + $0x51] sm:$0xff] %v660
      %670 = vst [vmem:[%s663 + $0x61] sm:$0xff] %v661
      %671 = vst [vmem:[%s663 + $0x71] sm:$0xff] %v662
      %672 = vst [vmem:[#allocation5] sm:$0xff] 0.0
      %673 = vst [vmem:[#allocation5 + $0x8] sm:$0x1] 0.0
      %674 = vst [vmem:[#allocation5] sm:$0x1] 0.0
      %675 = vst [vmem:[#allocation5 + $0x10] sm:$0x1] 0.0
      %676 = vst [vmem:[#allocation5 + $0x20] sm:$0x1] 0.0
      %677 = vst [vmem:[#allocation5 + $0x30] sm:$0x1] 0.0
      %678 = vst [vmem:[#allocation5 + $0x40] sm:$0x1] 0.0
      %679 = vst [vmem:[#allocation5 + $0x50] sm:$0x1] 0.0
      %680 = vst [vmem:[#allocation5 + $0x60] sm:$0x1] 0.0
      %681 = vst [vmem:[#allocation5 + $0x70] sm:$0x1] 0.0
      %682 = vst [vmem:[#allocation5 + $0x80] sm:$0x1] 0.0
      %v683 = vld [vmem:[%s495] sm:$0xff]
      %v684 = vld [vmem:[%s495 + $0x8] sm:$0xff]
      %v685 = vld [vmem:[%s495 + $0x10] sm:$0xff]
      %v686 = vld [vmem:[%s495 + $0x18] sm:$0xff]
      %v687 = vld [vmem:[%s495 + $0x20] sm:$0xff]
      %v688 = vld [vmem:[%s495 + $0x28] sm:$0xff]
      %v689 = vld [vmem:[%s495 + $0x30] sm:$0xff]
      %v690 = vld [vmem:[%s495 + $0x38] sm:$0xff]
      %v691 = vmul.f32 %v683, %v527
      %v692 = vmul.f32 %v684, %v527
      %v693 = vmul.f32 %v685, %v527
      %v694 = vmul.f32 %v686, %v527
      %v695 = vmul.f32 %v687, %v527
      %v696 = vmul.f32 %v688, %v527
      %v697 = vmul.f32 %v689, %v527
      %v698 = vmul.f32 %v690, %v527
      %v699 = vadd.f32 %v691, %v541
      %v700 = vadd.f32 %v692, %v541
      %v701 = vadd.f32 %v693, %v541
      %v702 = vadd.f32 %v694, %v541
      %v703 = vadd.f32 %v695, %v541
      %v704 = vadd.f32 %v696, %v541
      %v705 = vadd.f32 %v697, %v541
      %v706 = vadd.f32 %v698, %v541
      %v707 = vmax.f32 %v699, 0.0
      %v708 = vmax.f32 %v700, 0.0
      %v709 = vmax.f32 %v701, 0.0
      %v710 = vmax.f32 %v702, 0.0
      %v711 = vmax.f32 %v703, 0.0
      %v712 = vmax.f32 %v704, 0.0
      %v713 = vmax.f32 %v705, 0.0
      %v714 = vmax.f32 %v706, 0.0
      %s715 = scalar_lea.vmem [#allocation5], 16
      %716 = vst [vmem:[%s715 + $0x1] sm:$0xff] %v707
      %717 = vst [vmem:[%s715 + $0x11] sm:$0xff] %v708
      %718 = vst [vmem:[%s715 + $0x21] sm:$0xff] %v709
      %719 = vst [vmem:[%s715 + $0x31] sm:$0xff] %v710
      %720 = vst [vmem:[%s715 + $0x41] sm:$0xff] %v711
      %721 = vst [vmem:[%s715 + $0x51] sm:$0xff] %v712
      %722 = vst [vmem:[%s715 + $0x61] sm:$0xff] %v713
      %723 = vst [vmem:[%s715 + $0x71] sm:$0xff] %v714
      %v724 = vld [vmem:[#allocation5] sm:$0xff]
      %v725 = vld [vmem:[#allocation5 + $0x10] sm:$0xff]
      %v726 = vld [vmem:[#allocation5 + $0x20] sm:$0xff]
      %v727 = vld [vmem:[#allocation5 + $0x30] sm:$0xff]
      %v728 = vld [vmem:[#allocation5 + $0x40] sm:$0xff]
      %v729 = vld [vmem:[#allocation5 + $0x50] sm:$0xff]
      %v730 = vld [vmem:[#allocation5 + $0x60] sm:$0xff]
      %v731 = vld [vmem:[#allocation5 + $0x70] sm:$0xff]
      %v732 = vld [vmem:[#allocation5 + $0x80] sm:$0xff]
      %v733 = vpack.c.bf16 %v725, %v724
      %v734 = vpack.c.bf16 %v727, %v726
      %v735 = vpack.c.bf16 %v729, %v728
      %v736 = vpack.c.bf16 %v731, %v730
      %v737 = vld [vmem:[%s6] sm:$0xf]
      %v738 = vld [vmem:[%s6 + $0x4] sm:$0xf]
      %v739 = vld [vmem:[%s6 + $0x8] sm:$0xf]
      %v740 = vld [vmem:[%s6 + $0xc] sm:$0xf]
      %v741 = vld [vmem:[%s6 + $0x10] sm:$0xf]
      %v742 = vld [vmem:[%s6 + $0x14] sm:$0xf]
      %v743 = vld [vmem:[%s6 + $0x18] sm:$0xf]
      %v744 = vld [vmem:[%s6 + $0x1c] sm:$0xf]
      %v745 = vld [vmem:[%s6 + $0x20] sm:$0xf]
      %v746 = vld [vmem:[%s6 + $0x24] sm:$0xf]
      %v747 = vld [vmem:[%s6 + $0x28] sm:$0xf]
      %v748 = vld [vmem:[%s6 + $0x2c] sm:$0xf]
      %v749 = vld [vmem:[%s6 + $0x30] sm:$0xf]
      %v750 = vld [vmem:[%s6 + $0x34] sm:$0xf]
      %v751 = vld [vmem:[%s6 + $0x38] sm:$0xf]
      %v752 = vld [vmem:[%s6 + $0x3c] sm:$0xf]
      %v753 = vpack.c.bf16 %v726, %v725
      %v754 = vpack.c.bf16 %v728, %v727
      %v755 = vpack.c.bf16 %v730, %v729
      %v756 = vpack.c.bf16 %v732, %v731
      %s757 = scalar_lea.vmem %s6, 384
      %v758 = vld [vmem:[%s757] sm:$0xf]
      %v759 = vld [vmem:[%s757 + $0x4] sm:$0xf]
      %v760 = vld [vmem:[%s757 + $0x8] sm:$0xf]
      %v761 = vld [vmem:[%s757 + $0xc] sm:$0xf]
      %v762 = vld [vmem:[%s757 + $0x10] sm:$0xf]
      %v763 = vld [vmem:[%s757 + $0x14] sm:$0xf]
      %v764 = vld [vmem:[%s757 + $0x18] sm:$0xf]
      %v765 = vld [vmem:[%s757 + $0x1c] sm:$0xf]
      %v766 = vld [vmem:[%s757 + $0x20] sm:$0xf]
      %v767 = vld [vmem:[%s757 + $0x24] sm:$0xf]
      %v768 = vld [vmem:[%s757 + $0x28] sm:$0xf]
      %v769 = vld [vmem:[%s757 + $0x2c] sm:$0xf]
      %v770 = vld [vmem:[%s757 + $0x30] sm:$0xf]
      %v771 = vld [vmem:[%s757 + $0x34] sm:$0xf]
      %v772 = vld [vmem:[%s757 + $0x38] sm:$0xf]
      %v773 = vld [vmem:[%s757 + $0x3c] sm:$0xf]
      %v790 = vunpack.c.l.b16 %v758
      %v791 = vunpack.c.l.b16 %v759
      %v792 = vunpack.c.l.b16 %v760
      %v793 = vunpack.c.l.b16 %v761
      %v794 = vunpack.c.l.b16 %v762
      %v795 = vunpack.c.l.b16 %v763
      %v796 = vunpack.c.l.b16 %v764
      %v797 = vunpack.c.l.b16 %v765
      %v798 = vunpack.c.l.b16 %v766
      %v799 = vunpack.c.l.b16 %v767
      %v800 = vunpack.c.l.b16 %v768
      %v801 = vunpack.c.l.b16 %v769
      %v802 = vunpack.c.l.b16 %v770
      %v803 = vunpack.c.l.b16 %v771
      %v804 = vunpack.c.l.b16 %v772
      %v805 = vunpack.c.l.b16 %v773
      %v806 = vpack.c.b16 %v791, %v790
      %v807 = vpack.c.b16 %v793, %v792
      %v808 = vpack.c.b16 %v795, %v794
      %v809 = vpack.c.b16 %v797, %v796
      %v810 = vpack.c.b16 %v799, %v798
      %v811 = vpack.c.b16 %v801, %v800
      %v812 = vpack.c.b16 %v803, %v802
      %v813 = vpack.c.b16 %v805, %v804
      %822 = vmatprep.subr.bf16.mxu0 0
      %823 = vmatpush1.bf16.msra.mxu0 %v813
      %824 = vmatprep.subr.bf16.mxu0 0
      %825 = vmatpush1.bf16.msra.mxu0 %v812
      %826 = vmatprep.subr.bf16.mxu0 0
      %827 = vmatpush1.bf16.msra.mxu0 %v811
      %828 = vmatprep.subr.bf16.mxu0 0
      %829 = vmatpush1.bf16.msra.mxu0 %v810
      %830 = vmatprep.subr.bf16.mxu0 0
      %831 = vmatpush1.bf16.msra.mxu0 %v809
      %832 = vmatprep.subr.bf16.mxu0 0
      %833 = vmatpush1.bf16.msra.mxu0 %v808
      %834 = vmatprep.subr.bf16.mxu0 0
      %835 = vmatpush1.bf16.msra.mxu0 %v807
      %836 = vmatprep.subr.bf16.mxu0 0
      %837 = vmatpush1.bf16.msra.mxu0 %v806
      %838 = vmatprep.subr.bf16.mxu0 0
      %839 = vmatpush2.bf16.msra.mxu0 0
      %840 = vmatprep.subr.bf16.mxu0 0
      %841 = vmatpush2.bf16.msra.mxu0 0
      %842 = vmatprep.subr.bf16.mxu0 0
      %843 = vmatpush2.bf16.msra.mxu0 0
      %844 = vmatprep.subr.bf16.mxu0 0
      %845 = vmatpush2.bf16.msra.mxu0 0
      %846 = vmatprep.subr.bf16.mxu0 0
      %847 = vmatpush2.bf16.msra.mxu0 0
      %848 = vmatprep.subr.bf16.mxu0 0
      %849 = vmatpush2.bf16.msra.mxu0 0
      %850 = vmatprep.subr.bf16.mxu0 0
      %851 = vmatpush2.bf16.msra.mxu0 0
      %852 = vmatprep.subr.bf16.mxu0 0
      %853 = vmatpush2.bf16.msra.mxu0 0
      %854 = vmatprep.mubr.bf16.mxu0 0
      %855 = vmatmul.mubr.bf16.gmra.mxu0 %v753
      %v856 = vpop.f32.mrf.mxu0
      %v857 = vadd.f32 0.0, %v856
      %v858 = vpop.f32.mrf.mxu0
      %v859 = vpop.f32.mrf.mxu0
      %v860 = vadd.f32 0.0, %v859
      %v861 = vpop.f32.mrf.mxu0
      %862 = vmatprep.mubr.bf16.mxu0 0
      %863 = vmatmul.mubr.bf16.gmra.mxu0 %v754
      %v864 = vpop.f32.mrf.mxu0
      %v865 = vadd.f32 0.0, %v864
      %v866 = vpop.f32.mrf.mxu0
      %v867 = vpop.f32.mrf.mxu0
      %v868 = vadd.f32 0.0, %v867
      %v869 = vpop.f32.mrf.mxu0
      %870 = vmatprep.mubr.bf16.mxu0 0
      %871 = vmatmul.mubr.bf16.gmra.mxu0 %v755
      %v872 = vpop.f32.mrf.mxu0
      %v873 = vadd.f32 0.0, %v872
      %v874 = vpop.f32.mrf.mxu0
      %v875 = vpop.f32.mrf.mxu0
      %v876 = vadd.f32 0.0, %v875
      %v877 = vpop.f32.mrf.mxu0
      %878 = vmatprep.mubr.bf16.mxu0 0
      %879 = vmatmul.mubr.bf16.gmra.mxu0 %v756
      %v880 = vpop.f32.mrf.mxu0
      %v881 = vadd.f32 0.0, %v880
      %v882 = vpop.f32.mrf.mxu0
      %v883 = vpop.f32.mrf.mxu0
      %v884 = vadd.f32 0.0, %v883
      %v885 = vpop.f32.mrf.mxu0
      %886 = vdwg.mxu0
      %v903 = vunpack.c.l.b16 %v737
      %v904 = vunpack.c.l.b16 %v738
      %v905 = vunpack.c.l.b16 %v739
      %v906 = vunpack.c.l.b16 %v740
      %v907 = vunpack.c.l.b16 %v741
      %v908 = vunpack.c.l.b16 %v742
      %v909 = vunpack.c.l.b16 %v743
      %v910 = vunpack.c.l.b16 %v744
      %v911 = vunpack.c.l.b16 %v745
      %v912 = vunpack.c.l.b16 %v746
      %v913 = vunpack.c.l.b16 %v747
      %v914 = vunpack.c.l.b16 %v748
      %v915 = vunpack.c.l.b16 %v749
      %v916 = vunpack.c.l.b16 %v750
      %v917 = vunpack.c.l.b16 %v751
      %v918 = vunpack.c.l.b16 %v752
      %v919 = vpack.c.b16 %v904, %v903
      %v920 = vpack.c.b16 %v906, %v905
      %v921 = vpack.c.b16 %v908, %v907
      %v922 = vpack.c.b16 %v910, %v909
      %v923 = vpack.c.b16 %v912, %v911
      %v924 = vpack.c.b16 %v914, %v913
      %v925 = vpack.c.b16 %v916, %v915
      %v926 = vpack.c.b16 %v918, %v917
      %935 = vmatprep.subr.bf16.mxu0 0
      %936 = vmatpush1.bf16.msra.mxu0 %v926
      %937 = vmatprep.subr.bf16.mxu0 0
      %938 = vmatpush1.bf16.msra.mxu0 %v925
      %939 = vmatprep.subr.bf16.mxu0 0
      %940 = vmatpush1.bf16.msra.mxu0 %v924
      %941 = vmatprep.subr.bf16.mxu0 0
      %942 = vmatpush1.bf16.msra.mxu0 %v923
      %943 = vmatprep.subr.bf16.mxu0 0
      %944 = vmatpush1.bf16.msra.mxu0 %v922
      %945 = vmatprep.subr.bf16.mxu0 0
      %946 = vmatpush1.bf16.msra.mxu0 %v921
      %947 = vmatprep.subr.bf16.mxu0 0
      %948 = vmatpush1.bf16.msra.mxu0 %v920
      %949 = vmatprep.subr.bf16.mxu0 0
      %950 = vmatpush1.bf16.msra.mxu0 %v919
      %951 = vmatprep.subr.bf16.mxu0 0
      %952 = vmatpush2.bf16.msra.mxu0 0
      %953 = vmatprep.subr.bf16.mxu0 0
      %954 = vmatpush2.bf16.msra.mxu0 0
      %955 = vmatprep.subr.bf16.mxu0 0
      %956 = vmatpush2.bf16.msra.mxu0 0
      %957 = vmatprep.subr.bf16.mxu0 0
      %958 = vmatpush2.bf16.msra.mxu0 0
      %959 = vmatprep.subr.bf16.mxu0 0
      %960 = vmatpush2.bf16.msra.mxu0 0
      %961 = vmatprep.subr.bf16.mxu0 0
      %962 = vmatpush2.bf16.msra.mxu0 0
      %963 = vmatprep.subr.bf16.mxu0 0
      %964 = vmatpush2.bf16.msra.mxu0 0
      %965 = vmatprep.subr.bf16.mxu0 0
      %966 = vmatpush2.bf16.msra.mxu0 0
      %967 = vmatprep.mubr.bf16.mxu0 0
      %968 = vmatmul.mubr.bf16.gmra.mxu0 %v733
      %v969 = vpop.f32.mrf.mxu0
      %v970 = vadd.f32 %v857, %v969
      %v971 = vpop.f32.mrf.mxu0
      %v972 = vpop.f32.mrf.mxu0
      %v973 = vadd.f32 %v860, %v972
      %v974 = vpop.f32.mrf.mxu0
      %975 = vmatprep.mubr.bf16.mxu0 0
      %976 = vmatmul.mubr.bf16.gmra.mxu0 %v734
      %v977 = vpop.f32.mrf.mxu0
      %v978 = vadd.f32 %v865, %v977
      %v979 = vpop.f32.mrf.mxu0
      %v980 = vpop.f32.mrf.mxu0
      %v981 = vadd.f32 %v868, %v980
      %v982 = vpop.f32.mrf.mxu0
      %983 = vmatprep.mubr.bf16.mxu0 0
      %984 = vmatmul.mubr.bf16.gmra.mxu0 %v735
      %v985 = vpop.f32.mrf.mxu0
      %v986 = vadd.f32 %v873, %v985
      %v987 = vpop.f32.mrf.mxu0
      %v988 = vpop.f32.mrf.mxu0
      %v989 = vadd.f32 %v876, %v988
      %v990 = vpop.f32.mrf.mxu0
      %991 = vmatprep.mubr.bf16.mxu0 0
      %992 = vmatmul.mubr.bf16.gmra.mxu0 %v736
      %v993 = vpop.f32.mrf.mxu0
      %v994 = vadd.f32 %v881, %v993
      %v995 = vpop.f32.mrf.mxu0
      %v996 = vpop.f32.mrf.mxu0
      %v997 = vadd.f32 %v884, %v996
      %v998 = vpop.f32.mrf.mxu0
      %999 = vdwg.mxu0
      %v1000 = vld [vmem:[#allocation5 + $0x1] sm:$0xff]
      %v1001 = vld [vmem:[#allocation5 + $0x11] sm:$0xff]
      %v1002 = vld [vmem:[#allocation5 + $0x21] sm:$0xff]
      %v1003 = vld [vmem:[#allocation5 + $0x31] sm:$0xff]
      %v1004 = vld [vmem:[#allocation5 + $0x41] sm:$0xff]
      %v1005 = vld [vmem:[#allocation5 + $0x51] sm:$0xff]
      %v1006 = vld [vmem:[#allocation5 + $0x61] sm:$0xff]
      %v1007 = vld [vmem:[#allocation5 + $0x71] sm:$0xff]
      %v1008 = vld [vmem:[#allocation5 + $0x81] sm:$0xff]
      %v1009 = vpack.c.bf16 %v1001, %v1000
      %v1010 = vpack.c.bf16 %v1003, %v1002
      %v1011 = vpack.c.bf16 %v1005, %v1004
      %v1012 = vpack.c.bf16 %v1007, %v1006
      %s1013 = scalar_lea.vmem %s6, 128
      %v1014 = vld [vmem:[%s1013] sm:$0xf]
      %v1015 = vld [vmem:[%s1013 + $0x4] sm:$0xf]
      %v1016 = vld [vmem:[%s1013 + $0x8] sm:$0xf]
      %v1017 = vld [vmem:[%s1013 + $0xc] sm:$0xf]
      %v1018 = vld [vmem:[%s1013 + $0x10] sm:$0xf]
      %v1019 = vld [vmem:[%s1013 + $0x14] sm:$0xf]
      %v1020 = vld [vmem:[%s1013 + $0x18] sm:$0xf]
      %v1021 = vld [vmem:[%s1013 + $0x1c] sm:$0xf]
      %v1022 = vld [vmem:[%s1013 + $0x20] sm:$0xf]
      %v1023 = vld [vmem:[%s1013 + $0x24] sm:$0xf]
      %v1024 = vld [vmem:[%s1013 + $0x28] sm:$0xf]
      %v1025 = vld [vmem:[%s1013 + $0x2c] sm:$0xf]
      %v1026 = vld [vmem:[%s1013 + $0x30] sm:$0xf]
      %v1027 = vld [vmem:[%s1013 + $0x34] sm:$0xf]
      %v1028 = vld [vmem:[%s1013 + $0x38] sm:$0xf]
      %v1029 = vld [vmem:[%s1013 + $0x3c] sm:$0xf]
      %v1046 = vunpack.c.l.b16 %v1014
      %v1047 = vunpack.c.l.b16 %v1015
      %v1048 = vunpack.c.l.b16 %v1016
      %v1049 = vunpack.c.l.b16 %v1017
      %v1050 = vunpack.c.l.b16 %v1018
      %v1051 = vunpack.c.l.b16 %v1019
      %v1052 = vunpack.c.l.b16 %v1020
      %v1053 = vunpack.c.l.b16 %v1021
      %v1054 = vunpack.c.l.b16 %v1022
      %v1055 = vunpack.c.l.b16 %v1023
      %v1056 = vunpack.c.l.b16 %v1024
      %v1057 = vunpack.c.l.b16 %v1025
      %v1058 = vunpack.c.l.b16 %v1026
      %v1059 = vunpack.c.l.b16 %v1027
      %v1060 = vunpack.c.l.b16 %v1028
      %v1061 = vunpack.c.l.b16 %v1029
      %v1062 = vpack.c.b16 %v1047, %v1046
      %v1063 = vpack.c.b16 %v1049, %v1048
      %v1064 = vpack.c.b16 %v1051, %v1050
      %v1065 = vpack.c.b16 %v1053, %v1052
      %v1066 = vpack.c.b16 %v1055, %v1054
      %v1067 = vpack.c.b16 %v1057, %v1056
      %v1068 = vpack.c.b16 %v1059, %v1058
      %v1069 = vpack.c.b16 %v1061, %v1060
      %1078 = vmatprep.subr.bf16.mxu0 0
      %1079 = vmatpush1.bf16.msra.mxu0 %v1069
      %1080 = vmatprep.subr.bf16.mxu0 0
      %1081 = vmatpush1.bf16.msra.mxu0 %v1068
      %1082 = vmatprep.subr.bf16.mxu0 0
      %1083 = vmatpush1.bf16.msra.mxu0 %v1067
      %1084 = vmatprep.subr.bf16.mxu0 0
      %1085 = vmatpush1.bf16.msra.mxu0 %v1066
      %1086 = vmatprep.subr.bf16.mxu0 0
      %1087 = vmatpush1.bf16.msra.mxu0 %v1065
      %1088 = vmatprep.subr.bf16.mxu0 0
      %1089 = vmatpush1.bf16.msra.mxu0 %v1064
      %1090 = vmatprep.subr.bf16.mxu0 0
      %1091 = vmatpush1.bf16.msra.mxu0 %v1063
      %1092 = vmatprep.subr.bf16.mxu0 0
      %1093 = vmatpush1.bf16.msra.mxu0 %v1062
      %1094 = vmatprep.subr.bf16.mxu0 0
      %1095 = vmatpush2.bf16.msra.mxu0 0
      %1096 = vmatprep.subr.bf16.mxu0 0
      %1097 = vmatpush2.bf16.msra.mxu0 0
      %1098 = vmatprep.subr.bf16.mxu0 0
      %1099 = vmatpush2.bf16.msra.mxu0 0
      %1100 = vmatprep.subr.bf16.mxu0 0
      %1101 = vmatpush2.bf16.msra.mxu0 0
      %1102 = vmatprep.subr.bf16.mxu0 0
      %1103 = vmatpush2.bf16.msra.mxu0 0
      %1104 = vmatprep.subr.bf16.mxu0 0
      %1105 = vmatpush2.bf16.msra.mxu0 0
      %1106 = vmatprep.subr.bf16.mxu0 0
      %1107 = vmatpush2.bf16.msra.mxu0 0
      %1108 = vmatprep.subr.bf16.mxu0 0
      %1109 = vmatpush2.bf16.msra.mxu0 0
      %1110 = vmatprep.mubr.bf16.mxu0 0
      %1111 = vmatmul.mubr.bf16.gmra.mxu0 %v1009
      %v1112 = vpop.f32.mrf.mxu0
      %v1113 = vadd.f32 0.0, %v1112
      %v1114 = vpop.f32.mrf.mxu0
      %v1115 = vpop.f32.mrf.mxu0
      %v1116 = vadd.f32 0.0, %v1115
      %v1117 = vpop.f32.mrf.mxu0
      %1118 = vmatprep.mubr.bf16.mxu0 0
      %1119 = vmatmul.mubr.bf16.gmra.mxu0 %v1010
      %v1120 = vpop.f32.mrf.mxu0
      %v1121 = vadd.f32 0.0, %v1120
      %v1122 = vpop.f32.mrf.mxu0
      %v1123 = vpop.f32.mrf.mxu0
      %v1124 = vadd.f32 0.0, %v1123
      %v1125 = vpop.f32.mrf.mxu0
      %1126 = vmatprep.mubr.bf16.mxu0 0
      %1127 = vmatmul.mubr.bf16.gmra.mxu0 %v1011
      %v1128 = vpop.f32.mrf.mxu0
      %v1129 = vadd.f32 0.0, %v1128
      %v1130 = vpop.f32.mrf.mxu0
      %v1131 = vpop.f32.mrf.mxu0
      %v1132 = vadd.f32 0.0, %v1131
      %v1133 = vpop.f32.mrf.mxu0
      %1134 = vmatprep.mubr.bf16.mxu0 0
      %1135 = vmatmul.mubr.bf16.gmra.mxu0 %v1012
      %v1136 = vpop.f32.mrf.mxu0
      %v1137 = vadd.f32 0.0, %v1136
      %v1138 = vpop.f32.mrf.mxu0
      %v1139 = vpop.f32.mrf.mxu0
      %v1140 = vadd.f32 0.0, %v1139
      %v1141 = vpop.f32.mrf.mxu0
      %1142 = vdwg.mxu0
      %v1143 = vadd.f32 %v970, %v1113
      %v1144 = vadd.f32 %v973, %v1116
      %v1145 = vadd.f32 %v978, %v1121
      %v1146 = vadd.f32 %v981, %v1124
      %v1147 = vadd.f32 %v986, %v1129
      %v1148 = vadd.f32 %v989, %v1132
      %v1149 = vadd.f32 %v994, %v1137
      %v1150 = vadd.f32 %v997, %v1140
      %v1151 = vpack.c.bf16 %v1002, %v1001
      %v1152 = vpack.c.bf16 %v1004, %v1003
      %v1153 = vpack.c.bf16 %v1006, %v1005
      %v1154 = vpack.c.bf16 %v1008, %v1007
      %s1155 = scalar_lea.vmem %s6, 512
      %v1156 = vld [vmem:[%s1155] sm:$0xf]
      %v1157 = vld [vmem:[%s1155 + $0x4] sm:$0xf]
      %v1158 = vld [vmem:[%s1155 + $0x8] sm:$0xf]
      %v1159 = vld [vmem:[%s1155 + $0xc] sm:$0xf]
      %v1160 = vld [vmem:[%s1155 + $0x10] sm:$0xf]
      %v1161 = vld [vmem:[%s1155 + $0x14] sm:$0xf]
      %v1162 = vld [vmem:[%s1155 + $0x18] sm:$0xf]
      %v1163 = vld [vmem:[%s1155 + $0x1c] sm:$0xf]
      %v1164 = vld [vmem:[%s1155 + $0x20] sm:$0xf]
      %v1165 = vld [vmem:[%s1155 + $0x24] sm:$0xf]
      %v1166 = vld [vmem:[%s1155 + $0x28] sm:$0xf]
      %v1167 = vld [vmem:[%s1155 + $0x2c] sm:$0xf]
      %v1168 = vld [vmem:[%s1155 + $0x30] sm:$0xf]
      %v1169 = vld [vmem:[%s1155 + $0x34] sm:$0xf]
      %v1170 = vld [vmem:[%s1155 + $0x38] sm:$0xf]
      %v1171 = vld [vmem:[%s1155 + $0x3c] sm:$0xf]
      %v1188 = vunpack.c.l.b16 %v1156
      %v1189 = vunpack.c.l.b16 %v1157
      %v1190 = vunpack.c.l.b16 %v1158
      %v1191 = vunpack.c.l.b16 %v1159
      %v1192 = vunpack.c.l.b16 %v1160
      %v1193 = vunpack.c.l.b16 %v1161
      %v1194 = vunpack.c.l.b16 %v1162
      %v1195 = vunpack.c.l.b16 %v1163
      %v1196 = vunpack.c.l.b16 %v1164
      %v1197 = vunpack.c.l.b16 %v1165
      %v1198 = vunpack.c.l.b16 %v1166
      %v1199 = vunpack.c.l.b16 %v1167
      %v1200 = vunpack.c.l.b16 %v1168
      %v1201 = vunpack.c.l.b16 %v1169
      %v1202 = vunpack.c.l.b16 %v1170
      %v1203 = vunpack.c.l.b16 %v1171
      %v1204 = vpack.c.b16 %v1189, %v1188
      %v1205 = vpack.c.b16 %v1191, %v1190
      %v1206 = vpack.c.b16 %v1193, %v1192
      %v1207 = vpack.c.b16 %v1195, %v1194
      %v1208 = vpack.c.b16 %v1197, %v1196
      %v1209 = vpack.c.b16 %v1199, %v1198
      %v1210 = vpack.c.b16 %v1201, %v1200
      %v1211 = vpack.c.b16 %v1203, %v1202
      %1220 = vmatprep.subr.bf16.mxu0 0
      %1221 = vmatpush1.bf16.msra.mxu0 %v1211
      %1222 = vmatprep.subr.bf16.mxu0 0
      %1223 = vmatpush1.bf16.msra.mxu0 %v1210
      %1224 = vmatprep.subr.bf16.mxu0 0
      %1225 = vmatpush1.bf16.msra.mxu0 %v1209
      %1226 = vmatprep.subr.bf16.mxu0 0
      %1227 = vmatpush1.bf16.msra.mxu0 %v1208
      %1228 = vmatprep.subr.bf16.mxu0 0
      %1229 = vmatpush1.bf16.msra.mxu0 %v1207
      %1230 = vmatprep.subr.bf16.mxu0 0
      %1231 = vmatpush1.bf16.msra.mxu0 %v1206
      %1232 = vmatprep.subr.bf16.mxu0 0
      %1233 = vmatpush1.bf16.msra.mxu0 %v1205
      %1234 = vmatprep.subr.bf16.mxu0 0
      %1235 = vmatpush1.bf16.msra.mxu0 %v1204
      %1236 = vmatprep.subr.bf16.mxu0 0
      %1237 = vmatpush2.bf16.msra.mxu0 0
      %1238 = vmatprep.subr.bf16.mxu0 0
      %1239 = vmatpush2.bf16.msra.mxu0 0
      %1240 = vmatprep.subr.bf16.mxu0 0
      %1241 = vmatpush2.bf16.msra.mxu0 0
      %1242 = vmatprep.subr.bf16.mxu0 0
      %1243 = vmatpush2.bf16.msra.mxu0 0
      %1244 = vmatprep.subr.bf16.mxu0 0
      %1245 = vmatpush2.bf16.msra.mxu0 0
      %1246 = vmatprep.subr.bf16.mxu0 0
      %1247 = vmatpush2.bf16.msra.mxu0 0
      %1248 = vmatprep.subr.bf16.mxu0 0
      %1249 = vmatpush2.bf16.msra.mxu0 0
      %1250 = vmatprep.subr.bf16.mxu0 0
      %1251 = vmatpush2.bf16.msra.mxu0 0
      %1252 = vmatprep.mubr.bf16.mxu0 0
      %1253 = vmatmul.mubr.bf16.gmra.mxu0 %v1151
      %v1254 = vpop.f32.mrf.mxu0
      %v1255 = vadd.f32 0.0, %v1254
      %v1256 = vpop.f32.mrf.mxu0
      %v1257 = vpop.f32.mrf.mxu0
      %v1258 = vadd.f32 0.0, %v1257
      %v1259 = vpop.f32.mrf.mxu0
      %1260 = vmatprep.mubr.bf16.mxu0 0
      %1261 = vmatmul.mubr.bf16.gmra.mxu0 %v1152
      %v1262 = vpop.f32.mrf.mxu0
      %v1263 = vadd.f32 0.0, %v1262
      %v1264 = vpop.f32.mrf.mxu0
      %v1265 = vpop.f32.mrf.mxu0
      %v1266 = vadd.f32 0.0, %v1265
      %v1267 = vpop.f32.mrf.mxu0
      %1268 = vmatprep.mubr.bf16.mxu0 0
      %1269 = vmatmul.mubr.bf16.gmra.mxu0 %v1153
      %v1270 = vpop.f32.mrf.mxu0
      %v1271 = vadd.f32 0.0, %v1270
      %v1272 = vpop.f32.mrf.mxu0
      %v1273 = vpop.f32.mrf.mxu0
      %v1274 = vadd.f32 0.0, %v1273
      %v1275 = vpop.f32.mrf.mxu0
      %1276 = vmatprep.mubr.bf16.mxu0 0
      %1277 = vmatmul.mubr.bf16.gmra.mxu0 %v1154
      %v1278 = vpop.f32.mrf.mxu0
      %v1279 = vadd.f32 0.0, %v1278
      %v1280 = vpop.f32.mrf.mxu0
      %v1281 = vpop.f32.mrf.mxu0
      %v1282 = vadd.f32 0.0, %v1281
      %v1283 = vpop.f32.mrf.mxu0
      %1284 = vdwg.mxu0
      %v1285 = vadd.f32 %v1143, %v1255
      %v1286 = vadd.f32 %v1144, %v1258
      %v1287 = vadd.f32 %v1145, %v1263
      %v1288 = vadd.f32 %v1146, %v1266
      %v1289 = vadd.f32 %v1147, %v1271
      %v1290 = vadd.f32 %v1148, %v1274
      %v1291 = vadd.f32 %v1149, %v1279
      %v1292 = vadd.f32 %v1150, %v1282
      %v1293 = vld [vmem:[#allocation4 + $0x1] sm:$0xff]
      %v1294 = vld [vmem:[#allocation4 + $0x11] sm:$0xff]
      %v1295 = vld [vmem:[#allocation4 + $0x21] sm:$0xff]
      %v1296 = vld [vmem:[#allocation4 + $0x31] sm:$0xff]
      %v1297 = vld [vmem:[#allocation4 + $0x41] sm:$0xff]
      %v1298 = vld [vmem:[#allocation4 + $0x51] sm:$0xff]
      %v1299 = vld [vmem:[#allocation4 + $0x61] sm:$0xff]
      %v1300 = vld [vmem:[#allocation4 + $0x71] sm:$0xff]
      %v1301 = vld [vmem:[#allocation4 + $0x81] sm:$0xff]
      %v1302 = vpack.c.bf16 %v1294, %v1293
      %v1303 = vpack.c.bf16 %v1296, %v1295
      %v1304 = vpack.c.bf16 %v1298, %v1297
      %v1305 = vpack.c.bf16 %v1300, %v1299
      %s1306 = scalar_lea.vmem %s6, 64
      %v1307 = vld [vmem:[%s1306] sm:$0xf]
      %v1308 = vld [vmem:[%s1306 + $0x4] sm:$0xf]
      %v1309 = vld [vmem:[%s1306 + $0x8] sm:$0xf]
      %v1310 = vld [vmem:[%s1306 + $0xc] sm:$0xf]
      %v1311 = vld [vmem:[%s1306 + $0x10] sm:$0xf]
      %v1312 = vld [vmem:[%s1306 + $0x14] sm:$0xf]
      %v1313 = vld [vmem:[%s1306 + $0x18] sm:$0xf]
      %v1314 = vld [vmem:[%s1306 + $0x1c] sm:$0xf]
      %v1315 = vld [vmem:[%s1306 + $0x20] sm:$0xf]
      %v1316 = vld [vmem:[%s1306 + $0x24] sm:$0xf]
      %v1317 = vld [vmem:[%s1306 + $0x28] sm:$0xf]
      %v1318 = vld [vmem:[%s1306 + $0x2c] sm:$0xf]
      %v1319 = vld [vmem:[%s1306 + $0x30] sm:$0xf]
      %v1320 = vld [vmem:[%s1306 + $0x34] sm:$0xf]
      %v1321 = vld [vmem:[%s1306 + $0x38] sm:$0xf]
      %v1322 = vld [vmem:[%s1306 + $0x3c] sm:$0xf]
      %v1339 = vunpack.c.l.b16 %v1307
      %v1340 = vunpack.c.l.b16 %v1308
      %v1341 = vunpack.c.l.b16 %v1309
      %v1342 = vunpack.c.l.b16 %v1310
      %v1343 = vunpack.c.l.b16 %v1311
      %v1344 = vunpack.c.l.b16 %v1312
      %v1345 = vunpack.c.l.b16 %v1313
      %v1346 = vunpack.c.l.b16 %v1314
      %v1347 = vunpack.c.l.b16 %v1315
      %v1348 = vunpack.c.l.b16 %v1316
      %v1349 = vunpack.c.l.b16 %v1317
      %v1350 = vunpack.c.l.b16 %v1318
      %v1351 = vunpack.c.l.b16 %v1319
      %v1352 = vunpack.c.l.b16 %v1320
      %v1353 = vunpack.c.l.b16 %v1321
      %v1354 = vunpack.c.l.b16 %v1322
      %v1355 = vpack.c.b16 %v1340, %v1339
      %v1356 = vpack.c.b16 %v1342, %v1341
      %v1357 = vpack.c.b16 %v1344, %v1343
      %v1358 = vpack.c.b16 %v1346, %v1345
      %v1359 = vpack.c.b16 %v1348, %v1347
      %v1360 = vpack.c.b16 %v1350, %v1349
      %v1361 = vpack.c.b16 %v1352, %v1351
      %v1362 = vpack.c.b16 %v1354, %v1353
      %1371 = vmatprep.subr.bf16.mxu0 0
      %1372 = vmatpush1.bf16.msra.mxu0 %v1362
      %1373 = vmatprep.subr.bf16.mxu0 0
      %1374 = vmatpush1.bf16.msra.mxu0 %v1361
      %1375 = vmatprep.subr.bf16.mxu0 0
      %1376 = vmatpush1.bf16.msra.mxu0 %v1360
      %1377 = vmatprep.subr.bf16.mxu0 0
      %1378 = vmatpush1.bf16.msra.mxu0 %v1359
      %1379 = vmatprep.subr.bf16.mxu0 0
      %1380 = vmatpush1.bf16.msra.mxu0 %v1358
      %1381 = vmatprep.subr.bf16.mxu0 0
      %1382 = vmatpush1.bf16.msra.mxu0 %v1357
      %1383 = vmatprep.subr.bf16.mxu0 0
      %1384 = vmatpush1.bf16.msra.mxu0 %v1356
      %1385 = vmatprep.subr.bf16.mxu0 0
      %1386 = vmatpush1.bf16.msra.mxu0 %v1355
      %1387 = vmatprep.subr.bf16.mxu0 0
      %1388 = vmatpush2.bf16.msra.mxu0 0
      %1389 = vmatprep.subr.bf16.mxu0 0
      %1390 = vmatpush2.bf16.msra.mxu0 0
      %1391 = vmatprep.subr.bf16.mxu0 0
      %1392 = vmatpush2.bf16.msra.mxu0 0
      %1393 = vmatprep.subr.bf16.mxu0 0
      %1394 = vmatpush2.bf16.msra.mxu0 0
      %1395 = vmatprep.subr.bf16.mxu0 0
      %1396 = vmatpush2.bf16.msra.mxu0 0
      %1397 = vmatprep.subr.bf16.mxu0 0
      %1398 = vmatpush2.bf16.msra.mxu0 0
      %1399 = vmatprep.subr.bf16.mxu0 0
      %1400 = vmatpush2.bf16.msra.mxu0 0
      %1401 = vmatprep.subr.bf16.mxu0 0
      %1402 = vmatpush2.bf16.msra.mxu0 0
      %1403 = vmatprep.mubr.bf16.mxu0 0
      %1404 = vmatmul.mubr.bf16.gmra.mxu0 %v1302
      %v1405 = vpop.f32.mrf.mxu0
      %v1406 = vadd.f32 0.0, %v1405
      %v1407 = vpop.f32.mrf.mxu0
      %v1408 = vpop.f32.mrf.mxu0
      %v1409 = vadd.f32 0.0, %v1408
      %v1410 = vpop.f32.mrf.mxu0
      %1411 = vmatprep.mubr.bf16.mxu0 0
      %1412 = vmatmul.mubr.bf16.gmra.mxu0 %v1303
      %v1413 = vpop.f32.mrf.mxu0
      %v1414 = vadd.f32 0.0, %v1413
      %v1415 = vpop.f32.mrf.mxu0
      %v1416 = vpop.f32.mrf.mxu0
      %v1417 = vadd.f32 0.0, %v1416
      %v1418 = vpop.f32.mrf.mxu0
      %1419 = vmatprep.mubr.bf16.mxu0 0
      %1420 = vmatmul.mubr.bf16.gmra.mxu0 %v1304
      %v1421 = vpop.f32.mrf.mxu0
      %v1422 = vadd.f32 0.0, %v1421
      %v1423 = vpop.f32.mrf.mxu0
      %v1424 = vpop.f32.mrf.mxu0
      %v1425 = vadd.f32 0.0, %v1424
      %v1426 = vpop.f32.mrf.mxu0
      %1427 = vmatprep.mubr.bf16.mxu0 0
      %1428 = vmatmul.mubr.bf16.gmra.mxu0 %v1305
      %v1429 = vpop.f32.mrf.mxu0
      %v1430 = vadd.f32 0.0, %v1429
      %v1431 = vpop.f32.mrf.mxu0
      %v1432 = vpop.f32.mrf.mxu0
      %v1433 = vadd.f32 0.0, %v1432
      %v1434 = vpop.f32.mrf.mxu0
      %1435 = vdwg.mxu0
      %v1436 = vadd.f32 %v1285, %v1406
      %v1437 = vadd.f32 %v1286, %v1409
      %v1438 = vadd.f32 %v1287, %v1414
      %v1439 = vadd.f32 %v1288, %v1417
      %v1440 = vadd.f32 %v1289, %v1422
      %v1441 = vadd.f32 %v1290, %v1425
      %v1442 = vadd.f32 %v1291, %v1430
      %v1443 = vadd.f32 %v1292, %v1433
      %v1444 = vpack.c.bf16 %v1295, %v1294
      %v1445 = vpack.c.bf16 %v1297, %v1296
      %v1446 = vpack.c.bf16 %v1299, %v1298
      %v1447 = vpack.c.bf16 %v1301, %v1300
      %s1448 = scalar_lea.vmem %s6, 448
      %v1449 = vld [vmem:[%s1448] sm:$0xf]
      %v1450 = vld [vmem:[%s1448 + $0x4] sm:$0xf]
      %v1451 = vld [vmem:[%s1448 + $0x8] sm:$0xf]
      %v1452 = vld [vmem:[%s1448 + $0xc] sm:$0xf]
      %v1453 = vld [vmem:[%s1448 + $0x10] sm:$0xf]
      %v1454 = vld [vmem:[%s1448 + $0x14] sm:$0xf]
      %v1455 = vld [vmem:[%s1448 + $0x18] sm:$0xf]
      %v1456 = vld [vmem:[%s1448 + $0x1c] sm:$0xf]
      %v1457 = vld [vmem:[%s1448 + $0x20] sm:$0xf]
      %v1458 = vld [vmem:[%s1448 + $0x24] sm:$0xf]
      %v1459 = vld [vmem:[%s1448 + $0x28] sm:$0xf]
      %v1460 = vld [vmem:[%s1448 + $0x2c] sm:$0xf]
      %v1461 = vld [vmem:[%s1448 + $0x30] sm:$0xf]
      %v1462 = vld [vmem:[%s1448 + $0x34] sm:$0xf]
      %v1463 = vld [vmem:[%s1448 + $0x38] sm:$0xf]
      %v1464 = vld [vmem:[%s1448 + $0x3c] sm:$0xf]
      %v1481 = vunpack.c.l.b16 %v1449
      %v1482 = vunpack.c.l.b16 %v1450
      %v1483 = vunpack.c.l.b16 %v1451
      %v1484 = vunpack.c.l.b16 %v1452
      %v1485 = vunpack.c.l.b16 %v1453
      %v1486 = vunpack.c.l.b16 %v1454
      %v1487 = vunpack.c.l.b16 %v1455
      %v1488 = vunpack.c.l.b16 %v1456
      %v1489 = vunpack.c.l.b16 %v1457
      %v1490 = vunpack.c.l.b16 %v1458
      %v1491 = vunpack.c.l.b16 %v1459
      %v1492 = vunpack.c.l.b16 %v1460
      %v1493 = vunpack.c.l.b16 %v1461
      %v1494 = vunpack.c.l.b16 %v1462
      %v1495 = vunpack.c.l.b16 %v1463
      %v1496 = vunpack.c.l.b16 %v1464
      %v1497 = vpack.c.b16 %v1482, %v1481
      %v1498 = vpack.c.b16 %v1484, %v1483
      %v1499 = vpack.c.b16 %v1486, %v1485
      %v1500 = vpack.c.b16 %v1488, %v1487
      %v1501 = vpack.c.b16 %v1490, %v1489
      %v1502 = vpack.c.b16 %v1492, %v1491
      %v1503 = vpack.c.b16 %v1494, %v1493
      %v1504 = vpack.c.b16 %v1496, %v1495
      %1513 = vmatprep.subr.bf16.mxu0 0
      %1514 = vmatpush1.bf16.msra.mxu0 %v1504
      %1515 = vmatprep.subr.bf16.mxu0 0
      %1516 = vmatpush1.bf16.msra.mxu0 %v1503
      %1517 = vmatprep.subr.bf16.mxu0 0
      %1518 = vmatpush1.bf16.msra.mxu0 %v1502
      %1519 = vmatprep.subr.bf16.mxu0 0
      %1520 = vmatpush1.bf16.msra.mxu0 %v1501
      %1521 = vmatprep.subr.bf16.mxu0 0
      %1522 = vmatpush1.bf16.msra.mxu0 %v1500
      %1523 = vmatprep.subr.bf16.mxu0 0
      %1524 = vmatpush1.bf16.msra.mxu0 %v1499
      %1525 = vmatprep.subr.bf16.mxu0 0
      %1526 = vmatpush1.bf16.msra.mxu0 %v1498
      %1527 = vmatprep.subr.bf16.mxu0 0
      %1528 = vmatpush1.bf16.msra.mxu0 %v1497
      %1529 = vmatprep.subr.bf16.mxu0 0
      %1530 = vmatpush2.bf16.msra.mxu0 0
      %1531 = vmatprep.subr.bf16.mxu0 0
      %1532 = vmatpush2.bf16.msra.mxu0 0
      %1533 = vmatprep.subr.bf16.mxu0 0
      %1534 = vmatpush2.bf16.msra.mxu0 0
      %1535 = vmatprep.subr.bf16.mxu0 0
      %1536 = vmatpush2.bf16.msra.mxu0 0
      %1537 = vmatprep.subr.bf16.mxu0 0
      %1538 = vmatpush2.bf16.msra.mxu0 0
      %1539 = vmatprep.subr.bf16.mxu0 0
      %1540 = vmatpush2.bf16.msra.mxu0 0
      %1541 = vmatprep.subr.bf16.mxu0 0
      %1542 = vmatpush2.bf16.msra.mxu0 0
      %1543 = vmatprep.subr.bf16.mxu0 0
      %1544 = vmatpush2.bf16.msra.mxu0 0
      %1545 = vmatprep.mubr.bf16.mxu0 0
      %1546 = vmatmul.mubr.bf16.gmra.mxu0 %v1444
      %v1547 = vpop.f32.mrf.mxu0
      %v1548 = vadd.f32 0.0, %v1547
      %v1549 = vpop.f32.mrf.mxu0
      %v1550 = vpop.f32.mrf.mxu0
      %v1551 = vadd.f32 0.0, %v1550
      %v1552 = vpop.f32.mrf.mxu0
      %1553 = vmatprep.mubr.bf16.mxu0 0
      %1554 = vmatmul.mubr.bf16.gmra.mxu0 %v1445
      %v1555 = vpop.f32.mrf.mxu0
      %v1556 = vadd.f32 0.0, %v1555
      %v1557 = vpop.f32.mrf.mxu0
      %v1558 = vpop.f32.mrf.mxu0
      %v1559 = vadd.f32 0.0, %v1558
      %v1560 = vpop.f32.mrf.mxu0
      %1561 = vmatprep.mubr.bf16.mxu0 0
      %1562 = vmatmul.mubr.bf16.gmra.mxu0 %v1446
      %v1563 = vpop.f32.mrf.mxu0
      %v1564 = vadd.f32 0.0, %v1563
      %v1565 = vpop.f32.mrf.mxu0
      %v1566 = vpop.f32.mrf.mxu0
      %v1567 = vadd.f32 0.0, %v1566
      %v1568 = vpop.f32.mrf.mxu0
      %1569 = vmatprep.mubr.bf16.mxu0 0
      %1570 = vmatmul.mubr.bf16.gmra.mxu0 %v1447
      %v1571 = vpop.f32.mrf.mxu0
      %v1572 = vadd.f32 0.0, %v1571
      %v1573 = vpop.f32.mrf.mxu0
      %v1574 = vpop.f32.mrf.mxu0
      %v1575 = vadd.f32 0.0, %v1574
      %v1576 = vpop.f32.mrf.mxu0
      %1577 = vdwg.mxu0
      %v1578 = vadd.f32 %v1436, %v1548
      %v1579 = vadd.f32 %v1437, %v1551
      %v1580 = vadd.f32 %v1438, %v1556
      %v1581 = vadd.f32 %v1439, %v1559
      %v1582 = vadd.f32 %v1440, %v1564
      %v1583 = vadd.f32 %v1441, %v1567
      %v1584 = vadd.f32 %v1442, %v1572
      %v1585 = vadd.f32 %v1443, %v1575
      %v1586 = vld [vmem:[#allocation3 + $0x10] sm:$0xff]
      %v1587 = vld [vmem:[#allocation3 + $0x20] sm:$0xff]
      %v1588 = vld [vmem:[#allocation3 + $0x30] sm:$0xff]
      %v1589 = vld [vmem:[#allocation3 + $0x40] sm:$0xff]
      %v1590 = vld [vmem:[#allocation3 + $0x50] sm:$0xff]
      %v1591 = vld [vmem:[#allocation3 + $0x60] sm:$0xff]
      %v1592 = vld [vmem:[#allocation3 + $0x70] sm:$0xff]
      %v1593 = vld [vmem:[#allocation3 + $0x80] sm:$0xff]
      %v1594 = vpack.c.bf16 %v1587, %v1586
      %v1595 = vpack.c.bf16 %v1589, %v1588
      %v1596 = vpack.c.bf16 %v1591, %v1590
      %v1597 = vpack.c.bf16 %v1593, %v1592
      %s1598 = scalar_lea.vmem %s6, 192
      %v1599 = vld [vmem:[%s1598] sm:$0xf]
      %v1600 = vld [vmem:[%s1598 + $0x4] sm:$0xf]
      %v1601 = vld [vmem:[%s1598 + $0x8] sm:$0xf]
      %v1602 = vld [vmem:[%s1598 + $0xc] sm:$0xf]
      %v1603 = vld [vmem:[%s1598 + $0x10] sm:$0xf]
      %v1604 = vld [vmem:[%s1598 + $0x14] sm:$0xf]
      %v1605 = vld [vmem:[%s1598 + $0x18] sm:$0xf]
      %v1606 = vld [vmem:[%s1598 + $0x1c] sm:$0xf]
      %v1607 = vld [vmem:[%s1598 + $0x20] sm:$0xf]
      %v1608 = vld [vmem:[%s1598 + $0x24] sm:$0xf]
      %v1609 = vld [vmem:[%s1598 + $0x28] sm:$0xf]
      %v1610 = vld [vmem:[%s1598 + $0x2c] sm:$0xf]
      %v1611 = vld [vmem:[%s1598 + $0x30] sm:$0xf]
      %v1612 = vld [vmem:[%s1598 + $0x34] sm:$0xf]
      %v1613 = vld [vmem:[%s1598 + $0x38] sm:$0xf]
      %v1614 = vld [vmem:[%s1598 + $0x3c] sm:$0xf]
      %v1631 = vunpack.c.l.b16 %v1599
      %v1632 = vunpack.c.l.b16 %v1600
      %v1633 = vunpack.c.l.b16 %v1601
      %v1634 = vunpack.c.l.b16 %v1602
      %v1635 = vunpack.c.l.b16 %v1603
      %v1636 = vunpack.c.l.b16 %v1604
      %v1637 = vunpack.c.l.b16 %v1605
      %v1638 = vunpack.c.l.b16 %v1606
      %v1639 = vunpack.c.l.b16 %v1607
      %v1640 = vunpack.c.l.b16 %v1608
      %v1641 = vunpack.c.l.b16 %v1609
      %v1642 = vunpack.c.l.b16 %v1610
      %v1643 = vunpack.c.l.b16 %v1611
      %v1644 = vunpack.c.l.b16 %v1612
      %v1645 = vunpack.c.l.b16 %v1613
      %v1646 = vunpack.c.l.b16 %v1614
      %v1647 = vpack.c.b16 %v1632, %v1631
      %v1648 = vpack.c.b16 %v1634, %v1633
      %v1649 = vpack.c.b16 %v1636, %v1635
      %v1650 = vpack.c.b16 %v1638, %v1637
      %v1651 = vpack.c.b16 %v1640, %v1639
      %v1652 = vpack.c.b16 %v1642, %v1641
      %v1653 = vpack.c.b16 %v1644, %v1643
      %v1654 = vpack.c.b16 %v1646, %v1645
      %1663 = vmatprep.subr.bf16.mxu0 0
      %1664 = vmatpush1.bf16.msra.mxu0 %v1654
      %1665 = vmatprep.subr.bf16.mxu0 0
      %1666 = vmatpush1.bf16.msra.mxu0 %v1653
      %1667 = vmatprep.subr.bf16.mxu0 0
      %1668 = vmatpush1.bf16.msra.mxu0 %v1652
      %1669 = vmatprep.subr.bf16.mxu0 0
      %1670 = vmatpush1.bf16.msra.mxu0 %v1651
      %1671 = vmatprep.subr.bf16.mxu0 0
      %1672 = vmatpush1.bf16.msra.mxu0 %v1650
      %1673 = vmatprep.subr.bf16.mxu0 0
      %1674 = vmatpush1.bf16.msra.mxu0 %v1649
      %1675 = vmatprep.subr.bf16.mxu0 0
      %1676 = vmatpush1.bf16.msra.mxu0 %v1648
      %1677 = vmatprep.subr.bf16.mxu0 0
      %1678 = vmatpush1.bf16.msra.mxu0 %v1647
      %1679 = vmatprep.subr.bf16.mxu0 0
      %1680 = vmatpush2.bf16.msra.mxu0 0
      %1681 = vmatprep.subr.bf16.mxu0 0
      %1682 = vmatpush2.bf16.msra.mxu0 0
      %1683 = vmatprep.subr.bf16.mxu0 0
      %1684 = vmatpush2.bf16.msra.mxu0 0
      %1685 = vmatprep.subr.bf16.mxu0 0
      %1686 = vmatpush2.bf16.msra.mxu0 0
      %1687 = vmatprep.subr.bf16.mxu0 0
      %1688 = vmatpush2.bf16.msra.mxu0 0
      %1689 = vmatprep.subr.bf16.mxu0 0
      %1690 = vmatpush2.bf16.msra.mxu0 0
      %1691 = vmatprep.subr.bf16.mxu0 0
      %1692 = vmatpush2.bf16.msra.mxu0 0
      %1693 = vmatprep.subr.bf16.mxu0 0
      %1694 = vmatpush2.bf16.msra.mxu0 0
      %1695 = vmatprep.mubr.bf16.mxu0 0
      %1696 = vmatmul.mubr.bf16.gmra.mxu0 %v1594
      %v1697 = vpop.f32.mrf.mxu0
      %v1698 = vadd.f32 0.0, %v1697
      %v1699 = vpop.f32.mrf.mxu0
      %v1700 = vpop.f32.mrf.mxu0
      %v1701 = vadd.f32 0.0, %v1700
      %v1702 = vpop.f32.mrf.mxu0
      %1703 = vmatprep.mubr.bf16.mxu0 0
      %1704 = vmatmul.mubr.bf16.gmra.mxu0 %v1595
      %v1705 = vpop.f32.mrf.mxu0
      %v1706 = vadd.f32 0.0, %v1705
      %v1707 = vpop.f32.mrf.mxu0
      %v1708 = vpop.f32.mrf.mxu0
      %v1709 = vadd.f32 0.0, %v1708
      %v1710 = vpop.f32.mrf.mxu0
      %1711 = vmatprep.mubr.bf16.mxu0 0
      %1712 = vmatmul.mubr.bf16.gmra.mxu0 %v1596
      %v1713 = vpop.f32.mrf.mxu0
      %v1714 = vadd.f32 0.0, %v1713
      %v1715 = vpop.f32.mrf.mxu0
      %v1716 = vpop.f32.mrf.mxu0
      %v1717 = vadd.f32 0.0, %v1716
      %v1718 = vpop.f32.mrf.mxu0
      %1719 = vmatprep.mubr.bf16.mxu0 0
      %1720 = vmatmul.mubr.bf16.gmra.mxu0 %v1597
      %v1721 = vpop.f32.mrf.mxu0
      %v1722 = vadd.f32 0.0, %v1721
      %v1723 = vpop.f32.mrf.mxu0
      %v1724 = vpop.f32.mrf.mxu0
      %v1725 = vadd.f32 0.0, %v1724
      %v1726 = vpop.f32.mrf.mxu0
      %1727 = vdwg.mxu0
      %v1728 = vadd.f32 %v1578, %v1698
      %v1729 = vadd.f32 %v1579, %v1701
      %v1730 = vadd.f32 %v1580, %v1706
      %v1731 = vadd.f32 %v1581, %v1709
      %v1732 = vadd.f32 %v1582, %v1714
      %v1733 = vadd.f32 %v1583, %v1717
      %v1734 = vadd.f32 %v1584, %v1722
      %v1735 = vadd.f32 %v1585, %v1725
      %v1736 = vld [vmem:[#allocation3 + $0x11] sm:$0xff]
      %v1737 = vld [vmem:[#allocation3 + $0x21] sm:$0xff]
      %v1738 = vld [vmem:[#allocation3 + $0x31] sm:$0xff]
      %v1739 = vld [vmem:[#allocation3 + $0x41] sm:$0xff]
      %v1740 = vld [vmem:[#allocation3 + $0x51] sm:$0xff]
      %v1741 = vld [vmem:[#allocation3 + $0x61] sm:$0xff]
      %v1742 = vld [vmem:[#allocation3 + $0x71] sm:$0xff]
      %v1743 = vld [vmem:[#allocation3 + $0x81] sm:$0xff]
      %v1744 = vpack.c.bf16 %v1737, %v1736
      %v1745 = vpack.c.bf16 %v1739, %v1738
      %v1746 = vpack.c.bf16 %v1741, %v1740
      %v1747 = vpack.c.bf16 %v1743, %v1742
      %s1748 = scalar_lea.vmem %s6, 320
      %v1749 = vld [vmem:[%s1748] sm:$0xf]
      %v1750 = vld [vmem:[%s1748 + $0x4] sm:$0xf]
      %v1751 = vld [vmem:[%s1748 + $0x8] sm:$0xf]
      %v1752 = vld [vmem:[%s1748 + $0xc] sm:$0xf]
      %v1753 = vld [vmem:[%s1748 + $0x10] sm:$0xf]
      %v1754 = vld [vmem:[%s1748 + $0x14] sm:$0xf]
      %v1755 = vld [vmem:[%s1748 + $0x18] sm:$0xf]
      %v1756 = vld [vmem:[%s1748 + $0x1c] sm:$0xf]
      %v1757 = vld [vmem:[%s1748 + $0x20] sm:$0xf]
      %v1758 = vld [vmem:[%s1748 + $0x24] sm:$0xf]
      %v1759 = vld [vmem:[%s1748 + $0x28] sm:$0xf]
      %v1760 = vld [vmem:[%s1748 + $0x2c] sm:$0xf]
      %v1761 = vld [vmem:[%s1748 + $0x30] sm:$0xf]
      %v1762 = vld [vmem:[%s1748 + $0x34] sm:$0xf]
      %v1763 = vld [vmem:[%s1748 + $0x38] sm:$0xf]
      %v1764 = vld [vmem:[%s1748 + $0x3c] sm:$0xf]
      %v1781 = vunpack.c.l.b16 %v1749
      %v1782 = vunpack.c.l.b16 %v1750
      %v1783 = vunpack.c.l.b16 %v1751
      %v1784 = vunpack.c.l.b16 %v1752
      %v1785 = vunpack.c.l.b16 %v1753
      %v1786 = vunpack.c.l.b16 %v1754
      %v1787 = vunpack.c.l.b16 %v1755
      %v1788 = vunpack.c.l.b16 %v1756
      %v1789 = vunpack.c.l.b16 %v1757
      %v1790 = vunpack.c.l.b16 %v1758
      %v1791 = vunpack.c.l.b16 %v1759
      %v1792 = vunpack.c.l.b16 %v1760
      %v1793 = vunpack.c.l.b16 %v1761
      %v1794 = vunpack.c.l.b16 %v1762
      %v1795 = vunpack.c.l.b16 %v1763
      %v1796 = vunpack.c.l.b16 %v1764
      %v1797 = vpack.c.b16 %v1782, %v1781
      %v1798 = vpack.c.b16 %v1784, %v1783
      %v1799 = vpack.c.b16 %v1786, %v1785
      %v1800 = vpack.c.b16 %v1788, %v1787
      %v1801 = vpack.c.b16 %v1790, %v1789
      %v1802 = vpack.c.b16 %v1792, %v1791
      %v1803 = vpack.c.b16 %v1794, %v1793
      %v1804 = vpack.c.b16 %v1796, %v1795
      %1813 = vmatprep.subr.bf16.mxu0 0
      %1814 = vmatpush1.bf16.msra.mxu0 %v1804
      %1815 = vmatprep.subr.bf16.mxu0 0
      %1816 = vmatpush1.bf16.msra.mxu0 %v1803
      %1817 = vmatprep.subr.bf16.mxu0 0
      %1818 = vmatpush1.bf16.msra.mxu0 %v1802
      %1819 = vmatprep.subr.bf16.mxu0 0
      %1820 = vmatpush1.bf16.msra.mxu0 %v1801
      %1821 = vmatprep.subr.bf16.mxu0 0
      %1822 = vmatpush1.bf16.msra.mxu0 %v1800
      %1823 = vmatprep.subr.bf16.mxu0 0
      %1824 = vmatpush1.bf16.msra.mxu0 %v1799
      %1825 = vmatprep.subr.bf16.mxu0 0
      %1826 = vmatpush1.bf16.msra.mxu0 %v1798
      %1827 = vmatprep.subr.bf16.mxu0 0
      %1828 = vmatpush1.bf16.msra.mxu0 %v1797
      %1829 = vmatprep.subr.bf16.mxu0 0
      %1830 = vmatpush2.bf16.msra.mxu0 0
      %1831 = vmatprep.subr.bf16.mxu0 0
      %1832 = vmatpush2.bf16.msra.mxu0 0
      %1833 = vmatprep.subr.bf16.mxu0 0
      %1834 = vmatpush2.bf16.msra.mxu0 0
      %1835 = vmatprep.subr.bf16.mxu0 0
      %1836 = vmatpush2.bf16.msra.mxu0 0
      %1837 = vmatprep.subr.bf16.mxu0 0
      %1838 = vmatpush2.bf16.msra.mxu0 0
      %1839 = vmatprep.subr.bf16.mxu0 0
      %1840 = vmatpush2.bf16.msra.mxu0 0
      %1841 = vmatprep.subr.bf16.mxu0 0
      %1842 = vmatpush2.bf16.msra.mxu0 0
      %1843 = vmatprep.subr.bf16.mxu0 0
      %1844 = vmatpush2.bf16.msra.mxu0 0
      %1845 = vmatprep.mubr.bf16.mxu0 0
      %1846 = vmatmul.mubr.bf16.gmra.mxu0 %v1744
      %v1847 = vpop.f32.mrf.mxu0
      %v1848 = vadd.f32 0.0, %v1847
      %v1849 = vpop.f32.mrf.mxu0
      %v1850 = vpop.f32.mrf.mxu0
      %v1851 = vadd.f32 0.0, %v1850
      %v1852 = vpop.f32.mrf.mxu0
      %1853 = vmatprep.mubr.bf16.mxu0 0
      %1854 = vmatmul.mubr.bf16.gmra.mxu0 %v1745
      %v1855 = vpop.f32.mrf.mxu0
      %v1856 = vadd.f32 0.0, %v1855
      %v1857 = vpop.f32.mrf.mxu0
      %v1858 = vpop.f32.mrf.mxu0
      %v1859 = vadd.f32 0.0, %v1858
      %v1860 = vpop.f32.mrf.mxu0
      %1861 = vmatprep.mubr.bf16.mxu0 0
      %1862 = vmatmul.mubr.bf16.gmra.mxu0 %v1746
      %v1863 = vpop.f32.mrf.mxu0
      %v1864 = vadd.f32 0.0, %v1863
      %v1865 = vpop.f32.mrf.mxu0
      %v1866 = vpop.f32.mrf.mxu0
      %v1867 = vadd.f32 0.0, %v1866
      %v1868 = vpop.f32.mrf.mxu0
      %1869 = vmatprep.mubr.bf16.mxu0 0
      %1870 = vmatmul.mubr.bf16.gmra.mxu0 %v1747
      %v1871 = vpop.f32.mrf.mxu0
      %v1872 = vadd.f32 0.0, %v1871
      %v1873 = vpop.f32.mrf.mxu0
      %v1874 = vpop.f32.mrf.mxu0
      %v1875 = vadd.f32 0.0, %v1874
      %v1876 = vpop.f32.mrf.mxu0
      %1877 = vdwg.mxu0
      %v1878 = vadd.f32 %v1728, %v1848
      %v1879 = vadd.f32 %v1729, %v1851
      %v1880 = vadd.f32 %v1730, %v1856
      %v1881 = vadd.f32 %v1731, %v1859
      %v1882 = vadd.f32 %v1732, %v1864
      %v1883 = vadd.f32 %v1733, %v1867
      %v1884 = vadd.f32 %v1734, %v1872
      %v1885 = vadd.f32 %v1735, %v1875
      %v1886 = vld [vmem:[#allocation2 + $0x11] sm:$0xff]
      %v1887 = vld [vmem:[#allocation2 + $0x21] sm:$0xff]
      %v1888 = vld [vmem:[#allocation2 + $0x31] sm:$0xff]
      %v1889 = vld [vmem:[#allocation2 + $0x41] sm:$0xff]
      %v1890 = vld [vmem:[#allocation2 + $0x51] sm:$0xff]
      %v1891 = vld [vmem:[#allocation2 + $0x61] sm:$0xff]
      %v1892 = vld [vmem:[#allocation2 + $0x71] sm:$0xff]
      %v1893 = vld [vmem:[#allocation2 + $0x81] sm:$0xff]
      %v1894 = vpack.c.bf16 %v1887, %v1886
      %v1895 = vpack.c.bf16 %v1889, %v1888
      %v1896 = vpack.c.bf16 %v1891, %v1890
      %v1897 = vpack.c.bf16 %v1893, %v1892
      %s1898 = scalar_lea.vmem %s6, 256
      %v1899 = vld [vmem:[%s1898] sm:$0xf]
      %v1900 = vld [vmem:[%s1898 + $0x4] sm:$0xf]
      %v1901 = vld [vmem:[%s1898 + $0x8] sm:$0xf]
      %v1902 = vld [vmem:[%s1898 + $0xc] sm:$0xf]
      %v1903 = vld [vmem:[%s1898 + $0x10] sm:$0xf]
      %v1904 = vld [vmem:[%s1898 + $0x14] sm:$0xf]
      %v1905 = vld [vmem:[%s1898 + $0x18] sm:$0xf]
      %v1906 = vld [vmem:[%s1898 + $0x1c] sm:$0xf]
      %v1907 = vld [vmem:[%s1898 + $0x20] sm:$0xf]
      %v1908 = vld [vmem:[%s1898 + $0x24] sm:$0xf]
      %v1909 = vld [vmem:[%s1898 + $0x28] sm:$0xf]
      %v1910 = vld [vmem:[%s1898 + $0x2c] sm:$0xf]
      %v1911 = vld [vmem:[%s1898 + $0x30] sm:$0xf]
      %v1912 = vld [vmem:[%s1898 + $0x34] sm:$0xf]
      %v1913 = vld [vmem:[%s1898 + $0x38] sm:$0xf]
      %v1914 = vld [vmem:[%s1898 + $0x3c] sm:$0xf]
      %v1931 = vunpack.c.l.b16 %v1899
      %v1932 = vunpack.c.l.b16 %v1900
      %v1933 = vunpack.c.l.b16 %v1901
      %v1934 = vunpack.c.l.b16 %v1902
      %v1935 = vunpack.c.l.b16 %v1903
      %v1936 = vunpack.c.l.b16 %v1904
      %v1937 = vunpack.c.l.b16 %v1905
      %v1938 = vunpack.c.l.b16 %v1906
      %v1939 = vunpack.c.l.b16 %v1907
      %v1940 = vunpack.c.l.b16 %v1908
      %v1941 = vunpack.c.l.b16 %v1909
      %v1942 = vunpack.c.l.b16 %v1910
      %v1943 = vunpack.c.l.b16 %v1911
      %v1944 = vunpack.c.l.b16 %v1912
      %v1945 = vunpack.c.l.b16 %v1913
      %v1946 = vunpack.c.l.b16 %v1914
      %v1947 = vpack.c.b16 %v1932, %v1931
      %v1948 = vpack.c.b16 %v1934, %v1933
      %v1949 = vpack.c.b16 %v1936, %v1935
      %v1950 = vpack.c.b16 %v1938, %v1937
      %v1951 = vpack.c.b16 %v1940, %v1939
      %v1952 = vpack.c.b16 %v1942, %v1941
      %v1953 = vpack.c.b16 %v1944, %v1943
      %v1954 = vpack.c.b16 %v1946, %v1945
      %1963 = vmatprep.subr.bf16.mxu0 0
      %1964 = vmatpush1.bf16.msra.mxu0 %v1954
      %1965 = vmatprep.subr.bf16.mxu0 0
      %1966 = vmatpush1.bf16.msra.mxu0 %v1953
      %1967 = vmatprep.subr.bf16.mxu0 0
      %1968 = vmatpush1.bf16.msra.mxu0 %v1952
      %1969 = vmatprep.subr.bf16.mxu0 0
      %1970 = vmatpush1.bf16.msra.mxu0 %v1951
      %1971 = vmatprep.subr.bf16.mxu0 0
      %1972 = vmatpush1.bf16.msra.mxu0 %v1950
      %1973 = vmatprep.subr.bf16.mxu0 0
      %1974 = vmatpush1.bf16.msra.mxu0 %v1949
      %1975 = vmatprep.subr.bf16.mxu0 0
      %1976 = vmatpush1.bf16.msra.mxu0 %v1948
      %1977 = vmatprep.subr.bf16.mxu0 0
      %1978 = vmatpush1.bf16.msra.mxu0 %v1947
      %1979 = vmatprep.subr.bf16.mxu0 0
      %1980 = vmatpush2.bf16.msra.mxu0 0
      %1981 = vmatprep.subr.bf16.mxu0 0
      %1982 = vmatpush2.bf16.msra.mxu0 0
      %1983 = vmatprep.subr.bf16.mxu0 0
      %1984 = vmatpush2.bf16.msra.mxu0 0
      %1985 = vmatprep.subr.bf16.mxu0 0
      %1986 = vmatpush2.bf16.msra.mxu0 0
      %1987 = vmatprep.subr.bf16.mxu0 0
      %1988 = vmatpush2.bf16.msra.mxu0 0
      %1989 = vmatprep.subr.bf16.mxu0 0
      %1990 = vmatpush2.bf16.msra.mxu0 0
      %1991 = vmatprep.subr.bf16.mxu0 0
      %1992 = vmatpush2.bf16.msra.mxu0 0
      %1993 = vmatprep.subr.bf16.mxu0 0
      %1994 = vmatpush2.bf16.msra.mxu0 0
      %1995 = vmatprep.mubr.bf16.mxu0 0
      %1996 = vmatmul.mubr.bf16.gmra.mxu0 %v1894
      %v1997 = vpop.f32.mrf.mxu0
      %v1998 = vadd.f32 0.0, %v1997
      %v1999 = vpop.f32.mrf.mxu0
      %v2000 = vpop.f32.mrf.mxu0
      %v2001 = vadd.f32 0.0, %v2000
      %v2002 = vpop.f32.mrf.mxu0
      %2003 = vmatprep.mubr.bf16.mxu0 0
      %2004 = vmatmul.mubr.bf16.gmra.mxu0 %v1895
      %v2005 = vpop.f32.mrf.mxu0
      %v2006 = vadd.f32 0.0, %v2005
      %v2007 = vpop.f32.mrf.mxu0
      %v2008 = vpop.f32.mrf.mxu0
      %v2009 = vadd.f32 0.0, %v2008
      %v2010 = vpop.f32.mrf.mxu0
      %2011 = vmatprep.mubr.bf16.mxu0 0
      %2012 = vmatmul.mubr.bf16.gmra.mxu0 %v1896
      %v2013 = vpop.f32.mrf.mxu0
      %v2014 = vadd.f32 0.0, %v2013
      %v2015 = vpop.f32.mrf.mxu0
      %v2016 = vpop.f32.mrf.mxu0
      %v2017 = vadd.f32 0.0, %v2016
      %v2018 = vpop.f32.mrf.mxu0
      %2019 = vmatprep.mubr.bf16.mxu0 0
      %2020 = vmatmul.mubr.bf16.gmra.mxu0 %v1897
      %v2021 = vpop.f32.mrf.mxu0
      %v2022 = vadd.f32 0.0, %v2021
      %v2023 = vpop.f32.mrf.mxu0
      %v2024 = vpop.f32.mrf.mxu0
      %v2025 = vadd.f32 0.0, %v2024
      %v2026 = vpop.f32.mrf.mxu0
      %2027 = vdwg.mxu0
      %v2028 = vadd.f32 %v1878, %v1998
      %v2029 = vadd.f32 %v1879, %v2001
      %v2030 = vadd.f32 %v1880, %v2006
      %v2031 = vadd.f32 %v1881, %v2009
      %v2032 = vadd.f32 %v1882, %v2014
      %v2033 = vadd.f32 %v1883, %v2017
      %v2034 = vadd.f32 %v1884, %v2022
      %v2035 = vadd.f32 %v1885, %v2025
      %2036 = vst [vmem:[#allocation6] sm:$0xff] 0.0
      %2037 = vst [vmem:[#allocation6 + $0x8] sm:$0x3] 0.0
      %s2038 = scalar_lea.vmem [#allocation6], 144
      %2039 = vst [vmem:[%s2038] sm:$0xff] 0.0
      %2040 = vst [vmem:[%s2038 + $0x8] sm:$0x3] 0.0
      %2041 = vst [vmem:[#allocation6] sm:$0x1] 0.0
      %2042 = vst [vmem:[#allocation6 + $0x10] sm:$0x1] 0.0
      %2043 = vst [vmem:[#allocation6 + $0x20] sm:$0x1] 0.0
      %2044 = vst [vmem:[#allocation6 + $0x30] sm:$0x1] 0.0
      %2045 = vst [vmem:[#allocation6 + $0x40] sm:$0x1] 0.0
      %2046 = vst [vmem:[#allocation6 + $0x50] sm:$0x1] 0.0
      %2047 = vst [vmem:[#allocation6 + $0x60] sm:$0x1] 0.0
      %2048 = vst [vmem:[#allocation6 + $0x70] sm:$0x1] 0.0
      %2049 = vst [vmem:[#allocation6 + $0x80] sm:$0x1] 0.0
      %2050 = vst [vmem:[#allocation6 + $0x90] sm:$0x1] 0.0
      %2051 = vst [vmem:[#allocation6 + $0x9] sm:$0x1] 0.0
      %2052 = vst [vmem:[#allocation6 + $0x19] sm:$0x1] 0.0
      %2053 = vst [vmem:[#allocation6 + $0x29] sm:$0x1] 0.0
      %2054 = vst [vmem:[#allocation6 + $0x39] sm:$0x1] 0.0
      %2055 = vst [vmem:[#allocation6 + $0x49] sm:$0x1] 0.0
      %2056 = vst [vmem:[#allocation6 + $0x59] sm:$0x1] 0.0
      %2057 = vst [vmem:[#allocation6 + $0x69] sm:$0x1] 0.0
      %2058 = vst [vmem:[#allocation6 + $0x79] sm:$0x1] 0.0
      %2059 = vst [vmem:[#allocation6 + $0x89] sm:$0x1] 0.0
      %2060 = vst [vmem:[#allocation6 + $0x99] sm:$0x1] 0.0
      %v2061 = vld [vmem:[%s7] sm:$0x1]
      %v2063 = vlaneseq
      %v2064 = vshrl.u32 %v2063, 7
      %v2065 = vsub.s32 0, %v2064
      %v2066 = vrot.slane %v2061, %v2065
      %v2068 = vmul.f32 %v2028, %v2066
      %v2069 = vmul.f32 %v2029, %v2066
      %v2070 = vmul.f32 %v2030, %v2066
      %v2071 = vmul.f32 %v2031, %v2066
      %v2072 = vmul.f32 %v2032, %v2066
      %v2073 = vmul.f32 %v2033, %v2066
      %v2074 = vmul.f32 %v2034, %v2066
      %v2075 = vmul.f32 %v2035, %v2066
      %v2076 = vld [vmem:[%s8] sm:$0x1]
      %v2078 = vlaneseq
      %v2079 = vshrl.u32 %v2078, 7
      %v2080 = vsub.s32 0, %v2079
      %v2081 = vrot.slane %v2076, %v2080
      %v2083 = vadd.f32 %v2068, %v2081
      %v2084 = vadd.f32 %v2069, %v2081
      %v2085 = vadd.f32 %v2070, %v2081
      %v2086 = vadd.f32 %v2071, %v2081
      %v2087 = vadd.f32 %v2072, %v2081
      %v2088 = vadd.f32 %v2073, %v2081
      %v2089 = vadd.f32 %v2074, %v2081
      %v2090 = vadd.f32 %v2075, %v2081
      %v2091 = vmax.f32 %v2083, 0.0
      %v2092 = vmax.f32 %v2084, 0.0
      %v2093 = vmax.f32 %v2085, 0.0
      %v2094 = vmax.f32 %v2086, 0.0
      %v2095 = vmax.f32 %v2087, 0.0
      %v2096 = vmax.f32 %v2088, 0.0
      %v2097 = vmax.f32 %v2089, 0.0
      %v2098 = vmax.f32 %v2090, 0.0
      %s2099 = scalar_lea.vmem [#allocation6], 16
      %2100 = vst [vmem:[%s2099 + $0x1] sm:$0xff] %v2091
      %2101 = vst [vmem:[%s2099 + $0x11] sm:$0xff] %v2092
      %2102 = vst [vmem:[%s2099 + $0x21] sm:$0xff] %v2093
      %2103 = vst [vmem:[%s2099 + $0x31] sm:$0xff] %v2094
      %2104 = vst [vmem:[%s2099 + $0x41] sm:$0xff] %v2095
      %2105 = vst [vmem:[%s2099 + $0x51] sm:$0xff] %v2096
      %2106 = vst [vmem:[%s2099 + $0x61] sm:$0xff] %v2097
      %2107 = vst [vmem:[%s2099 + $0x71] sm:$0xff] %v2098
      %v2108 = vld [vmem:[%s10] sm:$0x1]
      %v2109 = vld [vmem:[#allocation6] sm:$0xff]
      %v2110 = vld [vmem:[#allocation6 + $0x10] sm:$0xff]
      %v2111 = vld [vmem:[#allocation6 + $0x20] sm:$0xff]
      %v2112 = vld [vmem:[#allocation6 + $0x30] sm:$0xff]
      %v2113 = vld [vmem:[#allocation6 + $0x40] sm:$0xff]
      %v2114 = vld [vmem:[#allocation6 + $0x50] sm:$0xff]
      %v2115 = vld [vmem:[#allocation6 + $0x60] sm:$0xff]
      %v2116 = vld [vmem:[#allocation6 + $0x70] sm:$0xff]
      %v2117 = vld [vmem:[#allocation6 + $0x80] sm:$0xff]
      %v2118 = vld [vmem:[#allocation6 + $0x90] sm:$0xff]
      %v2119 = vpack.c.bf16 %v2110, %v2109
      %v2120 = vpack.c.bf16 %v2112, %v2111
      %v2121 = vpack.c.bf16 %v2114, %v2113
      %v2122 = vpack.c.bf16 %v2116, %v2115
      %v2123 = vld [vmem:[%s9] sm:$0xf]
      %v2124 = vld [vmem:[%s9 + $0x4] sm:$0xf]
      %v2125 = vld [vmem:[%s9 + $0x8] sm:$0xf]
      %v2126 = vld [vmem:[%s9 + $0xc] sm:$0xf]
      %v2127 = vld [vmem:[%s9 + $0x10] sm:$0xf]
      %v2128 = vld [vmem:[%s9 + $0x14] sm:$0xf]
      %v2129 = vld [vmem:[%s9 + $0x18] sm:$0xf]
      %v2130 = vld [vmem:[%s9 + $0x1c] sm:$0xf]
      %v2131 = vld [vmem:[%s9 + $0x20] sm:$0xf]
      %v2132 = vld [vmem:[%s9 + $0x24] sm:$0xf]
      %v2133 = vld [vmem:[%s9 + $0x28] sm:$0xf]
      %v2134 = vld [vmem:[%s9 + $0x2c] sm:$0xf]
      %v2135 = vld [vmem:[%s9 + $0x30] sm:$0xf]
      %v2136 = vld [vmem:[%s9 + $0x34] sm:$0xf]
      %v2137 = vld [vmem:[%s9 + $0x38] sm:$0xf]
      %v2138 = vld [vmem:[%s9 + $0x3c] sm:$0xf]
      %v2155 = vunpack.c.l.b16 %v2123
      %v2156 = vunpack.c.l.b16 %v2124
      %v2157 = vunpack.c.l.b16 %v2125
      %v2158 = vunpack.c.l.b16 %v2126
      %v2159 = vunpack.c.l.b16 %v2127
      %v2160 = vunpack.c.l.b16 %v2128
      %v2161 = vunpack.c.l.b16 %v2129
      %v2162 = vunpack.c.l.b16 %v2130
      %v2163 = vunpack.c.l.b16 %v2131
      %v2164 = vunpack.c.l.b16 %v2132
      %v2165 = vunpack.c.l.b16 %v2133
      %v2166 = vunpack.c.l.b16 %v2134
      %v2167 = vunpack.c.l.b16 %v2135
      %v2168 = vunpack.c.l.b16 %v2136
      %v2169 = vunpack.c.l.b16 %v2137
      %v2170 = vunpack.c.l.b16 %v2138
      %v2171 = vpack.c.b16 %v2156, %v2155
      %v2172 = vpack.c.b16 %v2158, %v2157
      %v2173 = vpack.c.b16 %v2160, %v2159
      %v2174 = vpack.c.b16 %v2162, %v2161
      %v2175 = vpack.c.b16 %v2164, %v2163
      %v2176 = vpack.c.b16 %v2166, %v2165
      %v2177 = vpack.c.b16 %v2168, %v2167
      %v2178 = vpack.c.b16 %v2170, %v2169
      %2187 = vmatprep.subr.bf16.mxu0 0
      %2188 = vmatpush1.bf16.msra.mxu0 %v2178
      %2189 = vmatprep.subr.bf16.mxu0 0
      %2190 = vmatpush1.bf16.msra.mxu0 %v2177
      %2191 = vmatprep.subr.bf16.mxu0 0
      %2192 = vmatpush1.bf16.msra.mxu0 %v2176
      %2193 = vmatprep.subr.bf16.mxu0 0
      %2194 = vmatpush1.bf16.msra.mxu0 %v2175
      %2195 = vmatprep.subr.bf16.mxu0 0
      %2196 = vmatpush1.bf16.msra.mxu0 %v2174
      %2197 = vmatprep.subr.bf16.mxu0 0
      %2198 = vmatpush1.bf16.msra.mxu0 %v2173
      %2199 = vmatprep.subr.bf16.mxu0 0
      %2200 = vmatpush1.bf16.msra.mxu0 %v2172
      %2201 = vmatprep.subr.bf16.mxu0 0
      %2202 = vmatpush1.bf16.msra.mxu0 %v2171
      %2203 = vmatprep.subr.bf16.mxu0 0
      %2204 = vmatpush2.bf16.msra.mxu0 0
      %2205 = vmatprep.subr.bf16.mxu0 0
      %2206 = vmatpush2.bf16.msra.mxu0 0
      %2207 = vmatprep.subr.bf16.mxu0 0
      %2208 = vmatpush2.bf16.msra.mxu0 0
      %2209 = vmatprep.subr.bf16.mxu0 0
      %2210 = vmatpush2.bf16.msra.mxu0 0
      %2211 = vmatprep.subr.bf16.mxu0 0
      %2212 = vmatpush2.bf16.msra.mxu0 0
      %2213 = vmatprep.subr.bf16.mxu0 0
      %2214 = vmatpush2.bf16.msra.mxu0 0
      %2215 = vmatprep.subr.bf16.mxu0 0
      %2216 = vmatpush2.bf16.msra.mxu0 0
      %2217 = vmatprep.subr.bf16.mxu0 0
      %2218 = vmatpush2.bf16.msra.mxu0 0
      %2219 = vmatprep.mubr.bf16.mxu0 0
      %2220 = vmatmul.mubr.bf16.gmra.mxu0 %v2119
      %v2221 = vpop.f32.mrf.mxu0
      %v2222 = vadd.f32 0.0, %v2221
      %v2223 = vpop.f32.mrf.mxu0
      %v2224 = vpop.f32.mrf.mxu0
      %v2225 = vadd.f32 0.0, %v2224
      %v2226 = vpop.f32.mrf.mxu0
      %2227 = vmatprep.mubr.bf16.mxu0 0
      %2228 = vmatmul.mubr.bf16.gmra.mxu0 %v2120
      %v2229 = vpop.f32.mrf.mxu0
      %v2230 = vadd.f32 0.0, %v2229
      %v2231 = vpop.f32.mrf.mxu0
      %v2232 = vpop.f32.mrf.mxu0
      %v2233 = vadd.f32 0.0, %v2232
      %v2234 = vpop.f32.mrf.mxu0
      %2235 = vmatprep.mubr.bf16.mxu0 0
      %2236 = vmatmul.mubr.bf16.gmra.mxu0 %v2121
      %v2237 = vpop.f32.mrf.mxu0
      %v2238 = vadd.f32 0.0, %v2237
      %v2239 = vpop.f32.mrf.mxu0
      %v2240 = vpop.f32.mrf.mxu0
      %v2241 = vadd.f32 0.0, %v2240
      %v2242 = vpop.f32.mrf.mxu0
      %2243 = vmatprep.mubr.bf16.mxu0 0
      %2244 = vmatmul.mubr.bf16.gmra.mxu0 %v2122
      %v2245 = vpop.f32.mrf.mxu0
      %v2246 = vadd.f32 0.0, %v2245
      %v2247 = vpop.f32.mrf.mxu0
      %v2248 = vpop.f32.mrf.mxu0
      %v2249 = vadd.f32 0.0, %v2248
      %v2250 = vpop.f32.mrf.mxu0
      %2251 = vdwg.mxu0
      %v2253 = vlaneseq
      %v2254 = vshrl.u32 %v2253, 7
      %v2255 = vsub.s32 0, %v2254
      %v2256 = vrot.slane %v2108, %v2255
      %v2258 = vadd.f32 %v2256, %v2222
      %v2259 = vadd.f32 %v2256, %v2225
      %v2260 = vadd.f32 %v2256, %v2230
      %v2261 = vadd.f32 %v2256, %v2233
      %v2262 = vadd.f32 %v2256, %v2238
      %v2263 = vadd.f32 %v2256, %v2241
      %v2264 = vadd.f32 %v2256, %v2246
      %v2265 = vadd.f32 %v2256, %v2249
      %v2266 = vpack.c.bf16 %v2111, %v2110
      %v2267 = vpack.c.bf16 %v2113, %v2112
      %v2268 = vpack.c.bf16 %v2115, %v2114
      %v2269 = vpack.c.bf16 %v2117, %v2116
      %s2270 = scalar_lea.vmem %s9, 192
      %v2271 = vld [vmem:[%s2270] sm:$0xf]
      %v2272 = vld [vmem:[%s2270 + $0x4] sm:$0xf]
      %v2273 = vld [vmem:[%s2270 + $0x8] sm:$0xf]
      %v2274 = vld [vmem:[%s2270 + $0xc] sm:$0xf]
      %v2275 = vld [vmem:[%s2270 + $0x10] sm:$0xf]
      %v2276 = vld [vmem:[%s2270 + $0x14] sm:$0xf]
      %v2277 = vld [vmem:[%s2270 + $0x18] sm:$0xf]
      %v2278 = vld [vmem:[%s2270 + $0x1c] sm:$0xf]
      %v2279 = vld [vmem:[%s2270 + $0x20] sm:$0xf]
      %v2280 = vld [vmem:[%s2270 + $0x24] sm:$0xf]
      %v2281 = vld [vmem:[%s2270 + $0x28] sm:$0xf]
      %v2282 = vld [vmem:[%s2270 + $0x2c] sm:$0xf]
      %v2283 = vld [vmem:[%s2270 + $0x30] sm:$0xf]
      %v2284 = vld [vmem:[%s2270 + $0x34] sm:$0xf]
      %v2285 = vld [vmem:[%s2270 + $0x38] sm:$0xf]
      %v2286 = vld [vmem:[%s2270 + $0x3c] sm:$0xf]
      %v2303 = vunpack.c.l.b16 %v2271
      %v2304 = vunpack.c.l.b16 %v2272
      %v2305 = vunpack.c.l.b16 %v2273
      %v2306 = vunpack.c.l.b16 %v2274
      %v2307 = vunpack.c.l.b16 %v2275
      %v2308 = vunpack.c.l.b16 %v2276
      %v2309 = vunpack.c.l.b16 %v2277
      %v2310 = vunpack.c.l.b16 %v2278
      %v2311 = vunpack.c.l.b16 %v2279
      %v2312 = vunpack.c.l.b16 %v2280
      %v2313 = vunpack.c.l.b16 %v2281
      %v2314 = vunpack.c.l.b16 %v2282
      %v2315 = vunpack.c.l.b16 %v2283
      %v2316 = vunpack.c.l.b16 %v2284
      %v2317 = vunpack.c.l.b16 %v2285
      %v2318 = vunpack.c.l.b16 %v2286
      %v2319 = vpack.c.b16 %v2304, %v2303
      %v2320 = vpack.c.b16 %v2306, %v2305
      %v2321 = vpack.c.b16 %v2308, %v2307
      %v2322 = vpack.c.b16 %v2310, %v2309
      %v2323 = vpack.c.b16 %v2312, %v2311
      %v2324 = vpack.c.b16 %v2314, %v2313
      %v2325 = vpack.c.b16 %v2316, %v2315
      %v2326 = vpack.c.b16 %v2318, %v2317
      %2335 = vmatprep.subr.bf16.mxu0 0
      %2336 = vmatpush1.bf16.msra.mxu0 %v2326
      %2337 = vmatprep.subr.bf16.mxu0 0
      %2338 = vmatpush1.bf16.msra.mxu0 %v2325
      %2339 = vmatprep.subr.bf16.mxu0 0
      %2340 = vmatpush1.bf16.msra.mxu0 %v2324
      %2341 = vmatprep.subr.bf16.mxu0 0
      %2342 = vmatpush1.bf16.msra.mxu0 %v2323
      %2343 = vmatprep.subr.bf16.mxu0 0
      %2344 = vmatpush1.bf16.msra.mxu0 %v2322
      %2345 = vmatprep.subr.bf16.mxu0 0
      %2346 = vmatpush1.bf16.msra.mxu0 %v2321
      %2347 = vmatprep.subr.bf16.mxu0 0
      %2348 = vmatpush1.bf16.msra.mxu0 %v2320
      %2349 = vmatprep.subr.bf16.mxu0 0
      %2350 = vmatpush1.bf16.msra.mxu0 %v2319
      %2351 = vmatprep.subr.bf16.mxu0 0
      %2352 = vmatpush2.bf16.msra.mxu0 0
      %2353 = vmatprep.subr.bf16.mxu0 0
      %2354 = vmatpush2.bf16.msra.mxu0 0
      %2355 = vmatprep.subr.bf16.mxu0 0
      %2356 = vmatpush2.bf16.msra.mxu0 0
      %2357 = vmatprep.subr.bf16.mxu0 0
      %2358 = vmatpush2.bf16.msra.mxu0 0
      %2359 = vmatprep.subr.bf16.mxu0 0
      %2360 = vmatpush2.bf16.msra.mxu0 0
      %2361 = vmatprep.subr.bf16.mxu0 0
      %2362 = vmatpush2.bf16.msra.mxu0 0
      %2363 = vmatprep.subr.bf16.mxu0 0
      %2364 = vmatpush2.bf16.msra.mxu0 0
      %2365 = vmatprep.subr.bf16.mxu0 0
      %2366 = vmatpush2.bf16.msra.mxu0 0
      %2367 = vmatprep.mubr.bf16.mxu0 0
      %2368 = vmatmul.mubr.bf16.gmra.mxu0 %v2266
      %v2369 = vpop.f32.mrf.mxu0
      %v2370 = vadd.f32 0.0, %v2369
      %v2371 = vpop.f32.mrf.mxu0
      %v2372 = vpop.f32.mrf.mxu0
      %v2373 = vadd.f32 0.0, %v2372
      %v2374 = vpop.f32.mrf.mxu0
      %2375 = vmatprep.mubr.bf16.mxu0 0
      %2376 = vmatmul.mubr.bf16.gmra.mxu0 %v2267
      %v2377 = vpop.f32.mrf.mxu0
      %v2378 = vadd.f32 0.0, %v2377
      %v2379 = vpop.f32.mrf.mxu0
      %v2380 = vpop.f32.mrf.mxu0
      %v2381 = vadd.f32 0.0, %v2380
      %v2382 = vpop.f32.mrf.mxu0
      %2383 = vmatprep.mubr.bf16.mxu0 0
      %2384 = vmatmul.mubr.bf16.gmra.mxu0 %v2268
      %v2385 = vpop.f32.mrf.mxu0
      %v2386 = vadd.f32 0.0, %v2385
      %v2387 = vpop.f32.mrf.mxu0
      %v2388 = vpop.f32.mrf.mxu0
      %v2389 = vadd.f32 0.0, %v2388
      %v2390 = vpop.f32.mrf.mxu0
      %2391 = vmatprep.mubr.bf16.mxu0 0
      %2392 = vmatmul.mubr.bf16.gmra.mxu0 %v2269
      %v2393 = vpop.f32.mrf.mxu0
      %v2394 = vadd.f32 0.0, %v2393
      %v2395 = vpop.f32.mrf.mxu0
      %v2396 = vpop.f32.mrf.mxu0
      %v2397 = vadd.f32 0.0, %v2396
      %v2398 = vpop.f32.mrf.mxu0
      %2399 = vdwg.mxu0
      %v2400 = vadd.f32 %v2258, %v2370
      %v2401 = vadd.f32 %v2259, %v2373
      %v2402 = vadd.f32 %v2260, %v2378
      %v2403 = vadd.f32 %v2261, %v2381
      %v2404 = vadd.f32 %v2262, %v2386
      %v2405 = vadd.f32 %v2263, %v2389
      %v2406 = vadd.f32 %v2264, %v2394
      %v2407 = vadd.f32 %v2265, %v2397
      %v2408 = vpack.c.bf16 %v2118, %v2117
      %s2409 = scalar_lea.vmem %s9, 384
      %v2410 = vld [vmem:[%s2409] sm:$0xf]
      %v2411 = vld [vmem:[%s2409 + $0x4] sm:$0xf]
      %v2412 = vld [vmem:[%s2409 + $0x8] sm:$0xf]
      %v2413 = vld [vmem:[%s2409 + $0xc] sm:$0xf]
      %v2414 = vld [vmem:[%s2409 + $0x10] sm:$0xf]
      %v2415 = vld [vmem:[%s2409 + $0x14] sm:$0xf]
      %v2416 = vld [vmem:[%s2409 + $0x18] sm:$0xf]
      %v2417 = vld [vmem:[%s2409 + $0x1c] sm:$0xf]
      %v2418 = vld [vmem:[%s2409 + $0x20] sm:$0xf]
      %v2419 = vld [vmem:[%s2409 + $0x24] sm:$0xf]
      %v2420 = vld [vmem:[%s2409 + $0x28] sm:$0xf]
      %v2421 = vld [vmem:[%s2409 + $0x2c] sm:$0xf]
      %v2422 = vld [vmem:[%s2409 + $0x30] sm:$0xf]
      %v2423 = vld [vmem:[%s2409 + $0x34] sm:$0xf]
      %v2424 = vld [vmem:[%s2409 + $0x38] sm:$0xf]
      %v2425 = vld [vmem:[%s2409 + $0x3c] sm:$0xf]
      %v2442 = vunpack.c.l.b16 %v2410
      %v2443 = vunpack.c.l.b16 %v2411
      %v2444 = vunpack.c.l.b16 %v2412
      %v2445 = vunpack.c.l.b16 %v2413
      %v2446 = vunpack.c.l.b16 %v2414
      %v2447 = vunpack.c.l.b16 %v2415
      %v2448 = vunpack.c.l.b16 %v2416
      %v2449 = vunpack.c.l.b16 %v2417
      %v2450 = vunpack.c.l.b16 %v2418
      %v2451 = vunpack.c.l.b16 %v2419
      %v2452 = vunpack.c.l.b16 %v2420
      %v2453 = vunpack.c.l.b16 %v2421
      %v2454 = vunpack.c.l.b16 %v2422
      %v2455 = vunpack.c.l.b16 %v2423
      %v2456 = vunpack.c.l.b16 %v2424
      %v2457 = vunpack.c.l.b16 %v2425
      %v2458 = vpack.c.b16 %v2443, %v2442
      %v2459 = vpack.c.b16 %v2445, %v2444
      %v2460 = vpack.c.b16 %v2447, %v2446
      %v2461 = vpack.c.b16 %v2449, %v2448
      %v2462 = vpack.c.b16 %v2451, %v2450
      %v2463 = vpack.c.b16 %v2453, %v2452
      %v2464 = vpack.c.b16 %v2455, %v2454
      %v2465 = vpack.c.b16 %v2457, %v2456
      %2474 = vmatprep.subr.bf16.mxu0 0
      %2475 = vmatpush1.bf16.msra.mxu0 %v2465
      %2476 = vmatprep.subr.bf16.mxu0 0
      %2477 = vmatpush1.bf16.msra.mxu0 %v2464
      %2478 = vmatprep.subr.bf16.mxu0 0
      %2479 = vmatpush1.bf16.msra.mxu0 %v2463
      %2480 = vmatprep.subr.bf16.mxu0 0
      %2481 = vmatpush1.bf16.msra.mxu0 %v2462
      %2482 = vmatprep.subr.bf16.mxu0 0
      %2483 = vmatpush1.bf16.msra.mxu0 %v2461
      %2484 = vmatprep.subr.bf16.mxu0 0
      %2485 = vmatpush1.bf16.msra.mxu0 %v2460
      %2486 = vmatprep.subr.bf16.mxu0 0
      %2487 = vmatpush1.bf16.msra.mxu0 %v2459
      %2488 = vmatprep.subr.bf16.mxu0 0
      %2489 = vmatpush1.bf16.msra.mxu0 %v2458
      %2490 = vmatprep.subr.bf16.mxu0 0
      %2491 = vmatpush2.bf16.msra.mxu0 0
      %2492 = vmatprep.subr.bf16.mxu0 0
      %2493 = vmatpush2.bf16.msra.mxu0 0
      %2494 = vmatprep.subr.bf16.mxu0 0
      %2495 = vmatpush2.bf16.msra.mxu0 0
      %2496 = vmatprep.subr.bf16.mxu0 0
      %2497 = vmatpush2.bf16.msra.mxu0 0
      %2498 = vmatprep.subr.bf16.mxu0 0
      %2499 = vmatpush2.bf16.msra.mxu0 0
      %2500 = vmatprep.subr.bf16.mxu0 0
      %2501 = vmatpush2.bf16.msra.mxu0 0
      %2502 = vmatprep.subr.bf16.mxu0 0
      %2503 = vmatpush2.bf16.msra.mxu0 0
      %2504 = vmatprep.subr.bf16.mxu0 0
      %2505 = vmatpush2.bf16.msra.mxu0 0
      %2506 = vmatprep.mubr.bf16.mxu0 0
      %2507 = vmatmul.mubr.bf16.gmra.mxu0 %v2120
      %v2508 = vpop.f32.mrf.mxu0
      %v2509 = vadd.f32 0.0, %v2508
      %v2510 = vpop.f32.mrf.mxu0
      %v2511 = vpop.f32.mrf.mxu0
      %v2512 = vadd.f32 0.0, %v2511
      %v2513 = vpop.f32.mrf.mxu0
      %2514 = vmatprep.mubr.bf16.mxu0 0
      %2515 = vmatmul.mubr.bf16.gmra.mxu0 %v2121
      %v2516 = vpop.f32.mrf.mxu0
      %v2517 = vadd.f32 0.0, %v2516
      %v2518 = vpop.f32.mrf.mxu0
      %v2519 = vpop.f32.mrf.mxu0
      %v2520 = vadd.f32 0.0, %v2519
      %v2521 = vpop.f32.mrf.mxu0
      %2522 = vmatprep.mubr.bf16.mxu0 0
      %2523 = vmatmul.mubr.bf16.gmra.mxu0 %v2122
      %v2524 = vpop.f32.mrf.mxu0
      %v2525 = vadd.f32 0.0, %v2524
      %v2526 = vpop.f32.mrf.mxu0
      %v2527 = vpop.f32.mrf.mxu0
      %v2528 = vadd.f32 0.0, %v2527
      %v2529 = vpop.f32.mrf.mxu0
      %2530 = vmatprep.mubr.bf16.mxu0 0
      %2531 = vmatmul.mubr.bf16.gmra.mxu0 %v2408
      %v2532 = vpop.f32.mrf.mxu0
      %v2533 = vadd.f32 0.0, %v2532
      %v2534 = vpop.f32.mrf.mxu0
      %v2535 = vpop.f32.mrf.mxu0
      %v2536 = vadd.f32 0.0, %v2535
      %v2537 = vpop.f32.mrf.mxu0
      %2538 = vdwg.mxu0
      %v2539 = vadd.f32 %v2400, %v2509
      %v2540 = vadd.f32 %v2401, %v2512
      %v2541 = vadd.f32 %v2402, %v2517
      %v2542 = vadd.f32 %v2403, %v2520
      %v2543 = vadd.f32 %v2404, %v2525
      %v2544 = vadd.f32 %v2405, %v2528
      %v2545 = vadd.f32 %v2406, %v2533
      %v2546 = vadd.f32 %v2407, %v2536
      %v2547 = vld [vmem:[#allocation6 + $0x1] sm:$0xff]
      %v2548 = vld [vmem:[#allocation6 + $0x11] sm:$0xff]
      %v2549 = vld [vmem:[#allocation6 + $0x21] sm:$0xff]
      %v2550 = vld [vmem:[#allocation6 + $0x31] sm:$0xff]
      %v2551 = vld [vmem:[#allocation6 + $0x41] sm:$0xff]
      %v2552 = vld [vmem:[#allocation6 + $0x51] sm:$0xff]
      %v2553 = vld [vmem:[#allocation6 + $0x61] sm:$0xff]
      %v2554 = vld [vmem:[#allocation6 + $0x71] sm:$0xff]
      %v2555 = vld [vmem:[#allocation6 + $0x81] sm:$0xff]
      %v2556 = vld [vmem:[#allocation6 + $0x91] sm:$0xff]
      %v2557 = vpack.c.bf16 %v2548, %v2547
      %v2558 = vpack.c.bf16 %v2550, %v2549
      %v2559 = vpack.c.bf16 %v2552, %v2551
      %v2560 = vpack.c.bf16 %v2554, %v2553
      %s2561 = scalar_lea.vmem %s9, 64
      %v2562 = vld [vmem:[%s2561] sm:$0xf]
      %v2563 = vld [vmem:[%s2561 + $0x4] sm:$0xf]
      %v2564 = vld [vmem:[%s2561 + $0x8] sm:$0xf]
      %v2565 = vld [vmem:[%s2561 + $0xc] sm:$0xf]
      %v2566 = vld [vmem:[%s2561 + $0x10] sm:$0xf]
      %v2567 = vld [vmem:[%s2561 + $0x14] sm:$0xf]
      %v2568 = vld [vmem:[%s2561 + $0x18] sm:$0xf]
      %v2569 = vld [vmem:[%s2561 + $0x1c] sm:$0xf]
      %v2570 = vld [vmem:[%s2561 + $0x20] sm:$0xf]
      %v2571 = vld [vmem:[%s2561 + $0x24] sm:$0xf]
      %v2572 = vld [vmem:[%s2561 + $0x28] sm:$0xf]
      %v2573 = vld [vmem:[%s2561 + $0x2c] sm:$0xf]
      %v2574 = vld [vmem:[%s2561 + $0x30] sm:$0xf]
      %v2575 = vld [vmem:[%s2561 + $0x34] sm:$0xf]
      %v2576 = vld [vmem:[%s2561 + $0x38] sm:$0xf]
      %v2577 = vld [vmem:[%s2561 + $0x3c] sm:$0xf]
      %v2594 = vunpack.c.l.b16 %v2562
      %v2595 = vunpack.c.l.b16 %v2563
      %v2596 = vunpack.c.l.b16 %v2564
      %v2597 = vunpack.c.l.b16 %v2565
      %v2598 = vunpack.c.l.b16 %v2566
      %v2599 = vunpack.c.l.b16 %v2567
      %v2600 = vunpack.c.l.b16 %v2568
      %v2601 = vunpack.c.l.b16 %v2569
      %v2602 = vunpack.c.l.b16 %v2570
      %v2603 = vunpack.c.l.b16 %v2571
      %v2604 = vunpack.c.l.b16 %v2572
      %v2605 = vunpack.c.l.b16 %v2573
      %v2606 = vunpack.c.l.b16 %v2574
      %v2607 = vunpack.c.l.b16 %v2575
      %v2608 = vunpack.c.l.b16 %v2576
      %v2609 = vunpack.c.l.b16 %v2577
      %v2610 = vpack.c.b16 %v2595, %v2594
      %v2611 = vpack.c.b16 %v2597, %v2596
      %v2612 = vpack.c.b16 %v2599, %v2598
      %v2613 = vpack.c.b16 %v2601, %v2600
      %v2614 = vpack.c.b16 %v2603, %v2602
      %v2615 = vpack.c.b16 %v2605, %v2604
      %v2616 = vpack.c.b16 %v2607, %v2606
      %v2617 = vpack.c.b16 %v2609, %v2608
      %2626 = vmatprep.subr.bf16.mxu0 0
      %2627 = vmatpush1.bf16.msra.mxu0 %v2617
      %2628 = vmatprep.subr.bf16.mxu0 0
      %2629 = vmatpush1.bf16.msra.mxu0 %v2616
      %2630 = vmatprep.subr.bf16.mxu0 0
      %2631 = vmatpush1.bf16.msra.mxu0 %v2615
      %2632 = vmatprep.subr.bf16.mxu0 0
      %2633 = vmatpush1.bf16.msra.mxu0 %v2614
      %2634 = vmatprep.subr.bf16.mxu0 0
      %2635 = vmatpush1.bf16.msra.mxu0 %v2613
      %2636 = vmatprep.subr.bf16.mxu0 0
      %2637 = vmatpush1.bf16.msra.mxu0 %v2612
      %2638 = vmatprep.subr.bf16.mxu0 0
      %2639 = vmatpush1.bf16.msra.mxu0 %v2611
      %2640 = vmatprep.subr.bf16.mxu0 0
      %2641 = vmatpush1.bf16.msra.mxu0 %v2610
      %2642 = vmatprep.subr.bf16.mxu0 0
      %2643 = vmatpush2.bf16.msra.mxu0 0
      %2644 = vmatprep.subr.bf16.mxu0 0
      %2645 = vmatpush2.bf16.msra.mxu0 0
      %2646 = vmatprep.subr.bf16.mxu0 0
      %2647 = vmatpush2.bf16.msra.mxu0 0
      %2648 = vmatprep.subr.bf16.mxu0 0
      %2649 = vmatpush2.bf16.msra.mxu0 0
      %2650 = vmatprep.subr.bf16.mxu0 0
      %2651 = vmatpush2.bf16.msra.mxu0 0
      %2652 = vmatprep.subr.bf16.mxu0 0
      %2653 = vmatpush2.bf16.msra.mxu0 0
      %2654 = vmatprep.subr.bf16.mxu0 0
      %2655 = vmatpush2.bf16.msra.mxu0 0
      %2656 = vmatprep.subr.bf16.mxu0 0
      %2657 = vmatpush2.bf16.msra.mxu0 0
      %2658 = vmatprep.mubr.bf16.mxu0 0
      %2659 = vmatmul.mubr.bf16.gmra.mxu0 %v2557
      %v2660 = vpop.f32.mrf.mxu0
      %v2661 = vadd.f32 0.0, %v2660
      %v2662 = vpop.f32.mrf.mxu0
      %v2663 = vpop.f32.mrf.mxu0
      %v2664 = vadd.f32 0.0, %v2663
      %v2665 = vpop.f32.mrf.mxu0
      %2666 = vmatprep.mubr.bf16.mxu0 0
      %2667 = vmatmul.mubr.bf16.gmra.mxu0 %v2558
      %v2668 = vpop.f32.mrf.mxu0
      %v2669 = vadd.f32 0.0, %v2668
      %v2670 = vpop.f32.mrf.mxu0
      %v2671 = vpop.f32.mrf.mxu0
      %v2672 = vadd.f32 0.0, %v2671
      %v2673 = vpop.f32.mrf.mxu0
      %2674 = vmatprep.mubr.bf16.mxu0 0
      %2675 = vmatmul.mubr.bf16.gmra.mxu0 %v2559
      %v2676 = vpop.f32.mrf.mxu0
      %v2677 = vadd.f32 0.0, %v2676
      %v2678 = vpop.f32.mrf.mxu0
      %v2679 = vpop.f32.mrf.mxu0
      %v2680 = vadd.f32 0.0, %v2679
      %v2681 = vpop.f32.mrf.mxu0
      %2682 = vmatprep.mubr.bf16.mxu0 0
      %2683 = vmatmul.mubr.bf16.gmra.mxu0 %v2560
      %v2684 = vpop.f32.mrf.mxu0
      %v2685 = vadd.f32 0.0, %v2684
      %v2686 = vpop.f32.mrf.mxu0
      %v2687 = vpop.f32.mrf.mxu0
      %v2688 = vadd.f32 0.0, %v2687
      %v2689 = vpop.f32.mrf.mxu0
      %2690 = vdwg.mxu0
      %v2691 = vadd.f32 %v2539, %v2661
      %v2692 = vadd.f32 %v2540, %v2664
      %v2693 = vadd.f32 %v2541, %v2669
      %v2694 = vadd.f32 %v2542, %v2672
      %v2695 = vadd.f32 %v2543, %v2677
      %v2696 = vadd.f32 %v2544, %v2680
      %v2697 = vadd.f32 %v2545, %v2685
      %v2698 = vadd.f32 %v2546, %v2688
      %v2699 = vpack.c.bf16 %v2549, %v2548
      %v2700 = vpack.c.bf16 %v2551, %v2550
      %v2701 = vpack.c.bf16 %v2553, %v2552
      %v2702 = vpack.c.bf16 %v2555, %v2554
      %s2703 = scalar_lea.vmem %s9, 256
      %v2704 = vld [vmem:[%s2703] sm:$0xf]
      %v2705 = vld [vmem:[%s2703 + $0x4] sm:$0xf]
      %v2706 = vld [vmem:[%s2703 + $0x8] sm:$0xf]
      %v2707 = vld [vmem:[%s2703 + $0xc] sm:$0xf]
      %v2708 = vld [vmem:[%s2703 + $0x10] sm:$0xf]
      %v2709 = vld [vmem:[%s2703 + $0x14] sm:$0xf]
      %v2710 = vld [vmem:[%s2703 + $0x18] sm:$0xf]
      %v2711 = vld [vmem:[%s2703 + $0x1c] sm:$0xf]
      %v2712 = vld [vmem:[%s2703 + $0x20] sm:$0xf]
      %v2713 = vld [vmem:[%s2703 + $0x24] sm:$0xf]
      %v2714 = vld [vmem:[%s2703 + $0x28] sm:$0xf]
      %v2715 = vld [vmem:[%s2703 + $0x2c] sm:$0xf]
      %v2716 = vld [vmem:[%s2703 + $0x30] sm:$0xf]
      %v2717 = vld [vmem:[%s2703 + $0x34] sm:$0xf]
      %v2718 = vld [vmem:[%s2703 + $0x38] sm:$0xf]
      %v2719 = vld [vmem:[%s2703 + $0x3c] sm:$0xf]
      %v2736 = vunpack.c.l.b16 %v2704
      %v2737 = vunpack.c.l.b16 %v2705
      %v2738 = vunpack.c.l.b16 %v2706
      %v2739 = vunpack.c.l.b16 %v2707
      %v2740 = vunpack.c.l.b16 %v2708
      %v2741 = vunpack.c.l.b16 %v2709
      %v2742 = vunpack.c.l.b16 %v2710
      %v2743 = vunpack.c.l.b16 %v2711
      %v2744 = vunpack.c.l.b16 %v2712
      %v2745 = vunpack.c.l.b16 %v2713
      %v2746 = vunpack.c.l.b16 %v2714
      %v2747 = vunpack.c.l.b16 %v2715
      %v2748 = vunpack.c.l.b16 %v2716
      %v2749 = vunpack.c.l.b16 %v2717
      %v2750 = vunpack.c.l.b16 %v2718
      %v2751 = vunpack.c.l.b16 %v2719
      %v2752 = vpack.c.b16 %v2737, %v2736
      %v2753 = vpack.c.b16 %v2739, %v2738
      %v2754 = vpack.c.b16 %v2741, %v2740
      %v2755 = vpack.c.b16 %v2743, %v2742
      %v2756 = vpack.c.b16 %v2745, %v2744
      %v2757 = vpack.c.b16 %v2747, %v2746
      %v2758 = vpack.c.b16 %v2749, %v2748
      %v2759 = vpack.c.b16 %v2751, %v2750
      %2768 = vmatprep.subr.bf16.mxu0 0
      %2769 = vmatpush1.bf16.msra.mxu0 %v2759
      %2770 = vmatprep.subr.bf16.mxu0 0
      %2771 = vmatpush1.bf16.msra.mxu0 %v2758
      %2772 = vmatprep.subr.bf16.mxu0 0
      %2773 = vmatpush1.bf16.msra.mxu0 %v2757
      %2774 = vmatprep.subr.bf16.mxu0 0
      %2775 = vmatpush1.bf16.msra.mxu0 %v2756
      %2776 = vmatprep.subr.bf16.mxu0 0
      %2777 = vmatpush1.bf16.msra.mxu0 %v2755
      %2778 = vmatprep.subr.bf16.mxu0 0
      %2779 = vmatpush1.bf16.msra.mxu0 %v2754
      %2780 = vmatprep.subr.bf16.mxu0 0
      %2781 = vmatpush1.bf16.msra.mxu0 %v2753
      %2782 = vmatprep.subr.bf16.mxu0 0
      %2783 = vmatpush1.bf16.msra.mxu0 %v2752
      %2784 = vmatprep.subr.bf16.mxu0 0
      %2785 = vmatpush2.bf16.msra.mxu0 0
      %2786 = vmatprep.subr.bf16.mxu0 0
      %2787 = vmatpush2.bf16.msra.mxu0 0
      %2788 = vmatprep.subr.bf16.mxu0 0
      %2789 = vmatpush2.bf16.msra.mxu0 0
      %2790 = vmatprep.subr.bf16.mxu0 0
      %2791 = vmatpush2.bf16.msra.mxu0 0
      %2792 = vmatprep.subr.bf16.mxu0 0
      %2793 = vmatpush2.bf16.msra.mxu0 0
      %2794 = vmatprep.subr.bf16.mxu0 0
      %2795 = vmatpush2.bf16.msra.mxu0 0
      %2796 = vmatprep.subr.bf16.mxu0 0
      %2797 = vmatpush2.bf16.msra.mxu0 0
      %2798 = vmatprep.subr.bf16.mxu0 0
      %2799 = vmatpush2.bf16.msra.mxu0 0
      %2800 = vmatprep.mubr.bf16.mxu0 0
      %2801 = vmatmul.mubr.bf16.gmra.mxu0 %v2699
      %v2802 = vpop.f32.mrf.mxu0
      %v2803 = vadd.f32 0.0, %v2802
      %v2804 = vpop.f32.mrf.mxu0
      %v2805 = vpop.f32.mrf.mxu0
      %v2806 = vadd.f32 0.0, %v2805
      %v2807 = vpop.f32.mrf.mxu0
      %2808 = vmatprep.mubr.bf16.mxu0 0
      %2809 = vmatmul.mubr.bf16.gmra.mxu0 %v2700
      %v2810 = vpop.f32.mrf.mxu0
      %v2811 = vadd.f32 0.0, %v2810
      %v2812 = vpop.f32.mrf.mxu0
      %v2813 = vpop.f32.mrf.mxu0
      %v2814 = vadd.f32 0.0, %v2813
      %v2815 = vpop.f32.mrf.mxu0
      %2816 = vmatprep.mubr.bf16.mxu0 0
      %2817 = vmatmul.mubr.bf16.gmra.mxu0 %v2701
      %v2818 = vpop.f32.mrf.mxu0
      %v2819 = vadd.f32 0.0, %v2818
      %v2820 = vpop.f32.mrf.mxu0
      %v2821 = vpop.f32.mrf.mxu0
      %v2822 = vadd.f32 0.0, %v2821
      %v2823 = vpop.f32.mrf.mxu0
      %2824 = vmatprep.mubr.bf16.mxu0 0
      %2825 = vmatmul.mubr.bf16.gmra.mxu0 %v2702
      %v2826 = vpop.f32.mrf.mxu0
      %v2827 = vadd.f32 0.0, %v2826
      %v2828 = vpop.f32.mrf.mxu0
      %v2829 = vpop.f32.mrf.mxu0
      %v2830 = vadd.f32 0.0, %v2829
      %v2831 = vpop.f32.mrf.mxu0
      %2832 = vdwg.mxu0
      %v2833 = vadd.f32 %v2691, %v2803
      %v2834 = vadd.f32 %v2692, %v2806
      %v2835 = vadd.f32 %v2693, %v2811
      %v2836 = vadd.f32 %v2694, %v2814
      %v2837 = vadd.f32 %v2695, %v2819
      %v2838 = vadd.f32 %v2696, %v2822
      %v2839 = vadd.f32 %v2697, %v2827
      %v2840 = vadd.f32 %v2698, %v2830
      %v2841 = vpack.c.bf16 %v2556, %v2555
      %s2842 = scalar_lea.vmem %s9, 448
      %v2843 = vld [vmem:[%s2842] sm:$0xf]
      %v2844 = vld [vmem:[%s2842 + $0x4] sm:$0xf]
      %v2845 = vld [vmem:[%s2842 + $0x8] sm:$0xf]
      %v2846 = vld [vmem:[%s2842 + $0xc] sm:$0xf]
      %v2847 = vld [vmem:[%s2842 + $0x10] sm:$0xf]
      %v2848 = vld [vmem:[%s2842 + $0x14] sm:$0xf]
      %v2849 = vld [vmem:[%s2842 + $0x18] sm:$0xf]
      %v2850 = vld [vmem:[%s2842 + $0x1c] sm:$0xf]
      %v2851 = vld [vmem:[%s2842 + $0x20] sm:$0xf]
      %v2852 = vld [vmem:[%s2842 + $0x24] sm:$0xf]
      %v2853 = vld [vmem:[%s2842 + $0x28] sm:$0xf]
      %v2854 = vld [vmem:[%s2842 + $0x2c] sm:$0xf]
      %v2855 = vld [vmem:[%s2842 + $0x30] sm:$0xf]
      %v2856 = vld [vmem:[%s2842 + $0x34] sm:$0xf]
      %v2857 = vld [vmem:[%s2842 + $0x38] sm:$0xf]
      %v2858 = vld [vmem:[%s2842 + $0x3c] sm:$0xf]
      %v2875 = vunpack.c.l.b16 %v2843
      %v2876 = vunpack.c.l.b16 %v2844
      %v2877 = vunpack.c.l.b16 %v2845
      %v2878 = vunpack.c.l.b16 %v2846
      %v2879 = vunpack.c.l.b16 %v2847
      %v2880 = vunpack.c.l.b16 %v2848
      %v2881 = vunpack.c.l.b16 %v2849
      %v2882 = vunpack.c.l.b16 %v2850
      %v2883 = vunpack.c.l.b16 %v2851
      %v2884 = vunpack.c.l.b16 %v2852
      %v2885 = vunpack.c.l.b16 %v2853
      %v2886 = vunpack.c.l.b16 %v2854
      %v2887 = vunpack.c.l.b16 %v2855
      %v2888 = vunpack.c.l.b16 %v2856
      %v2889 = vunpack.c.l.b16 %v2857
      %v2890 = vunpack.c.l.b16 %v2858
      %v2891 = vpack.c.b16 %v2876, %v2875
      %v2892 = vpack.c.b16 %v2878, %v2877
      %v2893 = vpack.c.b16 %v2880, %v2879
      %v2894 = vpack.c.b16 %v2882, %v2881
      %v2895 = vpack.c.b16 %v2884, %v2883
      %v2896 = vpack.c.b16 %v2886, %v2885
      %v2897 = vpack.c.b16 %v2888, %v2887
      %v2898 = vpack.c.b16 %v2890, %v2889
      %2907 = vmatprep.subr.bf16.mxu0 0
      %2908 = vmatpush1.bf16.msra.mxu0 %v2898
      %2909 = vmatprep.subr.bf16.mxu0 0
      %2910 = vmatpush1.bf16.msra.mxu0 %v2897
      %2911 = vmatprep.subr.bf16.mxu0 0
      %2912 = vmatpush1.bf16.msra.mxu0 %v2896
      %2913 = vmatprep.subr.bf16.mxu0 0
      %2914 = vmatpush1.bf16.msra.mxu0 %v2895
      %2915 = vmatprep.subr.bf16.mxu0 0
      %2916 = vmatpush1.bf16.msra.mxu0 %v2894
      %2917 = vmatprep.subr.bf16.mxu0 0
      %2918 = vmatpush1.bf16.msra.mxu0 %v2893
      %2919 = vmatprep.subr.bf16.mxu0 0
      %2920 = vmatpush1.bf16.msra.mxu0 %v2892
      %2921 = vmatprep.subr.bf16.mxu0 0
      %2922 = vmatpush1.bf16.msra.mxu0 %v2891
      %2923 = vmatprep.subr.bf16.mxu0 0
      %2924 = vmatpush2.bf16.msra.mxu0 0
      %2925 = vmatprep.subr.bf16.mxu0 0
      %2926 = vmatpush2.bf16.msra.mxu0 0
      %2927 = vmatprep.subr.bf16.mxu0 0
      %2928 = vmatpush2.bf16.msra.mxu0 0
      %2929 = vmatprep.subr.bf16.mxu0 0
      %2930 = vmatpush2.bf16.msra.mxu0 0
      %2931 = vmatprep.subr.bf16.mxu0 0
      %2932 = vmatpush2.bf16.msra.mxu0 0
      %2933 = vmatprep.subr.bf16.mxu0 0
      %2934 = vmatpush2.bf16.msra.mxu0 0
      %2935 = vmatprep.subr.bf16.mxu0 0
      %2936 = vmatpush2.bf16.msra.mxu0 0
      %2937 = vmatprep.subr.bf16.mxu0 0
      %2938 = vmatpush2.bf16.msra.mxu0 0
      %2939 = vmatprep.mubr.bf16.mxu0 0
      %2940 = vmatmul.mubr.bf16.gmra.mxu0 %v2558
      %v2941 = vpop.f32.mrf.mxu0
      %v2942 = vadd.f32 0.0, %v2941
      %v2943 = vpop.f32.mrf.mxu0
      %v2944 = vpop.f32.mrf.mxu0
      %v2945 = vadd.f32 0.0, %v2944
      %v2946 = vpop.f32.mrf.mxu0
      %2947 = vmatprep.mubr.bf16.mxu0 0
      %2948 = vmatmul.mubr.bf16.gmra.mxu0 %v2559
      %v2949 = vpop.f32.mrf.mxu0
      %v2950 = vadd.f32 0.0, %v2949
      %v2951 = vpop.f32.mrf.mxu0
      %v2952 = vpop.f32.mrf.mxu0
      %v2953 = vadd.f32 0.0, %v2952
      %v2954 = vpop.f32.mrf.mxu0
      %2955 = vmatprep.mubr.bf16.mxu0 0
      %2956 = vmatmul.mubr.bf16.gmra.mxu0 %v2560
      %v2957 = vpop.f32.mrf.mxu0
      %v2958 = vadd.f32 0.0, %v2957
      %v2959 = vpop.f32.mrf.mxu0
      %v2960 = vpop.f32.mrf.mxu0
      %v2961 = vadd.f32 0.0, %v2960
      %v2962 = vpop.f32.mrf.mxu0
      %2963 = vmatprep.mubr.bf16.mxu0 0
      %2964 = vmatmul.mubr.bf16.gmra.mxu0 %v2841
      %v2965 = vpop.f32.mrf.mxu0
      %v2966 = vadd.f32 0.0, %v2965
      %v2967 = vpop.f32.mrf.mxu0
      %v2968 = vpop.f32.mrf.mxu0
      %v2969 = vadd.f32 0.0, %v2968
      %v2970 = vpop.f32.mrf.mxu0
      %2971 = vdwg.mxu0
      %v2972 = vadd.f32 %v2833, %v2942
      %v2973 = vadd.f32 %v2834, %v2945
      %v2974 = vadd.f32 %v2835, %v2950
      %v2975 = vadd.f32 %v2836, %v2953
      %v2976 = vadd.f32 %v2837, %v2958
      %v2977 = vadd.f32 %v2838, %v2961
      %v2978 = vadd.f32 %v2839, %v2966
      %v2979 = vadd.f32 %v2840, %v2969
      %v2980 = vld [vmem:[#allocation6 + $0x2] sm:$0xff]
      %v2981 = vld [vmem:[#allocation6 + $0x12] sm:$0xff]
      %v2982 = vld [vmem:[#allocation6 + $0x22] sm:$0xff]
      %v2983 = vld [vmem:[#allocation6 + $0x32] sm:$0xff]
      %v2984 = vld [vmem:[#allocation6 + $0x42] sm:$0xff]
      %v2985 = vld [vmem:[#allocation6 + $0x52] sm:$0xff]
      %v2986 = vld [vmem:[#allocation6 + $0x62] sm:$0xff]
      %v2987 = vld [vmem:[#allocation6 + $0x72] sm:$0xff]
      %v2988 = vld [vmem:[#allocation6 + $0x82] sm:$0xff]
      %v2989 = vld [vmem:[#allocation6 + $0x92] sm:$0xff]
      %v2990 = vpack.c.bf16 %v2981, %v2980
      %v2991 = vpack.c.bf16 %v2983, %v2982
      %v2992 = vpack.c.bf16 %v2985, %v2984
      %v2993 = vpack.c.bf16 %v2987, %v2986
      %s2994 = scalar_lea.vmem %s9, 128
      %v2995 = vld [vmem:[%s2994] sm:$0xf]
      %v2996 = vld [vmem:[%s2994 + $0x4] sm:$0xf]
      %v2997 = vld [vmem:[%s2994 + $0x8] sm:$0xf]
      %v2998 = vld [vmem:[%s2994 + $0xc] sm:$0xf]
      %v2999 = vld [vmem:[%s2994 + $0x10] sm:$0xf]
      %v3000 = vld [vmem:[%s2994 + $0x14] sm:$0xf]
      %v3001 = vld [vmem:[%s2994 + $0x18] sm:$0xf]
      %v3002 = vld [vmem:[%s2994 + $0x1c] sm:$0xf]
      %v3003 = vld [vmem:[%s2994 + $0x20] sm:$0xf]
      %v3004 = vld [vmem:[%s2994 + $0x24] sm:$0xf]
      %v3005 = vld [vmem:[%s2994 + $0x28] sm:$0xf]
      %v3006 = vld [vmem:[%s2994 + $0x2c] sm:$0xf]
      %v3007 = vld [vmem:[%s2994 + $0x30] sm:$0xf]
      %v3008 = vld [vmem:[%s2994 + $0x34] sm:$0xf]
      %v3009 = vld [vmem:[%s2994 + $0x38] sm:$0xf]
      %v3010 = vld [vmem:[%s2994 + $0x3c] sm:$0xf]
      %v3027 = vunpack.c.l.b16 %v2995
      %v3028 = vunpack.c.l.b16 %v2996
      %v3029 = vunpack.c.l.b16 %v2997
      %v3030 = vunpack.c.l.b16 %v2998
      %v3031 = vunpack.c.l.b16 %v2999
      %v3032 = vunpack.c.l.b16 %v3000
      %v3033 = vunpack.c.l.b16 %v3001
      %v3034 = vunpack.c.l.b16 %v3002
      %v3035 = vunpack.c.l.b16 %v3003
      %v3036 = vunpack.c.l.b16 %v3004
      %v3037 = vunpack.c.l.b16 %v3005
      %v3038 = vunpack.c.l.b16 %v3006
      %v3039 = vunpack.c.l.b16 %v3007
      %v3040 = vunpack.c.l.b16 %v3008
      %v3041 = vunpack.c.l.b16 %v3009
      %v3042 = vunpack.c.l.b16 %v3010
      %v3043 = vpack.c.b16 %v3028, %v3027
      %v3044 = vpack.c.b16 %v3030, %v3029
      %v3045 = vpack.c.b16 %v3032, %v3031
      %v3046 = vpack.c.b16 %v3034, %v3033
      %v3047 = vpack.c.b16 %v3036, %v3035
      %v3048 = vpack.c.b16 %v3038, %v3037
      %v3049 = vpack.c.b16 %v3040, %v3039
      %v3050 = vpack.c.b16 %v3042, %v3041
      %3059 = vmatprep.subr.bf16.mxu0 0
      %3060 = vmatpush1.bf16.msra.mxu0 %v3050
      %3061 = vmatprep.subr.bf16.mxu0 0
      %3062 = vmatpush1.bf16.msra.mxu0 %v3049
      %3063 = vmatprep.subr.bf16.mxu0 0
      %3064 = vmatpush1.bf16.msra.mxu0 %v3048
      %3065 = vmatprep.subr.bf16.mxu0 0
      %3066 = vmatpush1.bf16.msra.mxu0 %v3047
      %3067 = vmatprep.subr.bf16.mxu0 0
      %3068 = vmatpush1.bf16.msra.mxu0 %v3046
      %3069 = vmatprep.subr.bf16.mxu0 0
      %3070 = vmatpush1.bf16.msra.mxu0 %v3045
      %3071 = vmatprep.subr.bf16.mxu0 0
      %3072 = vmatpush1.bf16.msra.mxu0 %v3044
      %3073 = vmatprep.subr.bf16.mxu0 0
      %3074 = vmatpush1.bf16.msra.mxu0 %v3043
      %3075 = vmatprep.subr.bf16.mxu0 0
      %3076 = vmatpush2.bf16.msra.mxu0 0
      %3077 = vmatprep.subr.bf16.mxu0 0
      %3078 = vmatpush2.bf16.msra.mxu0 0
      %3079 = vmatprep.subr.bf16.mxu0 0
      %3080 = vmatpush2.bf16.msra.mxu0 0
      %3081 = vmatprep.subr.bf16.mxu0 0
      %3082 = vmatpush2.bf16.msra.mxu0 0
      %3083 = vmatprep.subr.bf16.mxu0 0
      %3084 = vmatpush2.bf16.msra.mxu0 0
      %3085 = vmatprep.subr.bf16.mxu0 0
      %3086 = vmatpush2.bf16.msra.mxu0 0
      %3087 = vmatprep.subr.bf16.mxu0 0
      %3088 = vmatpush2.bf16.msra.mxu0 0
      %3089 = vmatprep.subr.bf16.mxu0 0
      %3090 = vmatpush2.bf16.msra.mxu0 0
      %3091 = vmatprep.mubr.bf16.mxu0 0
      %3092 = vmatmul.mubr.bf16.gmra.mxu0 %v2990
      %v3093 = vpop.f32.mrf.mxu0
      %v3094 = vadd.f32 0.0, %v3093
      %v3095 = vpop.f32.mrf.mxu0
      %v3096 = vpop.f32.mrf.mxu0
      %v3097 = vadd.f32 0.0, %v3096
      %v3098 = vpop.f32.mrf.mxu0
      %3099 = vmatprep.mubr.bf16.mxu0 0
      %3100 = vmatmul.mubr.bf16.gmra.mxu0 %v2991
      %v3101 = vpop.f32.mrf.mxu0
      %v3102 = vadd.f32 0.0, %v3101
      %v3103 = vpop.f32.mrf.mxu0
      %v3104 = vpop.f32.mrf.mxu0
      %v3105 = vadd.f32 0.0, %v3104
      %v3106 = vpop.f32.mrf.mxu0
      %3107 = vmatprep.mubr.bf16.mxu0 0
      %3108 = vmatmul.mubr.bf16.gmra.mxu0 %v2992
      %v3109 = vpop.f32.mrf.mxu0
      %v3110 = vadd.f32 0.0, %v3109
      %v3111 = vpop.f32.mrf.mxu0
      %v3112 = vpop.f32.mrf.mxu0
      %v3113 = vadd.f32 0.0, %v3112
      %v3114 = vpop.f32.mrf.mxu0
      %3115 = vmatprep.mubr.bf16.mxu0 0
      %3116 = vmatmul.mubr.bf16.gmra.mxu0 %v2993
      %v3117 = vpop.f32.mrf.mxu0
      %v3118 = vadd.f32 0.0, %v3117
      %v3119 = vpop.f32.mrf.mxu0
      %v3120 = vpop.f32.mrf.mxu0
      %v3121 = vadd.f32 0.0, %v3120
      %v3122 = vpop.f32.mrf.mxu0
      %3123 = vdwg.mxu0
      %v3124 = vadd.f32 %v2972, %v3094
      %v3125 = vadd.f32 %v2973, %v3097
      %v3126 = vadd.f32 %v2974, %v3102
      %v3127 = vadd.f32 %v2975, %v3105
      %v3128 = vadd.f32 %v2976, %v3110
      %v3129 = vadd.f32 %v2977, %v3113
      %v3130 = vadd.f32 %v2978, %v3118
      %v3131 = vadd.f32 %v2979, %v3121
      %v3132 = vpack.c.bf16 %v2982, %v2981
      %v3133 = vpack.c.bf16 %v2984, %v2983
      %v3134 = vpack.c.bf16 %v2986, %v2985
      %v3135 = vpack.c.bf16 %v2988, %v2987
      %s3136 = scalar_lea.vmem %s9, 320
      %v3137 = vld [vmem:[%s3136] sm:$0xf]
      %v3138 = vld [vmem:[%s3136 + $0x4] sm:$0xf]
      %v3139 = vld [vmem:[%s3136 + $0x8] sm:$0xf]
      %v3140 = vld [vmem:[%s3136 + $0xc] sm:$0xf]
      %v3141 = vld [vmem:[%s3136 + $0x10] sm:$0xf]
      %v3142 = vld [vmem:[%s3136 + $0x14] sm:$0xf]
      %v3143 = vld [vmem:[%s3136 + $0x18] sm:$0xf]
      %v3144 = vld [vmem:[%s3136 + $0x1c] sm:$0xf]
      %v3145 = vld [vmem:[%s3136 + $0x20] sm:$0xf]
      %v3146 = vld [vmem:[%s3136 + $0x24] sm:$0xf]
      %v3147 = vld [vmem:[%s3136 + $0x28] sm:$0xf]
      %v3148 = vld [vmem:[%s3136 + $0x2c] sm:$0xf]
      %v3149 = vld [vmem:[%s3136 + $0x30] sm:$0xf]
      %v3150 = vld [vmem:[%s3136 + $0x34] sm:$0xf]
      %v3151 = vld [vmem:[%s3136 + $0x38] sm:$0xf]
      %v3152 = vld [vmem:[%s3136 + $0x3c] sm:$0xf]
      %v3169 = vunpack.c.l.b16 %v3137
      %v3170 = vunpack.c.l.b16 %v3138
      %v3171 = vunpack.c.l.b16 %v3139
      %v3172 = vunpack.c.l.b16 %v3140
      %v3173 = vunpack.c.l.b16 %v3141
      %v3174 = vunpack.c.l.b16 %v3142
      %v3175 = vunpack.c.l.b16 %v3143
      %v3176 = vunpack.c.l.b16 %v3144
      %v3177 = vunpack.c.l.b16 %v3145
      %v3178 = vunpack.c.l.b16 %v3146
      %v3179 = vunpack.c.l.b16 %v3147
      %v3180 = vunpack.c.l.b16 %v3148
      %v3181 = vunpack.c.l.b16 %v3149
      %v3182 = vunpack.c.l.b16 %v3150
      %v3183 = vunpack.c.l.b16 %v3151
      %v3184 = vunpack.c.l.b16 %v3152
      %v3185 = vpack.c.b16 %v3170, %v3169
      %v3186 = vpack.c.b16 %v3172, %v3171
      %v3187 = vpack.c.b16 %v3174, %v3173
      %v3188 = vpack.c.b16 %v3176, %v3175
      %v3189 = vpack.c.b16 %v3178, %v3177
      %v3190 = vpack.c.b16 %v3180, %v3179
      %v3191 = vpack.c.b16 %v3182, %v3181
      %v3192 = vpack.c.b16 %v3184, %v3183
      %3201 = vmatprep.subr.bf16.mxu0 0
      %3202 = vmatpush1.bf16.msra.mxu0 %v3192
      %3203 = vmatprep.subr.bf16.mxu0 0
      %3204 = vmatpush1.bf16.msra.mxu0 %v3191
      %3205 = vmatprep.subr.bf16.mxu0 0
      %3206 = vmatpush1.bf16.msra.mxu0 %v3190
      %3207 = vmatprep.subr.bf16.mxu0 0
      %3208 = vmatpush1.bf16.msra.mxu0 %v3189
      %3209 = vmatprep.subr.bf16.mxu0 0
      %3210 = vmatpush1.bf16.msra.mxu0 %v3188
      %3211 = vmatprep.subr.bf16.mxu0 0
      %3212 = vmatpush1.bf16.msra.mxu0 %v3187
      %3213 = vmatprep.subr.bf16.mxu0 0
      %3214 = vmatpush1.bf16.msra.mxu0 %v3186
      %3215 = vmatprep.subr.bf16.mxu0 0
      %3216 = vmatpush1.bf16.msra.mxu0 %v3185
      %3217 = vmatprep.subr.bf16.mxu0 0
      %3218 = vmatpush2.bf16.msra.mxu0 0
      %3219 = vmatprep.subr.bf16.mxu0 0
      %3220 = vmatpush2.bf16.msra.mxu0 0
      %3221 = vmatprep.subr.bf16.mxu0 0
      %3222 = vmatpush2.bf16.msra.mxu0 0
      %3223 = vmatprep.subr.bf16.mxu0 0
      %3224 = vmatpush2.bf16.msra.mxu0 0
      %3225 = vmatprep.subr.bf16.mxu0 0
      %3226 = vmatpush2.bf16.msra.mxu0 0
      %3227 = vmatprep.subr.bf16.mxu0 0
      %3228 = vmatpush2.bf16.msra.mxu0 0
      %3229 = vmatprep.subr.bf16.mxu0 0
      %3230 = vmatpush2.bf16.msra.mxu0 0
      %3231 = vmatprep.subr.bf16.mxu0 0
      %3232 = vmatpush2.bf16.msra.mxu0 0
      %3233 = vmatprep.mubr.bf16.mxu0 0
      %3234 = vmatmul.mubr.bf16.gmra.mxu0 %v3132
      %v3235 = vpop.f32.mrf.mxu0
      %v3236 = vadd.f32 0.0, %v3235
      %v3237 = vpop.f32.mrf.mxu0
      %v3238 = vpop.f32.mrf.mxu0
      %v3239 = vadd.f32 0.0, %v3238
      %v3240 = vpop.f32.mrf.mxu0
      %3241 = vmatprep.mubr.bf16.mxu0 0
      %3242 = vmatmul.mubr.bf16.gmra.mxu0 %v3133
      %v3243 = vpop.f32.mrf.mxu0
      %v3244 = vadd.f32 0.0, %v3243
      %v3245 = vpop.f32.mrf.mxu0
      %v3246 = vpop.f32.mrf.mxu0
      %v3247 = vadd.f32 0.0, %v3246
      %v3248 = vpop.f32.mrf.mxu0
      %3249 = vmatprep.mubr.bf16.mxu0 0
      %3250 = vmatmul.mubr.bf16.gmra.mxu0 %v3134
      %v3251 = vpop.f32.mrf.mxu0
      %v3252 = vadd.f32 0.0, %v3251
      %v3253 = vpop.f32.mrf.mxu0
      %v3254 = vpop.f32.mrf.mxu0
      %v3255 = vadd.f32 0.0, %v3254
      %v3256 = vpop.f32.mrf.mxu0
      %3257 = vmatprep.mubr.bf16.mxu0 0
      %3258 = vmatmul.mubr.bf16.gmra.mxu0 %v3135
      %v3259 = vpop.f32.mrf.mxu0
      %v3260 = vadd.f32 0.0, %v3259
      %v3261 = vpop.f32.mrf.mxu0
      %v3262 = vpop.f32.mrf.mxu0
      %v3263 = vadd.f32 0.0, %v3262
      %v3264 = vpop.f32.mrf.mxu0
      %3265 = vdwg.mxu0
      %v3266 = vadd.f32 %v3124, %v3236
      %v3267 = vadd.f32 %v3125, %v3239
      %v3268 = vadd.f32 %v3126, %v3244
      %v3269 = vadd.f32 %v3127, %v3247
      %v3270 = vadd.f32 %v3128, %v3252
      %v3271 = vadd.f32 %v3129, %v3255
      %v3272 = vadd.f32 %v3130, %v3260
      %v3273 = vadd.f32 %v3131, %v3263
      %v3274 = vpack.c.bf16 %v2989, %v2988
      %s3275 = scalar_lea.vmem %s9, 512
      %v3276 = vld [vmem:[%s3275] sm:$0xf]
      %v3277 = vld [vmem:[%s3275 + $0x4] sm:$0xf]
      %v3278 = vld [vmem:[%s3275 + $0x8] sm:$0xf]
      %v3279 = vld [vmem:[%s3275 + $0xc] sm:$0xf]
      %v3280 = vld [vmem:[%s3275 + $0x10] sm:$0xf]
      %v3281 = vld [vmem:[%s3275 + $0x14] sm:$0xf]
      %v3282 = vld [vmem:[%s3275 + $0x18] sm:$0xf]
      %v3283 = vld [vmem:[%s3275 + $0x1c] sm:$0xf]
      %v3284 = vld [vmem:[%s3275 + $0x20] sm:$0xf]
      %v3285 = vld [vmem:[%s3275 + $0x24] sm:$0xf]
      %v3286 = vld [vmem:[%s3275 + $0x28] sm:$0xf]
      %v3287 = vld [vmem:[%s3275 + $0x2c] sm:$0xf]
      %v3288 = vld [vmem:[%s3275 + $0x30] sm:$0xf]
      %v3289 = vld [vmem:[%s3275 + $0x34] sm:$0xf]
      %v3290 = vld [vmem:[%s3275 + $0x38] sm:$0xf]
      %v3291 = vld [vmem:[%s3275 + $0x3c] sm:$0xf]
      %v3308 = vunpack.c.l.b16 %v3276
      %v3309 = vunpack.c.l.b16 %v3277
      %v3310 = vunpack.c.l.b16 %v3278
      %v3311 = vunpack.c.l.b16 %v3279
      %v3312 = vunpack.c.l.b16 %v3280
      %v3313 = vunpack.c.l.b16 %v3281
      %v3314 = vunpack.c.l.b16 %v3282
      %v3315 = vunpack.c.l.b16 %v3283
      %v3316 = vunpack.c.l.b16 %v3284
      %v3317 = vunpack.c.l.b16 %v3285
      %v3318 = vunpack.c.l.b16 %v3286
      %v3319 = vunpack.c.l.b16 %v3287
      %v3320 = vunpack.c.l.b16 %v3288
      %v3321 = vunpack.c.l.b16 %v3289
      %v3322 = vunpack.c.l.b16 %v3290
      %v3323 = vunpack.c.l.b16 %v3291
      %v3324 = vpack.c.b16 %v3309, %v3308
      %v3325 = vpack.c.b16 %v3311, %v3310
      %v3326 = vpack.c.b16 %v3313, %v3312
      %v3327 = vpack.c.b16 %v3315, %v3314
      %v3328 = vpack.c.b16 %v3317, %v3316
      %v3329 = vpack.c.b16 %v3319, %v3318
      %v3330 = vpack.c.b16 %v3321, %v3320
      %v3331 = vpack.c.b16 %v3323, %v3322
      %3340 = vmatprep.subr.bf16.mxu0 0
      %3341 = vmatpush1.bf16.msra.mxu0 %v3331
      %3342 = vmatprep.subr.bf16.mxu0 0
      %3343 = vmatpush1.bf16.msra.mxu0 %v3330
      %3344 = vmatprep.subr.bf16.mxu0 0
      %3345 = vmatpush1.bf16.msra.mxu0 %v3329
      %3346 = vmatprep.subr.bf16.mxu0 0
      %3347 = vmatpush1.bf16.msra.mxu0 %v3328
      %3348 = vmatprep.subr.bf16.mxu0 0
      %3349 = vmatpush1.bf16.msra.mxu0 %v3327
      %3350 = vmatprep.subr.bf16.mxu0 0
      %3351 = vmatpush1.bf16.msra.mxu0 %v3326
      %3352 = vmatprep.subr.bf16.mxu0 0
      %3353 = vmatpush1.bf16.msra.mxu0 %v3325
      %3354 = vmatprep.subr.bf16.mxu0 0
      %3355 = vmatpush1.bf16.msra.mxu0 %v3324
      %3356 = vmatprep.subr.bf16.mxu0 0
      %3357 = vmatpush2.bf16.msra.mxu0 0
      %3358 = vmatprep.subr.bf16.mxu0 0
      %3359 = vmatpush2.bf16.msra.mxu0 0
      %3360 = vmatprep.subr.bf16.mxu0 0
      %3361 = vmatpush2.bf16.msra.mxu0 0
      %3362 = vmatprep.subr.bf16.mxu0 0
      %3363 = vmatpush2.bf16.msra.mxu0 0
      %3364 = vmatprep.subr.bf16.mxu0 0
      %3365 = vmatpush2.bf16.msra.mxu0 0
      %3366 = vmatprep.subr.bf16.mxu0 0
      %3367 = vmatpush2.bf16.msra.mxu0 0
      %3368 = vmatprep.subr.bf16.mxu0 0
      %3369 = vmatpush2.bf16.msra.mxu0 0
      %3370 = vmatprep.subr.bf16.mxu0 0
      %3371 = vmatpush2.bf16.msra.mxu0 0
      %3372 = vmatprep.mubr.bf16.mxu0 0
      %3373 = vmatmul.mubr.bf16.gmra.mxu0 %v2991
      %v3374 = vpop.f32.mrf.mxu0
      %v3375 = vadd.f32 0.0, %v3374
      %v3376 = vpop.f32.mrf.mxu0
      %v3377 = vpop.f32.mrf.mxu0
      %v3378 = vadd.f32 0.0, %v3377
      %v3379 = vpop.f32.mrf.mxu0
      %3380 = vmatprep.mubr.bf16.mxu0 0
      %3381 = vmatmul.mubr.bf16.gmra.mxu0 %v2992
      %v3382 = vpop.f32.mrf.mxu0
      %v3383 = vadd.f32 0.0, %v3382
      %v3384 = vpop.f32.mrf.mxu0
      %v3385 = vpop.f32.mrf.mxu0
      %v3386 = vadd.f32 0.0, %v3385
      %v3387 = vpop.f32.mrf.mxu0
      %3388 = vmatprep.mubr.bf16.mxu0 0
      %3389 = vmatmul.mubr.bf16.gmra.mxu0 %v2993
      %v3390 = vpop.f32.mrf.mxu0
      %v3391 = vadd.f32 0.0, %v3390
      %v3392 = vpop.f32.mrf.mxu0
      %v3393 = vpop.f32.mrf.mxu0
      %v3394 = vadd.f32 0.0, %v3393
      %v3395 = vpop.f32.mrf.mxu0
      %3396 = vmatprep.mubr.bf16.mxu0 0
      %3397 = vmatmul.mubr.bf16.gmra.mxu0 %v3274
      %v3398 = vpop.f32.mrf.mxu0
      %v3399 = vadd.f32 0.0, %v3398
      %v3400 = vpop.f32.mrf.mxu0
      %v3401 = vpop.f32.mrf.mxu0
      %v3402 = vadd.f32 0.0, %v3401
      %v3403 = vpop.f32.mrf.mxu0
      %3404 = vdwg.mxu0
      %v3405 = vadd.f32 %v3266, %v3375
      %v3406 = vadd.f32 %v3267, %v3378
      %v3407 = vadd.f32 %v3268, %v3383
      %v3408 = vadd.f32 %v3269, %v3386
      %v3409 = vadd.f32 %v3270, %v3391
      %v3410 = vadd.f32 %v3271, %v3394
      %v3411 = vadd.f32 %v3272, %v3399
      %v3412 = vadd.f32 %v3273, %v3402
      %v3413 = vld [vmem:[%s480] sm:$0xff]
      %v3414 = vld [vmem:[%s480 + $0x8] sm:$0xff]
      %v3415 = vld [vmem:[%s480 + $0x10] sm:$0xff]
      %v3416 = vld [vmem:[%s480 + $0x18] sm:$0xff]
      %v3417 = vld [vmem:[%s480 + $0x20] sm:$0xff]
      %v3418 = vld [vmem:[%s480 + $0x28] sm:$0xff]
      %v3419 = vld [vmem:[%s480 + $0x30] sm:$0xff]
      %v3420 = vld [vmem:[%s480 + $0x38] sm:$0xff]
      %v3421 = vpack.c.bf16 %v3414, %v3413
      %v3422 = vpack.c.bf16 %v3416, %v3415
      %v3423 = vpack.c.bf16 %v3418, %v3417
      %v3424 = vpack.c.bf16 %v3420, %v3419
      %v3425 = vld [vmem:[%s11] sm:$0xf]
      %v3426 = vld [vmem:[%s11 + $0x4] sm:$0xf]
      %v3427 = vld [vmem:[%s11 + $0x8] sm:$0xf]
      %v3428 = vld [vmem:[%s11 + $0xc] sm:$0xf]
      %v3429 = vld [vmem:[%s11 + $0x10] sm:$0xf]
      %v3430 = vld [vmem:[%s11 + $0x14] sm:$0xf]
      %v3431 = vld [vmem:[%s11 + $0x18] sm:$0xf]
      %v3432 = vld [vmem:[%s11 + $0x1c] sm:$0xf]
      %v3433 = vld [vmem:[%s11 + $0x20] sm:$0xf]
      %v3434 = vld [vmem:[%s11 + $0x24] sm:$0xf]
      %v3435 = vld [vmem:[%s11 + $0x28] sm:$0xf]
      %v3436 = vld [vmem:[%s11 + $0x2c] sm:$0xf]
      %v3437 = vld [vmem:[%s11 + $0x30] sm:$0xf]
      %v3438 = vld [vmem:[%s11 + $0x34] sm:$0xf]
      %v3439 = vld [vmem:[%s11 + $0x38] sm:$0xf]
      %v3440 = vld [vmem:[%s11 + $0x3c] sm:$0xf]
      %v3441 = vld [vmem:[%s12] sm:$0x1]
      %v3443 = vlaneseq
      %v3444 = vshrl.u32 %v3443, 7
      %v3445 = vsub.s32 0, %v3444
      %v3446 = vrot.slane %v3441, %v3445
      %v3464 = vunpack.c.l.b16 %v3425
      %v3465 = vunpack.c.l.b16 %v3426
      %v3466 = vunpack.c.l.b16 %v3427
      %v3467 = vunpack.c.l.b16 %v3428
      %v3468 = vunpack.c.l.b16 %v3429
      %v3469 = vunpack.c.l.b16 %v3430
      %v3470 = vunpack.c.l.b16 %v3431
      %v3471 = vunpack.c.l.b16 %v3432
      %v3472 = vunpack.c.l.b16 %v3433
      %v3473 = vunpack.c.l.b16 %v3434
      %v3474 = vunpack.c.l.b16 %v3435
      %v3475 = vunpack.c.l.b16 %v3436
      %v3476 = vunpack.c.l.b16 %v3437
      %v3477 = vunpack.c.l.b16 %v3438
      %v3478 = vunpack.c.l.b16 %v3439
      %v3479 = vunpack.c.l.b16 %v3440
      %v3480 = vpack.c.b16 %v3465, %v3464
      %v3481 = vpack.c.b16 %v3467, %v3466
      %v3482 = vpack.c.b16 %v3469, %v3468
      %v3483 = vpack.c.b16 %v3471, %v3470
      %v3484 = vpack.c.b16 %v3473, %v3472
      %v3485 = vpack.c.b16 %v3475, %v3474
      %v3486 = vpack.c.b16 %v3477, %v3476
      %v3487 = vpack.c.b16 %v3479, %v3478
      %3496 = vmatprep.subr.bf16.mxu0 0
      %3497 = vmatpush1.bf16.msra.mxu0 %v3487
      %3498 = vmatprep.subr.bf16.mxu0 0
      %3499 = vmatpush1.bf16.msra.mxu0 %v3486
      %3500 = vmatprep.subr.bf16.mxu0 0
      %3501 = vmatpush1.bf16.msra.mxu0 %v3485
      %3502 = vmatprep.subr.bf16.mxu0 0
      %3503 = vmatpush1.bf16.msra.mxu0 %v3484
      %3504 = vmatprep.subr.bf16.mxu0 0
      %3505 = vmatpush1.bf16.msra.mxu0 %v3483
      %3506 = vmatprep.subr.bf16.mxu0 0
      %3507 = vmatpush1.bf16.msra.mxu0 %v3482
      %3508 = vmatprep.subr.bf16.mxu0 0
      %3509 = vmatpush1.bf16.msra.mxu0 %v3481
      %3510 = vmatprep.subr.bf16.mxu0 0
      %3511 = vmatpush1.bf16.msra.mxu0 %v3480
      %3512 = vmatprep.subr.bf16.mxu0 0
      %3513 = vmatpush2.bf16.msra.mxu0 0
      %3514 = vmatprep.subr.bf16.mxu0 0
      %3515 = vmatpush2.bf16.msra.mxu0 0
      %3516 = vmatprep.subr.bf16.mxu0 0
      %3517 = vmatpush2.bf16.msra.mxu0 0
      %3518 = vmatprep.subr.bf16.mxu0 0
      %3519 = vmatpush2.bf16.msra.mxu0 0
      %3520 = vmatprep.subr.bf16.mxu0 0
      %3521 = vmatpush2.bf16.msra.mxu0 0
      %3522 = vmatprep.subr.bf16.mxu0 0
      %3523 = vmatpush2.bf16.msra.mxu0 0
      %3524 = vmatprep.subr.bf16.mxu0 0
      %3525 = vmatpush2.bf16.msra.mxu0 0
      %3526 = vmatprep.subr.bf16.mxu0 0
      %3527 = vmatpush2.bf16.msra.mxu0 0
      %3528 = vmatprep.mubr.bf16.mxu0 0
      %3529 = vmatmul.mubr.bf16.gmra.mxu0 %v3421
      %v3530 = vpop.f32.mrf.mxu0
      %v3531 = vadd.f32 %v3446, %v3530
      %v3532 = vpop.f32.mrf.mxu0
      %v3533 = vpop.f32.mrf.mxu0
      %v3534 = vadd.f32 %v3446, %v3533
      %v3535 = vpop.f32.mrf.mxu0
      %3536 = vmatprep.mubr.bf16.mxu0 0
      %3537 = vmatmul.mubr.bf16.gmra.mxu0 %v3422
      %v3538 = vpop.f32.mrf.mxu0
      %v3539 = vadd.f32 %v3446, %v3538
      %v3540 = vpop.f32.mrf.mxu0
      %v3541 = vpop.f32.mrf.mxu0
      %v3542 = vadd.f32 %v3446, %v3541
      %v3543 = vpop.f32.mrf.mxu0
      %3544 = vmatprep.mubr.bf16.mxu0 0
      %3545 = vmatmul.mubr.bf16.gmra.mxu0 %v3423
      %v3546 = vpop.f32.mrf.mxu0
      %v3547 = vadd.f32 %v3446, %v3546
      %v3548 = vpop.f32.mrf.mxu0
      %v3549 = vpop.f32.mrf.mxu0
      %v3550 = vadd.f32 %v3446, %v3549
      %v3551 = vpop.f32.mrf.mxu0
      %3552 = vmatprep.mubr.bf16.mxu0 0
      %3553 = vmatmul.mubr.bf16.gmra.mxu0 %v3424
      %v3554 = vpop.f32.mrf.mxu0
      %v3555 = vadd.f32 %v3446, %v3554
      %v3556 = vpop.f32.mrf.mxu0
      %v3557 = vpop.f32.mrf.mxu0
      %v3558 = vadd.f32 %v3446, %v3557
      %v3559 = vpop.f32.mrf.mxu0
      %3560 = vdwg.mxu0
      %v3561 = vadd.f32 %v3405, %v3531
      %v3562 = vadd.f32 %v3406, %v3534
      %v3563 = vadd.f32 %v3407, %v3539
      %v3564 = vadd.f32 %v3408, %v3542
      %v3565 = vadd.f32 %v3409, %v3547
      %v3566 = vadd.f32 %v3410, %v3550
      %v3567 = vadd.f32 %v3411, %v3555
      %v3568 = vadd.f32 %v3412, %v3558
      %3569 = vst [vmem:[%s500] sm:$0xff] %v3561
      %3570 = vst [vmem:[%s500 + $0x8] sm:$0xff] %v3562
      %3571 = vst [vmem:[%s500 + $0x10] sm:$0xff] %v3563
      %3572 = vst [vmem:[%s500 + $0x18] sm:$0xff] %v3564
      %3573 = vst [vmem:[%s500 + $0x20] sm:$0xff] %v3565
      %3574 = vst [vmem:[%s500 + $0x28] sm:$0xff] %v3566
      %3575 = vst [vmem:[%s500 + $0x30] sm:$0xff] %v3567
      %3576 = vst [vmem:[%s500 + $0x38] sm:$0xff] %v3568
      %p3577 = scmp.lt.s32.totalorder %s24, 1
      %s3578 = scalar_select %p3577, %s24, 1
      %s3579 = smul.addr %s3578, 8
      %s3580 = smul.addr %s3579, 8
      %s3581 = scalar_lea.vmem %s13, %s3580
      // Predicated region
      $region73: #{stack_layer_forward.2} parent=71 // pred_check
        %p3582 = pneg %p335
      $region74: #{stack_layer_forward.2} parent=71 // pred_check_branch
        %3584 = sbr.rel (%p3582) target = $region76
      $region75: #{stack_layer_forward.2} parent=71 // pred_region
        _
      $region76: #{stack_layer_forward.2} parent=71 // pred_fallthru
        _
    $region72: #{stack_layer_forward.2} parent=5 // pred_fallthru
      _
    %p3585 = scmp.le.s32.totalorder 2, %s19
    // Predicated region
    $region77: #{stack_layer_forward.2} parent=5 // pred_check
      %p3586 = pneg %p3585
    $region78: #{stack_layer_forward.2} parent=5 // pred_check_branch
      %3588 = sbr.rel (%p3586) target = $region80
    $region79: #{stack_layer_forward.2} parent=5 // pred_region
      %s3589 = ssub.s32 %s19, 2
      // Predicated region
      $region81: #{stack_layer_forward.2} parent=79 // pred_check
        %p3590 = pneg %p341
      $region82: #{stack_layer_forward.2} parent=79 // pred_check_branch
        %3592 = sbr.rel (%p3590) target = $region84
      $region83: #{stack_layer_forward.2} parent=79 // pred_region
        %p3593 = scmp.lt.s32.totalorder %s25, 1
        %s3594 = scalar_select %p3593, %s25, 1
        %s3595 = smul.addr %s3594, 8
        %s3596 = smul.addr %s3595, 8
        %s3597 = scalar_lea.vmem %s13, %s3596
      $region84: #{stack_layer_forward.2} parent=79 // pred_fallthru
        _
    $region80: #{stack_layer_forward.2} parent=5 // pred_fallthru
      _
  $region6: #{stack_layer_forward.2} parent=0 // loop_footer
    %s23 = sadd.s32 1, %s19
  $region7: #{stack_layer_forward.2} parent=0 // loop_footer_branch
    %18 = sbr.rel target = $region3
  $region8: #{stack_layer_forward.2} parent=0 // loop_exit
    _

</llo_original>
